<compile_context>
chip_gen: v7x
topology: tpu7x:2x2x1
jax: 0.10.0
libtpu: 0.0.40
codegen_flags: <defaults>
</compile_context>

<pallas_src>
import functools
import numpy as np
import jax
import jax.numpy as jnp
from jax.experimental import pallas as pl
from jax.experimental.pallas import tpu as pltpu


# ----------------------------- host-side helpers ------------------------------

def _round_up(x, m):
    return ((x + m - 1) // m) * m


def _adaptive_bins(in_size, out_size):
    i = np.arange(out_size)
    starts = (i * in_size) // out_size
    ends = ((i + 1) * in_size + out_size - 1) // out_size
    return starts, ends


def _avg_pool_matrix(in_size, out_size):
    s, e = _adaptive_bins(in_size, out_size)
    m = np.zeros((out_size, in_size), np.float32)
    for i in range(out_size):
        m[i, s[i]:e[i]] = 1.0 / float(e[i] - s[i])
    return m


def _band_matrices(conv_w, w_in, k_pad):
    """conv_w (3,3,Cin,Cout) -> (3, k_pad, w_in*Cout) banded weights for a
    3x3/stride-1/pad-1 conv on the fused (rows=H, lanes=W*C) layout."""
    cin, cout = conv_w.shape[2], conv_w.shape[3]
    assert k_pad >= (w_in + 2) * cin
    band = np.zeros((3, k_pad, w_in * cout), np.float32)
    for ky in range(3):
        for kx in range(3):
            for w in range(w_in):
                band[ky, (w + kx) * cin:(w + kx + 1) * cin,
                     w * cout:(w + 1) * cout] = conv_w[ky, kx]
    return band


def _erow_batched(h_in, batch, pad):
    """Row selectors (2, rows_out, batch*(h_in+2)-2) for the 2x2 maxpool row max
    on the batched row stack; drops cross-sample garbage conv rows and (pad=True)
    re-inserts zero padding rows for the next conv."""
    ho = h_in // 2
    rc = batch * (h_in + 2) - 2
    blk = ho + 2 if pad else ho
    off = 1 if pad else 0
    e = np.zeros((2, batch * blk, rc), np.float32)
    for a in range(2):
        for b in range(batch):
            for r in range(ho):
                e[a, b * blk + off + r, b * (h_in + 2) + 2 * r + a] = 1.0
    return e


def _scol_matrices(w_in, c, pad, lane_pad=128):
    """Lane selectors (2, w_in*c, pad128(out_lanes)) for the 2x2 maxpool column
    max (optionally re-inserting zero padding columns for the next conv)."""
    wo = w_in // 2
    cols = ((wo + 2) if pad else wo) * c
    cols_p = _round_up(cols, lane_pad)
    off = c if pad else 0
    s = np.zeros((2, w_in * c, cols_p), np.float32)
    eye = np.eye(c, dtype=np.float32)
    for a in range(2):
        for w in range(wo):
            s[a, (2 * w + a) * c:(2 * w + a + 1) * c,
              off + w * c:off + (w + 1) * c] = eye
    return s


def _amax_selectors(hf, out_hw, c, batch, in_lanes, lane_pad=128):
    """AdaptiveMaxPool2d selectors (each bin has <=2 elements).
    Rows g: (2, out_hw*batch, batch*hf), (i, b) row ordering so fc1 row slices
    are contiguous (batch, out_hw*c) blocks.  Lanes s: (2, in_lanes, pad128)."""
    lo, hi = _adaptive_bins(hf, out_hw)
    hi = hi - 1
    assert int((hi - lo).max()) <= 1, "adaptive max bins wider than 2 unsupported"
    g = np.zeros((2, out_hw * batch, batch * hf), np.float32)
    s = np.zeros((2, in_lanes, _round_up(out_hw * c, lane_pad)), np.float32)
    eye = np.eye(c, dtype=np.float32)
    for i in range(out_hw):
        for b in range(batch):
            g[0, i * batch + b, b * hf + lo[i]] = 1.0
            g[1, i * batch + b, b * hf + hi[i]] = 1.0
        s[0, lo[i] * c:(lo[i] + 1) * c, i * c:(i + 1) * c] = eye
        s[1, hi[i] * c:(hi[i] + 1) * c, i * c:(i + 1) * c] = eye
    return g, s


class _ConstPack:
    """Packs many small 2-D constants into one (rows, cols) buffer so the whole
    set is a single DMA descriptor; segments are sliced statically in-kernel."""

    def __init__(self, cols, dtype, row_align):
        self.cols, self.dtype, self.align = cols, dtype, row_align
        self._parts, self._segs, self._rows = [], {}, 0

    def add(self, name, arr):
        arr = np.asarray(arr, np.float32)
        if arr.ndim == 3:                  # stacked constants -> name0, name1, ...
            for a in range(arr.shape[0]):
                self.add(f"{name}{a}", arr[a])
            return
        r, c = arr.shape
        assert c <= self.cols, (name, arr.shape, self.cols)
        self._segs[name] = (self._rows, r, c)
        pad_r = _round_up(r, self.align) - r
        self._parts.append(np.pad(arr, ((0, pad_r), (0, self.cols - c))))
        self._rows += r + pad_r

    def finalize(self):
        buf = np.concatenate(self._parts, axis=0)
        return jnp.asarray(buf, self.dtype), dict(self._segs)


# --------------------------------- the factory ---------------------------------

def make_vgg_forward(params, batch, in_channels, in_hw, *, samples_per_step=8):
    """Builds all device constants once and returns a jitted forward(x, is_feat)."""
    convs = [(np.asarray(w, np.float32), np.asarray(b, np.float32))
             for (w, b) in params["convs"]]
    n_stage = len(convs)
    assert in_hw % (2 ** n_stage) == 0
    hf = in_hw >> n_stage                               # final spatial size
    cf = convs[-1][0].shape[-1]                         # final channels
    hidden = int(params["fc1_w"].shape[1])
    num_classes = int(params["fc3_w"].shape[1])
    ncls_p = _round_up(num_classes, 128)                # lane-dense logits
    assert int(params["fc1_w"].shape[0]) == cf * 7 * 7

    # samples per grid step, batched into the matmul M (sublane) dimension
    B = batch if batch <= samples_per_step else samples_per_step
    n_pad = _round_up(batch, B)
    steps = n_pad // B
    lane_in = _round_up((in_hw + 2) * in_channels, 128)

    # ------- packed bf16 matmul constants (bands, pool selectors, FC weights) -
    max_cols = max(256, hidden, ncls_p, _round_up(7 * cf, 128), lane_in)
    pk = _ConstPack(cols=max_cols, dtype=jnp.bfloat16, row_align=32)
    vec_rows = []
    h, k_pad = in_hw, lane_in
    for si, (cw, cb) in enumerate(convs):
        cout = cw.shape[-1]
        last = si == n_stage - 1
        pk.add(f"band{si}_", _band_matrices(cw, h, k_pad))
        pk.add(f"erow{si}_", _erow_batched(h, B, pad=not last))
        scol = _scol_matrices(h, cout, pad=not last)
        pk.add(f"scol{si}_", scol)
        vec_rows.append((f"bias{si}", np.tile(cb, h)))
        k_pad = scol.shape[-1]
        h //= 2
    assert h == hf
    lane_feat = k_pad                                   # padded feature lane width

    g_sel, s_sel = _amax_selectors(hf, 7, cf, B, lane_feat)
    pk.add("gsel", g_sel)
    pk.add("ssel", s_sel)
    # fc1 rows reordered from torch flatten order (c*49 + i*7 + j) to (i, j*C+c)
    w1 = np.asarray(params["fc1_w"], np.float32)
    w1_re = (w1.reshape(cf, 7, 7, hidden).transpose(1, 2, 0, 3)
             .reshape(7, 7 * cf, hidden))
    w1_pad = np.zeros((7, s_sel.shape[-1], hidden), np.float32)
    w1_pad[:, :7 * cf, :] = w1_re
    pk.add("w1_", w1_pad)
    pk.add("w2", np.asarray(params["fc2_w"], np.float32))
    w3p = np.zeros((hidden, ncls_p), np.float32)
    w3p[:, :num_classes] = np.asarray(params["fc3_w"], np.float32)
    pk.add("w3", w3p)
    bf16_buf, bseg = pk.finalize()

    # ------- f32 matrices (adaptive average pool path, kept f32 for parity) ---
    a_w = _avg_pool_matrix(hf, 768)                     # width pool hf -> 768
    m = np.zeros((lane_feat, 768), np.float32)          # fused with mean over C
    for w in range(hf):
        m[w * cf:(w + 1) * cf, :] = a_w[:, w] / float(cf)
    a50 = _avg_pool_matrix(hf, 50)                      # height pool hf -> 50
    a50b = np.zeros((B * 50, B * hf), np.float32)       # block-diagonal (batched)
    for b in range(B):
        a50b[b * 50:(b + 1) * 50, b * hf:(b + 1) * hf] = a50
    pkf = _ConstPack(cols=768, dtype=jnp.float32, row_align=8)
    pkf.add("m", m)
    pkf.add("a50", a50b)
    f32_buf, fseg = pkf.finalize()

    # ------- f32 row vectors (tiled conv biases, LayerNorm affine, FC biases) -
    fb3p = np.zeros((ncls_p,), np.float32)
    fb3p[:num_classes] = np.asarray(params["fc3_b"], np.float32)
    vec_rows += [("ln_g", np.asarray(params["ln_g"], np.float32)),
                 ("ln_b", np.asarray(params["ln_b"], np.float32)),
                 ("fc1_b", np.asarray(params["fc1_b"], np.float32)),
                 ("fc2_b", np.asarray(params["fc2_b"], np.float32)),
                 ("fc3_b", fb3p)]
    vw = _round_up(max(v.shape[0] for _, v in vec_rows), 128)
    vec_np = np.zeros((_round_up(len(vec_rows), 8), vw), np.float32)
    vseg = {}
    for r, (nm, v) in enumerate(vec_rows):
        vec_np[r, :v.shape[0]] = v
        vseg[nm] = (r, v.shape[0])
    vec_buf = jnp.asarray(vec_np)

    f32, bf16 = jnp.float32, jnp.bfloat16

    # ------------------------------- the kernel -------------------------------
    def kernel(xp_ref, cbf_ref, cf32_ref, vec_ref, l1_ref, logits_ref):
        def tk(name):                                   # packed bf16 constant
            off, r, c = bseg[name]
            return cbf_ref[off:off + r, 0:c]

        def tkf(name):                                  # packed f32 constant
            off, r, c = fseg[name]
            return cf32_ref[off:off + r, 0:c]

        def vec(name):                                  # (1, width) f32 row
            r, w = vseg[name]
            return vec_ref[r:r + 1, 0:w]

        def bdot(a, b):                                 # bf16 MXU, f32 accumulate
            return jnp.dot(a.astype(bf16), b.astype(bf16),
                           preferred_element_type=f32)

        # ---- features: 3x [conv3x3 + ReLU + maxpool2x2] on the batched stack
        x = xp_ref[...]                                 # (B*(H+2), lane_in) f32
        for si in range(n_stage):
            rc = x.shape[0] - 2
            acc = vec(f"bias{si}")                      # (1, W*Cout) broadcast
            for ky in range(3):                         # banded matmuls = conv
                acc = acc + bdot(x[ky:ky + rc, :], tk(f"band{si}_{ky}"))
            y = jnp.maximum(acc, 0.0)                   # ReLU
            hm = jnp.maximum(bdot(tk(f"erow{si}_0"), y),
                             bdot(tk(f"erow{si}_1"), y))        # 2x2 max (rows)
            x = jnp.maximum(bdot(hm, tk(f"scol{si}_0")),
                            bdot(hm, tk(f"scol{si}_1")))        # 2x2 max (cols)
        feat = x                                        # (B*hf, lane_feat) f32

        # ---- latents: AdaptiveAvgPool2d((50,768)) -> mean over C -> LayerNorm
        t = jnp.dot(feat, tkf("m"), preferred_element_type=f32)    # (B*hf, 768)
        l1 = jnp.dot(tkf("a50"), t, preferred_element_type=f32)    # (B*50, 768)
        mu = jnp.mean(l1, axis=-1, keepdims=True)
        xc = l1 - mu
        var = jnp.mean(xc * xc, axis=-1, keepdims=True)
        l1_ref[...] = xc * jax.lax.rsqrt(var + 1e-6) * vec("ln_g") + vec("ln_b")

        # ---- head: AdaptiveMaxPool2d((7,7)) -> Flatten -> classifier
        q = jnp.maximum(bdot(tk("gsel0"), feat), bdot(tk("gsel1"), feat))
        r = jnp.maximum(bdot(q, tk("ssel0")), bdot(q, tk("ssel1")))   # (7B, 7C)
        hid = vec("fc1_b")
        for i in range(7):                              # contiguous (B, 7C) rows
            hid = hid + bdot(r[i * B:(i + 1) * B, :], tk(f"w1_{i}"))
        hid = jnp.maximum(hid, 0.0)
        # TODO(synk): nn.Dropout is identity in eval mode; training-mode dropout
        # is not implemented.
        hid = jnp.maximum(bdot(hid, tk("w2")) + vec("fc2_b"), 0.0)
        logits_ref[...] = bdot(hid, tk("w3")) + vec("fc3_b")

    rows_x = B * (in_hw + 2)
    fused = pl.pallas_call(
        kernel,
        grid=(steps,),
        in_specs=[
            pl.BlockSpec((rows_x, lane_in), lambda s: (s, 0)),
            pl.BlockSpec(bf16_buf.shape, lambda s: (0, 0)),
            pl.BlockSpec(f32_buf.shape, lambda s: (0, 0)),
            pl.BlockSpec(vec_buf.shape, lambda s: (0, 0)),
        ],
        out_specs=(
            pl.BlockSpec((B * 50, 768), lambda s: (s, 0)),
            pl.BlockSpec((B, ncls_p), lambda s: (s, 0)),
        ),
        out_shape=(jax.ShapeDtypeStruct((n_pad * 50, 768), jnp.float32),
                   jax.ShapeDtypeStruct((n_pad, ncls_p), jnp.float32)),
        # TODO(synk): if a Mosaic dump shows the batch-chunk grid executing on a
        # single v7x TensorCore, switch this axis to pltpu.CORE_PARALLEL.
        compiler_params=pltpu.CompilerParams(
            dimension_semantics=("parallel",)),
    )

    @functools.partial(jax.jit, static_argnames=("is_feat",))
    def forward(x, is_feat=False):
        n = x.shape[0]
        assert n <= n_pad and tuple(x.shape[1:]) == (in_channels, in_hw, in_hw)
        # NCHW -> zero-padded fused-lane layout, samples stacked along rows.
        xh = jnp.pad(jnp.transpose(x, (0, 2, 3, 1)).astype(jnp.float32),
                     ((0, n_pad - n), (1, 1), (1, 1), (0, 0)))
        xh = xh.reshape(n_pad, in_hw + 2, (in_hw + 2) * in_channels)
        xh = jnp.pad(xh, ((0, 0), (0, 0),
                          (0, lane_in - (in_hw + 2) * in_channels)))
        xp = xh.reshape(n_pad * (in_hw + 2), lane_in)

        l1, logits = fused(xp, bf16_buf, f32_buf, vec_buf)
        l1 = l1[:n * 50].reshape(n, 50, 768)
        logits = logits[:n, :num_classes]
        return (l1, logits) if is_feat else logits

    return forward


# --------------------------------- parameters ----------------------------------

def init_params(key, num_classes=10, hidden=128):
    ks = jax.random.split(key, 6)

    def conv_p(k, cin, cout):
        k1, k2 = jax.random.split(k)
        w = jax.random.normal(k1, (3, 3, cin, cout), jnp.float32) / np.sqrt(9 * cin)
        b = 0.01 * jax.random.normal(k2, (cout,), jnp.float32)
        return (w, b)

    def lin_p(k, fin, fout):
        k1, k2 = jax.random.split(k)
        w = jax.random.normal(k1, (fin, fout), jnp.float32) / np.sqrt(fin)
        b = 0.01 * jax.random.normal(k2, (fout,), jnp.float32)
        return w, b

    convs = [conv_p(ks[0], 3, 8), conv_p(ks[1], 8, 16), conv_p(ks[2], 16, 32)]
    fc1_w, fc1_b = lin_p(ks[3], 32 * 7 * 7, hidden)
    fc2_w, fc2_b = lin_p(ks[4], hidden, hidden)
    fc3_w, fc3_b = lin_p(ks[5], hidden, num_classes)
    return dict(
        convs=convs,
        ln_g=jnp.ones((768,), jnp.float32), ln_b=jnp.zeros((768,), jnp.float32),
        fc1_w=fc1_w, fc1_b=fc1_b, fc2_w=fc2_w, fc2_b=fc2_b,
        fc3_w=fc3_w, fc3_b=fc3_b,
    )


if __name__ == "__main__":
    key = jax.random.PRNGKey(0)
    kp, kx = jax.random.split(key)
    params = init_params(kp, num_classes=10)
    x = jax.random.normal(kx, (2, 3, 32, 32), jnp.float32)   # NCHW, like PyTorch

    fwd = make_vgg_forward(params, batch=2, in_channels=3, in_hw=32)
    l1, logits = fwd(x, is_feat=True)
    jax.block_until_ready((l1, logits))

    assert l1.shape == (2, 50, 768), l1.shape
    assert logits.shape == (2, 10), logits.shape
    assert bool(jnp.all(jnp.isfinite(l1))) and bool(jnp.all(jnp.isfinite(logits)))
    print("KERNEL_OK")
</pallas_src>

<mosaic_0001>
module attributes {stable_mosaic.version = 11 : i64} {
  func.func @kernel(%arg0: i32, %arg1: memref<68x128xf32, #tpu.memory_space<vmem>>, %arg2: memref<6080x256xbf16, #tpu.memory_space<vmem>>, %arg3: memref<232x768xf32, #tpu.memory_space<vmem>>, %arg4: memref<8x768xf32, #tpu.memory_space<vmem>>, %arg5: memref<100x768xf32, #tpu.memory_space<vmem>>, %arg6: memref<2x128xf32, #tpu.memory_space<vmem>>) attributes {dimension_semantics = [#tpu.dimension_semantics<parallel>], iteration_bounds = array<i64: 1>, scalar_prefetch = 0 : i64, scratch_operands = 0 : i64, tpu.core_type = #tpu.core_type<tc>, window_params = [{transform_indices = @transform_0, window_bounds = array<i64: 68, 128>}, {pipeline_mode = #tpu.pipeline_mode<synchronous>, transform_indices = @transform_1, window_bounds = array<i64: 6080, 256>}, {pipeline_mode = #tpu.pipeline_mode<synchronous>, transform_indices = @transform_2, window_bounds = array<i64: 232, 768>}, {pipeline_mode = #tpu.pipeline_mode<synchronous>, transform_indices = @transform_3, window_bounds = array<i64: 8, 768>}, {transform_indices = @transform_4, window_bounds = array<i64: 100, 768>}, {transform_indices = @transform_5, window_bounds = array<i64: 2, 128>}]} {
    %c0 = arith.constant 0 : index
    %c0_0 = arith.constant 0 : index
    %0 = vector.load %arg1[%c0, %c0_0] : memref<68x128xf32, #tpu.memory_space<vmem>>, vector<68x128xf32>
    %c0_1 = arith.constant 0 : index
    %c0_2 = arith.constant 0 : index
    %1 = vector.load %arg4[%c0_1, %c0_2] : memref<8x768xf32, #tpu.memory_space<vmem>>, vector<1x256xf32>
    %2 = vector.extract_strided_slice %0 {offsets = [0, 0], sizes = [66, 128], strides = [1, 1]} : vector<68x128xf32> to vector<66x128xf32>
    %c0_3 = arith.constant 0 : index
    %c0_4 = arith.constant 0 : index
    %3 = vector.load %arg2[%c0_3, %c0_4] : memref<6080x256xbf16, #tpu.memory_space<vmem>>, vector<128x256xbf16>
    %4 = arith.truncf %2 : vector<66x128xf32> to vector<66x128xbf16>
    %cst = arith.constant dense<0.000000e+00> : vector<66x256xf32>
    %5 = tpu.matmul %4, %3, %cst {dimension_numbers = #tpu.dot_dimension_numbers<[1], [0], [0], [1], [0, 0, 1, 1], [], []>} : vector<66x128xbf16>, vector<128x256xbf16>, vector<66x256xf32> -> vector<66x256xf32>
    %6 = vector.broadcast %1 : vector<1x256xf32> to vector<66x256xf32>
    %7 = arith.addf %6, %5 : vector<66x256xf32>
    %8 = vector.extract_strided_slice %0 {offsets = [1, 0], sizes = [66, 128], strides = [1, 1]} : vector<68x128xf32> to vector<66x128xf32>
    %c128 = arith.constant 128 : index
    %c0_5 = arith.constant 0 : index
    %9 = vector.load %arg2[%c128, %c0_5] : memref<6080x256xbf16, #tpu.memory_space<vmem>>, vector<128x256xbf16>
    %10 = arith.truncf %8 : vector<66x128xf32> to vector<66x128xbf16>
    %cst_6 = arith.constant dense<0.000000e+00> : vector<66x256xf32>
    %11 = tpu.matmul %10, %9, %cst_6 {dimension_numbers = #tpu.dot_dimension_numbers<[1], [0], [0], [1], [0, 0, 1, 1], [], []>} : vector<66x128xbf16>, vector<128x256xbf16>, vector<66x256xf32> -> vector<66x256xf32>
    %12 = arith.addf %7, %11 : vector<66x256xf32>
    %13 = vector.extract_strided_slice %0 {offsets = [2, 0], sizes = [66, 128], strides = [1, 1]} : vector<68x128xf32> to vector<66x128xf32>
    %c256 = arith.constant 256 : index
    %c0_7 = arith.constant 0 : index
    %14 = vector.load %arg2[%c256, %c0_7] : memref<6080x256xbf16, #tpu.memory_space<vmem>>, vector<128x256xbf16>
    %15 = arith.truncf %13 : vector<66x128xf32> to vector<66x128xbf16>
    %cst_8 = arith.constant dense<0.000000e+00> : vector<66x256xf32>
    %16 = tpu.matmul %15, %14, %cst_8 {dimension_numbers = #tpu.dot_dimension_numbers<[1], [0], [0], [1], [0, 0, 1, 1], [], []>} : vector<66x128xbf16>, vector<128x256xbf16>, vector<66x256xf32> -> vector<66x256xf32>
    %17 = arith.addf %12, %16 : vector<66x256xf32>
    %cst_9 = arith.constant 0.000000e+00 : f32
    %18 = vector.broadcast %cst_9 : f32 to vector<66x256xf32>
    %19 = arith.maximumf %17, %18 : vector<66x256xf32>
    %c384 = arith.constant 384 : index
    %c0_10 = arith.constant 0 : index
    %20 = vector.load %arg2[%c384, %c0_10] : memref<6080x256xbf16, #tpu.memory_space<vmem>>, vector<36x66xbf16>
    %21 = arith.truncf %19 : vector<66x256xf32> to vector<66x256xbf16>
    %cst_11 = arith.constant dense<0.000000e+00> : vector<36x256xf32>
    %22 = tpu.matmul %20, %21, %cst_11 {dimension_numbers = #tpu.dot_dimension_numbers<[1], [0], [0], [1], [0, 0, 1, 1], [], []>} : vector<36x66xbf16>, vector<66x256xbf16>, vector<36x256xf32> -> vector<36x256xf32>
    %c448 = arith.constant 448 : index
    %c0_12 = arith.constant 0 : index
    %23 = vector.load %arg2[%c448, %c0_12] : memref<6080x256xbf16, #tpu.memory_space<vmem>>, vector<36x66xbf16>
    %24 = arith.truncf %19 : vector<66x256xf32> to vector<66x256xbf16>
    %cst_13 = arith.constant dense<0.000000e+00> : vector<36x256xf32>
    %25 = tpu.matmul %23, %24, %cst_13 {dimension_numbers = #tpu.dot_dimension_numbers<[1], [0], [0], [1], [0, 0, 1, 1], [], []>} : vector<36x66xbf16>, vector<66x256xbf16>, vector<36x256xf32> -> vector<36x256xf32>
    %26 = arith.maximumf %22, %25 : vector<36x256xf32>
    %c512 = arith.constant 512 : index
    %c0_14 = arith.constant 0 : index
    %27 = vector.load %arg2[%c512, %c0_14] : memref<6080x256xbf16, #tpu.memory_space<vmem>>, vector<256x256xbf16>
    %28 = arith.truncf %26 : vector<36x256xf32> to vector<36x256xbf16>
    %cst_15 = arith.constant dense<0.000000e+00> : vector<36x256xf32>
    %29 = tpu.matmul %28, %27, %cst_15 {dimension_numbers = #tpu.dot_dimension_numbers<[1], [0], [0], [1], [0, 0, 1, 1], [], []>} : vector<36x256xbf16>, vector<256x256xbf16>, vector<36x256xf32> -> vector<36x256xf32>
    %c768 = arith.constant 768 : index
    %c0_16 = arith.constant 0 : index
    %30 = vector.load %arg2[%c768, %c0_16] : memref<6080x256xbf16, #tpu.memory_space<vmem>>, vector<256x256xbf16>
    %31 = arith.truncf %26 : vector<36x256xf32> to vector<36x256xbf16>
    %cst_17 = arith.constant dense<0.000000e+00> : vector<36x256xf32>
    %32 = tpu.matmul %31, %30, %cst_17 {dimension_numbers = #tpu.dot_dimension_numbers<[1], [0], [0], [1], [0, 0, 1, 1], [], []>} : vector<36x256xbf16>, vector<256x256xbf16>, vector<36x256xf32> -> vector<36x256xf32>
    %33 = arith.maximumf %29, %32 : vector<36x256xf32>
    %c1 = arith.constant 1 : index
    %c0_18 = arith.constant 0 : index
    %34 = vector.load %arg4[%c1, %c0_18] : memref<8x768xf32, #tpu.memory_space<vmem>>, vector<1x256xf32>
    %35 = vector.extract_strided_slice %33 {offsets = [0, 0], sizes = [34, 256], strides = [1, 1]} : vector<36x256xf32> to vector<34x256xf32>
    %c1024 = arith.constant 1024 : index
    %c0_19 = arith.constant 0 : index
    %36 = vector.load %arg2[%c1024, %c0_19] : memref<6080x256xbf16, #tpu.memory_space<vmem>>, vector<256x256xbf16>
    %37 = arith.truncf %35 : vector<34x256xf32> to vector<34x256xbf16>
    %cst_20 = arith.constant dense<0.000000e+00> : vector<34x256xf32>
    %38 = tpu.matmul %37, %36, %cst_20 {dimension_numbers = #tpu.dot_dimension_numbers<[1], [0], [0], [1], [0, 0, 1, 1], [], []>} : vector<34x256xbf16>, vector<256x256xbf16>, vector<34x256xf32> -> vector<34x256xf32>
    %39 = vector.broadcast %34 : vector<1x256xf32> to vector<34x256xf32>
    %40 = arith.addf %39, %38 : vector<34x256xf32>
    %41 = vector.extract_strided_slice %33 {offsets = [1, 0], sizes = [34, 256], strides = [1, 1]} : vector<36x256xf32> to vector<34x256xf32>
    %c1280 = arith.constant 1280 : index
    %c0_21 = arith.constant 0 : index
    %42 = vector.load %arg2[%c1280, %c0_21] : memref<6080x256xbf16, #tpu.memory_space<vmem>>, vector<256x256xbf16>
    %43 = arith.truncf %41 : vector<34x256xf32> to vector<34x256xbf16>
    %cst_22 = arith.constant dense<0.000000e+00> : vector<34x256xf32>
    %44 = tpu.matmul %43, %42, %cst_22 {dimension_numbers = #tpu.dot_dimension_numbers<[1], [0], [0], [1], [0, 0, 1, 1], [], []>} : vector<34x256xbf16>, vector<256x256xbf16>, vector<34x256xf32> -> vector<34x256xf32>
    %45 = arith.addf %40, %44 : vector<34x256xf32>
    %46 = vector.extract_strided_slice %33 {offsets = [2, 0], sizes = [34, 256], strides = [1, 1]} : vector<36x256xf32> to vector<34x256xf32>
    %c1536 = arith.constant 1536 : index
    %c0_23 = arith.constant 0 : index
    %47 = vector.load %arg2[%c1536, %c0_23] : memref<6080x256xbf16, #tpu.memory_space<vmem>>, vector<256x256xbf16>
    %48 = arith.truncf %46 : vector<34x256xf32> to vector<34x256xbf16>
    %cst_24 = arith.constant dense<0.000000e+00> : vector<34x256xf32>
    %49 = tpu.matmul %48, %47, %cst_24 {dimension_numbers = #tpu.dot_dimension_numbers<[1], [0], [0], [1], [0, 0, 1, 1], [], []>} : vector<34x256xbf16>, vector<256x256xbf16>, vector<34x256xf32> -> vector<34x256xf32>
    %50 = arith.addf %45, %49 : vector<34x256xf32>
    %cst_25 = arith.constant 0.000000e+00 : f32
    %51 = vector.broadcast %cst_25 : f32 to vector<34x256xf32>
    %52 = arith.maximumf %50, %51 : vector<34x256xf32>
    %c1792 = arith.constant 1792 : index
    %c0_26 = arith.constant 0 : index
    %53 = vector.load %arg2[%c1792, %c0_26] : memref<6080x256xbf16, #tpu.memory_space<vmem>>, vector<20x34xbf16>
    %54 = arith.truncf %52 : vector<34x256xf32> to vector<34x256xbf16>
    %cst_27 = arith.constant dense<0.000000e+00> : vector<20x256xf32>
    %55 = tpu.matmul %53, %54, %cst_27 {dimension_numbers = #tpu.dot_dimension_numbers<[1], [0], [0], [1], [0, 0, 1, 1], [], []>} : vector<20x34xbf16>, vector<34x256xbf16>, vector<20x256xf32> -> vector<20x256xf32>
    %c1824 = arith.constant 1824 : index
    %c0_28 = arith.constant 0 : index
    %56 = vector.load %arg2[%c1824, %c0_28] : memref<6080x256xbf16, #tpu.memory_space<vmem>>, vector<20x34xbf16>
    %57 = arith.truncf %52 : vector<34x256xf32> to vector<34x256xbf16>
    %cst_29 = arith.constant dense<0.000000e+00> : vector<20x256xf32>
    %58 = tpu.matmul %56, %57, %cst_29 {dimension_numbers = #tpu.dot_dimension_numbers<[1], [0], [0], [1], [0, 0, 1, 1], [], []>} : vector<20x34xbf16>, vector<34x256xbf16>, vector<20x256xf32> -> vector<20x256xf32>
    %59 = arith.maximumf %55, %58 : vector<20x256xf32>
    %c1856 = arith.constant 1856 : index
    %c0_30 = arith.constant 0 : index
    %60 = vector.load %arg2[%c1856, %c0_30] : memref<6080x256xbf16, #tpu.memory_space<vmem>>, vector<256x256xbf16>
    %61 = arith.truncf %59 : vector<20x256xf32> to vector<20x256xbf16>
    %cst_31 = arith.constant dense<0.000000e+00> : vector<20x256xf32>
    %62 = tpu.matmul %61, %60, %cst_31 {dimension_numbers = #tpu.dot_dimension_numbers<[1], [0], [0], [1], [0, 0, 1, 1], [], []>} : vector<20x256xbf16>, vector<256x256xbf16>, vector<20x256xf32> -> vector<20x256xf32>
    %c2112 = arith.constant 2112 : index
    %c0_32 = arith.constant 0 : index
    %63 = vector.load %arg2[%c2112, %c0_32] : memref<6080x256xbf16, #tpu.memory_space<vmem>>, vector<256x256xbf16>
    %64 = arith.truncf %59 : vector<20x256xf32> to vector<20x256xbf16>
    %cst_33 = arith.constant dense<0.000000e+00> : vector<20x256xf32>
    %65 = tpu.matmul %64, %63, %cst_33 {dimension_numbers = #tpu.dot_dimension_numbers<[1], [0], [0], [1], [0, 0, 1, 1], [], []>} : vector<20x256xbf16>, vector<256x256xbf16>, vector<20x256xf32> -> vector<20x256xf32>
    %66 = arith.maximumf %62, %65 : vector<20x256xf32>
    %c2 = arith.constant 2 : index
    %c0_34 = arith.constant 0 : index
    %67 = vector.load %arg4[%c2, %c0_34] : memref<8x768xf32, #tpu.memory_space<vmem>>, vector<1x256xf32>
    %68 = vector.extract_strided_slice %66 {offsets = [0, 0], sizes = [18, 256], strides = [1, 1]} : vector<20x256xf32> to vector<18x256xf32>
    %c2368 = arith.constant 2368 : index
    %c0_35 = arith.constant 0 : index
    %69 = vector.load %arg2[%c2368, %c0_35] : memref<6080x256xbf16, #tpu.memory_space<vmem>>, vector<256x256xbf16>
    %70 = arith.truncf %68 : vector<18x256xf32> to vector<18x256xbf16>
    %cst_36 = arith.constant dense<0.000000e+00> : vector<18x256xf32>
    %71 = tpu.matmul %70, %69, %cst_36 {dimension_numbers = #tpu.dot_dimension_numbers<[1], [0], [0], [1], [0, 0, 1, 1], [], []>} : vector<18x256xbf16>, vector<256x256xbf16>, vector<18x256xf32> -> vector<18x256xf32>
    %72 = vector.broadcast %67 : vector<1x256xf32> to vector<18x256xf32>
    %73 = arith.addf %72, %71 : vector<18x256xf32>
    %74 = vector.extract_strided_slice %66 {offsets = [1, 0], sizes = [18, 256], strides = [1, 1]} : vector<20x256xf32> to vector<18x256xf32>
    %c2624 = arith.constant 2624 : index
    %c0_37 = arith.constant 0 : index
    %75 = vector.load %arg2[%c2624, %c0_37] : memref<6080x256xbf16, #tpu.memory_space<vmem>>, vector<256x256xbf16>
    %76 = arith.truncf %74 : vector<18x256xf32> to vector<18x256xbf16>
    %cst_38 = arith.constant dense<0.000000e+00> : vector<18x256xf32>
    %77 = tpu.matmul %76, %75, %cst_38 {dimension_numbers = #tpu.dot_dimension_numbers<[1], [0], [0], [1], [0, 0, 1, 1], [], []>} : vector<18x256xbf16>, vector<256x256xbf16>, vector<18x256xf32> -> vector<18x256xf32>
    %78 = arith.addf %73, %77 : vector<18x256xf32>
    %79 = vector.extract_strided_slice %66 {offsets = [2, 0], sizes = [18, 256], strides = [1, 1]} : vector<20x256xf32> to vector<18x256xf32>
    %c2880 = arith.constant 2880 : index
    %c0_39 = arith.constant 0 : index
    %80 = vector.load %arg2[%c2880, %c0_39] : memref<6080x256xbf16, #tpu.memory_space<vmem>>, vector<256x256xbf16>
    %81 = arith.truncf %79 : vector<18x256xf32> to vector<18x256xbf16>
    %cst_40 = arith.constant dense<0.000000e+00> : vector<18x256xf32>
    %82 = tpu.matmul %81, %80, %cst_40 {dimension_numbers = #tpu.dot_dimension_numbers<[1], [0], [0], [1], [0, 0, 1, 1], [], []>} : vector<18x256xbf16>, vector<256x256xbf16>, vector<18x256xf32> -> vector<18x256xf32>
    %83 = arith.addf %78, %82 : vector<18x256xf32>
    %cst_41 = arith.constant 0.000000e+00 : f32
    %84 = vector.broadcast %cst_41 : f32 to vector<18x256xf32>
    %85 = arith.maximumf %83, %84 : vector<18x256xf32>
    %c3136 = arith.constant 3136 : index
    %c0_42 = arith.constant 0 : index
    %86 = vector.load %arg2[%c3136, %c0_42] : memref<6080x256xbf16, #tpu.memory_space<vmem>>, vector<8x18xbf16>
    %87 = arith.truncf %85 : vector<18x256xf32> to vector<18x256xbf16>
    %cst_43 = arith.constant dense<0.000000e+00> : vector<8x256xf32>
    %88 = tpu.matmul %86, %87, %cst_43 {dimension_numbers = #tpu.dot_dimension_numbers<[1], [0], [0], [1], [0, 0, 1, 1], [], []>} : vector<8x18xbf16>, vector<18x256xbf16>, vector<8x256xf32> -> vector<8x256xf32>
    %c3168 = arith.constant 3168 : index
    %c0_44 = arith.constant 0 : index
    %89 = vector.load %arg2[%c3168, %c0_44] : memref<6080x256xbf16, #tpu.memory_space<vmem>>, vector<8x18xbf16>
    %90 = arith.truncf %85 : vector<18x256xf32> to vector<18x256xbf16>
    %cst_45 = arith.constant dense<0.000000e+00> : vector<8x256xf32>
    %91 = tpu.matmul %89, %90, %cst_45 {dimension_numbers = #tpu.dot_dimension_numbers<[1], [0], [0], [1], [0, 0, 1, 1], [], []>} : vector<8x18xbf16>, vector<18x256xbf16>, vector<8x256xf32> -> vector<8x256xf32>
    %92 = arith.maximumf %88, %91 : vector<8x256xf32>
    %c3200 = arith.constant 3200 : index
    %c0_46 = arith.constant 0 : index
    %93 = vector.load %arg2[%c3200, %c0_46] : memref<6080x256xbf16, #tpu.memory_space<vmem>>, vector<256x128xbf16>
    %94 = arith.truncf %92 : vector<8x256xf32> to vector<8x256xbf16>
    %cst_47 = arith.constant dense<0.000000e+00> : vector<8x128xf32>
    %95 = tpu.matmul %94, %93, %cst_47 {dimension_numbers = #tpu.dot_dimension_numbers<[1], [0], [0], [1], [0, 0, 1, 1], [], []>} : vector<8x256xbf16>, vector<256x128xbf16>, vector<8x128xf32> -> vector<8x128xf32>
    %c3456 = arith.constant 3456 : index
    %c0_48 = arith.constant 0 : index
    %96 = vector.load %arg2[%c3456, %c0_48] : memref<6080x256xbf16, #tpu.memory_space<vmem>>, vector<256x128xbf16>
    %97 = arith.truncf %92 : vector<8x256xf32> to vector<8x256xbf16>
    %cst_49 = arith.constant dense<0.000000e+00> : vector<8x128xf32>
    %98 = tpu.matmul %97, %96, %cst_49 {dimension_numbers = #tpu.dot_dimension_numbers<[1], [0], [0], [1], [0, 0, 1, 1], [], []>} : vector<8x256xbf16>, vector<256x128xbf16>, vector<8x128xf32> -> vector<8x128xf32>
    %99 = arith.maximumf %95, %98 : vector<8x128xf32>
    %c0_50 = arith.constant 0 : index
    %c0_51 = arith.constant 0 : index
    %100 = vector.load %arg3[%c0_50, %c0_51] : memref<232x768xf32, #tpu.memory_space<vmem>>, vector<128x768xf32>
    %cst_52 = arith.constant dense<0.000000e+00> : vector<8x768xf32>
    %101 = tpu.matmul %99, %100, %cst_52 {dimension_numbers = #tpu.dot_dimension_numbers<[1], [0], [0], [1], [0, 0, 1, 1], [], []>} : vector<8x128xf32>, vector<128x768xf32>, vector<8x768xf32> -> vector<8x768xf32>
    %c128_53 = arith.constant 128 : index
    %c0_54 = arith.constant 0 : index
    %102 = vector.load %arg3[%c128_53, %c0_54] : memref<232x768xf32, #tpu.memory_space<vmem>>, vector<100x8xf32>
    %cst_55 = arith.constant dense<0.000000e+00> : vector<100x768xf32>
    %103 = tpu.matmul %102, %101, %cst_55 {dimension_numbers = #tpu.dot_dimension_numbers<[1], [0], [0], [1], [0, 0, 1, 1], [], []>} : vector<100x8xf32>, vector<8x768xf32>, vector<100x768xf32> -> vector<100x768xf32>
    %cst_56 = arith.constant dense<0.000000e+00> : vector<100xf32>
    %104 = vector.multi_reduction <add>, %103, %cst_56 [1] : vector<100x768xf32> to vector<100xf32>
    %105 = vector.shape_cast %104 : vector<100xf32> to vector<100x1xf32>
    %cst_57 = arith.constant 7.680000e+02 : f32
    %106 = vector.broadcast %cst_57 : f32 to vector<100x1xf32>
    %107 = arith.divf %105, %106 : vector<100x1xf32>
    %108 = vector.broadcast %107 : vector<100x1xf32> to vector<100x768xf32>
    %109 = arith.subf %103, %108 : vector<100x768xf32>
    %110 = arith.mulf %109, %109 : vector<100x768xf32>
    %cst_58 = arith.constant dense<0.000000e+00> : vector<100xf32>
    %111 = vector.multi_reduction <add>, %110, %cst_58 [1] : vector<100x768xf32> to vector<100xf32>
    %112 = vector.shape_cast %111 : vector<100xf32> to vector<100x1xf32>
    %cst_59 = arith.constant 7.680000e+02 : f32
    %113 = vector.broadcast %cst_59 : f32 to vector<100x1xf32>
    %114 = arith.divf %112, %113 : vector<100x1xf32>
    %cst_60 = arith.constant 9.99999997E-7 : f32
    %115 = vector.broadcast %cst_60 : f32 to vector<100x1xf32>
    %116 = arith.addf %114, %115 : vector<100x1xf32>
    %117 = math.rsqrt %116 : vector<100x1xf32>
    %118 = vector.broadcast %117 : vector<100x1xf32> to vector<100x768xf32>
    %119 = arith.mulf %109, %118 : vector<100x768xf32>
    %c3 = arith.constant 3 : index
    %c0_61 = arith.constant 0 : index
    %120 = vector.load %arg4[%c3, %c0_61] : memref<8x768xf32, #tpu.memory_space<vmem>>, vector<1x768xf32>
    %121 = vector.broadcast %120 : vector<1x768xf32> to vector<100x768xf32>
    %122 = arith.mulf %119, %121 : vector<100x768xf32>
    %c4 = arith.constant 4 : index
    %c0_62 = arith.constant 0 : index
    %123 = vector.load %arg4[%c4, %c0_62] : memref<8x768xf32, #tpu.memory_space<vmem>>, vector<1x768xf32>
    %124 = vector.broadcast %123 : vector<1x768xf32> to vector<100x768xf32>
    %125 = arith.addf %122, %124 : vector<100x768xf32>
    %c0_63 = arith.constant 0 : index
    %c0_64 = arith.constant 0 : index
    %126 = vector.load %arg5[%c0_63, %c0_64] : memref<100x768xf32, #tpu.memory_space<vmem>>, vector<100x768xf32>
    tpu.vector_store %arg5[%c0_63, %c0_64], %125 {strides = array<i32>} : memref<100x768xf32, #tpu.memory_space<vmem>>, vector<100x768xf32>,
    %c3712 = arith.constant 3712 : index
    %c0_65 = arith.constant 0 : index
    %127 = vector.load %arg2[%c3712, %c0_65] : memref<6080x256xbf16, #tpu.memory_space<vmem>>, vector<14x8xbf16>
    %128 = arith.truncf %99 : vector<8x128xf32> to vector<8x128xbf16>
    %cst_66 = arith.constant dense<0.000000e+00> : vector<14x128xf32>
    %129 = tpu.matmul %127, %128, %cst_66 {dimension_numbers = #tpu.dot_dimension_numbers<[1], [0], [0], [1], [0, 0, 1, 1], [], []>} : vector<14x8xbf16>, vector<8x128xbf16>, vector<14x128xf32> -> vector<14x128xf32>
    %c3744 = arith.constant 3744 : index
    %c0_67 = arith.constant 0 : index
    %130 = vector.load %arg2[%c3744, %c0_67] : memref<6080x256xbf16, #tpu.memory_space<vmem>>, vector<14x8xbf16>
    %131 = arith.truncf %99 : vector<8x128xf32> to vector<8x128xbf16>
    %cst_68 = arith.constant dense<0.000000e+00> : vector<14x128xf32>
    %132 = tpu.matmul %130, %131, %cst_68 {dimension_numbers = #tpu.dot_dimension_numbers<[1], [0], [0], [1], [0, 0, 1, 1], [], []>} : vector<14x8xbf16>, vector<8x128xbf16>, vector<14x128xf32> -> vector<14x128xf32>
    %133 = arith.maximumf %129, %132 : vector<14x128xf32>
    %c3776 = arith.constant 3776 : index
    %c0_69 = arith.constant 0 : index
    %134 = vector.load %arg2[%c3776, %c0_69] : memref<6080x256xbf16, #tpu.memory_space<vmem>>, vector<128x256xbf16>
    %135 = arith.truncf %133 : vector<14x128xf32> to vector<14x128xbf16>
    %cst_70 = arith.constant dense<0.000000e+00> : vector<14x256xf32>
    %136 = tpu.matmul %135, %134, %cst_70 {dimension_numbers = #tpu.dot_dimension_numbers<[1], [0], [0], [1], [0, 0, 1, 1], [], []>} : vector<14x128xbf16>, vector<128x256xbf16>, vector<14x256xf32> -> vector<14x256xf32>
    %c3904 = arith.constant 3904 : index
    %c0_71 = arith.constant 0 : index
    %137 = vector.load %arg2[%c3904, %c0_71] : memref<6080x256xbf16, #tpu.memory_space<vmem>>, vector<128x256xbf16>
    %138 = arith.truncf %133 : vector<14x128xf32> to vector<14x128xbf16>
    %cst_72 = arith.constant dense<0.000000e+00> : vector<14x256xf32>
    %139 = tpu.matmul %138, %137, %cst_72 {dimension_numbers = #tpu.dot_dimension_numbers<[1], [0], [0], [1], [0, 0, 1, 1], [], []>} : vector<14x128xbf16>, vector<128x256xbf16>, vector<14x256xf32> -> vector<14x256xf32>
    %140 = arith.maximumf %136, %139 : vector<14x256xf32>
    %c5 = arith.constant 5 : index
    %c0_73 = arith.constant 0 : index
    %141 = vector.load %arg4[%c5, %c0_73] : memref<8x768xf32, #tpu.memory_space<vmem>>, vector<1x128xf32>
    %142 = vector.extract_strided_slice %140 {offsets = [0, 0], sizes = [2, 256], strides = [1, 1]} : vector<14x256xf32> to vector<2x256xf32>
    %c4032 = arith.constant 4032 : index
    %c0_74 = arith.constant 0 : index
    %143 = vector.load %arg2[%c4032, %c0_74] : memref<6080x256xbf16, #tpu.memory_space<vmem>>, vector<256x128xbf16>
    %144 = arith.truncf %142 : vector<2x256xf32> to vector<2x256xbf16>
    %cst_75 = arith.constant dense<0.000000e+00> : vector<2x128xf32>
    %145 = tpu.matmul %144, %143, %cst_75 {dimension_numbers = #tpu.dot_dimension_numbers<[1], [0], [0], [1], [0, 0, 1, 1], [], []>} : vector<2x256xbf16>, vector<256x128xbf16>, vector<2x128xf32> -> vector<2x128xf32>
    %146 = vector.broadcast %141 : vector<1x128xf32> to vector<2x128xf32>
    %147 = arith.addf %146, %145 : vector<2x128xf32>
    %148 = vector.extract_strided_slice %140 {offsets = [2, 0], sizes = [2, 256], strides = [1, 1]} : vector<14x256xf32> to vector<2x256xf32>
    %c4288 = arith.constant 4288 : index
    %c0_76 = arith.constant 0 : index
    %149 = vector.load %arg2[%c4288, %c0_76] : memref<6080x256xbf16, #tpu.memory_space<vmem>>, vector<256x128xbf16>
    %150 = arith.truncf %148 : vector<2x256xf32> to vector<2x256xbf16>
    %cst_77 = arith.constant dense<0.000000e+00> : vector<2x128xf32>
    %151 = tpu.matmul %150, %149, %cst_77 {dimension_numbers = #tpu.dot_dimension_numbers<[1], [0], [0], [1], [0, 0, 1, 1], [], []>} : vector<2x256xbf16>, vector<256x128xbf16>, vector<2x128xf32> -> vector<2x128xf32>
    %152 = arith.addf %147, %151 : vector<2x128xf32>
    %153 = vector.extract_strided_slice %140 {offsets = [4, 0], sizes = [2, 256], strides = [1, 1]} : vector<14x256xf32> to vector<2x256xf32>
    %c4544 = arith.constant 4544 : index
    %c0_78 = arith.constant 0 : index
    %154 = vector.load %arg2[%c4544, %c0_78] : memref<6080x256xbf16, #tpu.memory_space<vmem>>, vector<256x128xbf16>
    %155 = arith.truncf %153 : vector<2x256xf32> to vector<2x256xbf16>
    %cst_79 = arith.constant dense<0.000000e+00> : vector<2x128xf32>
    %156 = tpu.matmul %155, %154, %cst_79 {dimension_numbers = #tpu.dot_dimension_numbers<[1], [0], [0], [1], [0, 0, 1, 1], [], []>} : vector<2x256xbf16>, vector<256x128xbf16>, vector<2x128xf32> -> vector<2x128xf32>
    %157 = arith.addf %152, %156 : vector<2x128xf32>
    %158 = vector.extract_strided_slice %140 {offsets = [6, 0], sizes = [2, 256], strides = [1, 1]} : vector<14x256xf32> to vector<2x256xf32>
    %c4800 = arith.constant 4800 : index
    %c0_80 = arith.constant 0 : index
    %159 = vector.load %arg2[%c4800, %c0_80] : memref<6080x256xbf16, #tpu.memory_space<vmem>>, vector<256x128xbf16>
    %160 = arith.truncf %158 : vector<2x256xf32> to vector<2x256xbf16>
    %cst_81 = arith.constant dense<0.000000e+00> : vector<2x128xf32>
    %161 = tpu.matmul %160, %159, %cst_81 {dimension_numbers = #tpu.dot_dimension_numbers<[1], [0], [0], [1], [0, 0, 1, 1], [], []>} : vector<2x256xbf16>, vector<256x128xbf16>, vector<2x128xf32> -> vector<2x128xf32>
    %162 = arith.addf %157, %161 : vector<2x128xf32>
    %163 = vector.extract_strided_slice %140 {offsets = [8, 0], sizes = [2, 256], strides = [1, 1]} : vector<14x256xf32> to vector<2x256xf32>
    %c5056 = arith.constant 5056 : index
    %c0_82 = arith.constant 0 : index
    %164 = vector.load %arg2[%c5056, %c0_82] : memref<6080x256xbf16, #tpu.memory_space<vmem>>, vector<256x128xbf16>
    %165 = arith.truncf %163 : vector<2x256xf32> to vector<2x256xbf16>
    %cst_83 = arith.constant dense<0.000000e+00> : vector<2x128xf32>
    %166 = tpu.matmul %165, %164, %cst_83 {dimension_numbers = #tpu.dot_dimension_numbers<[1], [0], [0], [1], [0, 0, 1, 1], [], []>} : vector<2x256xbf16>, vector<256x128xbf16>, vector<2x128xf32> -> vector<2x128xf32>
    %167 = arith.addf %162, %166 : vector<2x128xf32>
    %168 = vector.extract_strided_slice %140 {offsets = [10, 0], sizes = [2, 256], strides = [1, 1]} : vector<14x256xf32> to vector<2x256xf32>
    %c5312 = arith.constant 5312 : index
    %c0_84 = arith.constant 0 : index
    %169 = vector.load %arg2[%c5312, %c0_84] : memref<6080x256xbf16, #tpu.memory_space<vmem>>, vector<256x128xbf16>
    %170 = arith.truncf %168 : vector<2x256xf32> to vector<2x256xbf16>
    %cst_85 = arith.constant dense<0.000000e+00> : vector<2x128xf32>
    %171 = tpu.matmul %170, %169, %cst_85 {dimension_numbers = #tpu.dot_dimension_numbers<[1], [0], [0], [1], [0, 0, 1, 1], [], []>} : vector<2x256xbf16>, vector<256x128xbf16>, vector<2x128xf32> -> vector<2x128xf32>
    %172 = arith.addf %167, %171 : vector<2x128xf32>
    %173 = vector.extract_strided_slice %140 {offsets = [12, 0], sizes = [2, 256], strides = [1, 1]} : vector<14x256xf32> to vector<2x256xf32>
    %c5568 = arith.constant 5568 : index
    %c0_86 = arith.constant 0 : index
    %174 = vector.load %arg2[%c5568, %c0_86] : memref<6080x256xbf16, #tpu.memory_space<vmem>>, vector<256x128xbf16>
    %175 = arith.truncf %173 : vector<2x256xf32> to vector<2x256xbf16>
    %cst_87 = arith.constant dense<0.000000e+00> : vector<2x128xf32>
    %176 = tpu.matmul %175, %174, %cst_87 {dimension_numbers = #tpu.dot_dimension_numbers<[1], [0], [0], [1], [0, 0, 1, 1], [], []>} : vector<2x256xbf16>, vector<256x128xbf16>, vector<2x128xf32> -> vector<2x128xf32>
    %177 = arith.addf %172, %176 : vector<2x128xf32>
    %cst_88 = arith.constant 0.000000e+00 : f32
    %178 = vector.broadcast %cst_88 : f32 to vector<2x128xf32>
    %179 = arith.maximumf %177, %178 : vector<2x128xf32>
    %c5824 = arith.constant 5824 : index
    %c0_89 = arith.constant 0 : index
    %180 = vector.load %arg2[%c5824, %c0_89] : memref<6080x256xbf16, #tpu.memory_space<vmem>>, vector<128x128xbf16>
    %181 = arith.truncf %179 : vector<2x128xf32> to vector<2x128xbf16>
    %cst_90 = arith.constant dense<0.000000e+00> : vector<2x128xf32>
    %182 = tpu.matmul %181, %180, %cst_90 {dimension_numbers = #tpu.dot_dimension_numbers<[1], [0], [0], [1], [0, 0, 1, 1], [], []>} : vector<2x128xbf16>, vector<128x128xbf16>, vector<2x128xf32> -> vector<2x128xf32>
    %c6 = arith.constant 6 : index
    %c0_91 = arith.constant 0 : index
    %183 = vector.load %arg4[%c6, %c0_91] : memref<8x768xf32, #tpu.memory_space<vmem>>, vector<1x128xf32>
    %184 = vector.broadcast %183 : vector<1x128xf32> to vector<2x128xf32>
    %185 = arith.addf %182, %184 : vector<2x128xf32>
    %cst_92 = arith.constant 0.000000e+00 : f32
    %186 = vector.broadcast %cst_92 : f32 to vector<2x128xf32>
    %187 = arith.maximumf %185, %186 : vector<2x128xf32>
    %c5952 = arith.constant 5952 : index
    %c0_93 = arith.constant 0 : index
    %188 = vector.load %arg2[%c5952, %c0_93] : memref<6080x256xbf16, #tpu.memory_space<vmem>>, vector<128x128xbf16>
    %189 = arith.truncf %187 : vector<2x128xf32> to vector<2x128xbf16>
    %cst_94 = arith.constant dense<0.000000e+00> : vector<2x128xf32>
    %190 = tpu.matmul %189, %188, %cst_94 {dimension_numbers = #tpu.dot_dimension_numbers<[1], [0], [0], [1], [0, 0, 1, 1], [], []>} : vector<2x128xbf16>, vector<128x128xbf16>, vector<2x128xf32> -> vector<2x128xf32>
    %c7 = arith.constant 7 : index
    %c0_95 = arith.constant 0 : index
    %191 = vector.load %arg4[%c7, %c0_95] : memref<8x768xf32, #tpu.memory_space<vmem>>, vector<1x128xf32>
    %192 = vector.broadcast %191 : vector<1x128xf32> to vector<2x128xf32>
    %193 = arith.addf %190, %192 : vector<2x128xf32>
    %c0_96 = arith.constant 0 : index
    %c0_97 = arith.constant 0 : index
    %194 = vector.load %arg6[%c0_96, %c0_97] : memref<2x128xf32, #tpu.memory_space<vmem>>, vector<2x128xf32>
    tpu.vector_store %arg6[%c0_96, %c0_97], %193 {strides = array<i32>} : memref<2x128xf32, #tpu.memory_space<vmem>>, vector<2x128xf32>,
    return
  }
  func.func @transform_0(%arg0: i32) -> (i32, i32) {
    %c0_i32 = arith.constant 0 : i32
    %c0_i32_0 = arith.constant 0 : i32
    return %arg0, %c0_i32 : i32, i32
  }
  func.func @transform_1(%arg0: i32) -> (i32, i32) {
    %c0_i32 = arith.constant 0 : i32
    %c0_i32_0 = arith.constant 0 : i32
    %c0_i32_1 = arith.constant 0 : i32
    return %c0_i32, %c0_i32_0 : i32, i32
  }
  func.func @transform_2(%arg0: i32) -> (i32, i32) {
    %c0_i32 = arith.constant 0 : i32
    %c0_i32_0 = arith.constant 0 : i32
    %c0_i32_1 = arith.constant 0 : i32
    return %c0_i32, %c0_i32_0 : i32, i32
  }
  func.func @transform_3(%arg0: i32) -> (i32, i32) {
    %c0_i32 = arith.constant 0 : i32
    %c0_i32_0 = arith.constant 0 : i32
    %c0_i32_1 = arith.constant 0 : i32
    return %c0_i32, %c0_i32_0 : i32, i32
  }
  func.func @transform_4(%arg0: i32) -> (i32, i32) {
    %c0_i32 = arith.constant 0 : i32
    %c0_i32_0 = arith.constant 0 : i32
    return %arg0, %c0_i32 : i32, i32
  }
  func.func @transform_5(%arg0: i32) -> (i32, i32) {
    %c0_i32 = arith.constant 0 : i32
    %c0_i32_0 = arith.constant 0 : i32
    return %arg0, %c0_i32 : i32, i32
  }
}

</mosaic_0001>

<llo_original>
// kernel: forward.1
$region0: #{forward.1}
  #allocation0 [shape = 'u32[]', space=smem, size = 0x4, offset = 0x4, fixed_abs, tag = 'smem constant byte address 0x4 - core index']
  #allocation1 [shape = 'u32[144,128]{1,0:T(1,128)}', space=vmem, size = 0x12000, scoped, tag = 'internal scratch']
  %s0 = inlined_call_operand.vmem [shape: f32[68,128], index: 0, kind: input, shape index: {}]
  %s1 = inlined_call_operand.vmem [shape: bf16[6080,256], index: 1, kind: input, shape index: {}]
  %s2 = inlined_call_operand.vmem [shape: f32[232,768], index: 2, kind: input, shape index: {}]
  %s3 = inlined_call_operand.vmem [shape: f32[8,768], index: 3, kind: input, shape index: {}]
  %s4 = inlined_call_operand.vmem [shape: f32[100,768], index: 4, kind: output, shape index: {0}]
  %s5 = inlined_call_operand.hbm [shape: f32[2,128], index: 5, kind: output, shape index: {1}]
  %6 = xla_tuple %s4, %s5
  %s7 = sld [smem:[#allocation0]]
  $region34: #{forward.1} parent=0
    _
  %s9 = ssub.s32 1, %s7
  %s10 = scalar_select 0, %s9, %s7
  $region1: #{forward.1} parent=0
    #allocation2 [shape = 'u8[1024]{0}', space=vmem, size = 0x400, scoped, tag = 'output window, operand 1, single buffered']
    #allocation3 [shape = 's32[1]{0}', space=sflag, size = 0x4, scoped, tag = 'scoped memory for forward.1']
    %11 = vsyncpa [#allocation3], 0
    // Predicated region
    $region2: #{forward.1} parent=1 // pred_check
      _
    $region3: #{forward.1} parent=1 // pred_check_branch
      %13 = sbr.rel (0) target = $region5
    $region4: #{forward.1} parent=1 // pred_region
      _
    $region5: #{forward.1} parent=1 // pred_fallthru
      _
    // Predicated region
    $region6: #{forward.1} parent=1 // pred_check
      _
    $region7: #{forward.1} parent=1 // pred_check_branch
      %15 = sbr.rel (0) target = $region9
    $region8: #{forward.1} parent=1 // pred_region
      _
    $region9: #{forward.1} parent=1 // pred_fallthru
      _
    // Predicated region
    $region10: #{forward.1} parent=1 // pred_check
      _
    $region11: #{forward.1} parent=1 // pred_check_branch
      %17 = sbr.rel (0) target = $region13
    $region12: #{forward.1} parent=1 // pred_region
      _
    $region13: #{forward.1} parent=1 // pred_fallthru
      _
    // Predicated region
    $region14: #{forward.1} parent=1 // pred_check
      _
    $region15: #{forward.1} parent=1 // pred_check_branch
      %19 = sbr.rel (0) target = $region17
    $region16: #{forward.1} parent=1 // pred_region
      _
    $region17: #{forward.1} parent=1 // pred_fallthru
      _
    %v21 = vld [vmem:[%s0] sm:$0xff]
    %v22 = vld [vmem:[%s0 + $0x8] sm:$0xff]
    %v23 = vld [vmem:[%s0 + $0x10] sm:$0xff]
    %v24 = vld [vmem:[%s0 + $0x18] sm:$0xff]
    %v25 = vld [vmem:[%s0 + $0x20] sm:$0xff]
    %v26 = vld [vmem:[%s0 + $0x28] sm:$0xff]
    %v27 = vld [vmem:[%s0 + $0x30] sm:$0xff]
    %v28 = vld [vmem:[%s0 + $0x38] sm:$0xff]
    %v29 = vld [vmem:[%s0 + $0x40] sm:$0xf]
    %v30 = vld [vmem:[%s3] ss:$8 sm:$0x3]
    %v31 = vld [vmem:[%s1] sm:$0xff]
    %v32 = vld [vmem:[%s1 + $0x8] sm:$0xff]
    %v33 = vld [vmem:[%s1 + $0x10] sm:$0xff]
    %v34 = vld [vmem:[%s1 + $0x18] sm:$0xff]
    %v35 = vld [vmem:[%s1 + $0x20] sm:$0xff]
    %v36 = vld [vmem:[%s1 + $0x28] sm:$0xff]
    %v37 = vld [vmem:[%s1 + $0x30] sm:$0xff]
    %v38 = vld [vmem:[%s1 + $0x38] sm:$0xff]
    %v39 = vld [vmem:[%s1 + $0x40] sm:$0xff]
    %v40 = vld [vmem:[%s1 + $0x48] sm:$0xff]
    %v41 = vld [vmem:[%s1 + $0x50] sm:$0xff]
    %v42 = vld [vmem:[%s1 + $0x58] sm:$0xff]
    %v43 = vld [vmem:[%s1 + $0x60] sm:$0xff]
    %v44 = vld [vmem:[%s1 + $0x68] sm:$0xff]
    %v45 = vld [vmem:[%s1 + $0x70] sm:$0xff]
    %v46 = vld [vmem:[%s1 + $0x78] sm:$0xff]
    %v47 = vpack.c.bf16 %v22, %v21
    %v48 = vpack.c.bf16 %v24, %v23
    %v49 = vpack.c.bf16 %v26, %v25
    %v50 = vpack.c.bf16 %v28, %v27
    %v51 = vpack.c.bf16 %v29, %v29
    %v68 = vunpack.c.l.b16 %v31
    %v69 = vunpack.c.h.b16 %v31
    %v70 = vunpack.c.l.b16 %v32
    %v71 = vunpack.c.h.b16 %v32
    %v72 = vunpack.c.l.b16 %v33
    %v73 = vunpack.c.h.b16 %v33
    %v74 = vunpack.c.l.b16 %v34
    %v75 = vunpack.c.h.b16 %v34
    %v76 = vunpack.c.l.b16 %v35
    %v77 = vunpack.c.h.b16 %v35
    %v78 = vunpack.c.l.b16 %v36
    %v79 = vunpack.c.h.b16 %v36
    %v80 = vunpack.c.l.b16 %v37
    %v81 = vunpack.c.h.b16 %v37
    %v82 = vunpack.c.l.b16 %v38
    %v83 = vunpack.c.h.b16 %v38
    %v84 = vunpack.c.l.b16 %v39
    %v85 = vunpack.c.h.b16 %v39
    %v86 = vunpack.c.l.b16 %v40
    %v87 = vunpack.c.h.b16 %v40
    %v88 = vunpack.c.l.b16 %v41
    %v89 = vunpack.c.h.b16 %v41
    %v90 = vunpack.c.l.b16 %v42
    %v91 = vunpack.c.h.b16 %v42
    %v92 = vunpack.c.l.b16 %v43
    %v93 = vunpack.c.h.b16 %v43
    %v94 = vunpack.c.l.b16 %v44
    %v95 = vunpack.c.h.b16 %v44
    %v96 = vunpack.c.l.b16 %v45
    %v97 = vunpack.c.h.b16 %v45
    %v98 = vunpack.c.l.b16 %v46
    %v99 = vunpack.c.h.b16 %v46
    %v100 = vpack.c.b16 %v70, %v68
    %v101 = vpack.c.b16 %v71, %v69
    %v102 = vpack.c.b16 %v74, %v72
    %v103 = vpack.c.b16 %v75, %v73
    %v104 = vpack.c.b16 %v78, %v76
    %v105 = vpack.c.b16 %v79, %v77
    %v106 = vpack.c.b16 %v82, %v80
    %v107 = vpack.c.b16 %v83, %v81
    %v108 = vpack.c.b16 %v86, %v84
    %v109 = vpack.c.b16 %v87, %v85
    %v110 = vpack.c.b16 %v90, %v88
    %v111 = vpack.c.b16 %v91, %v89
    %v112 = vpack.c.b16 %v94, %v92
    %v113 = vpack.c.b16 %v95, %v93
    %v114 = vpack.c.b16 %v98, %v96
    %v115 = vpack.c.b16 %v99, %v97
    %132 = vmatprep.subr.bf16.mxu0 %v101
    %133 = vmatpush1.bf16.msra.mxu0 %v100
    %134 = vmatprep.subr.bf16.mxu0 %v103
    %135 = vmatpush1.bf16.msra.mxu0 %v102
    %136 = vmatprep.subr.bf16.mxu0 %v105
    %137 = vmatpush1.bf16.msra.mxu0 %v104
    %138 = vmatprep.subr.bf16.mxu0 %v107
    %139 = vmatpush1.bf16.msra.mxu0 %v106
    %140 = vmatprep.subr.bf16.mxu0 %v109
    %141 = vmatpush1.bf16.msra.mxu0 %v108
    %142 = vmatprep.subr.bf16.mxu0 %v111
    %143 = vmatpush1.bf16.msra.mxu0 %v110
    %144 = vmatprep.subr.bf16.mxu0 %v113
    %145 = vmatpush1.bf16.msra.mxu0 %v112
    %146 = vmatprep.subr.bf16.mxu0 %v115
    %147 = vmatpush1.bf16.msra.mxu0 %v114
    %148 = vmatprep.subr.bf16.mxu0 0
    %149 = vmatpush1.bf16.msra.mxu0 0
    %150 = vmatprep.subr.bf16.mxu0 0
    %151 = vmatpush1.bf16.msra.mxu0 0
    %152 = vmatprep.subr.bf16.mxu0 0
    %153 = vmatpush1.bf16.msra.mxu0 0
    %154 = vmatprep.subr.bf16.mxu0 0
    %155 = vmatpush1.bf16.msra.mxu0 0
    %156 = vmatprep.subr.bf16.mxu0 0
    %157 = vmatpush1.bf16.msra.mxu0 0
    %158 = vmatprep.subr.bf16.mxu0 0
    %159 = vmatpush1.bf16.msra.mxu0 0
    %160 = vmatprep.subr.bf16.mxu0 0
    %161 = vmatpush1.bf16.msra.mxu0 0
    %162 = vmatprep.subr.bf16.mxu0 0
    %163 = vmatpush1.bf16.msra.mxu0 0
    %164 = vmatprep.mubr.bf16.mxu0 0
    %165 = vmatmul.mubr.bf16.gmra.mrb[0].mxu0 %v47
    %v166 = vpop.f32.mrb[0].mxu0
    %v167 = vadd.f32 0.0, %v166
    %v168 = vpop.f32.mrb[0].mxu0
    %v169 = vadd.f32 0.0, %v168
    %v170 = vpop.f32.mrb[0].mxu0
    %v171 = vadd.f32 0.0, %v170
    %v172 = vpop.f32.mrb[0].mxu0
    %v173 = vadd.f32 0.0, %v172
    %174 = vmatprep.mubr.bf16.mxu0 0
    %175 = vmatmul.mubr.bf16.gmra.mrb[0].mxu0 %v48
    %v176 = vpop.f32.mrb[0].mxu0
    %v177 = vadd.f32 0.0, %v176
    %v178 = vpop.f32.mrb[0].mxu0
    %v179 = vadd.f32 0.0, %v178
    %v180 = vpop.f32.mrb[0].mxu0
    %v181 = vadd.f32 0.0, %v180
    %v182 = vpop.f32.mrb[0].mxu0
    %v183 = vadd.f32 0.0, %v182
    %184 = vmatprep.mubr.bf16.mxu0 0
    %185 = vmatmul.mubr.bf16.gmra.mrb[0].mxu0 %v49
    %v186 = vpop.f32.mrb[0].mxu0
    %v187 = vadd.f32 0.0, %v186
    %v188 = vpop.f32.mrb[0].mxu0
    %v189 = vadd.f32 0.0, %v188
    %v190 = vpop.f32.mrb[0].mxu0
    %v191 = vadd.f32 0.0, %v190
    %v192 = vpop.f32.mrb[0].mxu0
    %v193 = vadd.f32 0.0, %v192
    %194 = vmatprep.mubr.bf16.mxu0 0
    %195 = vmatmul.mubr.bf16.gmra.mrb[0].mxu0 %v50
    %v196 = vpop.f32.mrb[0].mxu0
    %v197 = vadd.f32 0.0, %v196
    %v198 = vpop.f32.mrb[0].mxu0
    %v199 = vadd.f32 0.0, %v198
    %v200 = vpop.f32.mrb[0].mxu0
    %v201 = vadd.f32 0.0, %v200
    %v202 = vpop.f32.mrb[0].mxu0
    %v203 = vadd.f32 0.0, %v202
    %204 = vmatprep.mubr.bf16.mxu0 0
    %205 = vmatmul.mubr.bf16.gmra.mrb[0].mxu0 %v51
    %v206 = vpop.f32.mrb[0].mxu0
    %v207 = vadd.f32 0.0, %v206
    %v208 = vpop.f32.mrb[0].mxu0
    %v209 = vadd.f32 0.0, %v208
    %v210 = vpop.f32.mrb[0].mxu0
    %v211 = vpop.f32.mrb[0].mxu0
    %212 = vdwg.mxu0
    %v214 = vlaneseq
    %v215 = vshrl.u32 %v214, 7
    %v216 = vsub.s32 0, %v215
    %v217 = vrot.slane %v30, %v216
    %v218 = vlaneseq
    %v219 = vshrl.u32 %v218, 7
    %v220 = vsub.s32 1, %v219
    %v221 = vrot.slane %v30, %v220
    %v224 = vadd.f32 %v217, %v167
    %v225 = vadd.f32 %v221, %v169
    %v226 = vadd.f32 %v217, %v171
    %v227 = vadd.f32 %v221, %v173
    %v228 = vadd.f32 %v217, %v177
    %v229 = vadd.f32 %v221, %v179
    %v230 = vadd.f32 %v217, %v181
    %v231 = vadd.f32 %v221, %v183
    %v232 = vadd.f32 %v217, %v187
    %v233 = vadd.f32 %v221, %v189
    %v234 = vadd.f32 %v217, %v191
    %v235 = vadd.f32 %v221, %v193
    %v236 = vadd.f32 %v217, %v197
    %v237 = vadd.f32 %v221, %v199
    %v238 = vadd.f32 %v217, %v201
    %v239 = vadd.f32 %v221, %v203
    %v240 = vadd.f32 %v217, %v207
    %v241 = vadd.f32 %v221, %v209
    %v242 = vld [vmem:[%s1 + $0x80] sm:$0xff]
    %v243 = vld [vmem:[%s1 + $0x88] sm:$0xff]
    %v244 = vld [vmem:[%s1 + $0x90] sm:$0xff]
    %v245 = vld [vmem:[%s1 + $0x98] sm:$0xff]
    %v246 = vld [vmem:[%s1 + $0xa0] sm:$0xff]
    %v247 = vld [vmem:[%s1 + $0xa8] sm:$0xff]
    %v248 = vld [vmem:[%s1 + $0xb0] sm:$0xff]
    %v249 = vld [vmem:[%s1 + $0xb8] sm:$0xff]
    %v250 = vld [vmem:[%s1 + $0xc0] sm:$0xff]
    %v251 = vld [vmem:[%s1 + $0xc8] sm:$0xff]
    %v252 = vld [vmem:[%s1 + $0xd0] sm:$0xff]
    %v253 = vld [vmem:[%s1 + $0xd8] sm:$0xff]
    %v254 = vld [vmem:[%s1 + $0xe0] sm:$0xff]
    %v255 = vld [vmem:[%s1 + $0xe8] sm:$0xff]
    %v256 = vld [vmem:[%s1 + $0xf0] sm:$0xff]
    %v257 = vld [vmem:[%s1 + $0xf8] sm:$0xff]
    %vm258 = vsmask.f32 7424
    %v260 = vshrl.u32 %v47, 16
    %v262 = vshll.u32 %v47, 16
    %v264 = vrot.slane %v262, 1
    %v265 = vor.u32 %v260, %v264
    %v267 = vshll.u32 %v48, 16
    %v269 = vrot.slane %v267, 1
    %v270 = vsel %vm258, %v265, %v269
    %v271 = vshrl.u32 %v48, 16
    %v273 = vor.u32 %v271, %v269
    %v275 = vshll.u32 %v49, 16
    %v277 = vrot.slane %v275, 1
    %v278 = vsel %vm258, %v273, %v277
    %v279 = vshrl.u32 %v49, 16
    %v281 = vor.u32 %v279, %v277
    %v283 = vshll.u32 %v50, 16
    %v285 = vrot.slane %v283, 1
    %v286 = vsel %vm258, %v281, %v285
    %v287 = vshrl.u32 %v50, 16
    %v289 = vor.u32 %v287, %v285
    %v291 = vshll.u32 %v51, 16
    %v293 = vrot.slane %v291, 1
    %v294 = vsel %vm258, %v289, %v293
    %v295 = vshrl.u32 %v51, 16
    %v297 = vor.u32 %v295, %v293
    %v319 = vunpack.c.l.b16 %v242
    %v320 = vunpack.c.h.b16 %v242
    %v321 = vunpack.c.l.b16 %v243
    %v322 = vunpack.c.h.b16 %v243
    %v323 = vunpack.c.l.b16 %v244
    %v324 = vunpack.c.h.b16 %v244
    %v325 = vunpack.c.l.b16 %v245
    %v326 = vunpack.c.h.b16 %v245
    %v327 = vunpack.c.l.b16 %v246
    %v328 = vunpack.c.h.b16 %v246
    %v329 = vunpack.c.l.b16 %v247
    %v330 = vunpack.c.h.b16 %v247
    %v331 = vunpack.c.l.b16 %v248
    %v332 = vunpack.c.h.b16 %v248
    %v333 = vunpack.c.l.b16 %v249
    %v334 = vunpack.c.h.b16 %v249
    %v335 = vunpack.c.l.b16 %v250
    %v336 = vunpack.c.h.b16 %v250
    %v337 = vunpack.c.l.b16 %v251
    %v338 = vunpack.c.h.b16 %v251
    %v339 = vunpack.c.l.b16 %v252
    %v340 = vunpack.c.h.b16 %v252
    %v341 = vunpack.c.l.b16 %v253
    %v342 = vunpack.c.h.b16 %v253
    %v343 = vunpack.c.l.b16 %v254
    %v344 = vunpack.c.h.b16 %v254
    %v345 = vunpack.c.l.b16 %v255
    %v346 = vunpack.c.h.b16 %v255
    %v347 = vunpack.c.l.b16 %v256
    %v348 = vunpack.c.h.b16 %v256
    %v349 = vunpack.c.l.b16 %v257
    %v350 = vunpack.c.h.b16 %v257
    %v351 = vpack.c.b16 %v321, %v319
    %v352 = vpack.c.b16 %v322, %v320
    %v353 = vpack.c.b16 %v325, %v323
    %v354 = vpack.c.b16 %v326, %v324
    %v355 = vpack.c.b16 %v329, %v327
    %v356 = vpack.c.b16 %v330, %v328
    %v357 = vpack.c.b16 %v333, %v331
    %v358 = vpack.c.b16 %v334, %v332
    %v359 = vpack.c.b16 %v337, %v335
    %v360 = vpack.c.b16 %v338, %v336
    %v361 = vpack.c.b16 %v341, %v339
    %v362 = vpack.c.b16 %v342, %v340
    %v363 = vpack.c.b16 %v345, %v343
    %v364 = vpack.c.b16 %v346, %v344
    %v365 = vpack.c.b16 %v349, %v347
    %v366 = vpack.c.b16 %v350, %v348
    %383 = vmatprep.subr.bf16.mxu0 %v352
    %384 = vmatpush1.bf16.msra.mxu0 %v351
    %385 = vmatprep.subr.bf16.mxu0 %v354
    %386 = vmatpush1.bf16.msra.mxu0 %v353
    %387 = vmatprep.subr.bf16.mxu0 %v356
    %388 = vmatpush1.bf16.msra.mxu0 %v355
    %389 = vmatprep.subr.bf16.mxu0 %v358
    %390 = vmatpush1.bf16.msra.mxu0 %v357
    %391 = vmatprep.subr.bf16.mxu0 %v360
    %392 = vmatpush1.bf16.msra.mxu0 %v359
    %393 = vmatprep.subr.bf16.mxu0 %v362
    %394 = vmatpush1.bf16.msra.mxu0 %v361
    %395 = vmatprep.subr.bf16.mxu0 %v364
    %396 = vmatpush1.bf16.msra.mxu0 %v363
    %397 = vmatprep.subr.bf16.mxu0 %v366
    %398 = vmatpush1.bf16.msra.mxu0 %v365
    %399 = vmatprep.subr.bf16.mxu0 0
    %400 = vmatpush1.bf16.msra.mxu0 0
    %401 = vmatprep.subr.bf16.mxu0 0
    %402 = vmatpush1.bf16.msra.mxu0 0
    %403 = vmatprep.subr.bf16.mxu0 0
    %404 = vmatpush1.bf16.msra.mxu0 0
    %405 = vmatprep.subr.bf16.mxu0 0
    %406 = vmatpush1.bf16.msra.mxu0 0
    %407 = vmatprep.subr.bf16.mxu0 0
    %408 = vmatpush1.bf16.msra.mxu0 0
    %409 = vmatprep.subr.bf16.mxu0 0
    %410 = vmatpush1.bf16.msra.mxu0 0
    %411 = vmatprep.subr.bf16.mxu0 0
    %412 = vmatpush1.bf16.msra.mxu0 0
    %413 = vmatprep.subr.bf16.mxu0 0
    %414 = vmatpush1.bf16.msra.mxu0 0
    %415 = vmatprep.mubr.bf16.mxu0 0
    %416 = vmatmul.mubr.bf16.gmra.mrb[0].mxu0 %v270
    %v417 = vpop.f32.mrb[0].mxu0
    %v418 = vadd.f32 0.0, %v417
    %v419 = vpop.f32.mrb[0].mxu0
    %v420 = vadd.f32 0.0, %v419
    %v421 = vpop.f32.mrb[0].mxu0
    %v422 = vadd.f32 0.0, %v421
    %v423 = vpop.f32.mrb[0].mxu0
    %v424 = vadd.f32 0.0, %v423
    %425 = vmatprep.mubr.bf16.mxu0 0
    %426 = vmatmul.mubr.bf16.gmra.mrb[0].mxu0 %v278
    %v427 = vpop.f32.mrb[0].mxu0
    %v428 = vadd.f32 0.0, %v427
    %v429 = vpop.f32.mrb[0].mxu0
    %v430 = vadd.f32 0.0, %v429
    %v431 = vpop.f32.mrb[0].mxu0
    %v432 = vadd.f32 0.0, %v431
    %v433 = vpop.f32.mrb[0].mxu0
    %v434 = vadd.f32 0.0, %v433
    %435 = vmatprep.mubr.bf16.mxu0 0
    %436 = vmatmul.mubr.bf16.gmra.mrb[0].mxu0 %v286
    %v437 = vpop.f32.mrb[0].mxu0
    %v438 = vadd.f32 0.0, %v437
    %v439 = vpop.f32.mrb[0].mxu0
    %v440 = vadd.f32 0.0, %v439
    %v441 = vpop.f32.mrb[0].mxu0
    %v442 = vadd.f32 0.0, %v441
    %v443 = vpop.f32.mrb[0].mxu0
    %v444 = vadd.f32 0.0, %v443
    %445 = vmatprep.mubr.bf16.mxu0 0
    %446 = vmatmul.mubr.bf16.gmra.mrb[0].mxu0 %v294
    %v447 = vpop.f32.mrb[0].mxu0
    %v448 = vadd.f32 0.0, %v447
    %v449 = vpop.f32.mrb[0].mxu0
    %v450 = vadd.f32 0.0, %v449
    %v451 = vpop.f32.mrb[0].mxu0
    %v452 = vadd.f32 0.0, %v451
    %v453 = vpop.f32.mrb[0].mxu0
    %v454 = vadd.f32 0.0, %v453
    %455 = vmatprep.mubr.bf16.mxu0 0
    %456 = vmatmul.mubr.bf16.gmra.mrb[0].mxu0 %v297
    %v457 = vpop.f32.mrb[0].mxu0
    %v458 = vadd.f32 0.0, %v457
    %v459 = vpop.f32.mrb[0].mxu0
    %v460 = vadd.f32 0.0, %v459
    %v461 = vpop.f32.mrb[0].mxu0
    %v462 = vpop.f32.mrb[0].mxu0
    %463 = vdwg.mxu0
    %v464 = vadd.f32 %v224, %v418
    %v465 = vadd.f32 %v225, %v420
    %v466 = vadd.f32 %v226, %v422
    %v467 = vadd.f32 %v227, %v424
    %v468 = vadd.f32 %v228, %v428
    %v469 = vadd.f32 %v229, %v430
    %v470 = vadd.f32 %v230, %v432
    %v471 = vadd.f32 %v231, %v434
    %v472 = vadd.f32 %v232, %v438
    %v473 = vadd.f32 %v233, %v440
    %v474 = vadd.f32 %v234, %v442
    %v475 = vadd.f32 %v235, %v444
    %v476 = vadd.f32 %v236, %v448
    %v477 = vadd.f32 %v237, %v450
    %v478 = vadd.f32 %v238, %v452
    %v479 = vadd.f32 %v239, %v454
    %v480 = vadd.f32 %v240, %v458
    %v481 = vadd.f32 %v241, %v460
    %v482 = vld [vmem:[%s1 + $0x100] sm:$0xff]
    %v483 = vld [vmem:[%s1 + $0x108] sm:$0xff]
    %v484 = vld [vmem:[%s1 + $0x110] sm:$0xff]
    %v485 = vld [vmem:[%s1 + $0x118] sm:$0xff]
    %v486 = vld [vmem:[%s1 + $0x120] sm:$0xff]
    %v487 = vld [vmem:[%s1 + $0x128] sm:$0xff]
    %v488 = vld [vmem:[%s1 + $0x130] sm:$0xff]
    %v489 = vld [vmem:[%s1 + $0x138] sm:$0xff]
    %v490 = vld [vmem:[%s1 + $0x140] sm:$0xff]
    %v491 = vld [vmem:[%s1 + $0x148] sm:$0xff]
    %v492 = vld [vmem:[%s1 + $0x150] sm:$0xff]
    %v493 = vld [vmem:[%s1 + $0x158] sm:$0xff]
    %v494 = vld [vmem:[%s1 + $0x160] sm:$0xff]
    %v495 = vld [vmem:[%s1 + $0x168] sm:$0xff]
    %v496 = vld [vmem:[%s1 + $0x170] sm:$0xff]
    %v497 = vld [vmem:[%s1 + $0x178] sm:$0xff]
    %vm503 = vcmask 1046528
    %v504 = vrot.slane %v47, 1
    %v505 = vrot.slane %v48, 1
    %v506 = vsel %vm503, %v504, %v505
    %v507 = vrot.slane %v49, 1
    %v508 = vsel %vm503, %v505, %v507
    %v509 = vrot.slane %v50, 1
    %v510 = vsel %vm503, %v507, %v509
    %v511 = vrot.slane %v51, 1
    %v512 = vsel %vm503, %v509, %v511
    %v534 = vunpack.c.l.b16 %v482
    %v535 = vunpack.c.h.b16 %v482
    %v536 = vunpack.c.l.b16 %v483
    %v537 = vunpack.c.h.b16 %v483
    %v538 = vunpack.c.l.b16 %v484
    %v539 = vunpack.c.h.b16 %v484
    %v540 = vunpack.c.l.b16 %v485
    %v541 = vunpack.c.h.b16 %v485
    %v542 = vunpack.c.l.b16 %v486
    %v543 = vunpack.c.h.b16 %v486
    %v544 = vunpack.c.l.b16 %v487
    %v545 = vunpack.c.h.b16 %v487
    %v546 = vunpack.c.l.b16 %v488
    %v547 = vunpack.c.h.b16 %v488
    %v548 = vunpack.c.l.b16 %v489
    %v549 = vunpack.c.h.b16 %v489
    %v550 = vunpack.c.l.b16 %v490
    %v551 = vunpack.c.h.b16 %v490
    %v552 = vunpack.c.l.b16 %v491
    %v553 = vunpack.c.h.b16 %v491
    %v554 = vunpack.c.l.b16 %v492
    %v555 = vunpack.c.h.b16 %v492
    %v556 = vunpack.c.l.b16 %v493
    %v557 = vunpack.c.h.b16 %v493
    %v558 = vunpack.c.l.b16 %v494
    %v559 = vunpack.c.h.b16 %v494
    %v560 = vunpack.c.l.b16 %v495
    %v561 = vunpack.c.h.b16 %v495
    %v562 = vunpack.c.l.b16 %v496
    %v563 = vunpack.c.h.b16 %v496
    %v564 = vunpack.c.l.b16 %v497
    %v565 = vunpack.c.h.b16 %v497
    %v566 = vpack.c.b16 %v536, %v534
    %v567 = vpack.c.b16 %v537, %v535
    %v568 = vpack.c.b16 %v540, %v538
    %v569 = vpack.c.b16 %v541, %v539
    %v570 = vpack.c.b16 %v544, %v542
    %v571 = vpack.c.b16 %v545, %v543
    %v572 = vpack.c.b16 %v548, %v546
    %v573 = vpack.c.b16 %v549, %v547
    %v574 = vpack.c.b16 %v552, %v550
    %v575 = vpack.c.b16 %v553, %v551
    %v576 = vpack.c.b16 %v556, %v554
    %v577 = vpack.c.b16 %v557, %v555
    %v578 = vpack.c.b16 %v560, %v558
    %v579 = vpack.c.b16 %v561, %v559
    %v580 = vpack.c.b16 %v564, %v562
    %v581 = vpack.c.b16 %v565, %v563
    %598 = vmatprep.subr.bf16.mxu0 %v567
    %599 = vmatpush1.bf16.msra.mxu0 %v566
    %600 = vmatprep.subr.bf16.mxu0 %v569
    %601 = vmatpush1.bf16.msra.mxu0 %v568
    %602 = vmatprep.subr.bf16.mxu0 %v571
    %603 = vmatpush1.bf16.msra.mxu0 %v570
    %604 = vmatprep.subr.bf16.mxu0 %v573
    %605 = vmatpush1.bf16.msra.mxu0 %v572
    %606 = vmatprep.subr.bf16.mxu0 %v575
    %607 = vmatpush1.bf16.msra.mxu0 %v574
    %608 = vmatprep.subr.bf16.mxu0 %v577
    %609 = vmatpush1.bf16.msra.mxu0 %v576
    %610 = vmatprep.subr.bf16.mxu0 %v579
    %611 = vmatpush1.bf16.msra.mxu0 %v578
    %612 = vmatprep.subr.bf16.mxu0 %v581
    %613 = vmatpush1.bf16.msra.mxu0 %v580
    %614 = vmatprep.subr.bf16.mxu0 0
    %615 = vmatpush1.bf16.msra.mxu0 0
    %616 = vmatprep.subr.bf16.mxu0 0
    %617 = vmatpush1.bf16.msra.mxu0 0
    %618 = vmatprep.subr.bf16.mxu0 0
    %619 = vmatpush1.bf16.msra.mxu0 0
    %620 = vmatprep.subr.bf16.mxu0 0
    %621 = vmatpush1.bf16.msra.mxu0 0
    %622 = vmatprep.subr.bf16.mxu0 0
    %623 = vmatpush1.bf16.msra.mxu0 0
    %624 = vmatprep.subr.bf16.mxu0 0
    %625 = vmatpush1.bf16.msra.mxu0 0
    %626 = vmatprep.subr.bf16.mxu0 0
    %627 = vmatpush1.bf16.msra.mxu0 0
    %628 = vmatprep.subr.bf16.mxu0 0
    %629 = vmatpush1.bf16.msra.mxu0 0
    %630 = vmatprep.mubr.bf16.mxu0 0
    %631 = vmatmul.mubr.bf16.gmra.mrb[0].mxu0 %v506
    %v632 = vpop.f32.mrb[0].mxu0
    %v633 = vadd.f32 0.0, %v632
    %v634 = vpop.f32.mrb[0].mxu0
    %v635 = vadd.f32 0.0, %v634
    %v636 = vpop.f32.mrb[0].mxu0
    %v637 = vadd.f32 0.0, %v636
    %v638 = vpop.f32.mrb[0].mxu0
    %v639 = vadd.f32 0.0, %v638
    %640 = vmatprep.mubr.bf16.mxu0 0
    %641 = vmatmul.mubr.bf16.gmra.mrb[0].mxu0 %v508
    %v642 = vpop.f32.mrb[0].mxu0
    %v643 = vadd.f32 0.0, %v642
    %v644 = vpop.f32.mrb[0].mxu0
    %v645 = vadd.f32 0.0, %v644
    %v646 = vpop.f32.mrb[0].mxu0
    %v647 = vadd.f32 0.0, %v646
    %v648 = vpop.f32.mrb[0].mxu0
    %v649 = vadd.f32 0.0, %v648
    %650 = vmatprep.mubr.bf16.mxu0 0
    %651 = vmatmul.mubr.bf16.gmra.mrb[0].mxu0 %v510
    %v652 = vpop.f32.mrb[0].mxu0
    %v653 = vadd.f32 0.0, %v652
    %v654 = vpop.f32.mrb[0].mxu0
    %v655 = vadd.f32 0.0, %v654
    %v656 = vpop.f32.mrb[0].mxu0
    %v657 = vadd.f32 0.0, %v656
    %v658 = vpop.f32.mrb[0].mxu0
    %v659 = vadd.f32 0.0, %v658
    %660 = vmatprep.mubr.bf16.mxu0 0
    %661 = vmatmul.mubr.bf16.gmra.mrb[0].mxu0 %v512
    %v662 = vpop.f32.mrb[0].mxu0
    %v663 = vadd.f32 0.0, %v662
    %v664 = vpop.f32.mrb[0].mxu0
    %v665 = vadd.f32 0.0, %v664
    %v666 = vpop.f32.mrb[0].mxu0
    %v667 = vadd.f32 0.0, %v666
    %v668 = vpop.f32.mrb[0].mxu0
    %v669 = vadd.f32 0.0, %v668
    %670 = vmatprep.mubr.bf16.mxu0 0
    %671 = vmatmul.mubr.bf16.gmra.mrb[0].mxu0 %v511
    %v672 = vpop.f32.mrb[0].mxu0
    %v673 = vadd.f32 0.0, %v672
    %v674 = vpop.f32.mrb[0].mxu0
    %v675 = vadd.f32 0.0, %v674
    %v676 = vpop.f32.mrb[0].mxu0
    %v677 = vpop.f32.mrb[0].mxu0
    %678 = vdwg.mxu0
    %v679 = vadd.f32 %v464, %v633
    %v680 = vadd.f32 %v465, %v635
    %v681 = vadd.f32 %v466, %v637
    %v682 = vadd.f32 %v467, %v639
    %v683 = vadd.f32 %v468, %v643
    %v684 = vadd.f32 %v469, %v645
    %v685 = vadd.f32 %v470, %v647
    %v686 = vadd.f32 %v471, %v649
    %v687 = vadd.f32 %v472, %v653
    %v688 = vadd.f32 %v473, %v655
    %v689 = vadd.f32 %v474, %v657
    %v690 = vadd.f32 %v475, %v659
    %v691 = vadd.f32 %v476, %v663
    %v692 = vadd.f32 %v477, %v665
    %v693 = vadd.f32 %v478, %v667
    %v694 = vadd.f32 %v479, %v669
    %v695 = vadd.f32 %v480, %v673
    %v696 = vadd.f32 %v481, %v675
    %v697 = vmax.f32 %v679, 0.0
    %v698 = vmax.f32 %v680, 0.0
    %v699 = vmax.f32 %v681, 0.0
    %v700 = vmax.f32 %v682, 0.0
    %v701 = vmax.f32 %v683, 0.0
    %v702 = vmax.f32 %v684, 0.0
    %v703 = vmax.f32 %v685, 0.0
    %v704 = vmax.f32 %v686, 0.0
    %v705 = vmax.f32 %v687, 0.0
    %v706 = vmax.f32 %v688, 0.0
    %v707 = vmax.f32 %v689, 0.0
    %v708 = vmax.f32 %v690, 0.0
    %v709 = vmax.f32 %v691, 0.0
    %v710 = vmax.f32 %v692, 0.0
    %v711 = vmax.f32 %v693, 0.0
    %v712 = vmax.f32 %v694, 0.0
    %v713 = vmax.f32 %v695, 0.0
    %v714 = vmax.f32 %v696, 0.0
    %v715 = vld [vmem:[%s1 + $0x180] sm:$0xf]
    %v716 = vld [vmem:[%s1 + $0x188] sm:$0xf]
    %v717 = vld [vmem:[%s1 + $0x190] sm:$0xf]
    %v718 = vld [vmem:[%s1 + $0x198] sm:$0xf]
    %v719 = vld [vmem:[%s1 + $0x1a0] sm:$0x3]
    %v720 = vpack.c.bf16 %v699, %v697
    %v721 = vpack.c.bf16 %v700, %v698
    %v722 = vpack.c.bf16 %v703, %v701
    %v723 = vpack.c.bf16 %v704, %v702
    %v724 = vpack.c.bf16 %v707, %v705
    %v725 = vpack.c.bf16 %v708, %v706
    %v726 = vpack.c.bf16 %v711, %v709
    %v727 = vpack.c.bf16 %v712, %v710
    %v728 = vpack.c.bf16 %v713, %v713
    %v729 = vpack.c.bf16 %v714, %v714
    %v735 = vunpack.c.l.b16 %v715
    %v736 = vunpack.c.l.b16 %v716
    %v737 = vunpack.c.l.b16 %v717
    %v738 = vunpack.c.l.b16 %v718
    %v739 = vunpack.c.l.b16 %v719
    %v740 = vpack.c.b16 %v736, %v735
    %v741 = vpack.c.b16 %v738, %v737
    %v742 = vpack.c.b16 %v739, %v739
    %vm743 = vcmask 539648
    %v745 = vsel %vm743, %v740, 0
    %v748 = vsel %vm743, %v741, 0
    %v751 = vsel %vm743, %v742, 0
    %vm753 = vcmask 1040384
    %v755 = vsel %vm753, %v728, 0
    %v758 = vsel %vm753, %v729, 0
    %760 = vmatprep.subr.bf16.mxu0 %v721
    %761 = vmatpush1.bf16.msra.mxu0 %v720
    %762 = vmatprep.subr.bf16.mxu0 %v723
    %763 = vmatpush1.bf16.msra.mxu0 %v722
    %764 = vmatprep.subr.bf16.mxu0 %v725
    %765 = vmatpush1.bf16.msra.mxu0 %v724
    %766 = vmatprep.subr.bf16.mxu0 %v727
    %767 = vmatpush1.bf16.msra.mxu0 %v726
    %768 = vmatprep.subr.bf16.mxu0 %v758
    %769 = vmatpush1.bf16.msra.mxu0 %v755
    %770 = vmatprep.subr.bf16.mxu0 0
    %771 = vmatpush1.bf16.msra.mxu0 0
    %772 = vmatprep.subr.bf16.mxu0 0
    %773 = vmatpush1.bf16.msra.mxu0 0
    %774 = vmatprep.subr.bf16.mxu0 0
    %775 = vmatpush1.bf16.msra.mxu0 0
    %776 = vmatprep.subr.bf16.mxu0 0
    %777 = vmatpush1.bf16.msra.mxu0 0
    %778 = vmatprep.subr.bf16.mxu0 0
    %779 = vmatpush1.bf16.msra.mxu0 0
    %780 = vmatprep.subr.bf16.mxu0 0
    %781 = vmatpush1.bf16.msra.mxu0 0
    %782 = vmatprep.subr.bf16.mxu0 0
    %783 = vmatpush1.bf16.msra.mxu0 0
    %784 = vmatprep.subr.bf16.mxu0 0
    %785 = vmatpush1.bf16.msra.mxu0 0
    %786 = vmatprep.subr.bf16.mxu0 0
    %787 = vmatpush1.bf16.msra.mxu0 0
    %788 = vmatprep.subr.bf16.mxu0 0
    %789 = vmatpush1.bf16.msra.mxu0 0
    %790 = vmatprep.subr.bf16.mxu0 0
    %791 = vmatpush1.bf16.msra.mxu0 0
    %792 = vmatprep.mubr.bf16.mxu0 0
    %793 = vmatmul.mubr.bf16.gmra.mrb[0].mxu0 %v745
    %v794 = vpop.f32.mrb[0].mxu0
    %v795 = vadd.f32 0.0, %v794
    %v796 = vpop.f32.mrb[0].mxu0
    %v797 = vadd.f32 0.0, %v796
    %v798 = vpop.f32.mrb[0].mxu0
    %v799 = vadd.f32 0.0, %v798
    %v800 = vpop.f32.mrb[0].mxu0
    %v801 = vadd.f32 0.0, %v800
    %802 = vmatprep.mubr.bf16.mxu0 0
    %803 = vmatmul.mubr.bf16.gmra.mrb[0].mxu0 %v748
    %v804 = vpop.f32.mrb[0].mxu0
    %v805 = vadd.f32 0.0, %v804
    %v806 = vpop.f32.mrb[0].mxu0
    %v807 = vadd.f32 0.0, %v806
    %v808 = vpop.f32.mrb[0].mxu0
    %v809 = vadd.f32 0.0, %v808
    %v810 = vpop.f32.mrb[0].mxu0
    %v811 = vadd.f32 0.0, %v810
    %812 = vmatprep.mubr.bf16.mxu0 0
    %813 = vmatmul.mubr.bf16.gmra.mrb[0].mxu0 %v751
    %v814 = vpop.f32.mrb[0].mxu0
    %v815 = vadd.f32 0.0, %v814
    %v816 = vpop.f32.mrb[0].mxu0
    %v817 = vadd.f32 0.0, %v816
    %v818 = vpop.f32.mrb[0].mxu0
    %v819 = vpop.f32.mrb[0].mxu0
    %820 = vdwg.mxu0
    %v821 = vld [vmem:[%s1 + $0x1c0] sm:$0xf]
    %v822 = vld [vmem:[%s1 + $0x1c8] sm:$0xf]
    %v823 = vld [vmem:[%s1 + $0x1d0] sm:$0xf]
    %v824 = vld [vmem:[%s1 + $0x1d8] sm:$0xf]
    %v825 = vld [vmem:[%s1 + $0x1e0] sm:$0x3]
    %v831 = vunpack.c.l.b16 %v821
    %v832 = vunpack.c.l.b16 %v822
    %v833 = vunpack.c.l.b16 %v823
    %v834 = vunpack.c.l.b16 %v824
    %v835 = vunpack.c.l.b16 %v825
    %v836 = vpack.c.b16 %v832, %v831
    %v837 = vpack.c.b16 %v834, %v833
    %v838 = vpack.c.b16 %v835, %v835
    %v840 = vsel %vm743, %v836, 0
    %v843 = vsel %vm743, %v837, 0
    %v846 = vsel %vm743, %v838, 0
    %848 = vmatprep.subr.bf16.mxu0 %v721
    %849 = vmatpush1.bf16.msra.mxu0 %v720
    %850 = vmatprep.subr.bf16.mxu0 %v723
    %851 = vmatpush1.bf16.msra.mxu0 %v722
    %852 = vmatprep.subr.bf16.mxu0 %v725
    %853 = vmatpush1.bf16.msra.mxu0 %v724
    %854 = vmatprep.subr.bf16.mxu0 %v727
    %855 = vmatpush1.bf16.msra.mxu0 %v726
    %856 = vmatprep.subr.bf16.mxu0 %v758
    %857 = vmatpush1.bf16.msra.mxu0 %v755
    %858 = vmatprep.subr.bf16.mxu0 0
    %859 = vmatpush1.bf16.msra.mxu0 0
    %860 = vmatprep.subr.bf16.mxu0 0
    %861 = vmatpush1.bf16.msra.mxu0 0
    %862 = vmatprep.subr.bf16.mxu0 0
    %863 = vmatpush1.bf16.msra.mxu0 0
    %864 = vmatprep.subr.bf16.mxu0 0
    %865 = vmatpush1.bf16.msra.mxu0 0
    %866 = vmatprep.subr.bf16.mxu0 0
    %867 = vmatpush1.bf16.msra.mxu0 0
    %868 = vmatprep.subr.bf16.mxu0 0
    %869 = vmatpush1.bf16.msra.mxu0 0
    %870 = vmatprep.subr.bf16.mxu0 0
    %871 = vmatpush1.bf16.msra.mxu0 0
    %872 = vmatprep.subr.bf16.mxu0 0
    %873 = vmatpush1.bf16.msra.mxu0 0
    %874 = vmatprep.subr.bf16.mxu0 0
    %875 = vmatpush1.bf16.msra.mxu0 0
    %876 = vmatprep.subr.bf16.mxu0 0
    %877 = vmatpush1.bf16.msra.mxu0 0
    %878 = vmatprep.subr.bf16.mxu0 0
    %879 = vmatpush1.bf16.msra.mxu0 0
    %880 = vmatprep.mubr.bf16.mxu0 0
    %881 = vmatmul.mubr.bf16.gmra.mrb[0].mxu0 %v840
    %v882 = vpop.f32.mrb[0].mxu0
    %v883 = vadd.f32 0.0, %v882
    %v884 = vpop.f32.mrb[0].mxu0
    %v885 = vadd.f32 0.0, %v884
    %v886 = vpop.f32.mrb[0].mxu0
    %v887 = vadd.f32 0.0, %v886
    %v888 = vpop.f32.mrb[0].mxu0
    %v889 = vadd.f32 0.0, %v888
    %890 = vmatprep.mubr.bf16.mxu0 0
    %891 = vmatmul.mubr.bf16.gmra.mrb[0].mxu0 %v843
    %v892 = vpop.f32.mrb[0].mxu0
    %v893 = vadd.f32 0.0, %v892
    %v894 = vpop.f32.mrb[0].mxu0
    %v895 = vadd.f32 0.0, %v894
    %v896 = vpop.f32.mrb[0].mxu0
    %v897 = vadd.f32 0.0, %v896
    %v898 = vpop.f32.mrb[0].mxu0
    %v899 = vadd.f32 0.0, %v898
    %900 = vmatprep.mubr.bf16.mxu0 0
    %901 = vmatmul.mubr.bf16.gmra.mrb[0].mxu0 %v846
    %v902 = vpop.f32.mrb[0].mxu0
    %v903 = vadd.f32 0.0, %v902
    %v904 = vpop.f32.mrb[0].mxu0
    %v905 = vadd.f32 0.0, %v904
    %v906 = vpop.f32.mrb[0].mxu0
    %v907 = vpop.f32.mrb[0].mxu0
    %908 = vdwg.mxu0
    %v909 = vmax.f32 %v795, %v883
    %v910 = vmax.f32 %v797, %v885
    %v911 = vmax.f32 %v799, %v887
    %v912 = vmax.f32 %v801, %v889
    %v913 = vmax.f32 %v805, %v893
    %v914 = vmax.f32 %v807, %v895
    %v915 = vmax.f32 %v809, %v897
    %v916 = vmax.f32 %v811, %v899
    %v917 = vmax.f32 %v815, %v903
    %v918 = vmax.f32 %v817, %v905
    %v919 = vld [vmem:[%s1 + $0x200] sm:$0xff]
    %v920 = vld [vmem:[%s1 + $0x208] sm:$0xff]
    %v921 = vld [vmem:[%s1 + $0x210] sm:$0xff]
    %v922 = vld [vmem:[%s1 + $0x218] sm:$0xff]
    %v923 = vld [vmem:[%s1 + $0x220] sm:$0xff]
    %v924 = vld [vmem:[%s1 + $0x228] sm:$0xff]
    %v925 = vld [vmem:[%s1 + $0x230] sm:$0xff]
    %v926 = vld [vmem:[%s1 + $0x238] sm:$0xff]
    %v927 = vld [vmem:[%s1 + $0x240] sm:$0xff]
    %v928 = vld [vmem:[%s1 + $0x248] sm:$0xff]
    %v929 = vld [vmem:[%s1 + $0x250] sm:$0xff]
    %v930 = vld [vmem:[%s1 + $0x258] sm:$0xff]
    %v931 = vld [vmem:[%s1 + $0x260] sm:$0xff]
    %v932 = vld [vmem:[%s1 + $0x268] sm:$0xff]
    %v933 = vld [vmem:[%s1 + $0x270] sm:$0xff]
    %v934 = vld [vmem:[%s1 + $0x278] sm:$0xff]
    %v935 = vld [vmem:[%s1 + $0x280] sm:$0xff]
    %v936 = vld [vmem:[%s1 + $0x288] sm:$0xff]
    %v937 = vld [vmem:[%s1 + $0x290] sm:$0xff]
    %v938 = vld [vmem:[%s1 + $0x298] sm:$0xff]
    %v939 = vld [vmem:[%s1 + $0x2a0] sm:$0xff]
    %v940 = vld [vmem:[%s1 + $0x2a8] sm:$0xff]
    %v941 = vld [vmem:[%s1 + $0x2b0] sm:$0xff]
    %v942 = vld [vmem:[%s1 + $0x2b8] sm:$0xff]
    %v943 = vld [vmem:[%s1 + $0x2c0] sm:$0xff]
    %v944 = vld [vmem:[%s1 + $0x2c8] sm:$0xff]
    %v945 = vld [vmem:[%s1 + $0x2d0] sm:$0xff]
    %v946 = vld [vmem:[%s1 + $0x2d8] sm:$0xff]
    %v947 = vld [vmem:[%s1 + $0x2e0] sm:$0xff]
    %v948 = vld [vmem:[%s1 + $0x2e8] sm:$0xff]
    %v949 = vld [vmem:[%s1 + $0x2f0] sm:$0xff]
    %v950 = vld [vmem:[%s1 + $0x2f8] sm:$0xff]
    %v951 = vpack.c.bf16 %v911, %v909
    %v952 = vpack.c.bf16 %v912, %v910
    %v953 = vpack.c.bf16 %v915, %v913
    %v954 = vpack.c.bf16 %v916, %v914
    %v955 = vpack.c.bf16 %v917, %v917
    %v956 = vpack.c.bf16 %v918, %v918
    %v989 = vunpack.c.l.b16 %v919
    %v990 = vunpack.c.h.b16 %v919
    %v991 = vunpack.c.l.b16 %v920
    %v992 = vunpack.c.h.b16 %v920
    %v993 = vunpack.c.l.b16 %v921
    %v994 = vunpack.c.h.b16 %v921
    %v995 = vunpack.c.l.b16 %v922
    %v996 = vunpack.c.h.b16 %v922
    %v997 = vunpack.c.l.b16 %v923
    %v998 = vunpack.c.h.b16 %v923
    %v999 = vunpack.c.l.b16 %v924
    %v1000 = vunpack.c.h.b16 %v924
    %v1001 = vunpack.c.l.b16 %v925
    %v1002 = vunpack.c.h.b16 %v925
    %v1003 = vunpack.c.l.b16 %v926
    %v1004 = vunpack.c.h.b16 %v926
    %v1005 = vunpack.c.l.b16 %v927
    %v1006 = vunpack.c.h.b16 %v927
    %v1007 = vunpack.c.l.b16 %v928
    %v1008 = vunpack.c.h.b16 %v928
    %v1009 = vunpack.c.l.b16 %v929
    %v1010 = vunpack.c.h.b16 %v929
    %v1011 = vunpack.c.l.b16 %v930
    %v1012 = vunpack.c.h.b16 %v930
    %v1013 = vunpack.c.l.b16 %v931
    %v1014 = vunpack.c.h.b16 %v931
    %v1015 = vunpack.c.l.b16 %v932
    %v1016 = vunpack.c.h.b16 %v932
    %v1017 = vunpack.c.l.b16 %v933
    %v1018 = vunpack.c.h.b16 %v933
    %v1019 = vunpack.c.l.b16 %v934
    %v1020 = vunpack.c.h.b16 %v934
    %v1021 = vunpack.c.l.b16 %v935
    %v1022 = vunpack.c.h.b16 %v935
    %v1023 = vunpack.c.l.b16 %v936
    %v1024 = vunpack.c.h.b16 %v936
    %v1025 = vunpack.c.l.b16 %v937
    %v1026 = vunpack.c.h.b16 %v937
    %v1027 = vunpack.c.l.b16 %v938
    %v1028 = vunpack.c.h.b16 %v938
    %v1029 = vunpack.c.l.b16 %v939
    %v1030 = vunpack.c.h.b16 %v939
    %v1031 = vunpack.c.l.b16 %v940
    %v1032 = vunpack.c.h.b16 %v940
    %v1033 = vunpack.c.l.b16 %v941
    %v1034 = vunpack.c.h.b16 %v941
    %v1035 = vunpack.c.l.b16 %v942
    %v1036 = vunpack.c.h.b16 %v942
    %v1037 = vunpack.c.l.b16 %v943
    %v1038 = vunpack.c.h.b16 %v943
    %v1039 = vunpack.c.l.b16 %v944
    %v1040 = vunpack.c.h.b16 %v944
    %v1041 = vunpack.c.l.b16 %v945
    %v1042 = vunpack.c.h.b16 %v945
    %v1043 = vunpack.c.l.b16 %v946
    %v1044 = vunpack.c.h.b16 %v946
    %v1045 = vunpack.c.l.b16 %v947
    %v1046 = vunpack.c.h.b16 %v947
    %v1047 = vunpack.c.l.b16 %v948
    %v1048 = vunpack.c.h.b16 %v948
    %v1049 = vunpack.c.l.b16 %v949
    %v1050 = vunpack.c.h.b16 %v949
    %v1051 = vunpack.c.l.b16 %v950
    %v1052 = vunpack.c.h.b16 %v950
    %v1053 = vpack.c.b16 %v991, %v989
    %v1054 = vpack.c.b16 %v992, %v990
    %v1055 = vpack.c.b16 %v995, %v993
    %v1056 = vpack.c.b16 %v996, %v994
    %v1057 = vpack.c.b16 %v999, %v997
    %v1058 = vpack.c.b16 %v1000, %v998
    %v1059 = vpack.c.b16 %v1003, %v1001
    %v1060 = vpack.c.b16 %v1004, %v1002
    %v1061 = vpack.c.b16 %v1007, %v1005
    %v1062 = vpack.c.b16 %v1008, %v1006
    %v1063 = vpack.c.b16 %v1011, %v1009
    %v1064 = vpack.c.b16 %v1012, %v1010
    %v1065 = vpack.c.b16 %v1015, %v1013
    %v1066 = vpack.c.b16 %v1016, %v1014
    %v1067 = vpack.c.b16 %v1019, %v1017
    %v1068 = vpack.c.b16 %v1020, %v1018
    %v1069 = vpack.c.b16 %v1023, %v1021
    %v1070 = vpack.c.b16 %v1024, %v1022
    %v1071 = vpack.c.b16 %v1027, %v1025
    %v1072 = vpack.c.b16 %v1028, %v1026
    %v1073 = vpack.c.b16 %v1031, %v1029
    %v1074 = vpack.c.b16 %v1032, %v1030
    %v1075 = vpack.c.b16 %v1035, %v1033
    %v1076 = vpack.c.b16 %v1036, %v1034
    %v1077 = vpack.c.b16 %v1039, %v1037
    %v1078 = vpack.c.b16 %v1040, %v1038
    %v1079 = vpack.c.b16 %v1043, %v1041
    %v1080 = vpack.c.b16 %v1044, %v1042
    %v1081 = vpack.c.b16 %v1047, %v1045
    %v1082 = vpack.c.b16 %v1048, %v1046
    %v1083 = vpack.c.b16 %v1051, %v1049
    %v1084 = vpack.c.b16 %v1052, %v1050
    %1117 = vmatprep.subr.bf16.mxu0 %v1054
    %1118 = vmatpush1.bf16.msra.mxu0 %v1053
    %1119 = vmatprep.subr.bf16.mxu0 %v1056
    %1120 = vmatpush1.bf16.msra.mxu0 %v1055
    %1121 = vmatprep.subr.bf16.mxu0 %v1058
    %1122 = vmatpush1.bf16.msra.mxu0 %v1057
    %1123 = vmatprep.subr.bf16.mxu0 %v1060
    %1124 = vmatpush1.bf16.msra.mxu0 %v1059
    %1125 = vmatprep.subr.bf16.mxu0 %v1062
    %1126 = vmatpush1.bf16.msra.mxu0 %v1061
    %1127 = vmatprep.subr.bf16.mxu0 %v1064
    %1128 = vmatpush1.bf16.msra.mxu0 %v1063
    %1129 = vmatprep.subr.bf16.mxu0 %v1066
    %1130 = vmatpush1.bf16.msra.mxu0 %v1065
    %1131 = vmatprep.subr.bf16.mxu0 %v1068
    %1132 = vmatpush1.bf16.msra.mxu0 %v1067
    %1133 = vmatprep.subr.bf16.mxu0 %v1070
    %1134 = vmatpush1.bf16.msra.mxu0 %v1069
    %1135 = vmatprep.subr.bf16.mxu0 %v1072
    %1136 = vmatpush1.bf16.msra.mxu0 %v1071
    %1137 = vmatprep.subr.bf16.mxu0 %v1074
    %1138 = vmatpush1.bf16.msra.mxu0 %v1073
    %1139 = vmatprep.subr.bf16.mxu0 %v1076
    %1140 = vmatpush1.bf16.msra.mxu0 %v1075
    %1141 = vmatprep.subr.bf16.mxu0 %v1078
    %1142 = vmatpush1.bf16.msra.mxu0 %v1077
    %1143 = vmatprep.subr.bf16.mxu0 %v1080
    %1144 = vmatpush1.bf16.msra.mxu0 %v1079
    %1145 = vmatprep.subr.bf16.mxu0 %v1082
    %1146 = vmatpush1.bf16.msra.mxu0 %v1081
    %1147 = vmatprep.subr.bf16.mxu0 %v1084
    %1148 = vmatpush1.bf16.msra.mxu0 %v1083
    %1149 = vmatprep.mubr.bf16.mxu0 %v952
    %1150 = vmatmul.mubr.bf16.gmra.mrb[0].mxu0 %v951
    %v1151 = vpop.f32.mrb[0].mxu0
    %v1152 = vadd.f32 0.0, %v1151
    %v1153 = vpop.f32.mrb[0].mxu0
    %v1154 = vadd.f32 0.0, %v1153
    %v1155 = vpop.f32.mrb[0].mxu0
    %v1156 = vadd.f32 0.0, %v1155
    %v1157 = vpop.f32.mrb[0].mxu0
    %v1158 = vadd.f32 0.0, %v1157
    %1159 = vmatprep.mubr.bf16.mxu0 %v954
    %1160 = vmatmul.mubr.bf16.gmra.mrb[0].mxu0 %v953
    %v1161 = vpop.f32.mrb[0].mxu0
    %v1162 = vadd.f32 0.0, %v1161
    %v1163 = vpop.f32.mrb[0].mxu0
    %v1164 = vadd.f32 0.0, %v1163
    %v1165 = vpop.f32.mrb[0].mxu0
    %v1166 = vadd.f32 0.0, %v1165
    %v1167 = vpop.f32.mrb[0].mxu0
    %v1168 = vadd.f32 0.0, %v1167
    %1169 = vmatprep.mubr.bf16.mxu0 %v956
    %1170 = vmatmul.mubr.bf16.gmra.mrb[0].mxu0 %v955
    %v1171 = vpop.f32.mrb[0].mxu0
    %v1172 = vadd.f32 0.0, %v1171
    %v1173 = vpop.f32.mrb[0].mxu0
    %v1174 = vadd.f32 0.0, %v1173
    %v1175 = vpop.f32.mrb[0].mxu0
    %v1176 = vpop.f32.mrb[0].mxu0
    %1177 = vdwg.mxu0
    %v1178 = vld [vmem:[%s1 + $0x300] sm:$0xff]
    %v1179 = vld [vmem:[%s1 + $0x308] sm:$0xff]
    %v1180 = vld [vmem:[%s1 + $0x310] sm:$0xff]
    %v1181 = vld [vmem:[%s1 + $0x318] sm:$0xff]
    %v1182 = vld [vmem:[%s1 + $0x320] sm:$0xff]
    %v1183 = vld [vmem:[%s1 + $0x328] sm:$0xff]
    %v1184 = vld [vmem:[%s1 + $0x330] sm:$0xff]
    %v1185 = vld [vmem:[%s1 + $0x338] sm:$0xff]
    %v1186 = vld [vmem:[%s1 + $0x340] sm:$0xff]
    %v1187 = vld [vmem:[%s1 + $0x348] sm:$0xff]
    %v1188 = vld [vmem:[%s1 + $0x350] sm:$0xff]
    %v1189 = vld [vmem:[%s1 + $0x358] sm:$0xff]
    %v1190 = vld [vmem:[%s1 + $0x360] sm:$0xff]
    %v1191 = vld [vmem:[%s1 + $0x368] sm:$0xff]
    %v1192 = vld [vmem:[%s1 + $0x370] sm:$0xff]
    %v1193 = vld [vmem:[%s1 + $0x378] sm:$0xff]
    %v1194 = vld [vmem:[%s1 + $0x380] sm:$0xff]
    %v1195 = vld [vmem:[%s1 + $0x388] sm:$0xff]
    %v1196 = vld [vmem:[%s1 + $0x390] sm:$0xff]
    %v1197 = vld [vmem:[%s1 + $0x398] sm:$0xff]
    %v1198 = vld [vmem:[%s1 + $0x3a0] sm:$0xff]
    %v1199 = vld [vmem:[%s1 + $0x3a8] sm:$0xff]
    %v1200 = vld [vmem:[%s1 + $0x3b0] sm:$0xff]
    %v1201 = vld [vmem:[%s1 + $0x3b8] sm:$0xff]
    %v1202 = vld [vmem:[%s1 + $0x3c0] sm:$0xff]
    %v1203 = vld [vmem:[%s1 + $0x3c8] sm:$0xff]
    %v1204 = vld [vmem:[%s1 + $0x3d0] sm:$0xff]
    %v1205 = vld [vmem:[%s1 + $0x3d8] sm:$0xff]
    %v1206 = vld [vmem:[%s1 + $0x3e0] sm:$0xff]
    %v1207 = vld [vmem:[%s1 + $0x3e8] sm:$0xff]
    %v1208 = vld [vmem:[%s1 + $0x3f0] sm:$0xff]
    %v1209 = vld [vmem:[%s1 + $0x3f8] sm:$0xff]
    %v1242 = vunpack.c.l.b16 %v1178
    %v1243 = vunpack.c.h.b16 %v1178
    %v1244 = vunpack.c.l.b16 %v1179
    %v1245 = vunpack.c.h.b16 %v1179
    %v1246 = vunpack.c.l.b16 %v1180
    %v1247 = vunpack.c.h.b16 %v1180
    %v1248 = vunpack.c.l.b16 %v1181
    %v1249 = vunpack.c.h.b16 %v1181
    %v1250 = vunpack.c.l.b16 %v1182
    %v1251 = vunpack.c.h.b16 %v1182
    %v1252 = vunpack.c.l.b16 %v1183
    %v1253 = vunpack.c.h.b16 %v1183
    %v1254 = vunpack.c.l.b16 %v1184
    %v1255 = vunpack.c.h.b16 %v1184
    %v1256 = vunpack.c.l.b16 %v1185
    %v1257 = vunpack.c.h.b16 %v1185
    %v1258 = vunpack.c.l.b16 %v1186
    %v1259 = vunpack.c.h.b16 %v1186
    %v1260 = vunpack.c.l.b16 %v1187
    %v1261 = vunpack.c.h.b16 %v1187
    %v1262 = vunpack.c.l.b16 %v1188
    %v1263 = vunpack.c.h.b16 %v1188
    %v1264 = vunpack.c.l.b16 %v1189
    %v1265 = vunpack.c.h.b16 %v1189
    %v1266 = vunpack.c.l.b16 %v1190
    %v1267 = vunpack.c.h.b16 %v1190
    %v1268 = vunpack.c.l.b16 %v1191
    %v1269 = vunpack.c.h.b16 %v1191
    %v1270 = vunpack.c.l.b16 %v1192
    %v1271 = vunpack.c.h.b16 %v1192
    %v1272 = vunpack.c.l.b16 %v1193
    %v1273 = vunpack.c.h.b16 %v1193
    %v1274 = vunpack.c.l.b16 %v1194
    %v1275 = vunpack.c.h.b16 %v1194
    %v1276 = vunpack.c.l.b16 %v1195
    %v1277 = vunpack.c.h.b16 %v1195
    %v1278 = vunpack.c.l.b16 %v1196
    %v1279 = vunpack.c.h.b16 %v1196
    %v1280 = vunpack.c.l.b16 %v1197
    %v1281 = vunpack.c.h.b16 %v1197
    %v1282 = vunpack.c.l.b16 %v1198
    %v1283 = vunpack.c.h.b16 %v1198
    %v1284 = vunpack.c.l.b16 %v1199
    %v1285 = vunpack.c.h.b16 %v1199
    %v1286 = vunpack.c.l.b16 %v1200
    %v1287 = vunpack.c.h.b16 %v1200
    %v1288 = vunpack.c.l.b16 %v1201
    %v1289 = vunpack.c.h.b16 %v1201
    %v1290 = vunpack.c.l.b16 %v1202
    %v1291 = vunpack.c.h.b16 %v1202
    %v1292 = vunpack.c.l.b16 %v1203
    %v1293 = vunpack.c.h.b16 %v1203
    %v1294 = vunpack.c.l.b16 %v1204
    %v1295 = vunpack.c.h.b16 %v1204
    %v1296 = vunpack.c.l.b16 %v1205
    %v1297 = vunpack.c.h.b16 %v1205
    %v1298 = vunpack.c.l.b16 %v1206
    %v1299 = vunpack.c.h.b16 %v1206
    %v1300 = vunpack.c.l.b16 %v1207
    %v1301 = vunpack.c.h.b16 %v1207
    %v1302 = vunpack.c.l.b16 %v1208
    %v1303 = vunpack.c.h.b16 %v1208
    %v1304 = vunpack.c.l.b16 %v1209
    %v1305 = vunpack.c.h.b16 %v1209
    %v1306 = vpack.c.b16 %v1244, %v1242
    %v1307 = vpack.c.b16 %v1245, %v1243
    %v1308 = vpack.c.b16 %v1248, %v1246
    %v1309 = vpack.c.b16 %v1249, %v1247
    %v1310 = vpack.c.b16 %v1252, %v1250
    %v1311 = vpack.c.b16 %v1253, %v1251
    %v1312 = vpack.c.b16 %v1256, %v1254
    %v1313 = vpack.c.b16 %v1257, %v1255
    %v1314 = vpack.c.b16 %v1260, %v1258
    %v1315 = vpack.c.b16 %v1261, %v1259
    %v1316 = vpack.c.b16 %v1264, %v1262
    %v1317 = vpack.c.b16 %v1265, %v1263
    %v1318 = vpack.c.b16 %v1268, %v1266
    %v1319 = vpack.c.b16 %v1269, %v1267
    %v1320 = vpack.c.b16 %v1272, %v1270
    %v1321 = vpack.c.b16 %v1273, %v1271
    %v1322 = vpack.c.b16 %v1276, %v1274
    %v1323 = vpack.c.b16 %v1277, %v1275
    %v1324 = vpack.c.b16 %v1280, %v1278
    %v1325 = vpack.c.b16 %v1281, %v1279
    %v1326 = vpack.c.b16 %v1284, %v1282
    %v1327 = vpack.c.b16 %v1285, %v1283
    %v1328 = vpack.c.b16 %v1288, %v1286
    %v1329 = vpack.c.b16 %v1289, %v1287
    %v1330 = vpack.c.b16 %v1292, %v1290
    %v1331 = vpack.c.b16 %v1293, %v1291
    %v1332 = vpack.c.b16 %v1296, %v1294
    %v1333 = vpack.c.b16 %v1297, %v1295
    %v1334 = vpack.c.b16 %v1300, %v1298
    %v1335 = vpack.c.b16 %v1301, %v1299
    %v1336 = vpack.c.b16 %v1304, %v1302
    %v1337 = vpack.c.b16 %v1305, %v1303
    %1370 = vmatprep.subr.bf16.mxu0 %v1307
    %1371 = vmatpush1.bf16.msra.mxu0 %v1306
    %1372 = vmatprep.subr.bf16.mxu0 %v1309
    %1373 = vmatpush1.bf16.msra.mxu0 %v1308
    %1374 = vmatprep.subr.bf16.mxu0 %v1311
    %1375 = vmatpush1.bf16.msra.mxu0 %v1310
    %1376 = vmatprep.subr.bf16.mxu0 %v1313
    %1377 = vmatpush1.bf16.msra.mxu0 %v1312
    %1378 = vmatprep.subr.bf16.mxu0 %v1315
    %1379 = vmatpush1.bf16.msra.mxu0 %v1314
    %1380 = vmatprep.subr.bf16.mxu0 %v1317
    %1381 = vmatpush1.bf16.msra.mxu0 %v1316
    %1382 = vmatprep.subr.bf16.mxu0 %v1319
    %1383 = vmatpush1.bf16.msra.mxu0 %v1318
    %1384 = vmatprep.subr.bf16.mxu0 %v1321
    %1385 = vmatpush1.bf16.msra.mxu0 %v1320
    %1386 = vmatprep.subr.bf16.mxu0 %v1323
    %1387 = vmatpush1.bf16.msra.mxu0 %v1322
    %1388 = vmatprep.subr.bf16.mxu0 %v1325
    %1389 = vmatpush1.bf16.msra.mxu0 %v1324
    %1390 = vmatprep.subr.bf16.mxu0 %v1327
    %1391 = vmatpush1.bf16.msra.mxu0 %v1326
    %1392 = vmatprep.subr.bf16.mxu0 %v1329
    %1393 = vmatpush1.bf16.msra.mxu0 %v1328
    %1394 = vmatprep.subr.bf16.mxu0 %v1331
    %1395 = vmatpush1.bf16.msra.mxu0 %v1330
    %1396 = vmatprep.subr.bf16.mxu0 %v1333
    %1397 = vmatpush1.bf16.msra.mxu0 %v1332
    %1398 = vmatprep.subr.bf16.mxu0 %v1335
    %1399 = vmatpush1.bf16.msra.mxu0 %v1334
    %1400 = vmatprep.subr.bf16.mxu0 %v1337
    %1401 = vmatpush1.bf16.msra.mxu0 %v1336
    %1402 = vmatprep.mubr.bf16.mxu0 %v952
    %1403 = vmatmul.mubr.bf16.gmra.mrb[0].mxu0 %v951
    %v1404 = vpop.f32.mrb[0].mxu0
    %v1405 = vadd.f32 0.0, %v1404
    %v1406 = vpop.f32.mrb[0].mxu0
    %v1407 = vadd.f32 0.0, %v1406
    %v1408 = vpop.f32.mrb[0].mxu0
    %v1409 = vadd.f32 0.0, %v1408
    %v1410 = vpop.f32.mrb[0].mxu0
    %v1411 = vadd.f32 0.0, %v1410
    %1412 = vmatprep.mubr.bf16.mxu0 %v954
    %1413 = vmatmul.mubr.bf16.gmra.mrb[0].mxu0 %v953
    %v1414 = vpop.f32.mrb[0].mxu0
    %v1415 = vadd.f32 0.0, %v1414
    %v1416 = vpop.f32.mrb[0].mxu0
    %v1417 = vadd.f32 0.0, %v1416
    %v1418 = vpop.f32.mrb[0].mxu0
    %v1419 = vadd.f32 0.0, %v1418
    %v1420 = vpop.f32.mrb[0].mxu0
    %v1421 = vadd.f32 0.0, %v1420
    %1422 = vmatprep.mubr.bf16.mxu0 %v956
    %1423 = vmatmul.mubr.bf16.gmra.mrb[0].mxu0 %v955
    %v1424 = vpop.f32.mrb[0].mxu0
    %v1425 = vadd.f32 0.0, %v1424
    %v1426 = vpop.f32.mrb[0].mxu0
    %v1427 = vadd.f32 0.0, %v1426
    %v1428 = vpop.f32.mrb[0].mxu0
    %v1429 = vpop.f32.mrb[0].mxu0
    %1430 = vdwg.mxu0
    %v1431 = vmax.f32 %v1152, %v1405
    %v1432 = vmax.f32 %v1154, %v1407
    %v1433 = vmax.f32 %v1156, %v1409
    %v1434 = vmax.f32 %v1158, %v1411
    %v1435 = vmax.f32 %v1162, %v1415
    %v1436 = vmax.f32 %v1164, %v1417
    %v1437 = vmax.f32 %v1166, %v1419
    %v1438 = vmax.f32 %v1168, %v1421
    %v1439 = vmax.f32 %v1172, %v1425
    %v1440 = vmax.f32 %v1174, %v1427
    %s1441 = scalar_lea.vmem %s3, 1
    %v1442 = vld [vmem:[%s1441] ss:$8 sm:$0x3]
    %v1443 = vld [vmem:[%s1 + $0x400] sm:$0xff]
    %v1444 = vld [vmem:[%s1 + $0x408] sm:$0xff]
    %v1445 = vld [vmem:[%s1 + $0x410] sm:$0xff]
    %v1446 = vld [vmem:[%s1 + $0x418] sm:$0xff]
    %v1447 = vld [vmem:[%s1 + $0x420] sm:$0xff]
    %v1448 = vld [vmem:[%s1 + $0x428] sm:$0xff]
    %v1449 = vld [vmem:[%s1 + $0x430] sm:$0xff]
    %v1450 = vld [vmem:[%s1 + $0x438] sm:$0xff]
    %v1451 = vld [vmem:[%s1 + $0x440] sm:$0xff]
    %v1452 = vld [vmem:[%s1 + $0x448] sm:$0xff]
    %v1453 = vld [vmem:[%s1 + $0x450] sm:$0xff]
    %v1454 = vld [vmem:[%s1 + $0x458] sm:$0xff]
    %v1455 = vld [vmem:[%s1 + $0x460] sm:$0xff]
    %v1456 = vld [vmem:[%s1 + $0x468] sm:$0xff]
    %v1457 = vld [vmem:[%s1 + $0x470] sm:$0xff]
    %v1458 = vld [vmem:[%s1 + $0x478] sm:$0xff]
    %v1459 = vld [vmem:[%s1 + $0x480] sm:$0xff]
    %v1460 = vld [vmem:[%s1 + $0x488] sm:$0xff]
    %v1461 = vld [vmem:[%s1 + $0x490] sm:$0xff]
    %v1462 = vld [vmem:[%s1 + $0x498] sm:$0xff]
    %v1463 = vld [vmem:[%s1 + $0x4a0] sm:$0xff]
    %v1464 = vld [vmem:[%s1 + $0x4a8] sm:$0xff]
    %v1465 = vld [vmem:[%s1 + $0x4b0] sm:$0xff]
    %v1466 = vld [vmem:[%s1 + $0x4b8] sm:$0xff]
    %v1467 = vld [vmem:[%s1 + $0x4c0] sm:$0xff]
    %v1468 = vld [vmem:[%s1 + $0x4c8] sm:$0xff]
    %v1469 = vld [vmem:[%s1 + $0x4d0] sm:$0xff]
    %v1470 = vld [vmem:[%s1 + $0x4d8] sm:$0xff]
    %v1471 = vld [vmem:[%s1 + $0x4e0] sm:$0xff]
    %v1472 = vld [vmem:[%s1 + $0x4e8] sm:$0xff]
    %v1473 = vld [vmem:[%s1 + $0x4f0] sm:$0xff]
    %v1474 = vld [vmem:[%s1 + $0x4f8] sm:$0xff]
    %v1475 = vpack.c.bf16 %v1433, %v1431
    %v1476 = vpack.c.bf16 %v1434, %v1432
    %v1477 = vpack.c.bf16 %v1437, %v1435
    %v1478 = vpack.c.bf16 %v1438, %v1436
    %v1479 = vpack.c.bf16 %v1439, %v1439
    %v1480 = vpack.c.bf16 %v1440, %v1440
    %v1513 = vunpack.c.l.b16 %v1443
    %v1514 = vunpack.c.h.b16 %v1443
    %v1515 = vunpack.c.l.b16 %v1444
    %v1516 = vunpack.c.h.b16 %v1444
    %v1517 = vunpack.c.l.b16 %v1445
    %v1518 = vunpack.c.h.b16 %v1445
    %v1519 = vunpack.c.l.b16 %v1446
    %v1520 = vunpack.c.h.b16 %v1446
    %v1521 = vunpack.c.l.b16 %v1447
    %v1522 = vunpack.c.h.b16 %v1447
    %v1523 = vunpack.c.l.b16 %v1448
    %v1524 = vunpack.c.h.b16 %v1448
    %v1525 = vunpack.c.l.b16 %v1449
    %v1526 = vunpack.c.h.b16 %v1449
    %v1527 = vunpack.c.l.b16 %v1450
    %v1528 = vunpack.c.h.b16 %v1450
    %v1529 = vunpack.c.l.b16 %v1451
    %v1530 = vunpack.c.h.b16 %v1451
    %v1531 = vunpack.c.l.b16 %v1452
    %v1532 = vunpack.c.h.b16 %v1452
    %v1533 = vunpack.c.l.b16 %v1453
    %v1534 = vunpack.c.h.b16 %v1453
    %v1535 = vunpack.c.l.b16 %v1454
    %v1536 = vunpack.c.h.b16 %v1454
    %v1537 = vunpack.c.l.b16 %v1455
    %v1538 = vunpack.c.h.b16 %v1455
    %v1539 = vunpack.c.l.b16 %v1456
    %v1540 = vunpack.c.h.b16 %v1456
    %v1541 = vunpack.c.l.b16 %v1457
    %v1542 = vunpack.c.h.b16 %v1457
    %v1543 = vunpack.c.l.b16 %v1458
    %v1544 = vunpack.c.h.b16 %v1458
    %v1545 = vunpack.c.l.b16 %v1459
    %v1546 = vunpack.c.h.b16 %v1459
    %v1547 = vunpack.c.l.b16 %v1460
    %v1548 = vunpack.c.h.b16 %v1460
    %v1549 = vunpack.c.l.b16 %v1461
    %v1550 = vunpack.c.h.b16 %v1461
    %v1551 = vunpack.c.l.b16 %v1462
    %v1552 = vunpack.c.h.b16 %v1462
    %v1553 = vunpack.c.l.b16 %v1463
    %v1554 = vunpack.c.h.b16 %v1463
    %v1555 = vunpack.c.l.b16 %v1464
    %v1556 = vunpack.c.h.b16 %v1464
    %v1557 = vunpack.c.l.b16 %v1465
    %v1558 = vunpack.c.h.b16 %v1465
    %v1559 = vunpack.c.l.b16 %v1466
    %v1560 = vunpack.c.h.b16 %v1466
    %v1561 = vunpack.c.l.b16 %v1467
    %v1562 = vunpack.c.h.b16 %v1467
    %v1563 = vunpack.c.l.b16 %v1468
    %v1564 = vunpack.c.h.b16 %v1468
    %v1565 = vunpack.c.l.b16 %v1469
    %v1566 = vunpack.c.h.b16 %v1469
    %v1567 = vunpack.c.l.b16 %v1470
    %v1568 = vunpack.c.h.b16 %v1470
    %v1569 = vunpack.c.l.b16 %v1471
    %v1570 = vunpack.c.h.b16 %v1471
    %v1571 = vunpack.c.l.b16 %v1472
    %v1572 = vunpack.c.h.b16 %v1472
    %v1573 = vunpack.c.l.b16 %v1473
    %v1574 = vunpack.c.h.b16 %v1473
    %v1575 = vunpack.c.l.b16 %v1474
    %v1576 = vunpack.c.h.b16 %v1474
    %v1577 = vpack.c.b16 %v1515, %v1513
    %v1578 = vpack.c.b16 %v1516, %v1514
    %v1579 = vpack.c.b16 %v1519, %v1517
    %v1580 = vpack.c.b16 %v1520, %v1518
    %v1581 = vpack.c.b16 %v1523, %v1521
    %v1582 = vpack.c.b16 %v1524, %v1522
    %v1583 = vpack.c.b16 %v1527, %v1525
    %v1584 = vpack.c.b16 %v1528, %v1526
    %v1585 = vpack.c.b16 %v1531, %v1529
    %v1586 = vpack.c.b16 %v1532, %v1530
    %v1587 = vpack.c.b16 %v1535, %v1533
    %v1588 = vpack.c.b16 %v1536, %v1534
    %v1589 = vpack.c.b16 %v1539, %v1537
    %v1590 = vpack.c.b16 %v1540, %v1538
    %v1591 = vpack.c.b16 %v1543, %v1541
    %v1592 = vpack.c.b16 %v1544, %v1542
    %v1593 = vpack.c.b16 %v1547, %v1545
    %v1594 = vpack.c.b16 %v1548, %v1546
    %v1595 = vpack.c.b16 %v1551, %v1549
    %v1596 = vpack.c.b16 %v1552, %v1550
    %v1597 = vpack.c.b16 %v1555, %v1553
    %v1598 = vpack.c.b16 %v1556, %v1554
    %v1599 = vpack.c.b16 %v1559, %v1557
    %v1600 = vpack.c.b16 %v1560, %v1558
    %v1601 = vpack.c.b16 %v1563, %v1561
    %v1602 = vpack.c.b16 %v1564, %v1562
    %v1603 = vpack.c.b16 %v1567, %v1565
    %v1604 = vpack.c.b16 %v1568, %v1566
    %v1605 = vpack.c.b16 %v1571, %v1569
    %v1606 = vpack.c.b16 %v1572, %v1570
    %v1607 = vpack.c.b16 %v1575, %v1573
    %v1608 = vpack.c.b16 %v1576, %v1574
    %1641 = vmatprep.subr.bf16.mxu0 %v1578
    %1642 = vmatpush1.bf16.msra.mxu0 %v1577
    %1643 = vmatprep.subr.bf16.mxu0 %v1580
    %1644 = vmatpush1.bf16.msra.mxu0 %v1579
    %1645 = vmatprep.subr.bf16.mxu0 %v1582
    %1646 = vmatpush1.bf16.msra.mxu0 %v1581
    %1647 = vmatprep.subr.bf16.mxu0 %v1584
    %1648 = vmatpush1.bf16.msra.mxu0 %v1583
    %1649 = vmatprep.subr.bf16.mxu0 %v1586
    %1650 = vmatpush1.bf16.msra.mxu0 %v1585
    %1651 = vmatprep.subr.bf16.mxu0 %v1588
    %1652 = vmatpush1.bf16.msra.mxu0 %v1587
    %1653 = vmatprep.subr.bf16.mxu0 %v1590
    %1654 = vmatpush1.bf16.msra.mxu0 %v1589
    %1655 = vmatprep.subr.bf16.mxu0 %v1592
    %1656 = vmatpush1.bf16.msra.mxu0 %v1591
    %1657 = vmatprep.subr.bf16.mxu0 %v1594
    %1658 = vmatpush1.bf16.msra.mxu0 %v1593
    %1659 = vmatprep.subr.bf16.mxu0 %v1596
    %1660 = vmatpush1.bf16.msra.mxu0 %v1595
    %1661 = vmatprep.subr.bf16.mxu0 %v1598
    %1662 = vmatpush1.bf16.msra.mxu0 %v1597
    %1663 = vmatprep.subr.bf16.mxu0 %v1600
    %1664 = vmatpush1.bf16.msra.mxu0 %v1599
    %1665 = vmatprep.subr.bf16.mxu0 %v1602
    %1666 = vmatpush1.bf16.msra.mxu0 %v1601
    %1667 = vmatprep.subr.bf16.mxu0 %v1604
    %1668 = vmatpush1.bf16.msra.mxu0 %v1603
    %1669 = vmatprep.subr.bf16.mxu0 %v1606
    %1670 = vmatpush1.bf16.msra.mxu0 %v1605
    %1671 = vmatprep.subr.bf16.mxu0 %v1608
    %1672 = vmatpush1.bf16.msra.mxu0 %v1607
    %1673 = vmatprep.mubr.bf16.mxu0 %v1476
    %1674 = vmatmul.mubr.bf16.gmra.mrb[0].mxu0 %v1475
    %v1675 = vpop.f32.mrb[0].mxu0
    %v1676 = vadd.f32 0.0, %v1675
    %v1677 = vpop.f32.mrb[0].mxu0
    %v1678 = vadd.f32 0.0, %v1677
    %v1679 = vpop.f32.mrb[0].mxu0
    %v1680 = vadd.f32 0.0, %v1679
    %v1681 = vpop.f32.mrb[0].mxu0
    %v1682 = vadd.f32 0.0, %v1681
    %1683 = vmatprep.mubr.bf16.mxu0 %v1478
    %1684 = vmatmul.mubr.bf16.gmra.mrb[0].mxu0 %v1477
    %v1685 = vpop.f32.mrb[0].mxu0
    %v1686 = vadd.f32 0.0, %v1685
    %v1687 = vpop.f32.mrb[0].mxu0
    %v1688 = vadd.f32 0.0, %v1687
    %v1689 = vpop.f32.mrb[0].mxu0
    %v1690 = vadd.f32 0.0, %v1689
    %v1691 = vpop.f32.mrb[0].mxu0
    %v1692 = vadd.f32 0.0, %v1691
    %1693 = vmatprep.mubr.bf16.mxu0 %v1480
    %1694 = vmatmul.mubr.bf16.gmra.mrb[0].mxu0 %v1479
    %v1695 = vpop.f32.mrb[0].mxu0
    %v1696 = vadd.f32 0.0, %v1695
    %v1697 = vpop.f32.mrb[0].mxu0
    %v1698 = vadd.f32 0.0, %v1697
    %v1699 = vpop.f32.mrb[0].mxu0
    %v1700 = vpop.f32.mrb[0].mxu0
    %1701 = vdwg.mxu0
    %v1703 = vlaneseq
    %v1704 = vshrl.u32 %v1703, 7
    %v1705 = vsub.s32 0, %v1704
    %v1706 = vrot.slane %v1442, %v1705
    %v1707 = vlaneseq
    %v1708 = vshrl.u32 %v1707, 7
    %v1709 = vsub.s32 1, %v1708
    %v1710 = vrot.slane %v1442, %v1709
    %v1713 = vadd.f32 %v1706, %v1676
    %v1714 = vadd.f32 %v1710, %v1678
    %v1715 = vadd.f32 %v1706, %v1680
    %v1716 = vadd.f32 %v1710, %v1682
    %v1717 = vadd.f32 %v1706, %v1686
    %v1718 = vadd.f32 %v1710, %v1688
    %v1719 = vadd.f32 %v1706, %v1690
    %v1720 = vadd.f32 %v1710, %v1692
    %v1721 = vadd.f32 %v1706, %v1696
    %v1722 = vadd.f32 %v1710, %v1698
    %v1723 = vld [vmem:[%s1 + $0x500] sm:$0xff]
    %v1724 = vld [vmem:[%s1 + $0x508] sm:$0xff]
    %v1725 = vld [vmem:[%s1 + $0x510] sm:$0xff]
    %v1726 = vld [vmem:[%s1 + $0x518] sm:$0xff]
    %v1727 = vld [vmem:[%s1 + $0x520] sm:$0xff]
    %v1728 = vld [vmem:[%s1 + $0x528] sm:$0xff]
    %v1729 = vld [vmem:[%s1 + $0x530] sm:$0xff]
    %v1730 = vld [vmem:[%s1 + $0x538] sm:$0xff]
    %v1731 = vld [vmem:[%s1 + $0x540] sm:$0xff]
    %v1732 = vld [vmem:[%s1 + $0x548] sm:$0xff]
    %v1733 = vld [vmem:[%s1 + $0x550] sm:$0xff]
    %v1734 = vld [vmem:[%s1 + $0x558] sm:$0xff]
    %v1735 = vld [vmem:[%s1 + $0x560] sm:$0xff]
    %v1736 = vld [vmem:[%s1 + $0x568] sm:$0xff]
    %v1737 = vld [vmem:[%s1 + $0x570] sm:$0xff]
    %v1738 = vld [vmem:[%s1 + $0x578] sm:$0xff]
    %v1739 = vld [vmem:[%s1 + $0x580] sm:$0xff]
    %v1740 = vld [vmem:[%s1 + $0x588] sm:$0xff]
    %v1741 = vld [vmem:[%s1 + $0x590] sm:$0xff]
    %v1742 = vld [vmem:[%s1 + $0x598] sm:$0xff]
    %v1743 = vld [vmem:[%s1 + $0x5a0] sm:$0xff]
    %v1744 = vld [vmem:[%s1 + $0x5a8] sm:$0xff]
    %v1745 = vld [vmem:[%s1 + $0x5b0] sm:$0xff]
    %v1746 = vld [vmem:[%s1 + $0x5b8] sm:$0xff]
    %v1747 = vld [vmem:[%s1 + $0x5c0] sm:$0xff]
    %v1748 = vld [vmem:[%s1 + $0x5c8] sm:$0xff]
    %v1749 = vld [vmem:[%s1 + $0x5d0] sm:$0xff]
    %v1750 = vld [vmem:[%s1 + $0x5d8] sm:$0xff]
    %v1751 = vld [vmem:[%s1 + $0x5e0] sm:$0xff]
    %v1752 = vld [vmem:[%s1 + $0x5e8] sm:$0xff]
    %v1753 = vld [vmem:[%s1 + $0x5f0] sm:$0xff]
    %v1754 = vld [vmem:[%s1 + $0x5f8] sm:$0xff]
    %v1756 = vshrl.u32 %v1475, 16
    %v1758 = vshll.u32 %v1475, 16
    %v1760 = vrot.slane %v1758, 1
    %v1761 = vor.u32 %v1756, %v1760
    %v1763 = vshll.u32 %v1477, 16
    %v1765 = vrot.slane %v1763, 1
    %v1766 = vsel %vm258, %v1761, %v1765
    %v1768 = vshrl.u32 %v1476, 16
    %v1770 = vshll.u32 %v1476, 16
    %v1772 = vrot.slane %v1770, 1
    %v1773 = vor.u32 %v1768, %v1772
    %v1775 = vshll.u32 %v1478, 16
    %v1777 = vrot.slane %v1775, 1
    %v1778 = vsel %vm258, %v1773, %v1777
    %v1779 = vshrl.u32 %v1477, 16
    %v1781 = vor.u32 %v1779, %v1765
    %v1783 = vshll.u32 %v1479, 16
    %v1785 = vrot.slane %v1783, 1
    %v1786 = vsel %vm258, %v1781, %v1785
    %v1787 = vshrl.u32 %v1478, 16
    %v1789 = vor.u32 %v1787, %v1777
    %v1791 = vshll.u32 %v1480, 16
    %v1793 = vrot.slane %v1791, 1
    %v1794 = vsel %vm258, %v1789, %v1793
    %v1795 = vshrl.u32 %v1479, 16
    %v1797 = vor.u32 %v1795, %v1785
    %v1798 = vshrl.u32 %v1480, 16
    %v1800 = vor.u32 %v1798, %v1793
    %v1839 = vunpack.c.l.b16 %v1723
    %v1840 = vunpack.c.h.b16 %v1723
    %v1841 = vunpack.c.l.b16 %v1724
    %v1842 = vunpack.c.h.b16 %v1724
    %v1843 = vunpack.c.l.b16 %v1725
    %v1844 = vunpack.c.h.b16 %v1725
    %v1845 = vunpack.c.l.b16 %v1726
    %v1846 = vunpack.c.h.b16 %v1726
    %v1847 = vunpack.c.l.b16 %v1727
    %v1848 = vunpack.c.h.b16 %v1727
    %v1849 = vunpack.c.l.b16 %v1728
    %v1850 = vunpack.c.h.b16 %v1728
    %v1851 = vunpack.c.l.b16 %v1729
    %v1852 = vunpack.c.h.b16 %v1729
    %v1853 = vunpack.c.l.b16 %v1730
    %v1854 = vunpack.c.h.b16 %v1730
    %v1855 = vunpack.c.l.b16 %v1731
    %v1856 = vunpack.c.h.b16 %v1731
    %v1857 = vunpack.c.l.b16 %v1732
    %v1858 = vunpack.c.h.b16 %v1732
    %v1859 = vunpack.c.l.b16 %v1733
    %v1860 = vunpack.c.h.b16 %v1733
    %v1861 = vunpack.c.l.b16 %v1734
    %v1862 = vunpack.c.h.b16 %v1734
    %v1863 = vunpack.c.l.b16 %v1735
    %v1864 = vunpack.c.h.b16 %v1735
    %v1865 = vunpack.c.l.b16 %v1736
    %v1866 = vunpack.c.h.b16 %v1736
    %v1867 = vunpack.c.l.b16 %v1737
    %v1868 = vunpack.c.h.b16 %v1737
    %v1869 = vunpack.c.l.b16 %v1738
    %v1870 = vunpack.c.h.b16 %v1738
    %v1871 = vunpack.c.l.b16 %v1739
    %v1872 = vunpack.c.h.b16 %v1739
    %v1873 = vunpack.c.l.b16 %v1740
    %v1874 = vunpack.c.h.b16 %v1740
    %v1875 = vunpack.c.l.b16 %v1741
    %v1876 = vunpack.c.h.b16 %v1741
    %v1877 = vunpack.c.l.b16 %v1742
    %v1878 = vunpack.c.h.b16 %v1742
    %v1879 = vunpack.c.l.b16 %v1743
    %v1880 = vunpack.c.h.b16 %v1743
    %v1881 = vunpack.c.l.b16 %v1744
    %v1882 = vunpack.c.h.b16 %v1744
    %v1883 = vunpack.c.l.b16 %v1745
    %v1884 = vunpack.c.h.b16 %v1745
    %v1885 = vunpack.c.l.b16 %v1746
    %v1886 = vunpack.c.h.b16 %v1746
    %v1887 = vunpack.c.l.b16 %v1747
    %v1888 = vunpack.c.h.b16 %v1747
    %v1889 = vunpack.c.l.b16 %v1748
    %v1890 = vunpack.c.h.b16 %v1748
    %v1891 = vunpack.c.l.b16 %v1749
    %v1892 = vunpack.c.h.b16 %v1749
    %v1893 = vunpack.c.l.b16 %v1750
    %v1894 = vunpack.c.h.b16 %v1750
    %v1895 = vunpack.c.l.b16 %v1751
    %v1896 = vunpack.c.h.b16 %v1751
    %v1897 = vunpack.c.l.b16 %v1752
    %v1898 = vunpack.c.h.b16 %v1752
    %v1899 = vunpack.c.l.b16 %v1753
    %v1900 = vunpack.c.h.b16 %v1753
    %v1901 = vunpack.c.l.b16 %v1754
    %v1902 = vunpack.c.h.b16 %v1754
    %v1903 = vpack.c.b16 %v1841, %v1839
    %v1904 = vpack.c.b16 %v1842, %v1840
    %v1905 = vpack.c.b16 %v1845, %v1843
    %v1906 = vpack.c.b16 %v1846, %v1844
    %v1907 = vpack.c.b16 %v1849, %v1847
    %v1908 = vpack.c.b16 %v1850, %v1848
    %v1909 = vpack.c.b16 %v1853, %v1851
    %v1910 = vpack.c.b16 %v1854, %v1852
    %v1911 = vpack.c.b16 %v1857, %v1855
    %v1912 = vpack.c.b16 %v1858, %v1856
    %v1913 = vpack.c.b16 %v1861, %v1859
    %v1914 = vpack.c.b16 %v1862, %v1860
    %v1915 = vpack.c.b16 %v1865, %v1863
    %v1916 = vpack.c.b16 %v1866, %v1864
    %v1917 = vpack.c.b16 %v1869, %v1867
    %v1918 = vpack.c.b16 %v1870, %v1868
    %v1919 = vpack.c.b16 %v1873, %v1871
    %v1920 = vpack.c.b16 %v1874, %v1872
    %v1921 = vpack.c.b16 %v1877, %v1875
    %v1922 = vpack.c.b16 %v1878, %v1876
    %v1923 = vpack.c.b16 %v1881, %v1879
    %v1924 = vpack.c.b16 %v1882, %v1880
    %v1925 = vpack.c.b16 %v1885, %v1883
    %v1926 = vpack.c.b16 %v1886, %v1884
    %v1927 = vpack.c.b16 %v1889, %v1887
    %v1928 = vpack.c.b16 %v1890, %v1888
    %v1929 = vpack.c.b16 %v1893, %v1891
    %v1930 = vpack.c.b16 %v1894, %v1892
    %v1931 = vpack.c.b16 %v1897, %v1895
    %v1932 = vpack.c.b16 %v1898, %v1896
    %v1933 = vpack.c.b16 %v1901, %v1899
    %v1934 = vpack.c.b16 %v1902, %v1900
    %1967 = vmatprep.subr.bf16.mxu0 %v1904
    %1968 = vmatpush1.bf16.msra.mxu0 %v1903
    %1969 = vmatprep.subr.bf16.mxu0 %v1906
    %1970 = vmatpush1.bf16.msra.mxu0 %v1905
    %1971 = vmatprep.subr.bf16.mxu0 %v1908
    %1972 = vmatpush1.bf16.msra.mxu0 %v1907
    %1973 = vmatprep.subr.bf16.mxu0 %v1910
    %1974 = vmatpush1.bf16.msra.mxu0 %v1909
    %1975 = vmatprep.subr.bf16.mxu0 %v1912
    %1976 = vmatpush1.bf16.msra.mxu0 %v1911
    %1977 = vmatprep.subr.bf16.mxu0 %v1914
    %1978 = vmatpush1.bf16.msra.mxu0 %v1913
    %1979 = vmatprep.subr.bf16.mxu0 %v1916
    %1980 = vmatpush1.bf16.msra.mxu0 %v1915
    %1981 = vmatprep.subr.bf16.mxu0 %v1918
    %1982 = vmatpush1.bf16.msra.mxu0 %v1917
    %1983 = vmatprep.subr.bf16.mxu0 %v1920
    %1984 = vmatpush1.bf16.msra.mxu0 %v1919
    %1985 = vmatprep.subr.bf16.mxu0 %v1922
    %1986 = vmatpush1.bf16.msra.mxu0 %v1921
    %1987 = vmatprep.subr.bf16.mxu0 %v1924
    %1988 = vmatpush1.bf16.msra.mxu0 %v1923
    %1989 = vmatprep.subr.bf16.mxu0 %v1926
    %1990 = vmatpush1.bf16.msra.mxu0 %v1925
    %1991 = vmatprep.subr.bf16.mxu0 %v1928
    %1992 = vmatpush1.bf16.msra.mxu0 %v1927
    %1993 = vmatprep.subr.bf16.mxu0 %v1930
    %1994 = vmatpush1.bf16.msra.mxu0 %v1929
    %1995 = vmatprep.subr.bf16.mxu0 %v1932
    %1996 = vmatpush1.bf16.msra.mxu0 %v1931
    %1997 = vmatprep.subr.bf16.mxu0 %v1934
    %1998 = vmatpush1.bf16.msra.mxu0 %v1933
    %1999 = vmatprep.mubr.bf16.mxu0 %v1778
    %2000 = vmatmul.mubr.bf16.gmra.mrb[0].mxu0 %v1766
    %v2001 = vpop.f32.mrb[0].mxu0
    %v2002 = vadd.f32 0.0, %v2001
    %v2003 = vpop.f32.mrb[0].mxu0
    %v2004 = vadd.f32 0.0, %v2003
    %v2005 = vpop.f32.mrb[0].mxu0
    %v2006 = vadd.f32 0.0, %v2005
    %v2007 = vpop.f32.mrb[0].mxu0
    %v2008 = vadd.f32 0.0, %v2007
    %2009 = vmatprep.mubr.bf16.mxu0 %v1794
    %2010 = vmatmul.mubr.bf16.gmra.mrb[0].mxu0 %v1786
    %v2011 = vpop.f32.mrb[0].mxu0
    %v2012 = vadd.f32 0.0, %v2011
    %v2013 = vpop.f32.mrb[0].mxu0
    %v2014 = vadd.f32 0.0, %v2013
    %v2015 = vpop.f32.mrb[0].mxu0
    %v2016 = vadd.f32 0.0, %v2015
    %v2017 = vpop.f32.mrb[0].mxu0
    %v2018 = vadd.f32 0.0, %v2017
    %2019 = vmatprep.mubr.bf16.mxu0 %v1800
    %2020 = vmatmul.mubr.bf16.gmra.mrb[0].mxu0 %v1797
    %v2021 = vpop.f32.mrb[0].mxu0
    %v2022 = vadd.f32 0.0, %v2021
    %v2023 = vpop.f32.mrb[0].mxu0
    %v2024 = vadd.f32 0.0, %v2023
    %v2025 = vpop.f32.mrb[0].mxu0
    %v2026 = vpop.f32.mrb[0].mxu0
    %2027 = vdwg.mxu0
    %v2028 = vadd.f32 %v1713, %v2002
    %v2029 = vadd.f32 %v1714, %v2004
    %v2030 = vadd.f32 %v1715, %v2006
    %v2031 = vadd.f32 %v1716, %v2008
    %v2032 = vadd.f32 %v1717, %v2012
    %v2033 = vadd.f32 %v1718, %v2014
    %v2034 = vadd.f32 %v1719, %v2016
    %v2035 = vadd.f32 %v1720, %v2018
    %v2036 = vadd.f32 %v1721, %v2022
    %v2037 = vadd.f32 %v1722, %v2024
    %v2038 = vld [vmem:[%s1 + $0x600] sm:$0xff]
    %v2039 = vld [vmem:[%s1 + $0x608] sm:$0xff]
    %v2040 = vld [vmem:[%s1 + $0x610] sm:$0xff]
    %v2041 = vld [vmem:[%s1 + $0x618] sm:$0xff]
    %v2042 = vld [vmem:[%s1 + $0x620] sm:$0xff]
    %v2043 = vld [vmem:[%s1 + $0x628] sm:$0xff]
    %v2044 = vld [vmem:[%s1 + $0x630] sm:$0xff]
    %v2045 = vld [vmem:[%s1 + $0x638] sm:$0xff]
    %v2046 = vld [vmem:[%s1 + $0x640] sm:$0xff]
    %v2047 = vld [vmem:[%s1 + $0x648] sm:$0xff]
    %v2048 = vld [vmem:[%s1 + $0x650] sm:$0xff]
    %v2049 = vld [vmem:[%s1 + $0x658] sm:$0xff]
    %v2050 = vld [vmem:[%s1 + $0x660] sm:$0xff]
    %v2051 = vld [vmem:[%s1 + $0x668] sm:$0xff]
    %v2052 = vld [vmem:[%s1 + $0x670] sm:$0xff]
    %v2053 = vld [vmem:[%s1 + $0x678] sm:$0xff]
    %v2054 = vld [vmem:[%s1 + $0x680] sm:$0xff]
    %v2055 = vld [vmem:[%s1 + $0x688] sm:$0xff]
    %v2056 = vld [vmem:[%s1 + $0x690] sm:$0xff]
    %v2057 = vld [vmem:[%s1 + $0x698] sm:$0xff]
    %v2058 = vld [vmem:[%s1 + $0x6a0] sm:$0xff]
    %v2059 = vld [vmem:[%s1 + $0x6a8] sm:$0xff]
    %v2060 = vld [vmem:[%s1 + $0x6b0] sm:$0xff]
    %v2061 = vld [vmem:[%s1 + $0x6b8] sm:$0xff]
    %v2062 = vld [vmem:[%s1 + $0x6c0] sm:$0xff]
    %v2063 = vld [vmem:[%s1 + $0x6c8] sm:$0xff]
    %v2064 = vld [vmem:[%s1 + $0x6d0] sm:$0xff]
    %v2065 = vld [vmem:[%s1 + $0x6d8] sm:$0xff]
    %v2066 = vld [vmem:[%s1 + $0x6e0] sm:$0xff]
    %v2067 = vld [vmem:[%s1 + $0x6e8] sm:$0xff]
    %v2068 = vld [vmem:[%s1 + $0x6f0] sm:$0xff]
    %v2069 = vld [vmem:[%s1 + $0x6f8] sm:$0xff]
    %v2076 = vrot.slane %v1475, 1
    %v2077 = vrot.slane %v1477, 1
    %v2078 = vsel %vm503, %v2076, %v2077
    %v2079 = vrot.slane %v1476, 1
    %v2080 = vrot.slane %v1478, 1
    %v2081 = vsel %vm503, %v2079, %v2080
    %v2082 = vrot.slane %v1479, 1
    %v2083 = vsel %vm503, %v2077, %v2082
    %v2084 = vrot.slane %v1480, 1
    %v2085 = vsel %vm503, %v2080, %v2084
    %v2124 = vunpack.c.l.b16 %v2038
    %v2125 = vunpack.c.h.b16 %v2038
    %v2126 = vunpack.c.l.b16 %v2039
    %v2127 = vunpack.c.h.b16 %v2039
    %v2128 = vunpack.c.l.b16 %v2040
    %v2129 = vunpack.c.h.b16 %v2040
    %v2130 = vunpack.c.l.b16 %v2041
    %v2131 = vunpack.c.h.b16 %v2041
    %v2132 = vunpack.c.l.b16 %v2042
    %v2133 = vunpack.c.h.b16 %v2042
    %v2134 = vunpack.c.l.b16 %v2043
    %v2135 = vunpack.c.h.b16 %v2043
    %v2136 = vunpack.c.l.b16 %v2044
    %v2137 = vunpack.c.h.b16 %v2044
    %v2138 = vunpack.c.l.b16 %v2045
    %v2139 = vunpack.c.h.b16 %v2045
    %v2140 = vunpack.c.l.b16 %v2046
    %v2141 = vunpack.c.h.b16 %v2046
    %v2142 = vunpack.c.l.b16 %v2047
    %v2143 = vunpack.c.h.b16 %v2047
    %v2144 = vunpack.c.l.b16 %v2048
    %v2145 = vunpack.c.h.b16 %v2048
    %v2146 = vunpack.c.l.b16 %v2049
    %v2147 = vunpack.c.h.b16 %v2049
    %v2148 = vunpack.c.l.b16 %v2050
    %v2149 = vunpack.c.h.b16 %v2050
    %v2150 = vunpack.c.l.b16 %v2051
    %v2151 = vunpack.c.h.b16 %v2051
    %v2152 = vunpack.c.l.b16 %v2052
    %v2153 = vunpack.c.h.b16 %v2052
    %v2154 = vunpack.c.l.b16 %v2053
    %v2155 = vunpack.c.h.b16 %v2053
    %v2156 = vunpack.c.l.b16 %v2054
    %v2157 = vunpack.c.h.b16 %v2054
    %v2158 = vunpack.c.l.b16 %v2055
    %v2159 = vunpack.c.h.b16 %v2055
    %v2160 = vunpack.c.l.b16 %v2056
    %v2161 = vunpack.c.h.b16 %v2056
    %v2162 = vunpack.c.l.b16 %v2057
    %v2163 = vunpack.c.h.b16 %v2057
    %v2164 = vunpack.c.l.b16 %v2058
    %v2165 = vunpack.c.h.b16 %v2058
    %v2166 = vunpack.c.l.b16 %v2059
    %v2167 = vunpack.c.h.b16 %v2059
    %v2168 = vunpack.c.l.b16 %v2060
    %v2169 = vunpack.c.h.b16 %v2060
    %v2170 = vunpack.c.l.b16 %v2061
    %v2171 = vunpack.c.h.b16 %v2061
    %v2172 = vunpack.c.l.b16 %v2062
    %v2173 = vunpack.c.h.b16 %v2062
    %v2174 = vunpack.c.l.b16 %v2063
    %v2175 = vunpack.c.h.b16 %v2063
    %v2176 = vunpack.c.l.b16 %v2064
    %v2177 = vunpack.c.h.b16 %v2064
    %v2178 = vunpack.c.l.b16 %v2065
    %v2179 = vunpack.c.h.b16 %v2065
    %v2180 = vunpack.c.l.b16 %v2066
    %v2181 = vunpack.c.h.b16 %v2066
    %v2182 = vunpack.c.l.b16 %v2067
    %v2183 = vunpack.c.h.b16 %v2067
    %v2184 = vunpack.c.l.b16 %v2068
    %v2185 = vunpack.c.h.b16 %v2068
    %v2186 = vunpack.c.l.b16 %v2069
    %v2187 = vunpack.c.h.b16 %v2069
    %v2188 = vpack.c.b16 %v2126, %v2124
    %v2189 = vpack.c.b16 %v2127, %v2125
    %v2190 = vpack.c.b16 %v2130, %v2128
    %v2191 = vpack.c.b16 %v2131, %v2129
    %v2192 = vpack.c.b16 %v2134, %v2132
    %v2193 = vpack.c.b16 %v2135, %v2133
    %v2194 = vpack.c.b16 %v2138, %v2136
    %v2195 = vpack.c.b16 %v2139, %v2137
    %v2196 = vpack.c.b16 %v2142, %v2140
    %v2197 = vpack.c.b16 %v2143, %v2141
    %v2198 = vpack.c.b16 %v2146, %v2144
    %v2199 = vpack.c.b16 %v2147, %v2145
    %v2200 = vpack.c.b16 %v2150, %v2148
    %v2201 = vpack.c.b16 %v2151, %v2149
    %v2202 = vpack.c.b16 %v2154, %v2152
    %v2203 = vpack.c.b16 %v2155, %v2153
    %v2204 = vpack.c.b16 %v2158, %v2156
    %v2205 = vpack.c.b16 %v2159, %v2157
    %v2206 = vpack.c.b16 %v2162, %v2160
    %v2207 = vpack.c.b16 %v2163, %v2161
    %v2208 = vpack.c.b16 %v2166, %v2164
    %v2209 = vpack.c.b16 %v2167, %v2165
    %v2210 = vpack.c.b16 %v2170, %v2168
    %v2211 = vpack.c.b16 %v2171, %v2169
    %v2212 = vpack.c.b16 %v2174, %v2172
    %v2213 = vpack.c.b16 %v2175, %v2173
    %v2214 = vpack.c.b16 %v2178, %v2176
    %v2215 = vpack.c.b16 %v2179, %v2177
    %v2216 = vpack.c.b16 %v2182, %v2180
    %v2217 = vpack.c.b16 %v2183, %v2181
    %v2218 = vpack.c.b16 %v2186, %v2184
    %v2219 = vpack.c.b16 %v2187, %v2185
    %2252 = vmatprep.subr.bf16.mxu0 %v2189
    %2253 = vmatpush1.bf16.msra.mxu0 %v2188
    %2254 = vmatprep.subr.bf16.mxu0 %v2191
    %2255 = vmatpush1.bf16.msra.mxu0 %v2190
    %2256 = vmatprep.subr.bf16.mxu0 %v2193
    %2257 = vmatpush1.bf16.msra.mxu0 %v2192
    %2258 = vmatprep.subr.bf16.mxu0 %v2195
    %2259 = vmatpush1.bf16.msra.mxu0 %v2194
    %2260 = vmatprep.subr.bf16.mxu0 %v2197
    %2261 = vmatpush1.bf16.msra.mxu0 %v2196
    %2262 = vmatprep.subr.bf16.mxu0 %v2199
    %2263 = vmatpush1.bf16.msra.mxu0 %v2198
    %2264 = vmatprep.subr.bf16.mxu0 %v2201
    %2265 = vmatpush1.bf16.msra.mxu0 %v2200
    %2266 = vmatprep.subr.bf16.mxu0 %v2203
    %2267 = vmatpush1.bf16.msra.mxu0 %v2202
    %2268 = vmatprep.subr.bf16.mxu0 %v2205
    %2269 = vmatpush1.bf16.msra.mxu0 %v2204
    %2270 = vmatprep.subr.bf16.mxu0 %v2207
    %2271 = vmatpush1.bf16.msra.mxu0 %v2206
    %2272 = vmatprep.subr.bf16.mxu0 %v2209
    %2273 = vmatpush1.bf16.msra.mxu0 %v2208
    %2274 = vmatprep.subr.bf16.mxu0 %v2211
    %2275 = vmatpush1.bf16.msra.mxu0 %v2210
    %2276 = vmatprep.subr.bf16.mxu0 %v2213
    %2277 = vmatpush1.bf16.msra.mxu0 %v2212
    %2278 = vmatprep.subr.bf16.mxu0 %v2215
    %2279 = vmatpush1.bf16.msra.mxu0 %v2214
    %2280 = vmatprep.subr.bf16.mxu0 %v2217
    %2281 = vmatpush1.bf16.msra.mxu0 %v2216
    %2282 = vmatprep.subr.bf16.mxu0 %v2219
    %2283 = vmatpush1.bf16.msra.mxu0 %v2218
    %2284 = vmatprep.mubr.bf16.mxu0 %v2081
    %2285 = vmatmul.mubr.bf16.gmra.mrb[0].mxu0 %v2078
    %v2286 = vpop.f32.mrb[0].mxu0
    %v2287 = vadd.f32 0.0, %v2286
    %v2288 = vpop.f32.mrb[0].mxu0
    %v2289 = vadd.f32 0.0, %v2288
    %v2290 = vpop.f32.mrb[0].mxu0
    %v2291 = vadd.f32 0.0, %v2290
    %v2292 = vpop.f32.mrb[0].mxu0
    %v2293 = vadd.f32 0.0, %v2292
    %2294 = vmatprep.mubr.bf16.mxu0 %v2085
    %2295 = vmatmul.mubr.bf16.gmra.mrb[0].mxu0 %v2083
    %v2296 = vpop.f32.mrb[0].mxu0
    %v2297 = vadd.f32 0.0, %v2296
    %v2298 = vpop.f32.mrb[0].mxu0
    %v2299 = vadd.f32 0.0, %v2298
    %v2300 = vpop.f32.mrb[0].mxu0
    %v2301 = vadd.f32 0.0, %v2300
    %v2302 = vpop.f32.mrb[0].mxu0
    %v2303 = vadd.f32 0.0, %v2302
    %2304 = vmatprep.mubr.bf16.mxu0 %v2084
    %2305 = vmatmul.mubr.bf16.gmra.mrb[0].mxu0 %v2082
    %v2306 = vpop.f32.mrb[0].mxu0
    %v2307 = vadd.f32 0.0, %v2306
    %v2308 = vpop.f32.mrb[0].mxu0
    %v2309 = vadd.f32 0.0, %v2308
    %v2310 = vpop.f32.mrb[0].mxu0
    %v2311 = vpop.f32.mrb[0].mxu0
    %2312 = vdwg.mxu0
    %v2313 = vadd.f32 %v2028, %v2287
    %v2314 = vadd.f32 %v2029, %v2289
    %v2315 = vadd.f32 %v2030, %v2291
    %v2316 = vadd.f32 %v2031, %v2293
    %v2317 = vadd.f32 %v2032, %v2297
    %v2318 = vadd.f32 %v2033, %v2299
    %v2319 = vadd.f32 %v2034, %v2301
    %v2320 = vadd.f32 %v2035, %v2303
    %v2321 = vadd.f32 %v2036, %v2307
    %v2322 = vadd.f32 %v2037, %v2309
    %v2323 = vmax.f32 %v2313, 0.0
    %v2324 = vmax.f32 %v2314, 0.0
    %v2325 = vmax.f32 %v2315, 0.0
    %v2326 = vmax.f32 %v2316, 0.0
    %v2327 = vmax.f32 %v2317, 0.0
    %v2328 = vmax.f32 %v2318, 0.0
    %v2329 = vmax.f32 %v2319, 0.0
    %v2330 = vmax.f32 %v2320, 0.0
    %v2331 = vmax.f32 %v2321, 0.0
    %v2332 = vmax.f32 %v2322, 0.0
    %v2333 = vld [vmem:[%s1 + $0x700] sm:$0xf]
    %v2334 = vld [vmem:[%s1 + $0x708] sm:$0xf]
    %v2335 = vld [vmem:[%s1 + $0x710] sm:$0x3]
    %v2336 = vpack.c.bf16 %v2325, %v2323
    %v2337 = vpack.c.bf16 %v2326, %v2324
    %v2338 = vpack.c.bf16 %v2329, %v2327
    %v2339 = vpack.c.bf16 %v2330, %v2328
    %v2340 = vpack.c.bf16 %v2331, %v2331
    %v2341 = vpack.c.bf16 %v2332, %v2332
    %v2345 = vunpack.c.l.b16 %v2333
    %v2346 = vunpack.c.l.b16 %v2334
    %v2347 = vunpack.c.l.b16 %v2335
    %v2348 = vpack.c.b16 %v2346, %v2345
    %v2349 = vpack.c.b16 %v2347, %v2347
    %vm2350 = vcmask 277504
    %v2352 = vsel %vm2350, %v2348, 0
    %v2355 = vsel %vm2350, %v2349, 0
    %v2358 = vsel %vm753, %v2340, 0
    %v2361 = vsel %vm753, %v2341, 0
    %2363 = vmatprep.subr.bf16.mxu0 %v2337
    %2364 = vmatpush1.bf16.msra.mxu0 %v2336
    %2365 = vmatprep.subr.bf16.mxu0 %v2339
    %2366 = vmatpush1.bf16.msra.mxu0 %v2338
    %2367 = vmatprep.subr.bf16.mxu0 %v2361
    %2368 = vmatpush1.bf16.msra.mxu0 %v2358
    %2369 = vmatprep.subr.bf16.mxu0 0
    %2370 = vmatpush1.bf16.msra.mxu0 0
    %2371 = vmatprep.subr.bf16.mxu0 0
    %2372 = vmatpush1.bf16.msra.mxu0 0
    %2373 = vmatprep.subr.bf16.mxu0 0
    %2374 = vmatpush1.bf16.msra.mxu0 0
    %2375 = vmatprep.subr.bf16.mxu0 0
    %2376 = vmatpush1.bf16.msra.mxu0 0
    %2377 = vmatprep.subr.bf16.mxu0 0
    %2378 = vmatpush1.bf16.msra.mxu0 0
    %2379 = vmatprep.subr.bf16.mxu0 0
    %2380 = vmatpush1.bf16.msra.mxu0 0
    %2381 = vmatprep.subr.bf16.mxu0 0
    %2382 = vmatpush1.bf16.msra.mxu0 0
    %2383 = vmatprep.subr.bf16.mxu0 0
    %2384 = vmatpush1.bf16.msra.mxu0 0
    %2385 = vmatprep.subr.bf16.mxu0 0
    %2386 = vmatpush1.bf16.msra.mxu0 0
    %2387 = vmatprep.subr.bf16.mxu0 0
    %2388 = vmatpush1.bf16.msra.mxu0 0
    %2389 = vmatprep.subr.bf16.mxu0 0
    %2390 = vmatpush1.bf16.msra.mxu0 0
    %2391 = vmatprep.subr.bf16.mxu0 0
    %2392 = vmatpush1.bf16.msra.mxu0 0
    %2393 = vmatprep.subr.bf16.mxu0 0
    %2394 = vmatpush1.bf16.msra.mxu0 0
    %2395 = vmatprep.mubr.bf16.mxu0 0
    %2396 = vmatmul.mubr.bf16.gmra.mrb[0].mxu0 %v2352
    %v2397 = vpop.f32.mrb[0].mxu0
    %v2398 = vadd.f32 0.0, %v2397
    %v2399 = vpop.f32.mrb[0].mxu0
    %v2400 = vadd.f32 0.0, %v2399
    %v2401 = vpop.f32.mrb[0].mxu0
    %v2402 = vadd.f32 0.0, %v2401
    %v2403 = vpop.f32.mrb[0].mxu0
    %v2404 = vadd.f32 0.0, %v2403
    %2405 = vmatprep.mubr.bf16.mxu0 0
    %2406 = vmatmul.mubr.bf16.gmra.mrb[0].mxu0 %v2355
    %v2407 = vpop.f32.mrb[0].mxu0
    %v2408 = vadd.f32 0.0, %v2407
    %v2409 = vpop.f32.mrb[0].mxu0
    %v2410 = vadd.f32 0.0, %v2409
    %v2411 = vpop.f32.mrb[0].mxu0
    %v2412 = vpop.f32.mrb[0].mxu0
    %2413 = vdwg.mxu0
    %v2414 = vld [vmem:[%s1 + $0x720] sm:$0xf]
    %v2415 = vld [vmem:[%s1 + $0x728] sm:$0xf]
    %v2416 = vld [vmem:[%s1 + $0x730] sm:$0x3]
    %v2420 = vunpack.c.l.b16 %v2414
    %v2421 = vunpack.c.l.b16 %v2415
    %v2422 = vunpack.c.l.b16 %v2416
    %v2423 = vpack.c.b16 %v2421, %v2420
    %v2424 = vpack.c.b16 %v2422, %v2422
    %v2426 = vsel %vm2350, %v2423, 0
    %v2429 = vsel %vm2350, %v2424, 0
    %2431 = vmatprep.subr.bf16.mxu0 %v2337
    %2432 = vmatpush1.bf16.msra.mxu0 %v2336
    %2433 = vmatprep.subr.bf16.mxu0 %v2339
    %2434 = vmatpush1.bf16.msra.mxu0 %v2338
    %2435 = vmatprep.subr.bf16.mxu0 %v2361
    %2436 = vmatpush1.bf16.msra.mxu0 %v2358
    %2437 = vmatprep.subr.bf16.mxu0 0
    %2438 = vmatpush1.bf16.msra.mxu0 0
    %2439 = vmatprep.subr.bf16.mxu0 0
    %2440 = vmatpush1.bf16.msra.mxu0 0
    %2441 = vmatprep.subr.bf16.mxu0 0
    %2442 = vmatpush1.bf16.msra.mxu0 0
    %2443 = vmatprep.subr.bf16.mxu0 0
    %2444 = vmatpush1.bf16.msra.mxu0 0
    %2445 = vmatprep.subr.bf16.mxu0 0
    %2446 = vmatpush1.bf16.msra.mxu0 0
    %2447 = vmatprep.subr.bf16.mxu0 0
    %2448 = vmatpush1.bf16.msra.mxu0 0
    %2449 = vmatprep.subr.bf16.mxu0 0
    %2450 = vmatpush1.bf16.msra.mxu0 0
    %2451 = vmatprep.subr.bf16.mxu0 0
    %2452 = vmatpush1.bf16.msra.mxu0 0
    %2453 = vmatprep.subr.bf16.mxu0 0
    %2454 = vmatpush1.bf16.msra.mxu0 0
    %2455 = vmatprep.subr.bf16.mxu0 0
    %2456 = vmatpush1.bf16.msra.mxu0 0
    %2457 = vmatprep.subr.bf16.mxu0 0
    %2458 = vmatpush1.bf16.msra.mxu0 0
    %2459 = vmatprep.subr.bf16.mxu0 0
    %2460 = vmatpush1.bf16.msra.mxu0 0
    %2461 = vmatprep.subr.bf16.mxu0 0
    %2462 = vmatpush1.bf16.msra.mxu0 0
    %2463 = vmatprep.mubr.bf16.mxu0 0
    %2464 = vmatmul.mubr.bf16.gmra.mrb[0].mxu0 %v2426
    %v2465 = vpop.f32.mrb[0].mxu0
    %v2466 = vadd.f32 0.0, %v2465
    %v2467 = vpop.f32.mrb[0].mxu0
    %v2468 = vadd.f32 0.0, %v2467
    %v2469 = vpop.f32.mrb[0].mxu0
    %v2470 = vadd.f32 0.0, %v2469
    %v2471 = vpop.f32.mrb[0].mxu0
    %v2472 = vadd.f32 0.0, %v2471
    %2473 = vmatprep.mubr.bf16.mxu0 0
    %2474 = vmatmul.mubr.bf16.gmra.mrb[0].mxu0 %v2429
    %v2475 = vpop.f32.mrb[0].mxu0
    %v2476 = vadd.f32 0.0, %v2475
    %v2477 = vpop.f32.mrb[0].mxu0
    %v2478 = vadd.f32 0.0, %v2477
    %v2479 = vpop.f32.mrb[0].mxu0
    %v2480 = vpop.f32.mrb[0].mxu0
    %2481 = vdwg.mxu0
    %v2482 = vmax.f32 %v2398, %v2466
    %v2483 = vmax.f32 %v2400, %v2468
    %v2484 = vmax.f32 %v2402, %v2470
    %v2485 = vmax.f32 %v2404, %v2472
    %v2486 = vmax.f32 %v2408, %v2476
    %v2487 = vmax.f32 %v2410, %v2478
    %v2488 = vld [vmem:[%s1 + $0x740] sm:$0xff]
    %v2489 = vld [vmem:[%s1 + $0x748] sm:$0xff]
    %v2490 = vld [vmem:[%s1 + $0x750] sm:$0xff]
    %v2491 = vld [vmem:[%s1 + $0x758] sm:$0xff]
    %v2492 = vld [vmem:[%s1 + $0x760] sm:$0xff]
    %v2493 = vld [vmem:[%s1 + $0x768] sm:$0xff]
    %v2494 = vld [vmem:[%s1 + $0x770] sm:$0xff]
    %v2495 = vld [vmem:[%s1 + $0x778] sm:$0xff]
    %v2496 = vld [vmem:[%s1 + $0x780] sm:$0xff]
    %v2497 = vld [vmem:[%s1 + $0x788] sm:$0xff]
    %v2498 = vld [vmem:[%s1 + $0x790] sm:$0xff]
    %v2499 = vld [vmem:[%s1 + $0x798] sm:$0xff]
    %v2500 = vld [vmem:[%s1 + $0x7a0] sm:$0xff]
    %v2501 = vld [vmem:[%s1 + $0x7a8] sm:$0xff]
    %v2502 = vld [vmem:[%s1 + $0x7b0] sm:$0xff]
    %v2503 = vld [vmem:[%s1 + $0x7b8] sm:$0xff]
    %v2504 = vld [vmem:[%s1 + $0x7c0] sm:$0xff]
    %v2505 = vld [vmem:[%s1 + $0x7c8] sm:$0xff]
    %v2506 = vld [vmem:[%s1 + $0x7d0] sm:$0xff]
    %v2507 = vld [vmem:[%s1 + $0x7d8] sm:$0xff]
    %v2508 = vld [vmem:[%s1 + $0x7e0] sm:$0xff]
    %v2509 = vld [vmem:[%s1 + $0x7e8] sm:$0xff]
    %v2510 = vld [vmem:[%s1 + $0x7f0] sm:$0xff]
    %v2511 = vld [vmem:[%s1 + $0x7f8] sm:$0xff]
    %v2512 = vld [vmem:[%s1 + $0x800] sm:$0xff]
    %v2513 = vld [vmem:[%s1 + $0x808] sm:$0xff]
    %v2514 = vld [vmem:[%s1 + $0x810] sm:$0xff]
    %v2515 = vld [vmem:[%s1 + $0x818] sm:$0xff]
    %v2516 = vld [vmem:[%s1 + $0x820] sm:$0xff]
    %v2517 = vld [vmem:[%s1 + $0x828] sm:$0xff]
    %v2518 = vld [vmem:[%s1 + $0x830] sm:$0xff]
    %v2519 = vld [vmem:[%s1 + $0x838] sm:$0xff]
    %v2520 = vpack.c.bf16 %v2484, %v2482
    %v2521 = vpack.c.bf16 %v2485, %v2483
    %v2522 = vpack.c.bf16 %v2486, %v2486
    %v2523 = vpack.c.bf16 %v2487, %v2487
    %v2556 = vunpack.c.l.b16 %v2488
    %v2557 = vunpack.c.h.b16 %v2488
    %v2558 = vunpack.c.l.b16 %v2489
    %v2559 = vunpack.c.h.b16 %v2489
    %v2560 = vunpack.c.l.b16 %v2490
    %v2561 = vunpack.c.h.b16 %v2490
    %v2562 = vunpack.c.l.b16 %v2491
    %v2563 = vunpack.c.h.b16 %v2491
    %v2564 = vunpack.c.l.b16 %v2492
    %v2565 = vunpack.c.h.b16 %v2492
    %v2566 = vunpack.c.l.b16 %v2493
    %v2567 = vunpack.c.h.b16 %v2493
    %v2568 = vunpack.c.l.b16 %v2494
    %v2569 = vunpack.c.h.b16 %v2494
    %v2570 = vunpack.c.l.b16 %v2495
    %v2571 = vunpack.c.h.b16 %v2495
    %v2572 = vunpack.c.l.b16 %v2496
    %v2573 = vunpack.c.h.b16 %v2496
    %v2574 = vunpack.c.l.b16 %v2497
    %v2575 = vunpack.c.h.b16 %v2497
    %v2576 = vunpack.c.l.b16 %v2498
    %v2577 = vunpack.c.h.b16 %v2498
    %v2578 = vunpack.c.l.b16 %v2499
    %v2579 = vunpack.c.h.b16 %v2499
    %v2580 = vunpack.c.l.b16 %v2500
    %v2581 = vunpack.c.h.b16 %v2500
    %v2582 = vunpack.c.l.b16 %v2501
    %v2583 = vunpack.c.h.b16 %v2501
    %v2584 = vunpack.c.l.b16 %v2502
    %v2585 = vunpack.c.h.b16 %v2502
    %v2586 = vunpack.c.l.b16 %v2503
    %v2587 = vunpack.c.h.b16 %v2503
    %v2588 = vunpack.c.l.b16 %v2504
    %v2589 = vunpack.c.h.b16 %v2504
    %v2590 = vunpack.c.l.b16 %v2505
    %v2591 = vunpack.c.h.b16 %v2505
    %v2592 = vunpack.c.l.b16 %v2506
    %v2593 = vunpack.c.h.b16 %v2506
    %v2594 = vunpack.c.l.b16 %v2507
    %v2595 = vunpack.c.h.b16 %v2507
    %v2596 = vunpack.c.l.b16 %v2508
    %v2597 = vunpack.c.h.b16 %v2508
    %v2598 = vunpack.c.l.b16 %v2509
    %v2599 = vunpack.c.h.b16 %v2509
    %v2600 = vunpack.c.l.b16 %v2510
    %v2601 = vunpack.c.h.b16 %v2510
    %v2602 = vunpack.c.l.b16 %v2511
    %v2603 = vunpack.c.h.b16 %v2511
    %v2604 = vunpack.c.l.b16 %v2512
    %v2605 = vunpack.c.h.b16 %v2512
    %v2606 = vunpack.c.l.b16 %v2513
    %v2607 = vunpack.c.h.b16 %v2513
    %v2608 = vunpack.c.l.b16 %v2514
    %v2609 = vunpack.c.h.b16 %v2514
    %v2610 = vunpack.c.l.b16 %v2515
    %v2611 = vunpack.c.h.b16 %v2515
    %v2612 = vunpack.c.l.b16 %v2516
    %v2613 = vunpack.c.h.b16 %v2516
    %v2614 = vunpack.c.l.b16 %v2517
    %v2615 = vunpack.c.h.b16 %v2517
    %v2616 = vunpack.c.l.b16 %v2518
    %v2617 = vunpack.c.h.b16 %v2518
    %v2618 = vunpack.c.l.b16 %v2519
    %v2619 = vunpack.c.h.b16 %v2519
    %v2620 = vpack.c.b16 %v2558, %v2556
    %v2621 = vpack.c.b16 %v2559, %v2557
    %v2622 = vpack.c.b16 %v2562, %v2560
    %v2623 = vpack.c.b16 %v2563, %v2561
    %v2624 = vpack.c.b16 %v2566, %v2564
    %v2625 = vpack.c.b16 %v2567, %v2565
    %v2626 = vpack.c.b16 %v2570, %v2568
    %v2627 = vpack.c.b16 %v2571, %v2569
    %v2628 = vpack.c.b16 %v2574, %v2572
    %v2629 = vpack.c.b16 %v2575, %v2573
    %v2630 = vpack.c.b16 %v2578, %v2576
    %v2631 = vpack.c.b16 %v2579, %v2577
    %v2632 = vpack.c.b16 %v2582, %v2580
    %v2633 = vpack.c.b16 %v2583, %v2581
    %v2634 = vpack.c.b16 %v2586, %v2584
    %v2635 = vpack.c.b16 %v2587, %v2585
    %v2636 = vpack.c.b16 %v2590, %v2588
    %v2637 = vpack.c.b16 %v2591, %v2589
    %v2638 = vpack.c.b16 %v2594, %v2592
    %v2639 = vpack.c.b16 %v2595, %v2593
    %v2640 = vpack.c.b16 %v2598, %v2596
    %v2641 = vpack.c.b16 %v2599, %v2597
    %v2642 = vpack.c.b16 %v2602, %v2600
    %v2643 = vpack.c.b16 %v2603, %v2601
    %v2644 = vpack.c.b16 %v2606, %v2604
    %v2645 = vpack.c.b16 %v2607, %v2605
    %v2646 = vpack.c.b16 %v2610, %v2608
    %v2647 = vpack.c.b16 %v2611, %v2609
    %v2648 = vpack.c.b16 %v2614, %v2612
    %v2649 = vpack.c.b16 %v2615, %v2613
    %v2650 = vpack.c.b16 %v2618, %v2616
    %v2651 = vpack.c.b16 %v2619, %v2617
    %2684 = vmatprep.subr.bf16.mxu0 %v2621
    %2685 = vmatpush1.bf16.msra.mxu0 %v2620
    %2686 = vmatprep.subr.bf16.mxu0 %v2623
    %2687 = vmatpush1.bf16.msra.mxu0 %v2622
    %2688 = vmatprep.subr.bf16.mxu0 %v2625
    %2689 = vmatpush1.bf16.msra.mxu0 %v2624
    %2690 = vmatprep.subr.bf16.mxu0 %v2627
    %2691 = vmatpush1.bf16.msra.mxu0 %v2626
    %2692 = vmatprep.subr.bf16.mxu0 %v2629
    %2693 = vmatpush1.bf16.msra.mxu0 %v2628
    %2694 = vmatprep.subr.bf16.mxu0 %v2631
    %2695 = vmatpush1.bf16.msra.mxu0 %v2630
    %2696 = vmatprep.subr.bf16.mxu0 %v2633
    %2697 = vmatpush1.bf16.msra.mxu0 %v2632
    %2698 = vmatprep.subr.bf16.mxu0 %v2635
    %2699 = vmatpush1.bf16.msra.mxu0 %v2634
    %2700 = vmatprep.subr.bf16.mxu0 %v2637
    %2701 = vmatpush1.bf16.msra.mxu0 %v2636
    %2702 = vmatprep.subr.bf16.mxu0 %v2639
    %2703 = vmatpush1.bf16.msra.mxu0 %v2638
    %2704 = vmatprep.subr.bf16.mxu0 %v2641
    %2705 = vmatpush1.bf16.msra.mxu0 %v2640
    %2706 = vmatprep.subr.bf16.mxu0 %v2643
    %2707 = vmatpush1.bf16.msra.mxu0 %v2642
    %2708 = vmatprep.subr.bf16.mxu0 %v2645
    %2709 = vmatpush1.bf16.msra.mxu0 %v2644
    %2710 = vmatprep.subr.bf16.mxu0 %v2647
    %2711 = vmatpush1.bf16.msra.mxu0 %v2646
    %2712 = vmatprep.subr.bf16.mxu0 %v2649
    %2713 = vmatpush1.bf16.msra.mxu0 %v2648
    %2714 = vmatprep.subr.bf16.mxu0 %v2651
    %2715 = vmatpush1.bf16.msra.mxu0 %v2650
    %2716 = vmatprep.mubr.bf16.mxu0 %v2521
    %2717 = vmatmul.mubr.bf16.gmra.mrb[0].mxu0 %v2520
    %v2718 = vpop.f32.mrb[0].mxu0
    %v2719 = vadd.f32 0.0, %v2718
    %v2720 = vpop.f32.mrb[0].mxu0
    %v2721 = vadd.f32 0.0, %v2720
    %v2722 = vpop.f32.mrb[0].mxu0
    %v2723 = vadd.f32 0.0, %v2722
    %v2724 = vpop.f32.mrb[0].mxu0
    %v2725 = vadd.f32 0.0, %v2724
    %2726 = vmatprep.mubr.bf16.mxu0 %v2523
    %2727 = vmatmul.mubr.bf16.gmra.mrb[0].mxu0 %v2522
    %v2728 = vpop.f32.mrb[0].mxu0
    %v2729 = vadd.f32 0.0, %v2728
    %v2730 = vpop.f32.mrb[0].mxu0
    %v2731 = vadd.f32 0.0, %v2730
    %v2732 = vpop.f32.mrb[0].mxu0
    %v2733 = vpop.f32.mrb[0].mxu0
    %2734 = vdwg.mxu0
    %v2735 = vld [vmem:[%s1 + $0x840] sm:$0xff]
    %v2736 = vld [vmem:[%s1 + $0x848] sm:$0xff]
    %v2737 = vld [vmem:[%s1 + $0x850] sm:$0xff]
    %v2738 = vld [vmem:[%s1 + $0x858] sm:$0xff]
    %v2739 = vld [vmem:[%s1 + $0x860] sm:$0xff]
    %v2740 = vld [vmem:[%s1 + $0x868] sm:$0xff]
    %v2741 = vld [vmem:[%s1 + $0x870] sm:$0xff]
    %v2742 = vld [vmem:[%s1 + $0x878] sm:$0xff]
    %v2743 = vld [vmem:[%s1 + $0x880] sm:$0xff]
    %v2744 = vld [vmem:[%s1 + $0x888] sm:$0xff]
    %v2745 = vld [vmem:[%s1 + $0x890] sm:$0xff]
    %v2746 = vld [vmem:[%s1 + $0x898] sm:$0xff]
    %v2747 = vld [vmem:[%s1 + $0x8a0] sm:$0xff]
    %v2748 = vld [vmem:[%s1 + $0x8a8] sm:$0xff]
    %v2749 = vld [vmem:[%s1 + $0x8b0] sm:$0xff]
    %v2750 = vld [vmem:[%s1 + $0x8b8] sm:$0xff]
    %v2751 = vld [vmem:[%s1 + $0x8c0] sm:$0xff]
    %v2752 = vld [vmem:[%s1 + $0x8c8] sm:$0xff]
    %v2753 = vld [vmem:[%s1 + $0x8d0] sm:$0xff]
    %v2754 = vld [vmem:[%s1 + $0x8d8] sm:$0xff]
    %v2755 = vld [vmem:[%s1 + $0x8e0] sm:$0xff]
    %v2756 = vld [vmem:[%s1 + $0x8e8] sm:$0xff]
    %v2757 = vld [vmem:[%s1 + $0x8f0] sm:$0xff]
    %v2758 = vld [vmem:[%s1 + $0x8f8] sm:$0xff]
    %v2759 = vld [vmem:[%s1 + $0x900] sm:$0xff]
    %v2760 = vld [vmem:[%s1 + $0x908] sm:$0xff]
    %v2761 = vld [vmem:[%s1 + $0x910] sm:$0xff]
    %v2762 = vld [vmem:[%s1 + $0x918] sm:$0xff]
    %v2763 = vld [vmem:[%s1 + $0x920] sm:$0xff]
    %v2764 = vld [vmem:[%s1 + $0x928] sm:$0xff]
    %v2765 = vld [vmem:[%s1 + $0x930] sm:$0xff]
    %v2766 = vld [vmem:[%s1 + $0x938] sm:$0xff]
    %v2799 = vunpack.c.l.b16 %v2735
    %v2800 = vunpack.c.h.b16 %v2735
    %v2801 = vunpack.c.l.b16 %v2736
    %v2802 = vunpack.c.h.b16 %v2736
    %v2803 = vunpack.c.l.b16 %v2737
    %v2804 = vunpack.c.h.b16 %v2737
    %v2805 = vunpack.c.l.b16 %v2738
    %v2806 = vunpack.c.h.b16 %v2738
    %v2807 = vunpack.c.l.b16 %v2739
    %v2808 = vunpack.c.h.b16 %v2739
    %v2809 = vunpack.c.l.b16 %v2740
    %v2810 = vunpack.c.h.b16 %v2740
    %v2811 = vunpack.c.l.b16 %v2741
    %v2812 = vunpack.c.h.b16 %v2741
    %v2813 = vunpack.c.l.b16 %v2742
    %v2814 = vunpack.c.h.b16 %v2742
    %v2815 = vunpack.c.l.b16 %v2743
    %v2816 = vunpack.c.h.b16 %v2743
    %v2817 = vunpack.c.l.b16 %v2744
    %v2818 = vunpack.c.h.b16 %v2744
    %v2819 = vunpack.c.l.b16 %v2745
    %v2820 = vunpack.c.h.b16 %v2745
    %v2821 = vunpack.c.l.b16 %v2746
    %v2822 = vunpack.c.h.b16 %v2746
    %v2823 = vunpack.c.l.b16 %v2747
    %v2824 = vunpack.c.h.b16 %v2747
    %v2825 = vunpack.c.l.b16 %v2748
    %v2826 = vunpack.c.h.b16 %v2748
    %v2827 = vunpack.c.l.b16 %v2749
    %v2828 = vunpack.c.h.b16 %v2749
    %v2829 = vunpack.c.l.b16 %v2750
    %v2830 = vunpack.c.h.b16 %v2750
    %v2831 = vunpack.c.l.b16 %v2751
    %v2832 = vunpack.c.h.b16 %v2751
    %v2833 = vunpack.c.l.b16 %v2752
    %v2834 = vunpack.c.h.b16 %v2752
    %v2835 = vunpack.c.l.b16 %v2753
    %v2836 = vunpack.c.h.b16 %v2753
    %v2837 = vunpack.c.l.b16 %v2754
    %v2838 = vunpack.c.h.b16 %v2754
    %v2839 = vunpack.c.l.b16 %v2755
    %v2840 = vunpack.c.h.b16 %v2755
    %v2841 = vunpack.c.l.b16 %v2756
    %v2842 = vunpack.c.h.b16 %v2756
    %v2843 = vunpack.c.l.b16 %v2757
    %v2844 = vunpack.c.h.b16 %v2757
    %v2845 = vunpack.c.l.b16 %v2758
    %v2846 = vunpack.c.h.b16 %v2758
    %v2847 = vunpack.c.l.b16 %v2759
    %v2848 = vunpack.c.h.b16 %v2759
    %v2849 = vunpack.c.l.b16 %v2760
    %v2850 = vunpack.c.h.b16 %v2760
    %v2851 = vunpack.c.l.b16 %v2761
    %v2852 = vunpack.c.h.b16 %v2761
    %v2853 = vunpack.c.l.b16 %v2762
    %v2854 = vunpack.c.h.b16 %v2762
    %v2855 = vunpack.c.l.b16 %v2763
    %v2856 = vunpack.c.h.b16 %v2763
    %v2857 = vunpack.c.l.b16 %v2764
    %v2858 = vunpack.c.h.b16 %v2764
    %v2859 = vunpack.c.l.b16 %v2765
    %v2860 = vunpack.c.h.b16 %v2765
    %v2861 = vunpack.c.l.b16 %v2766
    %v2862 = vunpack.c.h.b16 %v2766
    %v2863 = vpack.c.b16 %v2801, %v2799
    %v2864 = vpack.c.b16 %v2802, %v2800
    %v2865 = vpack.c.b16 %v2805, %v2803
    %v2866 = vpack.c.b16 %v2806, %v2804
    %v2867 = vpack.c.b16 %v2809, %v2807
    %v2868 = vpack.c.b16 %v2810, %v2808
    %v2869 = vpack.c.b16 %v2813, %v2811
    %v2870 = vpack.c.b16 %v2814, %v2812
    %v2871 = vpack.c.b16 %v2817, %v2815
    %v2872 = vpack.c.b16 %v2818, %v2816
    %v2873 = vpack.c.b16 %v2821, %v2819
    %v2874 = vpack.c.b16 %v2822, %v2820
    %v2875 = vpack.c.b16 %v2825, %v2823
    %v2876 = vpack.c.b16 %v2826, %v2824
    %v2877 = vpack.c.b16 %v2829, %v2827
    %v2878 = vpack.c.b16 %v2830, %v2828
    %v2879 = vpack.c.b16 %v2833, %v2831
    %v2880 = vpack.c.b16 %v2834, %v2832
    %v2881 = vpack.c.b16 %v2837, %v2835
    %v2882 = vpack.c.b16 %v2838, %v2836
    %v2883 = vpack.c.b16 %v2841, %v2839
    %v2884 = vpack.c.b16 %v2842, %v2840
    %v2885 = vpack.c.b16 %v2845, %v2843
    %v2886 = vpack.c.b16 %v2846, %v2844
    %v2887 = vpack.c.b16 %v2849, %v2847
    %v2888 = vpack.c.b16 %v2850, %v2848
    %v2889 = vpack.c.b16 %v2853, %v2851
    %v2890 = vpack.c.b16 %v2854, %v2852
    %v2891 = vpack.c.b16 %v2857, %v2855
    %v2892 = vpack.c.b16 %v2858, %v2856
    %v2893 = vpack.c.b16 %v2861, %v2859
    %v2894 = vpack.c.b16 %v2862, %v2860
    %2927 = vmatprep.subr.bf16.mxu0 %v2864
    %2928 = vmatpush1.bf16.msra.mxu0 %v2863
    %2929 = vmatprep.subr.bf16.mxu0 %v2866
    %2930 = vmatpush1.bf16.msra.mxu0 %v2865
    %2931 = vmatprep.subr.bf16.mxu0 %v2868
    %2932 = vmatpush1.bf16.msra.mxu0 %v2867
    %2933 = vmatprep.subr.bf16.mxu0 %v2870
    %2934 = vmatpush1.bf16.msra.mxu0 %v2869
    %2935 = vmatprep.subr.bf16.mxu0 %v2872
    %2936 = vmatpush1.bf16.msra.mxu0 %v2871
    %2937 = vmatprep.subr.bf16.mxu0 %v2874
    %2938 = vmatpush1.bf16.msra.mxu0 %v2873
    %2939 = vmatprep.subr.bf16.mxu0 %v2876
    %2940 = vmatpush1.bf16.msra.mxu0 %v2875
    %2941 = vmatprep.subr.bf16.mxu0 %v2878
    %2942 = vmatpush1.bf16.msra.mxu0 %v2877
    %2943 = vmatprep.subr.bf16.mxu0 %v2880
    %2944 = vmatpush1.bf16.msra.mxu0 %v2879
    %2945 = vmatprep.subr.bf16.mxu0 %v2882
    %2946 = vmatpush1.bf16.msra.mxu0 %v2881
    %2947 = vmatprep.subr.bf16.mxu0 %v2884
    %2948 = vmatpush1.bf16.msra.mxu0 %v2883
    %2949 = vmatprep.subr.bf16.mxu0 %v2886
    %2950 = vmatpush1.bf16.msra.mxu0 %v2885
    %2951 = vmatprep.subr.bf16.mxu0 %v2888
    %2952 = vmatpush1.bf16.msra.mxu0 %v2887
    %2953 = vmatprep.subr.bf16.mxu0 %v2890
    %2954 = vmatpush1.bf16.msra.mxu0 %v2889
    %2955 = vmatprep.subr.bf16.mxu0 %v2892
    %2956 = vmatpush1.bf16.msra.mxu0 %v2891
    %2957 = vmatprep.subr.bf16.mxu0 %v2894
    %2958 = vmatpush1.bf16.msra.mxu0 %v2893
    %2959 = vmatprep.mubr.bf16.mxu0 %v2521
    %2960 = vmatmul.mubr.bf16.gmra.mrb[0].mxu0 %v2520
    %v2961 = vpop.f32.mrb[0].mxu0
    %v2962 = vadd.f32 0.0, %v2961
    %v2963 = vpop.f32.mrb[0].mxu0
    %v2964 = vadd.f32 0.0, %v2963
    %v2965 = vpop.f32.mrb[0].mxu0
    %v2966 = vadd.f32 0.0, %v2965
    %v2967 = vpop.f32.mrb[0].mxu0
    %v2968 = vadd.f32 0.0, %v2967
    %2969 = vmatprep.mubr.bf16.mxu0 %v2523
    %2970 = vmatmul.mubr.bf16.gmra.mrb[0].mxu0 %v2522
    %v2971 = vpop.f32.mrb[0].mxu0
    %v2972 = vadd.f32 0.0, %v2971
    %v2973 = vpop.f32.mrb[0].mxu0
    %v2974 = vadd.f32 0.0, %v2973
    %v2975 = vpop.f32.mrb[0].mxu0
    %v2976 = vpop.f32.mrb[0].mxu0
    %2977 = vdwg.mxu0
    %v2978 = vmax.f32 %v2719, %v2962
    %v2979 = vmax.f32 %v2721, %v2964
    %v2980 = vmax.f32 %v2723, %v2966
    %v2981 = vmax.f32 %v2725, %v2968
    %v2982 = vmax.f32 %v2729, %v2972
    %v2983 = vmax.f32 %v2731, %v2974
    %s2984 = scalar_lea.vmem %s3, 2
    %v2985 = vld [vmem:[%s2984] ss:$8 sm:$0x3]
    %v2986 = vld [vmem:[%s1 + $0x940] sm:$0xff]
    %v2987 = vld [vmem:[%s1 + $0x948] sm:$0xff]
    %v2988 = vld [vmem:[%s1 + $0x950] sm:$0xff]
    %v2989 = vld [vmem:[%s1 + $0x958] sm:$0xff]
    %v2990 = vld [vmem:[%s1 + $0x960] sm:$0xff]
    %v2991 = vld [vmem:[%s1 + $0x968] sm:$0xff]
    %v2992 = vld [vmem:[%s1 + $0x970] sm:$0xff]
    %v2993 = vld [vmem:[%s1 + $0x978] sm:$0xff]
    %v2994 = vld [vmem:[%s1 + $0x980] sm:$0xff]
    %v2995 = vld [vmem:[%s1 + $0x988] sm:$0xff]
    %v2996 = vld [vmem:[%s1 + $0x990] sm:$0xff]
    %v2997 = vld [vmem:[%s1 + $0x998] sm:$0xff]
    %v2998 = vld [vmem:[%s1 + $0x9a0] sm:$0xff]
    %v2999 = vld [vmem:[%s1 + $0x9a8] sm:$0xff]
    %v3000 = vld [vmem:[%s1 + $0x9b0] sm:$0xff]
    %v3001 = vld [vmem:[%s1 + $0x9b8] sm:$0xff]
    %v3002 = vld [vmem:[%s1 + $0x9c0] sm:$0xff]
    %v3003 = vld [vmem:[%s1 + $0x9c8] sm:$0xff]
    %v3004 = vld [vmem:[%s1 + $0x9d0] sm:$0xff]
    %v3005 = vld [vmem:[%s1 + $0x9d8] sm:$0xff]
    %v3006 = vld [vmem:[%s1 + $0x9e0] sm:$0xff]
    %v3007 = vld [vmem:[%s1 + $0x9e8] sm:$0xff]
    %v3008 = vld [vmem:[%s1 + $0x9f0] sm:$0xff]
    %v3009 = vld [vmem:[%s1 + $0x9f8] sm:$0xff]
    %v3010 = vld [vmem:[%s1 + $0xa00] sm:$0xff]
    %v3011 = vld [vmem:[%s1 + $0xa08] sm:$0xff]
    %v3012 = vld [vmem:[%s1 + $0xa10] sm:$0xff]
    %v3013 = vld [vmem:[%s1 + $0xa18] sm:$0xff]
    %v3014 = vld [vmem:[%s1 + $0xa20] sm:$0xff]
    %v3015 = vld [vmem:[%s1 + $0xa28] sm:$0xff]
    %v3016 = vld [vmem:[%s1 + $0xa30] sm:$0xff]
    %v3017 = vld [vmem:[%s1 + $0xa38] sm:$0xff]
    %v3018 = vpack.c.bf16 %v2980, %v2978
    %v3019 = vpack.c.bf16 %v2981, %v2979
    %v3020 = vpack.c.bf16 %v2982, %v2982
    %v3021 = vpack.c.bf16 %v2983, %v2983
    %v3054 = vunpack.c.l.b16 %v2986
    %v3055 = vunpack.c.h.b16 %v2986
    %v3056 = vunpack.c.l.b16 %v2987
    %v3057 = vunpack.c.h.b16 %v2987
    %v3058 = vunpack.c.l.b16 %v2988
    %v3059 = vunpack.c.h.b16 %v2988
    %v3060 = vunpack.c.l.b16 %v2989
    %v3061 = vunpack.c.h.b16 %v2989
    %v3062 = vunpack.c.l.b16 %v2990
    %v3063 = vunpack.c.h.b16 %v2990
    %v3064 = vunpack.c.l.b16 %v2991
    %v3065 = vunpack.c.h.b16 %v2991
    %v3066 = vunpack.c.l.b16 %v2992
    %v3067 = vunpack.c.h.b16 %v2992
    %v3068 = vunpack.c.l.b16 %v2993
    %v3069 = vunpack.c.h.b16 %v2993
    %v3070 = vunpack.c.l.b16 %v2994
    %v3071 = vunpack.c.h.b16 %v2994
    %v3072 = vunpack.c.l.b16 %v2995
    %v3073 = vunpack.c.h.b16 %v2995
    %v3074 = vunpack.c.l.b16 %v2996
    %v3075 = vunpack.c.h.b16 %v2996
    %v3076 = vunpack.c.l.b16 %v2997
    %v3077 = vunpack.c.h.b16 %v2997
    %v3078 = vunpack.c.l.b16 %v2998
    %v3079 = vunpack.c.h.b16 %v2998
    %v3080 = vunpack.c.l.b16 %v2999
    %v3081 = vunpack.c.h.b16 %v2999
    %v3082 = vunpack.c.l.b16 %v3000
    %v3083 = vunpack.c.h.b16 %v3000
    %v3084 = vunpack.c.l.b16 %v3001
    %v3085 = vunpack.c.h.b16 %v3001
    %v3086 = vunpack.c.l.b16 %v3002
    %v3087 = vunpack.c.h.b16 %v3002
    %v3088 = vunpack.c.l.b16 %v3003
    %v3089 = vunpack.c.h.b16 %v3003
    %v3090 = vunpack.c.l.b16 %v3004
    %v3091 = vunpack.c.h.b16 %v3004
    %v3092 = vunpack.c.l.b16 %v3005
    %v3093 = vunpack.c.h.b16 %v3005
    %v3094 = vunpack.c.l.b16 %v3006
    %v3095 = vunpack.c.h.b16 %v3006
    %v3096 = vunpack.c.l.b16 %v3007
    %v3097 = vunpack.c.h.b16 %v3007
    %v3098 = vunpack.c.l.b16 %v3008
    %v3099 = vunpack.c.h.b16 %v3008
    %v3100 = vunpack.c.l.b16 %v3009
    %v3101 = vunpack.c.h.b16 %v3009
    %v3102 = vunpack.c.l.b16 %v3010
    %v3103 = vunpack.c.h.b16 %v3010
    %v3104 = vunpack.c.l.b16 %v3011
    %v3105 = vunpack.c.h.b16 %v3011
    %v3106 = vunpack.c.l.b16 %v3012
    %v3107 = vunpack.c.h.b16 %v3012
    %v3108 = vunpack.c.l.b16 %v3013
    %v3109 = vunpack.c.h.b16 %v3013
    %v3110 = vunpack.c.l.b16 %v3014
    %v3111 = vunpack.c.h.b16 %v3014
    %v3112 = vunpack.c.l.b16 %v3015
    %v3113 = vunpack.c.h.b16 %v3015
    %v3114 = vunpack.c.l.b16 %v3016
    %v3115 = vunpack.c.h.b16 %v3016
    %v3116 = vunpack.c.l.b16 %v3017
    %v3117 = vunpack.c.h.b16 %v3017
    %v3118 = vpack.c.b16 %v3056, %v3054
    %v3119 = vpack.c.b16 %v3057, %v3055
    %v3120 = vpack.c.b16 %v3060, %v3058
    %v3121 = vpack.c.b16 %v3061, %v3059
    %v3122 = vpack.c.b16 %v3064, %v3062
    %v3123 = vpack.c.b16 %v3065, %v3063
    %v3124 = vpack.c.b16 %v3068, %v3066
    %v3125 = vpack.c.b16 %v3069, %v3067
    %v3126 = vpack.c.b16 %v3072, %v3070
    %v3127 = vpack.c.b16 %v3073, %v3071
    %v3128 = vpack.c.b16 %v3076, %v3074
    %v3129 = vpack.c.b16 %v3077, %v3075
    %v3130 = vpack.c.b16 %v3080, %v3078
    %v3131 = vpack.c.b16 %v3081, %v3079
    %v3132 = vpack.c.b16 %v3084, %v3082
    %v3133 = vpack.c.b16 %v3085, %v3083
    %v3134 = vpack.c.b16 %v3088, %v3086
    %v3135 = vpack.c.b16 %v3089, %v3087
    %v3136 = vpack.c.b16 %v3092, %v3090
    %v3137 = vpack.c.b16 %v3093, %v3091
    %v3138 = vpack.c.b16 %v3096, %v3094
    %v3139 = vpack.c.b16 %v3097, %v3095
    %v3140 = vpack.c.b16 %v3100, %v3098
    %v3141 = vpack.c.b16 %v3101, %v3099
    %v3142 = vpack.c.b16 %v3104, %v3102
    %v3143 = vpack.c.b16 %v3105, %v3103
    %v3144 = vpack.c.b16 %v3108, %v3106
    %v3145 = vpack.c.b16 %v3109, %v3107
    %v3146 = vpack.c.b16 %v3112, %v3110
    %v3147 = vpack.c.b16 %v3113, %v3111
    %v3148 = vpack.c.b16 %v3116, %v3114
    %v3149 = vpack.c.b16 %v3117, %v3115
    %3182 = vmatprep.subr.bf16.mxu0 %v3119
    %3183 = vmatpush1.bf16.msra.mxu0 %v3118
    %3184 = vmatprep.subr.bf16.mxu0 %v3121
    %3185 = vmatpush1.bf16.msra.mxu0 %v3120
    %3186 = vmatprep.subr.bf16.mxu0 %v3123
    %3187 = vmatpush1.bf16.msra.mxu0 %v3122
    %3188 = vmatprep.subr.bf16.mxu0 %v3125
    %3189 = vmatpush1.bf16.msra.mxu0 %v3124
    %3190 = vmatprep.subr.bf16.mxu0 %v3127
    %3191 = vmatpush1.bf16.msra.mxu0 %v3126
    %3192 = vmatprep.subr.bf16.mxu0 %v3129
    %3193 = vmatpush1.bf16.msra.mxu0 %v3128
    %3194 = vmatprep.subr.bf16.mxu0 %v3131
    %3195 = vmatpush1.bf16.msra.mxu0 %v3130
    %3196 = vmatprep.subr.bf16.mxu0 %v3133
    %3197 = vmatpush1.bf16.msra.mxu0 %v3132
    %3198 = vmatprep.subr.bf16.mxu0 %v3135
    %3199 = vmatpush1.bf16.msra.mxu0 %v3134
    %3200 = vmatprep.subr.bf16.mxu0 %v3137
    %3201 = vmatpush1.bf16.msra.mxu0 %v3136
    %3202 = vmatprep.subr.bf16.mxu0 %v3139
    %3203 = vmatpush1.bf16.msra.mxu0 %v3138
    %3204 = vmatprep.subr.bf16.mxu0 %v3141
    %3205 = vmatpush1.bf16.msra.mxu0 %v3140
    %3206 = vmatprep.subr.bf16.mxu0 %v3143
    %3207 = vmatpush1.bf16.msra.mxu0 %v3142
    %3208 = vmatprep.subr.bf16.mxu0 %v3145
    %3209 = vmatpush1.bf16.msra.mxu0 %v3144
    %3210 = vmatprep.subr.bf16.mxu0 %v3147
    %3211 = vmatpush1.bf16.msra.mxu0 %v3146
    %3212 = vmatprep.subr.bf16.mxu0 %v3149
    %3213 = vmatpush1.bf16.msra.mxu0 %v3148
    %3214 = vmatprep.mubr.bf16.mxu0 %v3019
    %3215 = vmatmul.mubr.bf16.gmra.mrb[0].mxu0 %v3018
    %v3216 = vpop.f32.mrb[0].mxu0
    %v3217 = vadd.f32 0.0, %v3216
    %v3218 = vpop.f32.mrb[0].mxu0
    %v3219 = vadd.f32 0.0, %v3218
    %v3220 = vpop.f32.mrb[0].mxu0
    %v3221 = vadd.f32 0.0, %v3220
    %v3222 = vpop.f32.mrb[0].mxu0
    %v3223 = vadd.f32 0.0, %v3222
    %3224 = vmatprep.mubr.bf16.mxu0 %v3021
    %3225 = vmatmul.mubr.bf16.gmra.mrb[0].mxu0 %v3020
    %v3226 = vpop.f32.mrb[0].mxu0
    %v3227 = vadd.f32 0.0, %v3226
    %v3228 = vpop.f32.mrb[0].mxu0
    %v3229 = vadd.f32 0.0, %v3228
    %v3230 = vpop.f32.mrb[0].mxu0
    %v3231 = vpop.f32.mrb[0].mxu0
    %3232 = vdwg.mxu0
    %v3234 = vlaneseq
    %v3235 = vshrl.u32 %v3234, 7
    %v3236 = vsub.s32 0, %v3235
    %v3237 = vrot.slane %v2985, %v3236
    %v3238 = vlaneseq
    %v3239 = vshrl.u32 %v3238, 7
    %v3240 = vsub.s32 1, %v3239
    %v3241 = vrot.slane %v2985, %v3240
    %v3244 = vadd.f32 %v3237, %v3217
    %v3245 = vadd.f32 %v3241, %v3219
    %v3246 = vadd.f32 %v3237, %v3221
    %v3247 = vadd.f32 %v3241, %v3223
    %v3248 = vadd.f32 %v3237, %v3227
    %v3249 = vadd.f32 %v3241, %v3229
    %v3250 = vld [vmem:[%s1 + $0xa40] sm:$0xff]
    %v3251 = vld [vmem:[%s1 + $0xa48] sm:$0xff]
    %v3252 = vld [vmem:[%s1 + $0xa50] sm:$0xff]
    %v3253 = vld [vmem:[%s1 + $0xa58] sm:$0xff]
    %v3254 = vld [vmem:[%s1 + $0xa60] sm:$0xff]
    %v3255 = vld [vmem:[%s1 + $0xa68] sm:$0xff]
    %v3256 = vld [vmem:[%s1 + $0xa70] sm:$0xff]
    %v3257 = vld [vmem:[%s1 + $0xa78] sm:$0xff]
    %v3258 = vld [vmem:[%s1 + $0xa80] sm:$0xff]
    %v3259 = vld [vmem:[%s1 + $0xa88] sm:$0xff]
    %v3260 = vld [vmem:[%s1 + $0xa90] sm:$0xff]
    %v3261 = vld [vmem:[%s1 + $0xa98] sm:$0xff]
    %v3262 = vld [vmem:[%s1 + $0xaa0] sm:$0xff]
    %v3263 = vld [vmem:[%s1 + $0xaa8] sm:$0xff]
    %v3264 = vld [vmem:[%s1 + $0xab0] sm:$0xff]
    %v3265 = vld [vmem:[%s1 + $0xab8] sm:$0xff]
    %v3266 = vld [vmem:[%s1 + $0xac0] sm:$0xff]
    %v3267 = vld [vmem:[%s1 + $0xac8] sm:$0xff]
    %v3268 = vld [vmem:[%s1 + $0xad0] sm:$0xff]
    %v3269 = vld [vmem:[%s1 + $0xad8] sm:$0xff]
    %v3270 = vld [vmem:[%s1 + $0xae0] sm:$0xff]
    %v3271 = vld [vmem:[%s1 + $0xae8] sm:$0xff]
    %v3272 = vld [vmem:[%s1 + $0xaf0] sm:$0xff]
    %v3273 = vld [vmem:[%s1 + $0xaf8] sm:$0xff]
    %v3274 = vld [vmem:[%s1 + $0xb00] sm:$0xff]
    %v3275 = vld [vmem:[%s1 + $0xb08] sm:$0xff]
    %v3276 = vld [vmem:[%s1 + $0xb10] sm:$0xff]
    %v3277 = vld [vmem:[%s1 + $0xb18] sm:$0xff]
    %v3278 = vld [vmem:[%s1 + $0xb20] sm:$0xff]
    %v3279 = vld [vmem:[%s1 + $0xb28] sm:$0xff]
    %v3280 = vld [vmem:[%s1 + $0xb30] sm:$0xff]
    %v3281 = vld [vmem:[%s1 + $0xb38] sm:$0xff]
    %v3283 = vshrl.u32 %v3018, 16
    %v3285 = vshll.u32 %v3018, 16
    %v3287 = vrot.slane %v3285, 1
    %v3288 = vor.u32 %v3283, %v3287
    %v3290 = vshll.u32 %v3020, 16
    %v3292 = vrot.slane %v3290, 1
    %v3293 = vsel %vm258, %v3288, %v3292
    %v3295 = vshrl.u32 %v3019, 16
    %v3297 = vshll.u32 %v3019, 16
    %v3299 = vrot.slane %v3297, 1
    %v3300 = vor.u32 %v3295, %v3299
    %v3302 = vshll.u32 %v3021, 16
    %v3304 = vrot.slane %v3302, 1
    %v3305 = vsel %vm258, %v3300, %v3304
    %v3306 = vshrl.u32 %v3020, 16
    %v3308 = vor.u32 %v3306, %v3292
    %v3309 = vshrl.u32 %v3021, 16
    %v3311 = vor.u32 %v3309, %v3304
    %v3348 = vunpack.c.l.b16 %v3250
    %v3349 = vunpack.c.h.b16 %v3250
    %v3350 = vunpack.c.l.b16 %v3251
    %v3351 = vunpack.c.h.b16 %v3251
    %v3352 = vunpack.c.l.b16 %v3252
    %v3353 = vunpack.c.h.b16 %v3252
    %v3354 = vunpack.c.l.b16 %v3253
    %v3355 = vunpack.c.h.b16 %v3253
    %v3356 = vunpack.c.l.b16 %v3254
    %v3357 = vunpack.c.h.b16 %v3254
    %v3358 = vunpack.c.l.b16 %v3255
    %v3359 = vunpack.c.h.b16 %v3255
    %v3360 = vunpack.c.l.b16 %v3256
    %v3361 = vunpack.c.h.b16 %v3256
    %v3362 = vunpack.c.l.b16 %v3257
    %v3363 = vunpack.c.h.b16 %v3257
    %v3364 = vunpack.c.l.b16 %v3258
    %v3365 = vunpack.c.h.b16 %v3258
    %v3366 = vunpack.c.l.b16 %v3259
    %v3367 = vunpack.c.h.b16 %v3259
    %v3368 = vunpack.c.l.b16 %v3260
    %v3369 = vunpack.c.h.b16 %v3260
    %v3370 = vunpack.c.l.b16 %v3261
    %v3371 = vunpack.c.h.b16 %v3261
    %v3372 = vunpack.c.l.b16 %v3262
    %v3373 = vunpack.c.h.b16 %v3262
    %v3374 = vunpack.c.l.b16 %v3263
    %v3375 = vunpack.c.h.b16 %v3263
    %v3376 = vunpack.c.l.b16 %v3264
    %v3377 = vunpack.c.h.b16 %v3264
    %v3378 = vunpack.c.l.b16 %v3265
    %v3379 = vunpack.c.h.b16 %v3265
    %v3380 = vunpack.c.l.b16 %v3266
    %v3381 = vunpack.c.h.b16 %v3266
    %v3382 = vunpack.c.l.b16 %v3267
    %v3383 = vunpack.c.h.b16 %v3267
    %v3384 = vunpack.c.l.b16 %v3268
    %v3385 = vunpack.c.h.b16 %v3268
    %v3386 = vunpack.c.l.b16 %v3269
    %v3387 = vunpack.c.h.b16 %v3269
    %v3388 = vunpack.c.l.b16 %v3270
    %v3389 = vunpack.c.h.b16 %v3270
    %v3390 = vunpack.c.l.b16 %v3271
    %v3391 = vunpack.c.h.b16 %v3271
    %v3392 = vunpack.c.l.b16 %v3272
    %v3393 = vunpack.c.h.b16 %v3272
    %v3394 = vunpack.c.l.b16 %v3273
    %v3395 = vunpack.c.h.b16 %v3273
    %v3396 = vunpack.c.l.b16 %v3274
    %v3397 = vunpack.c.h.b16 %v3274
    %v3398 = vunpack.c.l.b16 %v3275
    %v3399 = vunpack.c.h.b16 %v3275
    %v3400 = vunpack.c.l.b16 %v3276
    %v3401 = vunpack.c.h.b16 %v3276
    %v3402 = vunpack.c.l.b16 %v3277
    %v3403 = vunpack.c.h.b16 %v3277
    %v3404 = vunpack.c.l.b16 %v3278
    %v3405 = vunpack.c.h.b16 %v3278
    %v3406 = vunpack.c.l.b16 %v3279
    %v3407 = vunpack.c.h.b16 %v3279
    %v3408 = vunpack.c.l.b16 %v3280
    %v3409 = vunpack.c.h.b16 %v3280
    %v3410 = vunpack.c.l.b16 %v3281
    %v3411 = vunpack.c.h.b16 %v3281
    %v3412 = vpack.c.b16 %v3350, %v3348
    %v3413 = vpack.c.b16 %v3351, %v3349
    %v3414 = vpack.c.b16 %v3354, %v3352
    %v3415 = vpack.c.b16 %v3355, %v3353
    %v3416 = vpack.c.b16 %v3358, %v3356
    %v3417 = vpack.c.b16 %v3359, %v3357
    %v3418 = vpack.c.b16 %v3362, %v3360
    %v3419 = vpack.c.b16 %v3363, %v3361
    %v3420 = vpack.c.b16 %v3366, %v3364
    %v3421 = vpack.c.b16 %v3367, %v3365
    %v3422 = vpack.c.b16 %v3370, %v3368
    %v3423 = vpack.c.b16 %v3371, %v3369
    %v3424 = vpack.c.b16 %v3374, %v3372
    %v3425 = vpack.c.b16 %v3375, %v3373
    %v3426 = vpack.c.b16 %v3378, %v3376
    %v3427 = vpack.c.b16 %v3379, %v3377
    %v3428 = vpack.c.b16 %v3382, %v3380
    %v3429 = vpack.c.b16 %v3383, %v3381
    %v3430 = vpack.c.b16 %v3386, %v3384
    %v3431 = vpack.c.b16 %v3387, %v3385
    %v3432 = vpack.c.b16 %v3390, %v3388
    %v3433 = vpack.c.b16 %v3391, %v3389
    %v3434 = vpack.c.b16 %v3394, %v3392
    %v3435 = vpack.c.b16 %v3395, %v3393
    %v3436 = vpack.c.b16 %v3398, %v3396
    %v3437 = vpack.c.b16 %v3399, %v3397
    %v3438 = vpack.c.b16 %v3402, %v3400
    %v3439 = vpack.c.b16 %v3403, %v3401
    %v3440 = vpack.c.b16 %v3406, %v3404
    %v3441 = vpack.c.b16 %v3407, %v3405
    %v3442 = vpack.c.b16 %v3410, %v3408
    %v3443 = vpack.c.b16 %v3411, %v3409
    %3476 = vmatprep.subr.bf16.mxu0 %v3413
    %3477 = vmatpush1.bf16.msra.mxu0 %v3412
    %3478 = vmatprep.subr.bf16.mxu0 %v3415
    %3479 = vmatpush1.bf16.msra.mxu0 %v3414
    %3480 = vmatprep.subr.bf16.mxu0 %v3417
    %3481 = vmatpush1.bf16.msra.mxu0 %v3416
    %3482 = vmatprep.subr.bf16.mxu0 %v3419
    %3483 = vmatpush1.bf16.msra.mxu0 %v3418
    %3484 = vmatprep.subr.bf16.mxu0 %v3421
    %3485 = vmatpush1.bf16.msra.mxu0 %v3420
    %3486 = vmatprep.subr.bf16.mxu0 %v3423
    %3487 = vmatpush1.bf16.msra.mxu0 %v3422
    %3488 = vmatprep.subr.bf16.mxu0 %v3425
    %3489 = vmatpush1.bf16.msra.mxu0 %v3424
    %3490 = vmatprep.subr.bf16.mxu0 %v3427
    %3491 = vmatpush1.bf16.msra.mxu0 %v3426
    %3492 = vmatprep.subr.bf16.mxu0 %v3429
    %3493 = vmatpush1.bf16.msra.mxu0 %v3428
    %3494 = vmatprep.subr.bf16.mxu0 %v3431
    %3495 = vmatpush1.bf16.msra.mxu0 %v3430
    %3496 = vmatprep.subr.bf16.mxu0 %v3433
    %3497 = vmatpush1.bf16.msra.mxu0 %v3432
    %3498 = vmatprep.subr.bf16.mxu0 %v3435
    %3499 = vmatpush1.bf16.msra.mxu0 %v3434
    %3500 = vmatprep.subr.bf16.mxu0 %v3437
    %3501 = vmatpush1.bf16.msra.mxu0 %v3436
    %3502 = vmatprep.subr.bf16.mxu0 %v3439
    %3503 = vmatpush1.bf16.msra.mxu0 %v3438
    %3504 = vmatprep.subr.bf16.mxu0 %v3441
    %3505 = vmatpush1.bf16.msra.mxu0 %v3440
    %3506 = vmatprep.subr.bf16.mxu0 %v3443
    %3507 = vmatpush1.bf16.msra.mxu0 %v3442
    %3508 = vmatprep.mubr.bf16.mxu0 %v3305
    %3509 = vmatmul.mubr.bf16.gmra.mrb[0].mxu0 %v3293
    %v3510 = vpop.f32.mrb[0].mxu0
    %v3511 = vadd.f32 0.0, %v3510
    %v3512 = vpop.f32.mrb[0].mxu0
    %v3513 = vadd.f32 0.0, %v3512
    %v3514 = vpop.f32.mrb[0].mxu0
    %v3515 = vadd.f32 0.0, %v3514
    %v3516 = vpop.f32.mrb[0].mxu0
    %v3517 = vadd.f32 0.0, %v3516
    %3518 = vmatprep.mubr.bf16.mxu0 %v3311
    %3519 = vmatmul.mubr.bf16.gmra.mrb[0].mxu0 %v3308
    %v3520 = vpop.f32.mrb[0].mxu0
    %v3521 = vadd.f32 0.0, %v3520
    %v3522 = vpop.f32.mrb[0].mxu0
    %v3523 = vadd.f32 0.0, %v3522
    %v3524 = vpop.f32.mrb[0].mxu0
    %v3525 = vpop.f32.mrb[0].mxu0
    %3526 = vdwg.mxu0
    %v3527 = vadd.f32 %v3244, %v3511
    %v3528 = vadd.f32 %v3245, %v3513
    %v3529 = vadd.f32 %v3246, %v3515
    %v3530 = vadd.f32 %v3247, %v3517
    %v3531 = vadd.f32 %v3248, %v3521
    %v3532 = vadd.f32 %v3249, %v3523
    %v3533 = vld [vmem:[%s1 + $0xb40] sm:$0xff]
    %v3534 = vld [vmem:[%s1 + $0xb48] sm:$0xff]
    %v3535 = vld [vmem:[%s1 + $0xb50] sm:$0xff]
    %v3536 = vld [vmem:[%s1 + $0xb58] sm:$0xff]
    %v3537 = vld [vmem:[%s1 + $0xb60] sm:$0xff]
    %v3538 = vld [vmem:[%s1 + $0xb68] sm:$0xff]
    %v3539 = vld [vmem:[%s1 + $0xb70] sm:$0xff]
    %v3540 = vld [vmem:[%s1 + $0xb78] sm:$0xff]
    %v3541 = vld [vmem:[%s1 + $0xb80] sm:$0xff]
    %v3542 = vld [vmem:[%s1 + $0xb88] sm:$0xff]
    %v3543 = vld [vmem:[%s1 + $0xb90] sm:$0xff]
    %v3544 = vld [vmem:[%s1 + $0xb98] sm:$0xff]
    %v3545 = vld [vmem:[%s1 + $0xba0] sm:$0xff]
    %v3546 = vld [vmem:[%s1 + $0xba8] sm:$0xff]
    %v3547 = vld [vmem:[%s1 + $0xbb0] sm:$0xff]
    %v3548 = vld [vmem:[%s1 + $0xbb8] sm:$0xff]
    %v3549 = vld [vmem:[%s1 + $0xbc0] sm:$0xff]
    %v3550 = vld [vmem:[%s1 + $0xbc8] sm:$0xff]
    %v3551 = vld [vmem:[%s1 + $0xbd0] sm:$0xff]
    %v3552 = vld [vmem:[%s1 + $0xbd8] sm:$0xff]
    %v3553 = vld [vmem:[%s1 + $0xbe0] sm:$0xff]
    %v3554 = vld [vmem:[%s1 + $0xbe8] sm:$0xff]
    %v3555 = vld [vmem:[%s1 + $0xbf0] sm:$0xff]
    %v3556 = vld [vmem:[%s1 + $0xbf8] sm:$0xff]
    %v3557 = vld [vmem:[%s1 + $0xc00] sm:$0xff]
    %v3558 = vld [vmem:[%s1 + $0xc08] sm:$0xff]
    %v3559 = vld [vmem:[%s1 + $0xc10] sm:$0xff]
    %v3560 = vld [vmem:[%s1 + $0xc18] sm:$0xff]
    %v3561 = vld [vmem:[%s1 + $0xc20] sm:$0xff]
    %v3562 = vld [vmem:[%s1 + $0xc28] sm:$0xff]
    %v3563 = vld [vmem:[%s1 + $0xc30] sm:$0xff]
    %v3564 = vld [vmem:[%s1 + $0xc38] sm:$0xff]
    %v3569 = vrot.slane %v3018, 1
    %v3570 = vrot.slane %v3020, 1
    %v3571 = vsel %vm503, %v3569, %v3570
    %v3572 = vrot.slane %v3019, 1
    %v3573 = vrot.slane %v3021, 1
    %v3574 = vsel %vm503, %v3572, %v3573
    %v3611 = vunpack.c.l.b16 %v3533
    %v3612 = vunpack.c.h.b16 %v3533
    %v3613 = vunpack.c.l.b16 %v3534
    %v3614 = vunpack.c.h.b16 %v3534
    %v3615 = vunpack.c.l.b16 %v3535
    %v3616 = vunpack.c.h.b16 %v3535
    %v3617 = vunpack.c.l.b16 %v3536
    %v3618 = vunpack.c.h.b16 %v3536
    %v3619 = vunpack.c.l.b16 %v3537
    %v3620 = vunpack.c.h.b16 %v3537
    %v3621 = vunpack.c.l.b16 %v3538
    %v3622 = vunpack.c.h.b16 %v3538
    %v3623 = vunpack.c.l.b16 %v3539
    %v3624 = vunpack.c.h.b16 %v3539
    %v3625 = vunpack.c.l.b16 %v3540
    %v3626 = vunpack.c.h.b16 %v3540
    %v3627 = vunpack.c.l.b16 %v3541
    %v3628 = vunpack.c.h.b16 %v3541
    %v3629 = vunpack.c.l.b16 %v3542
    %v3630 = vunpack.c.h.b16 %v3542
    %v3631 = vunpack.c.l.b16 %v3543
    %v3632 = vunpack.c.h.b16 %v3543
    %v3633 = vunpack.c.l.b16 %v3544
    %v3634 = vunpack.c.h.b16 %v3544
    %v3635 = vunpack.c.l.b16 %v3545
    %v3636 = vunpack.c.h.b16 %v3545
    %v3637 = vunpack.c.l.b16 %v3546
    %v3638 = vunpack.c.h.b16 %v3546
    %v3639 = vunpack.c.l.b16 %v3547
    %v3640 = vunpack.c.h.b16 %v3547
    %v3641 = vunpack.c.l.b16 %v3548
    %v3642 = vunpack.c.h.b16 %v3548
    %v3643 = vunpack.c.l.b16 %v3549
    %v3644 = vunpack.c.h.b16 %v3549
    %v3645 = vunpack.c.l.b16 %v3550
    %v3646 = vunpack.c.h.b16 %v3550
    %v3647 = vunpack.c.l.b16 %v3551
    %v3648 = vunpack.c.h.b16 %v3551
    %v3649 = vunpack.c.l.b16 %v3552
    %v3650 = vunpack.c.h.b16 %v3552
    %v3651 = vunpack.c.l.b16 %v3553
    %v3652 = vunpack.c.h.b16 %v3553
    %v3653 = vunpack.c.l.b16 %v3554
    %v3654 = vunpack.c.h.b16 %v3554
    %v3655 = vunpack.c.l.b16 %v3555
    %v3656 = vunpack.c.h.b16 %v3555
    %v3657 = vunpack.c.l.b16 %v3556
    %v3658 = vunpack.c.h.b16 %v3556
    %v3659 = vunpack.c.l.b16 %v3557
    %v3660 = vunpack.c.h.b16 %v3557
    %v3661 = vunpack.c.l.b16 %v3558
    %v3662 = vunpack.c.h.b16 %v3558
    %v3663 = vunpack.c.l.b16 %v3559
    %v3664 = vunpack.c.h.b16 %v3559
    %v3665 = vunpack.c.l.b16 %v3560
    %v3666 = vunpack.c.h.b16 %v3560
    %v3667 = vunpack.c.l.b16 %v3561
    %v3668 = vunpack.c.h.b16 %v3561
    %v3669 = vunpack.c.l.b16 %v3562
    %v3670 = vunpack.c.h.b16 %v3562
    %v3671 = vunpack.c.l.b16 %v3563
    %v3672 = vunpack.c.h.b16 %v3563
    %v3673 = vunpack.c.l.b16 %v3564
    %v3674 = vunpack.c.h.b16 %v3564
    %v3675 = vpack.c.b16 %v3613, %v3611
    %v3676 = vpack.c.b16 %v3614, %v3612
    %v3677 = vpack.c.b16 %v3617, %v3615
    %v3678 = vpack.c.b16 %v3618, %v3616
    %v3679 = vpack.c.b16 %v3621, %v3619
    %v3680 = vpack.c.b16 %v3622, %v3620
    %v3681 = vpack.c.b16 %v3625, %v3623
    %v3682 = vpack.c.b16 %v3626, %v3624
    %v3683 = vpack.c.b16 %v3629, %v3627
    %v3684 = vpack.c.b16 %v3630, %v3628
    %v3685 = vpack.c.b16 %v3633, %v3631
    %v3686 = vpack.c.b16 %v3634, %v3632
    %v3687 = vpack.c.b16 %v3637, %v3635
    %v3688 = vpack.c.b16 %v3638, %v3636
    %v3689 = vpack.c.b16 %v3641, %v3639
    %v3690 = vpack.c.b16 %v3642, %v3640
    %v3691 = vpack.c.b16 %v3645, %v3643
    %v3692 = vpack.c.b16 %v3646, %v3644
    %v3693 = vpack.c.b16 %v3649, %v3647
    %v3694 = vpack.c.b16 %v3650, %v3648
    %v3695 = vpack.c.b16 %v3653, %v3651
    %v3696 = vpack.c.b16 %v3654, %v3652
    %v3697 = vpack.c.b16 %v3657, %v3655
    %v3698 = vpack.c.b16 %v3658, %v3656
    %v3699 = vpack.c.b16 %v3661, %v3659
    %v3700 = vpack.c.b16 %v3662, %v3660
    %v3701 = vpack.c.b16 %v3665, %v3663
    %v3702 = vpack.c.b16 %v3666, %v3664
    %v3703 = vpack.c.b16 %v3669, %v3667
    %v3704 = vpack.c.b16 %v3670, %v3668
    %v3705 = vpack.c.b16 %v3673, %v3671
    %v3706 = vpack.c.b16 %v3674, %v3672
    %3739 = vmatprep.subr.bf16.mxu0 %v3676
    %3740 = vmatpush1.bf16.msra.mxu0 %v3675
    %3741 = vmatprep.subr.bf16.mxu0 %v3678
    %3742 = vmatpush1.bf16.msra.mxu0 %v3677
    %3743 = vmatprep.subr.bf16.mxu0 %v3680
    %3744 = vmatpush1.bf16.msra.mxu0 %v3679
    %3745 = vmatprep.subr.bf16.mxu0 %v3682
    %3746 = vmatpush1.bf16.msra.mxu0 %v3681
    %3747 = vmatprep.subr.bf16.mxu0 %v3684
    %3748 = vmatpush1.bf16.msra.mxu0 %v3683
    %3749 = vmatprep.subr.bf16.mxu0 %v3686
    %3750 = vmatpush1.bf16.msra.mxu0 %v3685
    %3751 = vmatprep.subr.bf16.mxu0 %v3688
    %3752 = vmatpush1.bf16.msra.mxu0 %v3687
    %3753 = vmatprep.subr.bf16.mxu0 %v3690
    %3754 = vmatpush1.bf16.msra.mxu0 %v3689
    %3755 = vmatprep.subr.bf16.mxu0 %v3692
    %3756 = vmatpush1.bf16.msra.mxu0 %v3691
    %3757 = vmatprep.subr.bf16.mxu0 %v3694
    %3758 = vmatpush1.bf16.msra.mxu0 %v3693
    %3759 = vmatprep.subr.bf16.mxu0 %v3696
    %3760 = vmatpush1.bf16.msra.mxu0 %v3695
    %3761 = vmatprep.subr.bf16.mxu0 %v3698
    %3762 = vmatpush1.bf16.msra.mxu0 %v3697
    %3763 = vmatprep.subr.bf16.mxu0 %v3700
    %3764 = vmatpush1.bf16.msra.mxu0 %v3699
    %3765 = vmatprep.subr.bf16.mxu0 %v3702
    %3766 = vmatpush1.bf16.msra.mxu0 %v3701
    %3767 = vmatprep.subr.bf16.mxu0 %v3704
    %3768 = vmatpush1.bf16.msra.mxu0 %v3703
    %3769 = vmatprep.subr.bf16.mxu0 %v3706
    %3770 = vmatpush1.bf16.msra.mxu0 %v3705
    %3771 = vmatprep.mubr.bf16.mxu0 %v3574
    %3772 = vmatmul.mubr.bf16.gmra.mrb[0].mxu0 %v3571
    %v3773 = vpop.f32.mrb[0].mxu0
    %v3774 = vadd.f32 0.0, %v3773
    %v3775 = vpop.f32.mrb[0].mxu0
    %v3776 = vadd.f32 0.0, %v3775
    %v3777 = vpop.f32.mrb[0].mxu0
    %v3778 = vadd.f32 0.0, %v3777
    %v3779 = vpop.f32.mrb[0].mxu0
    %v3780 = vadd.f32 0.0, %v3779
    %3781 = vmatprep.mubr.bf16.mxu0 %v3573
    %3782 = vmatmul.mubr.bf16.gmra.mrb[0].mxu0 %v3570
    %v3783 = vpop.f32.mrb[0].mxu0
    %v3784 = vadd.f32 0.0, %v3783
    %v3785 = vpop.f32.mrb[0].mxu0
    %v3786 = vadd.f32 0.0, %v3785
    %v3787 = vpop.f32.mrb[0].mxu0
    %v3788 = vpop.f32.mrb[0].mxu0
    %3789 = vdwg.mxu0
    %v3790 = vadd.f32 %v3527, %v3774
    %v3791 = vadd.f32 %v3528, %v3776
    %v3792 = vadd.f32 %v3529, %v3778
    %v3793 = vadd.f32 %v3530, %v3780
    %v3794 = vadd.f32 %v3531, %v3784
    %v3795 = vadd.f32 %v3532, %v3786
    %v3796 = vmax.f32 %v3790, 0.0
    %v3797 = vmax.f32 %v3791, 0.0
    %v3798 = vmax.f32 %v3792, 0.0
    %v3799 = vmax.f32 %v3793, 0.0
    %v3800 = vmax.f32 %v3794, 0.0
    %v3801 = vmax.f32 %v3795, 0.0
    %v3802 = vld [vmem:[%s1 + $0xc40] sm:$0xf]
    %v3803 = vpack.c.bf16 %v3798, %v3796
    %v3804 = vpack.c.bf16 %v3799, %v3797
    %v3805 = vpack.c.bf16 %v3800, %v3800
    %v3806 = vpack.c.bf16 %v3801, %v3801
    %vm3807 = vcmask 146432
    %v3809 = vsel %vm3807, %v3802, 0
    %v3812 = vsel %vm753, %v3805, 0
    %v3815 = vsel %vm753, %v3806, 0
    %3817 = vmatprep.subr.bf16.mxu0 %v3804
    %3818 = vmatpush1.bf16.msra.mxu0 %v3803
    %3819 = vmatprep.subr.bf16.mxu0 %v3815
    %3820 = vmatpush1.bf16.msra.mxu0 %v3812
    %3821 = vmatprep.subr.bf16.mxu0 0
    %3822 = vmatpush1.bf16.msra.mxu0 0
    %3823 = vmatprep.subr.bf16.mxu0 0
    %3824 = vmatpush1.bf16.msra.mxu0 0
    %3825 = vmatprep.subr.bf16.mxu0 0
    %3826 = vmatpush1.bf16.msra.mxu0 0
    %3827 = vmatprep.subr.bf16.mxu0 0
    %3828 = vmatpush1.bf16.msra.mxu0 0
    %3829 = vmatprep.subr.bf16.mxu0 0
    %3830 = vmatpush1.bf16.msra.mxu0 0
    %3831 = vmatprep.subr.bf16.mxu0 0
    %3832 = vmatpush1.bf16.msra.mxu0 0
    %3833 = vmatprep.subr.bf16.mxu0 0
    %3834 = vmatpush1.bf16.msra.mxu0 0
    %3835 = vmatprep.subr.bf16.mxu0 0
    %3836 = vmatpush1.bf16.msra.mxu0 0
    %3837 = vmatprep.subr.bf16.mxu0 0
    %3838 = vmatpush1.bf16.msra.mxu0 0
    %3839 = vmatprep.subr.bf16.mxu0 0
    %3840 = vmatpush1.bf16.msra.mxu0 0
    %3841 = vmatprep.subr.bf16.mxu0 0
    %3842 = vmatpush1.bf16.msra.mxu0 0
    %3843 = vmatprep.subr.bf16.mxu0 0
    %3844 = vmatpush1.bf16.msra.mxu0 0
    %3845 = vmatprep.subr.bf16.mxu0 0
    %3846 = vmatpush1.bf16.msra.mxu0 0
    %3847 = vmatprep.subr.bf16.mxu0 0
    %3848 = vmatpush1.bf16.msra.mxu0 0
    %3849 = vmatprep.mubr.bf16.mxu0 0
    %3850 = vmatmul.mubr.bf16.gmra.mrb[0].mxu0 %v3809
    %v3851 = vpop.f32.mrb[0].mxu0
    %v3852 = vadd.f32 0.0, %v3851
    %v3853 = vpop.f32.mrb[0].mxu0
    %v3854 = vadd.f32 0.0, %v3853
    %v3855 = vpop.f32.mrb[0].mxu0
    %v3856 = vpop.f32.mrb[0].mxu0
    %3857 = vdwg.mxu0
    %v3858 = vld [vmem:[%s1 + $0xc60] sm:$0xf]
    %v3860 = vsel %vm3807, %v3858, 0
    %3862 = vmatprep.subr.bf16.mxu0 %v3804
    %3863 = vmatpush1.bf16.msra.mxu0 %v3803
    %3864 = vmatprep.subr.bf16.mxu0 %v3815
    %3865 = vmatpush1.bf16.msra.mxu0 %v3812
    %3866 = vmatprep.subr.bf16.mxu0 0
    %3867 = vmatpush1.bf16.msra.mxu0 0
    %3868 = vmatprep.subr.bf16.mxu0 0
    %3869 = vmatpush1.bf16.msra.mxu0 0
    %3870 = vmatprep.subr.bf16.mxu0 0
    %3871 = vmatpush1.bf16.msra.mxu0 0
    %3872 = vmatprep.subr.bf16.mxu0 0
    %3873 = vmatpush1.bf16.msra.mxu0 0
    %3874 = vmatprep.subr.bf16.mxu0 0
    %3875 = vmatpush1.bf16.msra.mxu0 0
    %3876 = vmatprep.subr.bf16.mxu0 0
    %3877 = vmatpush1.bf16.msra.mxu0 0
    %3878 = vmatprep.subr.bf16.mxu0 0
    %3879 = vmatpush1.bf16.msra.mxu0 0
    %3880 = vmatprep.subr.bf16.mxu0 0
    %3881 = vmatpush1.bf16.msra.mxu0 0
    %3882 = vmatprep.subr.bf16.mxu0 0
    %3883 = vmatpush1.bf16.msra.mxu0 0
    %3884 = vmatprep.subr.bf16.mxu0 0
    %3885 = vmatpush1.bf16.msra.mxu0 0
    %3886 = vmatprep.subr.bf16.mxu0 0
    %3887 = vmatpush1.bf16.msra.mxu0 0
    %3888 = vmatprep.subr.bf16.mxu0 0
    %3889 = vmatpush1.bf16.msra.mxu0 0
    %3890 = vmatprep.subr.bf16.mxu0 0
    %3891 = vmatpush1.bf16.msra.mxu0 0
    %3892 = vmatprep.subr.bf16.mxu0 0
    %3893 = vmatpush1.bf16.msra.mxu0 0
    %3894 = vmatprep.mubr.bf16.mxu0 0
    %3895 = vmatmul.mubr.bf16.gmra.mrb[0].mxu0 %v3860
    %v3896 = vpop.f32.mrb[0].mxu0
    %v3897 = vadd.f32 0.0, %v3896
    %v3898 = vpop.f32.mrb[0].mxu0
    %v3899 = vadd.f32 0.0, %v3898
    %v3900 = vpop.f32.mrb[0].mxu0
    %v3901 = vpop.f32.mrb[0].mxu0
    %3902 = vdwg.mxu0
    %v3903 = vmax.f32 %v3852, %v3897
    %v3904 = vmax.f32 %v3854, %v3899
    %v3905 = vld [vmem:[%s1 + $0xc80] sm:$0xf]
    %v3906 = vld [vmem:[%s1 + $0xc88] sm:$0xf]
    %v3907 = vld [vmem:[%s1 + $0xc90] sm:$0xf]
    %v3908 = vld [vmem:[%s1 + $0xc98] sm:$0xf]
    %v3909 = vld [vmem:[%s1 + $0xca0] sm:$0xf]
    %v3910 = vld [vmem:[%s1 + $0xca8] sm:$0xf]
    %v3911 = vld [vmem:[%s1 + $0xcb0] sm:$0xf]
    %v3912 = vld [vmem:[%s1 + $0xcb8] sm:$0xf]
    %v3913 = vld [vmem:[%s1 + $0xcc0] sm:$0xf]
    %v3914 = vld [vmem:[%s1 + $0xcc8] sm:$0xf]
    %v3915 = vld [vmem:[%s1 + $0xcd0] sm:$0xf]
    %v3916 = vld [vmem:[%s1 + $0xcd8] sm:$0xf]
    %v3917 = vld [vmem:[%s1 + $0xce0] sm:$0xf]
    %v3918 = vld [vmem:[%s1 + $0xce8] sm:$0xf]
    %v3919 = vld [vmem:[%s1 + $0xcf0] sm:$0xf]
    %v3920 = vld [vmem:[%s1 + $0xcf8] sm:$0xf]
    %v3921 = vld [vmem:[%s1 + $0xd00] sm:$0xf]
    %v3922 = vld [vmem:[%s1 + $0xd08] sm:$0xf]
    %v3923 = vld [vmem:[%s1 + $0xd10] sm:$0xf]
    %v3924 = vld [vmem:[%s1 + $0xd18] sm:$0xf]
    %v3925 = vld [vmem:[%s1 + $0xd20] sm:$0xf]
    %v3926 = vld [vmem:[%s1 + $0xd28] sm:$0xf]
    %v3927 = vld [vmem:[%s1 + $0xd30] sm:$0xf]
    %v3928 = vld [vmem:[%s1 + $0xd38] sm:$0xf]
    %v3929 = vld [vmem:[%s1 + $0xd40] sm:$0xf]
    %v3930 = vld [vmem:[%s1 + $0xd48] sm:$0xf]
    %v3931 = vld [vmem:[%s1 + $0xd50] sm:$0xf]
    %v3932 = vld [vmem:[%s1 + $0xd58] sm:$0xf]
    %v3933 = vld [vmem:[%s1 + $0xd60] sm:$0xf]
    %v3934 = vld [vmem:[%s1 + $0xd68] sm:$0xf]
    %v3935 = vld [vmem:[%s1 + $0xd70] sm:$0xf]
    %v3936 = vld [vmem:[%s1 + $0xd78] sm:$0xf]
    %v3937 = vpack.c.bf16 %v3903, %v3903
    %v3938 = vpack.c.bf16 %v3904, %v3904
    %v3971 = vunpack.c.l.b16 %v3905
    %v3972 = vunpack.c.l.b16 %v3906
    %v3973 = vunpack.c.l.b16 %v3907
    %v3974 = vunpack.c.l.b16 %v3908
    %v3975 = vunpack.c.l.b16 %v3909
    %v3976 = vunpack.c.l.b16 %v3910
    %v3977 = vunpack.c.l.b16 %v3911
    %v3978 = vunpack.c.l.b16 %v3912
    %v3979 = vunpack.c.l.b16 %v3913
    %v3980 = vunpack.c.l.b16 %v3914
    %v3981 = vunpack.c.l.b16 %v3915
    %v3982 = vunpack.c.l.b16 %v3916
    %v3983 = vunpack.c.l.b16 %v3917
    %v3984 = vunpack.c.l.b16 %v3918
    %v3985 = vunpack.c.l.b16 %v3919
    %v3986 = vunpack.c.l.b16 %v3920
    %v3987 = vunpack.c.l.b16 %v3921
    %v3988 = vunpack.c.l.b16 %v3922
    %v3989 = vunpack.c.l.b16 %v3923
    %v3990 = vunpack.c.l.b16 %v3924
    %v3991 = vunpack.c.l.b16 %v3925
    %v3992 = vunpack.c.l.b16 %v3926
    %v3993 = vunpack.c.l.b16 %v3927
    %v3994 = vunpack.c.l.b16 %v3928
    %v3995 = vunpack.c.l.b16 %v3929
    %v3996 = vunpack.c.l.b16 %v3930
    %v3997 = vunpack.c.l.b16 %v3931
    %v3998 = vunpack.c.l.b16 %v3932
    %v3999 = vunpack.c.l.b16 %v3933
    %v4000 = vunpack.c.l.b16 %v3934
    %v4001 = vunpack.c.l.b16 %v3935
    %v4002 = vunpack.c.l.b16 %v3936
    %v4003 = vpack.c.b16 %v3972, %v3971
    %v4004 = vpack.c.b16 %v3974, %v3973
    %v4005 = vpack.c.b16 %v3976, %v3975
    %v4006 = vpack.c.b16 %v3978, %v3977
    %v4007 = vpack.c.b16 %v3980, %v3979
    %v4008 = vpack.c.b16 %v3982, %v3981
    %v4009 = vpack.c.b16 %v3984, %v3983
    %v4010 = vpack.c.b16 %v3986, %v3985
    %v4011 = vpack.c.b16 %v3988, %v3987
    %v4012 = vpack.c.b16 %v3990, %v3989
    %v4013 = vpack.c.b16 %v3992, %v3991
    %v4014 = vpack.c.b16 %v3994, %v3993
    %v4015 = vpack.c.b16 %v3996, %v3995
    %v4016 = vpack.c.b16 %v3998, %v3997
    %v4017 = vpack.c.b16 %v4000, %v3999
    %v4018 = vpack.c.b16 %v4002, %v4001
    %4035 = vmatprep.subr.bf16.mxu0 0
    %4036 = vmatpush1.bf16.msra.mxu0 %v4003
    %4037 = vmatprep.subr.bf16.mxu0 0
    %4038 = vmatpush1.bf16.msra.mxu0 %v4004
    %4039 = vmatprep.subr.bf16.mxu0 0
    %4040 = vmatpush1.bf16.msra.mxu0 %v4005
    %4041 = vmatprep.subr.bf16.mxu0 0
    %4042 = vmatpush1.bf16.msra.mxu0 %v4006
    %4043 = vmatprep.subr.bf16.mxu0 0
    %4044 = vmatpush1.bf16.msra.mxu0 %v4007
    %4045 = vmatprep.subr.bf16.mxu0 0
    %4046 = vmatpush1.bf16.msra.mxu0 %v4008
    %4047 = vmatprep.subr.bf16.mxu0 0
    %4048 = vmatpush1.bf16.msra.mxu0 %v4009
    %4049 = vmatprep.subr.bf16.mxu0 0
    %4050 = vmatpush1.bf16.msra.mxu0 %v4010
    %4051 = vmatprep.subr.bf16.mxu0 0
    %4052 = vmatpush1.bf16.msra.mxu0 %v4011
    %4053 = vmatprep.subr.bf16.mxu0 0
    %4054 = vmatpush1.bf16.msra.mxu0 %v4012
    %4055 = vmatprep.subr.bf16.mxu0 0
    %4056 = vmatpush1.bf16.msra.mxu0 %v4013
    %4057 = vmatprep.subr.bf16.mxu0 0
    %4058 = vmatpush1.bf16.msra.mxu0 %v4014
    %4059 = vmatprep.subr.bf16.mxu0 0
    %4060 = vmatpush1.bf16.msra.mxu0 %v4015
    %4061 = vmatprep.subr.bf16.mxu0 0
    %4062 = vmatpush1.bf16.msra.mxu0 %v4016
    %4063 = vmatprep.subr.bf16.mxu0 0
    %4064 = vmatpush1.bf16.msra.mxu0 %v4017
    %4065 = vmatprep.subr.bf16.mxu0 0
    %4066 = vmatpush1.bf16.msra.mxu0 %v4018
    %4067 = vmatprep.mubr.bf16.mxu0 %v3938
    %4068 = vmatmul.mubr.bf16.gmra.mrb[0].mxu0 %v3937
    %v4069 = vpop.f32.mrb[0].mxu0
    %v4070 = vadd.f32 0.0, %v4069
    %v4071 = vpop.f32.mrb[0].mxu0
    %v4072 = vpop.f32.mrb[0].mxu0
    %v4073 = vpop.f32.mrb[0].mxu0
    %4074 = vdwg.mxu0
    %v4075 = vld [vmem:[%s1 + $0xd80] sm:$0xf]
    %v4076 = vld [vmem:[%s1 + $0xd88] sm:$0xf]
    %v4077 = vld [vmem:[%s1 + $0xd90] sm:$0xf]
    %v4078 = vld [vmem:[%s1 + $0xd98] sm:$0xf]
    %v4079 = vld [vmem:[%s1 + $0xda0] sm:$0xf]
    %v4080 = vld [vmem:[%s1 + $0xda8] sm:$0xf]
    %v4081 = vld [vmem:[%s1 + $0xdb0] sm:$0xf]
    %v4082 = vld [vmem:[%s1 + $0xdb8] sm:$0xf]
    %v4083 = vld [vmem:[%s1 + $0xdc0] sm:$0xf]
    %v4084 = vld [vmem:[%s1 + $0xdc8] sm:$0xf]
    %v4085 = vld [vmem:[%s1 + $0xdd0] sm:$0xf]
    %v4086 = vld [vmem:[%s1 + $0xdd8] sm:$0xf]
    %v4087 = vld [vmem:[%s1 + $0xde0] sm:$0xf]
    %v4088 = vld [vmem:[%s1 + $0xde8] sm:$0xf]
    %v4089 = vld [vmem:[%s1 + $0xdf0] sm:$0xf]
    %v4090 = vld [vmem:[%s1 + $0xdf8] sm:$0xf]
    %v4091 = vld [vmem:[%s1 + $0xe00] sm:$0xf]
    %v4092 = vld [vmem:[%s1 + $0xe08] sm:$0xf]
    %v4093 = vld [vmem:[%s1 + $0xe10] sm:$0xf]
    %v4094 = vld [vmem:[%s1 + $0xe18] sm:$0xf]
    %v4095 = vld [vmem:[%s1 + $0xe20] sm:$0xf]
    %v4096 = vld [vmem:[%s1 + $0xe28] sm:$0xf]
    %v4097 = vld [vmem:[%s1 + $0xe30] sm:$0xf]
    %v4098 = vld [vmem:[%s1 + $0xe38] sm:$0xf]
    %v4099 = vld [vmem:[%s1 + $0xe40] sm:$0xf]
    %v4100 = vld [vmem:[%s1 + $0xe48] sm:$0xf]
    %v4101 = vld [vmem:[%s1 + $0xe50] sm:$0xf]
    %v4102 = vld [vmem:[%s1 + $0xe58] sm:$0xf]
    %v4103 = vld [vmem:[%s1 + $0xe60] sm:$0xf]
    %v4104 = vld [vmem:[%s1 + $0xe68] sm:$0xf]
    %v4105 = vld [vmem:[%s1 + $0xe70] sm:$0xf]
    %v4106 = vld [vmem:[%s1 + $0xe78] sm:$0xf]
    %v4139 = vunpack.c.l.b16 %v4075
    %v4140 = vunpack.c.l.b16 %v4076
    %v4141 = vunpack.c.l.b16 %v4077
    %v4142 = vunpack.c.l.b16 %v4078
    %v4143 = vunpack.c.l.b16 %v4079
    %v4144 = vunpack.c.l.b16 %v4080
    %v4145 = vunpack.c.l.b16 %v4081
    %v4146 = vunpack.c.l.b16 %v4082
    %v4147 = vunpack.c.l.b16 %v4083
    %v4148 = vunpack.c.l.b16 %v4084
    %v4149 = vunpack.c.l.b16 %v4085
    %v4150 = vunpack.c.l.b16 %v4086
    %v4151 = vunpack.c.l.b16 %v4087
    %v4152 = vunpack.c.l.b16 %v4088
    %v4153 = vunpack.c.l.b16 %v4089
    %v4154 = vunpack.c.l.b16 %v4090
    %v4155 = vunpack.c.l.b16 %v4091
    %v4156 = vunpack.c.l.b16 %v4092
    %v4157 = vunpack.c.l.b16 %v4093
    %v4158 = vunpack.c.l.b16 %v4094
    %v4159 = vunpack.c.l.b16 %v4095
    %v4160 = vunpack.c.l.b16 %v4096
    %v4161 = vunpack.c.l.b16 %v4097
    %v4162 = vunpack.c.l.b16 %v4098
    %v4163 = vunpack.c.l.b16 %v4099
    %v4164 = vunpack.c.l.b16 %v4100
    %v4165 = vunpack.c.l.b16 %v4101
    %v4166 = vunpack.c.l.b16 %v4102
    %v4167 = vunpack.c.l.b16 %v4103
    %v4168 = vunpack.c.l.b16 %v4104
    %v4169 = vunpack.c.l.b16 %v4105
    %v4170 = vunpack.c.l.b16 %v4106
    %v4171 = vpack.c.b16 %v4140, %v4139
    %v4172 = vpack.c.b16 %v4142, %v4141
    %v4173 = vpack.c.b16 %v4144, %v4143
    %v4174 = vpack.c.b16 %v4146, %v4145
    %v4175 = vpack.c.b16 %v4148, %v4147
    %v4176 = vpack.c.b16 %v4150, %v4149
    %v4177 = vpack.c.b16 %v4152, %v4151
    %v4178 = vpack.c.b16 %v4154, %v4153
    %v4179 = vpack.c.b16 %v4156, %v4155
    %v4180 = vpack.c.b16 %v4158, %v4157
    %v4181 = vpack.c.b16 %v4160, %v4159
    %v4182 = vpack.c.b16 %v4162, %v4161
    %v4183 = vpack.c.b16 %v4164, %v4163
    %v4184 = vpack.c.b16 %v4166, %v4165
    %v4185 = vpack.c.b16 %v4168, %v4167
    %v4186 = vpack.c.b16 %v4170, %v4169
    %4203 = vmatprep.subr.bf16.mxu0 0
    %4204 = vmatpush1.bf16.msra.mxu0 %v4171
    %4205 = vmatprep.subr.bf16.mxu0 0
    %4206 = vmatpush1.bf16.msra.mxu0 %v4172
    %4207 = vmatprep.subr.bf16.mxu0 0
    %4208 = vmatpush1.bf16.msra.mxu0 %v4173
    %4209 = vmatprep.subr.bf16.mxu0 0
    %4210 = vmatpush1.bf16.msra.mxu0 %v4174
    %4211 = vmatprep.subr.bf16.mxu0 0
    %4212 = vmatpush1.bf16.msra.mxu0 %v4175
    %4213 = vmatprep.subr.bf16.mxu0 0
    %4214 = vmatpush1.bf16.msra.mxu0 %v4176
    %4215 = vmatprep.subr.bf16.mxu0 0
    %4216 = vmatpush1.bf16.msra.mxu0 %v4177
    %4217 = vmatprep.subr.bf16.mxu0 0
    %4218 = vmatpush1.bf16.msra.mxu0 %v4178
    %4219 = vmatprep.subr.bf16.mxu0 0
    %4220 = vmatpush1.bf16.msra.mxu0 %v4179
    %4221 = vmatprep.subr.bf16.mxu0 0
    %4222 = vmatpush1.bf16.msra.mxu0 %v4180
    %4223 = vmatprep.subr.bf16.mxu0 0
    %4224 = vmatpush1.bf16.msra.mxu0 %v4181
    %4225 = vmatprep.subr.bf16.mxu0 0
    %4226 = vmatpush1.bf16.msra.mxu0 %v4182
    %4227 = vmatprep.subr.bf16.mxu0 0
    %4228 = vmatpush1.bf16.msra.mxu0 %v4183
    %4229 = vmatprep.subr.bf16.mxu0 0
    %4230 = vmatpush1.bf16.msra.mxu0 %v4184
    %4231 = vmatprep.subr.bf16.mxu0 0
    %4232 = vmatpush1.bf16.msra.mxu0 %v4185
    %4233 = vmatprep.subr.bf16.mxu0 0
    %4234 = vmatpush1.bf16.msra.mxu0 %v4186
    %4235 = vmatprep.mubr.bf16.mxu0 %v3938
    %4236 = vmatmul.mubr.bf16.gmra.mrb[0].mxu0 %v3937
    %v4237 = vpop.f32.mrb[0].mxu0
    %v4238 = vadd.f32 0.0, %v4237
    %v4239 = vpop.f32.mrb[0].mxu0
    %v4240 = vpop.f32.mrb[0].mxu0
    %v4241 = vpop.f32.mrb[0].mxu0
    %4242 = vdwg.mxu0
    %v4243 = vmax.f32 %v4070, %v4238
    %v4244 = vld [vmem:[%s2] sm:$0xff]
    %v4245 = vld [vmem:[%s2 + $0x8] sm:$0xff]
    %v4246 = vld [vmem:[%s2 + $0x10] sm:$0xff]
    %v4247 = vld [vmem:[%s2 + $0x18] sm:$0xff]
    %v4248 = vld [vmem:[%s2 + $0x20] sm:$0xff]
    %v4249 = vld [vmem:[%s2 + $0x28] sm:$0xff]
    %v4250 = vld [vmem:[%s2 + $0x30] sm:$0xff]
    %v4251 = vld [vmem:[%s2 + $0x38] sm:$0xff]
    %v4252 = vld [vmem:[%s2 + $0x40] sm:$0xff]
    %v4253 = vld [vmem:[%s2 + $0x48] sm:$0xff]
    %v4254 = vld [vmem:[%s2 + $0x50] sm:$0xff]
    %v4255 = vld [vmem:[%s2 + $0x58] sm:$0xff]
    %v4256 = vld [vmem:[%s2 + $0x60] sm:$0xff]
    %v4257 = vld [vmem:[%s2 + $0x68] sm:$0xff]
    %v4258 = vld [vmem:[%s2 + $0x70] sm:$0xff]
    %v4259 = vld [vmem:[%s2 + $0x78] sm:$0xff]
    %v4260 = vld [vmem:[%s2 + $0x80] sm:$0xff]
    %v4261 = vld [vmem:[%s2 + $0x88] sm:$0xff]
    %v4262 = vld [vmem:[%s2 + $0x90] sm:$0xff]
    %v4263 = vld [vmem:[%s2 + $0x98] sm:$0xff]
    %v4264 = vld [vmem:[%s2 + $0xa0] sm:$0xff]
    %v4265 = vld [vmem:[%s2 + $0xa8] sm:$0xff]
    %v4266 = vld [vmem:[%s2 + $0xb0] sm:$0xff]
    %v4267 = vld [vmem:[%s2 + $0xb8] sm:$0xff]
    %v4268 = vld [vmem:[%s2 + $0xc0] sm:$0xff]
    %v4269 = vld [vmem:[%s2 + $0xc8] sm:$0xff]
    %v4270 = vld [vmem:[%s2 + $0xd0] sm:$0xff]
    %v4271 = vld [vmem:[%s2 + $0xd8] sm:$0xff]
    %v4272 = vld [vmem:[%s2 + $0xe0] sm:$0xff]
    %v4273 = vld [vmem:[%s2 + $0xe8] sm:$0xff]
    %v4274 = vld [vmem:[%s2 + $0xf0] sm:$0xff]
    %v4275 = vld [vmem:[%s2 + $0xf8] sm:$0xff]
    %v4276 = vld [vmem:[%s2 + $0x100] sm:$0xff]
    %v4277 = vld [vmem:[%s2 + $0x108] sm:$0xff]
    %v4278 = vld [vmem:[%s2 + $0x110] sm:$0xff]
    %v4279 = vld [vmem:[%s2 + $0x118] sm:$0xff]
    %v4280 = vld [vmem:[%s2 + $0x120] sm:$0xff]
    %v4281 = vld [vmem:[%s2 + $0x128] sm:$0xff]
    %v4282 = vld [vmem:[%s2 + $0x130] sm:$0xff]
    %v4283 = vld [vmem:[%s2 + $0x138] sm:$0xff]
    %v4284 = vld [vmem:[%s2 + $0x140] sm:$0xff]
    %v4285 = vld [vmem:[%s2 + $0x148] sm:$0xff]
    %v4286 = vld [vmem:[%s2 + $0x150] sm:$0xff]
    %v4287 = vld [vmem:[%s2 + $0x158] sm:$0xff]
    %v4288 = vld [vmem:[%s2 + $0x160] sm:$0xff]
    %v4289 = vld [vmem:[%s2 + $0x168] sm:$0xff]
    %v4290 = vld [vmem:[%s2 + $0x170] sm:$0xff]
    %v4291 = vld [vmem:[%s2 + $0x178] sm:$0xff]
    %v4292 = vld [vmem:[%s2 + $0x180] sm:$0xff]
    %v4293 = vld [vmem:[%s2 + $0x188] sm:$0xff]
    %v4294 = vld [vmem:[%s2 + $0x190] sm:$0xff]
    %v4295 = vld [vmem:[%s2 + $0x198] sm:$0xff]
    %v4296 = vld [vmem:[%s2 + $0x1a0] sm:$0xff]
    %v4297 = vld [vmem:[%s2 + $0x1a8] sm:$0xff]
    %v4298 = vld [vmem:[%s2 + $0x1b0] sm:$0xff]
    %v4299 = vld [vmem:[%s2 + $0x1b8] sm:$0xff]
    %v4300 = vld [vmem:[%s2 + $0x1c0] sm:$0xff]
    %v4301 = vld [vmem:[%s2 + $0x1c8] sm:$0xff]
    %v4302 = vld [vmem:[%s2 + $0x1d0] sm:$0xff]
    %v4303 = vld [vmem:[%s2 + $0x1d8] sm:$0xff]
    %v4304 = vld [vmem:[%s2 + $0x1e0] sm:$0xff]
    %v4305 = vld [vmem:[%s2 + $0x1e8] sm:$0xff]
    %v4306 = vld [vmem:[%s2 + $0x1f0] sm:$0xff]
    %v4307 = vld [vmem:[%s2 + $0x1f8] sm:$0xff]
    %v4308 = vld [vmem:[%s2 + $0x200] sm:$0xff]
    %v4309 = vld [vmem:[%s2 + $0x208] sm:$0xff]
    %v4310 = vld [vmem:[%s2 + $0x210] sm:$0xff]
    %v4311 = vld [vmem:[%s2 + $0x218] sm:$0xff]
    %v4312 = vld [vmem:[%s2 + $0x220] sm:$0xff]
    %v4313 = vld [vmem:[%s2 + $0x228] sm:$0xff]
    %v4314 = vld [vmem:[%s2 + $0x230] sm:$0xff]
    %v4315 = vld [vmem:[%s2 + $0x238] sm:$0xff]
    %v4316 = vld [vmem:[%s2 + $0x240] sm:$0xff]
    %v4317 = vld [vmem:[%s2 + $0x248] sm:$0xff]
    %v4318 = vld [vmem:[%s2 + $0x250] sm:$0xff]
    %v4319 = vld [vmem:[%s2 + $0x258] sm:$0xff]
    %v4320 = vld [vmem:[%s2 + $0x260] sm:$0xff]
    %v4321 = vld [vmem:[%s2 + $0x268] sm:$0xff]
    %v4322 = vld [vmem:[%s2 + $0x270] sm:$0xff]
    %v4323 = vld [vmem:[%s2 + $0x278] sm:$0xff]
    %v4324 = vld [vmem:[%s2 + $0x280] sm:$0xff]
    %v4325 = vld [vmem:[%s2 + $0x288] sm:$0xff]
    %v4326 = vld [vmem:[%s2 + $0x290] sm:$0xff]
    %v4327 = vld [vmem:[%s2 + $0x298] sm:$0xff]
    %v4328 = vld [vmem:[%s2 + $0x2a0] sm:$0xff]
    %v4329 = vld [vmem:[%s2 + $0x2a8] sm:$0xff]
    %v4330 = vld [vmem:[%s2 + $0x2b0] sm:$0xff]
    %v4331 = vld [vmem:[%s2 + $0x2b8] sm:$0xff]
    %v4332 = vld [vmem:[%s2 + $0x2c0] sm:$0xff]
    %v4333 = vld [vmem:[%s2 + $0x2c8] sm:$0xff]
    %v4334 = vld [vmem:[%s2 + $0x2d0] sm:$0xff]
    %v4335 = vld [vmem:[%s2 + $0x2d8] sm:$0xff]
    %v4336 = vld [vmem:[%s2 + $0x2e0] sm:$0xff]
    %v4337 = vld [vmem:[%s2 + $0x2e8] sm:$0xff]
    %v4338 = vld [vmem:[%s2 + $0x2f0] sm:$0xff]
    %v4339 = vld [vmem:[%s2 + $0x2f8] sm:$0xff]
    %4340 = vmatprep.subr.mxu0 %v4245
    %4341 = vmatpush1.msra.mxu0 %v4244
    %4342 = vmatprep.subr.mxu0 %v4251
    %4343 = vmatpush1.msra.mxu0 %v4250
    %4344 = vmatprep.subr.mxu0 %v4257
    %4345 = vmatpush1.msra.mxu0 %v4256
    %4346 = vmatprep.subr.mxu0 %v4263
    %4347 = vmatpush1.msra.mxu0 %v4262
    %4348 = vmatprep.subr.mxu0 %v4269
    %4349 = vmatpush1.msra.mxu0 %v4268
    %4350 = vmatprep.subr.mxu0 %v4275
    %4351 = vmatpush1.msra.mxu0 %v4274
    %4352 = vmatprep.subr.mxu0 %v4281
    %4353 = vmatpush1.msra.mxu0 %v4280
    %4354 = vmatprep.subr.mxu0 %v4287
    %4355 = vmatpush1.msra.mxu0 %v4286
    %4356 = vmatprep.subr.mxu0 %v4293
    %4357 = vmatpush1.msra.mxu0 %v4292
    %4358 = vmatprep.subr.mxu0 %v4299
    %4359 = vmatpush1.msra.mxu0 %v4298
    %4360 = vmatprep.subr.mxu0 %v4305
    %4361 = vmatpush1.msra.mxu0 %v4304
    %4362 = vmatprep.subr.mxu0 %v4311
    %4363 = vmatpush1.msra.mxu0 %v4310
    %4364 = vmatprep.subr.mxu0 %v4317
    %4365 = vmatpush1.msra.mxu0 %v4316
    %4366 = vmatprep.subr.mxu0 %v4323
    %4367 = vmatpush1.msra.mxu0 %v4322
    %4368 = vmatprep.subr.mxu0 %v4329
    %4369 = vmatpush1.msra.mxu0 %v4328
    %4370 = vmatprep.subr.mxu0 %v4335
    %4371 = vmatpush1.msra.mxu0 %v4334
    %4372 = vmatprep.subr.mxu0 0.0
    %4373 = vmatpush1.msra.mxu0 0.0
    %4374 = vmatprep.subr.mxu0 0.0
    %4375 = vmatpush1.msra.mxu0 0.0
    %4376 = vmatprep.subr.mxu0 0.0
    %4377 = vmatpush1.msra.mxu0 0.0
    %4378 = vmatprep.subr.mxu0 0.0
    %4379 = vmatpush1.msra.mxu0 0.0
    %4380 = vmatprep.subr.mxu0 0.0
    %4381 = vmatpush1.msra.mxu0 0.0
    %4382 = vmatprep.subr.mxu0 0.0
    %4383 = vmatpush1.msra.mxu0 0.0
    %4384 = vmatprep.subr.mxu0 0.0
    %4385 = vmatpush1.msra.mxu0 0.0
    %4386 = vmatprep.subr.mxu0 0.0
    %4387 = vmatpush1.msra.mxu0 0.0
    %4388 = vmatprep.subr.mxu0 0.0
    %4389 = vmatpush1.msra.mxu0 0.0
    %4390 = vmatprep.subr.mxu0 0.0
    %4391 = vmatpush1.msra.mxu0 0.0
    %4392 = vmatprep.subr.mxu0 0.0
    %4393 = vmatpush1.msra.mxu0 0.0
    %4394 = vmatprep.subr.mxu0 0.0
    %4395 = vmatpush1.msra.mxu0 0.0
    %4396 = vmatprep.subr.mxu0 0.0
    %4397 = vmatpush1.msra.mxu0 0.0
    %4398 = vmatprep.subr.mxu0 0.0
    %4399 = vmatpush1.msra.mxu0 0.0
    %4400 = vmatprep.subr.mxu0 0.0
    %4401 = vmatpush1.msra.mxu0 0.0
    %4402 = vmatprep.subr.mxu0 0.0
    %4403 = vmatpush1.msra.mxu0 0.0
    %4404 = vmatprep.mubr.f32.mxu0 0.0
    %4405 = vmatmul.mubr.f32.gmra.mrb[0].mxu0 %v4243
    %v4406 = vpop.f32.mrb[0].mxu0
    %v4407 = vadd.f32 0.0, %v4406
    %v4408 = vpop.f32.mrb[0].mxu0
    %v4409 = vadd.f32 0.0, %v4408
    %4410 = vdwg.mxu0
    %4411 = vmatprep.subr.mxu0 %v4247
    %4412 = vmatpush1.msra.mxu0 %v4246
    %4413 = vmatprep.subr.mxu0 %v4253
    %4414 = vmatpush1.msra.mxu0 %v4252
    %4415 = vmatprep.subr.mxu0 %v4259
    %4416 = vmatpush1.msra.mxu0 %v4258
    %4417 = vmatprep.subr.mxu0 %v4265
    %4418 = vmatpush1.msra.mxu0 %v4264
    %4419 = vmatprep.subr.mxu0 %v4271
    %4420 = vmatpush1.msra.mxu0 %v4270
    %4421 = vmatprep.subr.mxu0 %v4277
    %4422 = vmatpush1.msra.mxu0 %v4276
    %4423 = vmatprep.subr.mxu0 %v4283
    %4424 = vmatpush1.msra.mxu0 %v4282
    %4425 = vmatprep.subr.mxu0 %v4289
    %4426 = vmatpush1.msra.mxu0 %v4288
    %4427 = vmatprep.subr.mxu0 %v4295
    %4428 = vmatpush1.msra.mxu0 %v4294
    %4429 = vmatprep.subr.mxu0 %v4301
    %4430 = vmatpush1.msra.mxu0 %v4300
    %4431 = vmatprep.subr.mxu0 %v4307
    %4432 = vmatpush1.msra.mxu0 %v4306
    %4433 = vmatprep.subr.mxu0 %v4313
    %4434 = vmatpush1.msra.mxu0 %v4312
    %4435 = vmatprep.subr.mxu0 %v4319
    %4436 = vmatpush1.msra.mxu0 %v4318
    %4437 = vmatprep.subr.mxu0 %v4325
    %4438 = vmatpush1.msra.mxu0 %v4324
    %4439 = vmatprep.subr.mxu0 %v4331
    %4440 = vmatpush1.msra.mxu0 %v4330
    %4441 = vmatprep.subr.mxu0 %v4337
    %4442 = vmatpush1.msra.mxu0 %v4336
    %4443 = vmatprep.subr.mxu0 0.0
    %4444 = vmatpush1.msra.mxu0 0.0
    %4445 = vmatprep.subr.mxu0 0.0
    %4446 = vmatpush1.msra.mxu0 0.0
    %4447 = vmatprep.subr.mxu0 0.0
    %4448 = vmatpush1.msra.mxu0 0.0
    %4449 = vmatprep.subr.mxu0 0.0
    %4450 = vmatpush1.msra.mxu0 0.0
    %4451 = vmatprep.subr.mxu0 0.0
    %4452 = vmatpush1.msra.mxu0 0.0
    %4453 = vmatprep.subr.mxu0 0.0
    %4454 = vmatpush1.msra.mxu0 0.0
    %4455 = vmatprep.subr.mxu0 0.0
    %4456 = vmatpush1.msra.mxu0 0.0
    %4457 = vmatprep.subr.mxu0 0.0
    %4458 = vmatpush1.msra.mxu0 0.0
    %4459 = vmatprep.subr.mxu0 0.0
    %4460 = vmatpush1.msra.mxu0 0.0
    %4461 = vmatprep.subr.mxu0 0.0
    %4462 = vmatpush1.msra.mxu0 0.0
    %4463 = vmatprep.subr.mxu0 0.0
    %4464 = vmatpush1.msra.mxu0 0.0
    %4465 = vmatprep.subr.mxu0 0.0
    %4466 = vmatpush1.msra.mxu0 0.0
    %4467 = vmatprep.subr.mxu0 0.0
    %4468 = vmatpush1.msra.mxu0 0.0
    %4469 = vmatprep.subr.mxu0 0.0
    %4470 = vmatpush1.msra.mxu0 0.0
    %4471 = vmatprep.subr.mxu0 0.0
    %4472 = vmatpush1.msra.mxu0 0.0
    %4473 = vmatprep.subr.mxu0 0.0
    %4474 = vmatpush1.msra.mxu0 0.0
    %4475 = vmatprep.mubr.f32.mxu0 0.0
    %4476 = vmatmul.mubr.f32.gmra.mrb[0].mxu0 %v4243
    %v4477 = vpop.f32.mrb[0].mxu0
    %v4478 = vadd.f32 0.0, %v4477
    %v4479 = vpop.f32.mrb[0].mxu0
    %v4480 = vadd.f32 0.0, %v4479
    %4481 = vdwg.mxu0
    %4482 = vmatprep.subr.mxu0 %v4249
    %4483 = vmatpush1.msra.mxu0 %v4248
    %4484 = vmatprep.subr.mxu0 %v4255
    %4485 = vmatpush1.msra.mxu0 %v4254
    %4486 = vmatprep.subr.mxu0 %v4261
    %4487 = vmatpush1.msra.mxu0 %v4260
    %4488 = vmatprep.subr.mxu0 %v4267
    %4489 = vmatpush1.msra.mxu0 %v4266
    %4490 = vmatprep.subr.mxu0 %v4273
    %4491 = vmatpush1.msra.mxu0 %v4272
    %4492 = vmatprep.subr.mxu0 %v4279
    %4493 = vmatpush1.msra.mxu0 %v4278
    %4494 = vmatprep.subr.mxu0 %v4285
    %4495 = vmatpush1.msra.mxu0 %v4284
    %4496 = vmatprep.subr.mxu0 %v4291
    %4497 = vmatpush1.msra.mxu0 %v4290
    %4498 = vmatprep.subr.mxu0 %v4297
    %4499 = vmatpush1.msra.mxu0 %v4296
    %4500 = vmatprep.subr.mxu0 %v4303
    %4501 = vmatpush1.msra.mxu0 %v4302
    %4502 = vmatprep.subr.mxu0 %v4309
    %4503 = vmatpush1.msra.mxu0 %v4308
    %4504 = vmatprep.subr.mxu0 %v4315
    %4505 = vmatpush1.msra.mxu0 %v4314
    %4506 = vmatprep.subr.mxu0 %v4321
    %4507 = vmatpush1.msra.mxu0 %v4320
    %4508 = vmatprep.subr.mxu0 %v4327
    %4509 = vmatpush1.msra.mxu0 %v4326
    %4510 = vmatprep.subr.mxu0 %v4333
    %4511 = vmatpush1.msra.mxu0 %v4332
    %4512 = vmatprep.subr.mxu0 %v4339
    %4513 = vmatpush1.msra.mxu0 %v4338
    %4514 = vmatprep.subr.mxu0 0.0
    %4515 = vmatpush1.msra.mxu0 0.0
    %4516 = vmatprep.subr.mxu0 0.0
    %4517 = vmatpush1.msra.mxu0 0.0
    %4518 = vmatprep.subr.mxu0 0.0
    %4519 = vmatpush1.msra.mxu0 0.0
    %4520 = vmatprep.subr.mxu0 0.0
    %4521 = vmatpush1.msra.mxu0 0.0
    %4522 = vmatprep.subr.mxu0 0.0
    %4523 = vmatpush1.msra.mxu0 0.0
    %4524 = vmatprep.subr.mxu0 0.0
    %4525 = vmatpush1.msra.mxu0 0.0
    %4526 = vmatprep.subr.mxu0 0.0
    %4527 = vmatpush1.msra.mxu0 0.0
    %4528 = vmatprep.subr.mxu0 0.0
    %4529 = vmatpush1.msra.mxu0 0.0
    %4530 = vmatprep.subr.mxu0 0.0
    %4531 = vmatpush1.msra.mxu0 0.0
    %4532 = vmatprep.subr.mxu0 0.0
    %4533 = vmatpush1.msra.mxu0 0.0
    %4534 = vmatprep.subr.mxu0 0.0
    %4535 = vmatpush1.msra.mxu0 0.0
    %4536 = vmatprep.subr.mxu0 0.0
    %4537 = vmatpush1.msra.mxu0 0.0
    %4538 = vmatprep.subr.mxu0 0.0
    %4539 = vmatpush1.msra.mxu0 0.0
    %4540 = vmatprep.subr.mxu0 0.0
    %4541 = vmatpush1.msra.mxu0 0.0
    %4542 = vmatprep.subr.mxu0 0.0
    %4543 = vmatpush1.msra.mxu0 0.0
    %4544 = vmatprep.subr.mxu0 0.0
    %4545 = vmatpush1.msra.mxu0 0.0
    %4546 = vmatprep.mubr.f32.mxu0 0.0
    %4547 = vmatmul.mubr.f32.gmra.mrb[0].mxu0 %v4243
    %v4548 = vpop.f32.mrb[0].mxu0
    %v4549 = vadd.f32 0.0, %v4548
    %v4550 = vpop.f32.mrb[0].mxu0
    %v4551 = vadd.f32 0.0, %v4550
    %4552 = vdwg.mxu0
    %v4553 = vld [vmem:[%s2 + $0x300] sm:$0xff]
    %v4554 = vld [vmem:[%s2 + $0x330] sm:$0xff]
    %v4555 = vld [vmem:[%s2 + $0x360] sm:$0xff]
    %v4556 = vld [vmem:[%s2 + $0x390] sm:$0xff]
    %v4557 = vld [vmem:[%s2 + $0x3c0] sm:$0xff]
    %v4558 = vld [vmem:[%s2 + $0x3f0] sm:$0xff]
    %v4559 = vld [vmem:[%s2 + $0x420] sm:$0xff]
    %v4560 = vld [vmem:[%s2 + $0x450] sm:$0xff]
    %v4561 = vld [vmem:[%s2 + $0x480] sm:$0xff]
    %v4562 = vld [vmem:[%s2 + $0x4b0] sm:$0xff]
    %v4563 = vld [vmem:[%s2 + $0x4e0] sm:$0xff]
    %v4564 = vld [vmem:[%s2 + $0x510] sm:$0xff]
    %v4565 = vld [vmem:[%s2 + $0x540] sm:$0xf]
    %vm4566 = vcmask 64512
    %v4568 = vsel %vm4566, %v4553, 0
    %v4571 = vsel %vm4566, %v4554, 0
    %v4574 = vsel %vm4566, %v4555, 0
    %v4577 = vsel %vm4566, %v4556, 0
    %v4580 = vsel %vm4566, %v4557, 0
    %v4583 = vsel %vm4566, %v4558, 0
    %v4586 = vsel %vm4566, %v4559, 0
    %v4589 = vsel %vm4566, %v4560, 0
    %v4592 = vsel %vm4566, %v4561, 0
    %v4595 = vsel %vm4566, %v4562, 0
    %v4598 = vsel %vm4566, %v4563, 0
    %v4601 = vsel %vm4566, %v4564, 0
    %v4604 = vsel %vm4566, %v4565, 0
    %4606 = vmatprep.subr.mxu0 %v4409
    %4607 = vmatpush1.msra.mxu0 %v4407
    %4608 = vmatprep.subr.mxu0 0.0
    %4609 = vmatpush1.msra.mxu0 0.0
    %4610 = vmatprep.subr.mxu0 0.0
    %4611 = vmatpush1.msra.mxu0 0.0
    %4612 = vmatprep.subr.mxu0 0.0
    %4613 = vmatpush1.msra.mxu0 0.0
    %4614 = vmatprep.subr.mxu0 0.0
    %4615 = vmatpush1.msra.mxu0 0.0
    %4616 = vmatprep.subr.mxu0 0.0
    %4617 = vmatpush1.msra.mxu0 0.0
    %4618 = vmatprep.subr.mxu0 0.0
    %4619 = vmatpush1.msra.mxu0 0.0
    %4620 = vmatprep.subr.mxu0 0.0
    %4621 = vmatpush1.msra.mxu0 0.0
    %4622 = vmatprep.subr.mxu0 0.0
    %4623 = vmatpush1.msra.mxu0 0.0
    %4624 = vmatprep.subr.mxu0 0.0
    %4625 = vmatpush1.msra.mxu0 0.0
    %4626 = vmatprep.subr.mxu0 0.0
    %4627 = vmatpush1.msra.mxu0 0.0
    %4628 = vmatprep.subr.mxu0 0.0
    %4629 = vmatpush1.msra.mxu0 0.0
    %4630 = vmatprep.subr.mxu0 0.0
    %4631 = vmatpush1.msra.mxu0 0.0
    %4632 = vmatprep.subr.mxu0 0.0
    %4633 = vmatpush1.msra.mxu0 0.0
    %4634 = vmatprep.subr.mxu0 0.0
    %4635 = vmatpush1.msra.mxu0 0.0
    %4636 = vmatprep.subr.mxu0 0.0
    %4637 = vmatpush1.msra.mxu0 0.0
    %4638 = vmatprep.subr.mxu0 0.0
    %4639 = vmatpush1.msra.mxu0 0.0
    %4640 = vmatprep.subr.mxu0 0.0
    %4641 = vmatpush1.msra.mxu0 0.0
    %4642 = vmatprep.subr.mxu0 0.0
    %4643 = vmatpush1.msra.mxu0 0.0
    %4644 = vmatprep.subr.mxu0 0.0
    %4645 = vmatpush1.msra.mxu0 0.0
    %4646 = vmatprep.subr.mxu0 0.0
    %4647 = vmatpush1.msra.mxu0 0.0
    %4648 = vmatprep.subr.mxu0 0.0
    %4649 = vmatpush1.msra.mxu0 0.0
    %4650 = vmatprep.subr.mxu0 0.0
    %4651 = vmatpush1.msra.mxu0 0.0
    %4652 = vmatprep.subr.mxu0 0.0
    %4653 = vmatpush1.msra.mxu0 0.0
    %4654 = vmatprep.subr.mxu0 0.0
    %4655 = vmatpush1.msra.mxu0 0.0
    %4656 = vmatprep.subr.mxu0 0.0
    %4657 = vmatpush1.msra.mxu0 0.0
    %4658 = vmatprep.subr.mxu0 0.0
    %4659 = vmatpush1.msra.mxu0 0.0
    %4660 = vmatprep.subr.mxu0 0.0
    %4661 = vmatpush1.msra.mxu0 0.0
    %4662 = vmatprep.subr.mxu0 0.0
    %4663 = vmatpush1.msra.mxu0 0.0
    %4664 = vmatprep.subr.mxu0 0.0
    %4665 = vmatpush1.msra.mxu0 0.0
    %4666 = vmatprep.subr.mxu0 0.0
    %4667 = vmatpush1.msra.mxu0 0.0
    %4668 = vmatprep.subr.mxu0 0.0
    %4669 = vmatpush1.msra.mxu0 0.0
    %4670 = vmatprep.mubr.f32.mxu0 0.0
    %4671 = vmatmul.mubr.f32.gmra.mrb[0].mxu0 %v4568
    %v4672 = vpop.f32.mrb[0].mxu0
    %v4673 = vadd.f32 0.0, %v4672
    %v4674 = vpop.f32.mrb[0].mxu0
    %v4675 = vadd.f32 0.0, %v4674
    %4676 = vmatprep.mubr.f32.mxu0 0.0
    %4677 = vmatmul.mubr.f32.gmra.mrb[0].mxu0 %v4571
    %v4678 = vpop.f32.mrb[0].mxu0
    %v4679 = vadd.f32 0.0, %v4678
    %v4680 = vpop.f32.mrb[0].mxu0
    %v4681 = vadd.f32 0.0, %v4680
    %4682 = vmatprep.mubr.f32.mxu0 0.0
    %4683 = vmatmul.mubr.f32.gmra.mrb[0].mxu0 %v4574
    %v4684 = vpop.f32.mrb[0].mxu0
    %v4685 = vadd.f32 0.0, %v4684
    %v4686 = vpop.f32.mrb[0].mxu0
    %v4687 = vadd.f32 0.0, %v4686
    %4688 = vmatprep.mubr.f32.mxu0 0.0
    %4689 = vmatmul.mubr.f32.gmra.mrb[0].mxu0 %v4577
    %v4690 = vpop.f32.mrb[0].mxu0
    %v4691 = vadd.f32 0.0, %v4690
    %v4692 = vpop.f32.mrb[0].mxu0
    %v4693 = vadd.f32 0.0, %v4692
    %4694 = vmatprep.mubr.f32.mxu0 0.0
    %4695 = vmatmul.mubr.f32.gmra.mrb[0].mxu0 %v4580
    %v4696 = vpop.f32.mrb[0].mxu0
    %v4697 = vadd.f32 0.0, %v4696
    %v4698 = vpop.f32.mrb[0].mxu0
    %v4699 = vadd.f32 0.0, %v4698
    %4700 = vmatprep.mubr.f32.mxu0 0.0
    %4701 = vmatmul.mubr.f32.gmra.mrb[0].mxu0 %v4583
    %v4702 = vpop.f32.mrb[0].mxu0
    %v4703 = vadd.f32 0.0, %v4702
    %v4704 = vpop.f32.mrb[0].mxu0
    %v4705 = vadd.f32 0.0, %v4704
    %4706 = vmatprep.mubr.f32.mxu0 0.0
    %4707 = vmatmul.mubr.f32.gmra.mrb[0].mxu0 %v4586
    %v4708 = vpop.f32.mrb[0].mxu0
    %v4709 = vadd.f32 0.0, %v4708
    %v4710 = vpop.f32.mrb[0].mxu0
    %v4711 = vadd.f32 0.0, %v4710
    %4712 = vmatprep.mubr.f32.mxu0 0.0
    %4713 = vmatmul.mubr.f32.gmra.mrb[0].mxu0 %v4589
    %v4714 = vpop.f32.mrb[0].mxu0
    %v4715 = vadd.f32 0.0, %v4714
    %v4716 = vpop.f32.mrb[0].mxu0
    %v4717 = vadd.f32 0.0, %v4716
    %4718 = vmatprep.mubr.f32.mxu0 0.0
    %4719 = vmatmul.mubr.f32.gmra.mrb[0].mxu0 %v4592
    %v4720 = vpop.f32.mrb[0].mxu0
    %v4721 = vadd.f32 0.0, %v4720
    %v4722 = vpop.f32.mrb[0].mxu0
    %v4723 = vadd.f32 0.0, %v4722
    %4724 = vmatprep.mubr.f32.mxu0 0.0
    %4725 = vmatmul.mubr.f32.gmra.mrb[0].mxu0 %v4595
    %v4726 = vpop.f32.mrb[0].mxu0
    %v4727 = vadd.f32 0.0, %v4726
    %v4728 = vpop.f32.mrb[0].mxu0
    %v4729 = vadd.f32 0.0, %v4728
    %4730 = vmatprep.mubr.f32.mxu0 0.0
    %4731 = vmatmul.mubr.f32.gmra.mrb[0].mxu0 %v4598
    %v4732 = vpop.f32.mrb[0].mxu0
    %v4733 = vadd.f32 0.0, %v4732
    %v4734 = vpop.f32.mrb[0].mxu0
    %v4735 = vadd.f32 0.0, %v4734
    %4736 = vmatprep.mubr.f32.mxu0 0.0
    %4737 = vmatmul.mubr.f32.gmra.mrb[0].mxu0 %v4601
    %v4738 = vpop.f32.mrb[0].mxu0
    %v4739 = vadd.f32 0.0, %v4738
    %v4740 = vpop.f32.mrb[0].mxu0
    %v4741 = vadd.f32 0.0, %v4740
    %4742 = vmatprep.mubr.f32.mxu0 0.0
    %4743 = vmatmul.mubr.f32.gmra.mrb[0].mxu0 %v4604
    %v4744 = vpop.f32.mrb[0].mxu0
    %v4745 = vadd.f32 0.0, %v4744
    %v4746 = vpop.f32.mrb[0].mxu0
    %v4747 = vadd.f32 0.0, %v4746
    %4748 = vdwg.mxu0
    %4749 = vmatprep.subr.mxu0 %v4480
    %4750 = vmatpush1.msra.mxu0 %v4478
    %4751 = vmatprep.subr.mxu0 0.0
    %4752 = vmatpush1.msra.mxu0 0.0
    %4753 = vmatprep.subr.mxu0 0.0
    %4754 = vmatpush1.msra.mxu0 0.0
    %4755 = vmatprep.subr.mxu0 0.0
    %4756 = vmatpush1.msra.mxu0 0.0
    %4757 = vmatprep.subr.mxu0 0.0
    %4758 = vmatpush1.msra.mxu0 0.0
    %4759 = vmatprep.subr.mxu0 0.0
    %4760 = vmatpush1.msra.mxu0 0.0
    %4761 = vmatprep.subr.mxu0 0.0
    %4762 = vmatpush1.msra.mxu0 0.0
    %4763 = vmatprep.subr.mxu0 0.0
    %4764 = vmatpush1.msra.mxu0 0.0
    %4765 = vmatprep.subr.mxu0 0.0
    %4766 = vmatpush1.msra.mxu0 0.0
    %4767 = vmatprep.subr.mxu0 0.0
    %4768 = vmatpush1.msra.mxu0 0.0
    %4769 = vmatprep.subr.mxu0 0.0
    %4770 = vmatpush1.msra.mxu0 0.0
    %4771 = vmatprep.subr.mxu0 0.0
    %4772 = vmatpush1.msra.mxu0 0.0
    %4773 = vmatprep.subr.mxu0 0.0
    %4774 = vmatpush1.msra.mxu0 0.0
    %4775 = vmatprep.subr.mxu0 0.0
    %4776 = vmatpush1.msra.mxu0 0.0
    %4777 = vmatprep.subr.mxu0 0.0
    %4778 = vmatpush1.msra.mxu0 0.0
    %4779 = vmatprep.subr.mxu0 0.0
    %4780 = vmatpush1.msra.mxu0 0.0
    %4781 = vmatprep.subr.mxu0 0.0
    %4782 = vmatpush1.msra.mxu0 0.0
    %4783 = vmatprep.subr.mxu0 0.0
    %4784 = vmatpush1.msra.mxu0 0.0
    %4785 = vmatprep.subr.mxu0 0.0
    %4786 = vmatpush1.msra.mxu0 0.0
    %4787 = vmatprep.subr.mxu0 0.0
    %4788 = vmatpush1.msra.mxu0 0.0
    %4789 = vmatprep.subr.mxu0 0.0
    %4790 = vmatpush1.msra.mxu0 0.0
    %4791 = vmatprep.subr.mxu0 0.0
    %4792 = vmatpush1.msra.mxu0 0.0
    %4793 = vmatprep.subr.mxu0 0.0
    %4794 = vmatpush1.msra.mxu0 0.0
    %4795 = vmatprep.subr.mxu0 0.0
    %4796 = vmatpush1.msra.mxu0 0.0
    %4797 = vmatprep.subr.mxu0 0.0
    %4798 = vmatpush1.msra.mxu0 0.0
    %4799 = vmatprep.subr.mxu0 0.0
    %4800 = vmatpush1.msra.mxu0 0.0
    %4801 = vmatprep.subr.mxu0 0.0
    %4802 = vmatpush1.msra.mxu0 0.0
    %4803 = vmatprep.subr.mxu0 0.0
    %4804 = vmatpush1.msra.mxu0 0.0
    %4805 = vmatprep.subr.mxu0 0.0
    %4806 = vmatpush1.msra.mxu0 0.0
    %4807 = vmatprep.subr.mxu0 0.0
    %4808 = vmatpush1.msra.mxu0 0.0
    %4809 = vmatprep.subr.mxu0 0.0
    %4810 = vmatpush1.msra.mxu0 0.0
    %4811 = vmatprep.subr.mxu0 0.0
    %4812 = vmatpush1.msra.mxu0 0.0
    %4813 = vmatprep.mubr.f32.mxu0 0.0
    %4814 = vmatmul.mubr.f32.gmra.mrb[0].mxu0 %v4568
    %v4815 = vpop.f32.mrb[0].mxu0
    %v4816 = vadd.f32 0.0, %v4815
    %v4817 = vpop.f32.mrb[0].mxu0
    %v4818 = vadd.f32 0.0, %v4817
    %4819 = vmatprep.mubr.f32.mxu0 0.0
    %4820 = vmatmul.mubr.f32.gmra.mrb[0].mxu0 %v4571
    %v4821 = vpop.f32.mrb[0].mxu0
    %v4822 = vadd.f32 0.0, %v4821
    %v4823 = vpop.f32.mrb[0].mxu0
    %v4824 = vadd.f32 0.0, %v4823
    %4825 = vmatprep.mubr.f32.mxu0 0.0
    %4826 = vmatmul.mubr.f32.gmra.mrb[0].mxu0 %v4574
    %v4827 = vpop.f32.mrb[0].mxu0
    %v4828 = vadd.f32 0.0, %v4827
    %v4829 = vpop.f32.mrb[0].mxu0
    %v4830 = vadd.f32 0.0, %v4829
    %4831 = vmatprep.mubr.f32.mxu0 0.0
    %4832 = vmatmul.mubr.f32.gmra.mrb[0].mxu0 %v4577
    %v4833 = vpop.f32.mrb[0].mxu0
    %v4834 = vadd.f32 0.0, %v4833
    %v4835 = vpop.f32.mrb[0].mxu0
    %v4836 = vadd.f32 0.0, %v4835
    %4837 = vmatprep.mubr.f32.mxu0 0.0
    %4838 = vmatmul.mubr.f32.gmra.mrb[0].mxu0 %v4580
    %v4839 = vpop.f32.mrb[0].mxu0
    %v4840 = vadd.f32 0.0, %v4839
    %v4841 = vpop.f32.mrb[0].mxu0
    %v4842 = vadd.f32 0.0, %v4841
    %4843 = vmatprep.mubr.f32.mxu0 0.0
    %4844 = vmatmul.mubr.f32.gmra.mrb[0].mxu0 %v4583
    %v4845 = vpop.f32.mrb[0].mxu0
    %v4846 = vadd.f32 0.0, %v4845
    %v4847 = vpop.f32.mrb[0].mxu0
    %v4848 = vadd.f32 0.0, %v4847
    %4849 = vmatprep.mubr.f32.mxu0 0.0
    %4850 = vmatmul.mubr.f32.gmra.mrb[0].mxu0 %v4586
    %v4851 = vpop.f32.mrb[0].mxu0
    %v4852 = vadd.f32 0.0, %v4851
    %v4853 = vpop.f32.mrb[0].mxu0
    %v4854 = vadd.f32 0.0, %v4853
    %4855 = vmatprep.mubr.f32.mxu0 0.0
    %4856 = vmatmul.mubr.f32.gmra.mrb[0].mxu0 %v4589
    %v4857 = vpop.f32.mrb[0].mxu0
    %v4858 = vadd.f32 0.0, %v4857
    %v4859 = vpop.f32.mrb[0].mxu0
    %v4860 = vadd.f32 0.0, %v4859
    %4861 = vmatprep.mubr.f32.mxu0 0.0
    %4862 = vmatmul.mubr.f32.gmra.mrb[0].mxu0 %v4592
    %v4863 = vpop.f32.mrb[0].mxu0
    %v4864 = vadd.f32 0.0, %v4863
    %v4865 = vpop.f32.mrb[0].mxu0
    %v4866 = vadd.f32 0.0, %v4865
    %4867 = vmatprep.mubr.f32.mxu0 0.0
    %4868 = vmatmul.mubr.f32.gmra.mrb[0].mxu0 %v4595
    %v4869 = vpop.f32.mrb[0].mxu0
    %v4870 = vadd.f32 0.0, %v4869
    %v4871 = vpop.f32.mrb[0].mxu0
    %v4872 = vadd.f32 0.0, %v4871
    %4873 = vmatprep.mubr.f32.mxu0 0.0
    %4874 = vmatmul.mubr.f32.gmra.mrb[0].mxu0 %v4598
    %v4875 = vpop.f32.mrb[0].mxu0
    %v4876 = vadd.f32 0.0, %v4875
    %v4877 = vpop.f32.mrb[0].mxu0
    %v4878 = vadd.f32 0.0, %v4877
    %4879 = vmatprep.mubr.f32.mxu0 0.0
    %4880 = vmatmul.mubr.f32.gmra.mrb[0].mxu0 %v4601
    %v4881 = vpop.f32.mrb[0].mxu0
    %v4882 = vadd.f32 0.0, %v4881
    %v4883 = vpop.f32.mrb[0].mxu0
    %v4884 = vadd.f32 0.0, %v4883
    %4885 = vmatprep.mubr.f32.mxu0 0.0
    %4886 = vmatmul.mubr.f32.gmra.mrb[0].mxu0 %v4604
    %v4887 = vpop.f32.mrb[0].mxu0
    %v4888 = vadd.f32 0.0, %v4887
    %v4889 = vpop.f32.mrb[0].mxu0
    %v4890 = vadd.f32 0.0, %v4889
    %4891 = vdwg.mxu0
    %4892 = vmatprep.subr.mxu0 %v4551
    %4893 = vmatpush1.msra.mxu0 %v4549
    %4894 = vmatprep.subr.mxu0 0.0
    %4895 = vmatpush1.msra.mxu0 0.0
    %4896 = vmatprep.subr.mxu0 0.0
    %4897 = vmatpush1.msra.mxu0 0.0
    %4898 = vmatprep.subr.mxu0 0.0
    %4899 = vmatpush1.msra.mxu0 0.0
    %4900 = vmatprep.subr.mxu0 0.0
    %4901 = vmatpush1.msra.mxu0 0.0
    %4902 = vmatprep.subr.mxu0 0.0
    %4903 = vmatpush1.msra.mxu0 0.0
    %4904 = vmatprep.subr.mxu0 0.0
    %4905 = vmatpush1.msra.mxu0 0.0
    %4906 = vmatprep.subr.mxu0 0.0
    %4907 = vmatpush1.msra.mxu0 0.0
    %4908 = vmatprep.subr.mxu0 0.0
    %4909 = vmatpush1.msra.mxu0 0.0
    %4910 = vmatprep.subr.mxu0 0.0
    %4911 = vmatpush1.msra.mxu0 0.0
    %4912 = vmatprep.subr.mxu0 0.0
    %4913 = vmatpush1.msra.mxu0 0.0
    %4914 = vmatprep.subr.mxu0 0.0
    %4915 = vmatpush1.msra.mxu0 0.0
    %4916 = vmatprep.subr.mxu0 0.0
    %4917 = vmatpush1.msra.mxu0 0.0
    %4918 = vmatprep.subr.mxu0 0.0
    %4919 = vmatpush1.msra.mxu0 0.0
    %4920 = vmatprep.subr.mxu0 0.0
    %4921 = vmatpush1.msra.mxu0 0.0
    %4922 = vmatprep.subr.mxu0 0.0
    %4923 = vmatpush1.msra.mxu0 0.0
    %4924 = vmatprep.subr.mxu0 0.0
    %4925 = vmatpush1.msra.mxu0 0.0
    %4926 = vmatprep.subr.mxu0 0.0
    %4927 = vmatpush1.msra.mxu0 0.0
    %4928 = vmatprep.subr.mxu0 0.0
    %4929 = vmatpush1.msra.mxu0 0.0
    %4930 = vmatprep.subr.mxu0 0.0
    %4931 = vmatpush1.msra.mxu0 0.0
    %4932 = vmatprep.subr.mxu0 0.0
    %4933 = vmatpush1.msra.mxu0 0.0
    %4934 = vmatprep.subr.mxu0 0.0
    %4935 = vmatpush1.msra.mxu0 0.0
    %4936 = vmatprep.subr.mxu0 0.0
    %4937 = vmatpush1.msra.mxu0 0.0
    %4938 = vmatprep.subr.mxu0 0.0
    %4939 = vmatpush1.msra.mxu0 0.0
    %4940 = vmatprep.subr.mxu0 0.0
    %4941 = vmatpush1.msra.mxu0 0.0
    %4942 = vmatprep.subr.mxu0 0.0
    %4943 = vmatpush1.msra.mxu0 0.0
    %4944 = vmatprep.subr.mxu0 0.0
    %4945 = vmatpush1.msra.mxu0 0.0
    %4946 = vmatprep.subr.mxu0 0.0
    %4947 = vmatpush1.msra.mxu0 0.0
    %4948 = vmatprep.subr.mxu0 0.0
    %4949 = vmatpush1.msra.mxu0 0.0
    %4950 = vmatprep.subr.mxu0 0.0
    %4951 = vmatpush1.msra.mxu0 0.0
    %4952 = vmatprep.subr.mxu0 0.0
    %4953 = vmatpush1.msra.mxu0 0.0
    %4954 = vmatprep.subr.mxu0 0.0
    %4955 = vmatpush1.msra.mxu0 0.0
    %4956 = vmatprep.mubr.f32.mxu0 0.0
    %4957 = vmatmul.mubr.f32.gmra.mrb[0].mxu0 %v4568
    %v4958 = vpop.f32.mrb[0].mxu0
    %v4959 = vadd.f32 0.0, %v4958
    %v4960 = vpop.f32.mrb[0].mxu0
    %v4961 = vadd.f32 0.0, %v4960
    %4962 = vmatprep.mubr.f32.mxu0 0.0
    %4963 = vmatmul.mubr.f32.gmra.mrb[0].mxu0 %v4571
    %v4964 = vpop.f32.mrb[0].mxu0
    %v4965 = vadd.f32 0.0, %v4964
    %v4966 = vpop.f32.mrb[0].mxu0
    %v4967 = vadd.f32 0.0, %v4966
    %4968 = vmatprep.mubr.f32.mxu0 0.0
    %4969 = vmatmul.mubr.f32.gmra.mrb[0].mxu0 %v4574
    %v4970 = vpop.f32.mrb[0].mxu0
    %v4971 = vadd.f32 0.0, %v4970
    %v4972 = vpop.f32.mrb[0].mxu0
    %v4973 = vadd.f32 0.0, %v4972
    %4974 = vmatprep.mubr.f32.mxu0 0.0
    %4975 = vmatmul.mubr.f32.gmra.mrb[0].mxu0 %v4577
    %v4976 = vpop.f32.mrb[0].mxu0
    %v4977 = vadd.f32 0.0, %v4976
    %v4978 = vpop.f32.mrb[0].mxu0
    %v4979 = vadd.f32 0.0, %v4978
    %4980 = vmatprep.mubr.f32.mxu0 0.0
    %4981 = vmatmul.mubr.f32.gmra.mrb[0].mxu0 %v4580
    %v4982 = vpop.f32.mrb[0].mxu0
    %v4983 = vadd.f32 0.0, %v4982
    %v4984 = vpop.f32.mrb[0].mxu0
    %v4985 = vadd.f32 0.0, %v4984
    %4986 = vmatprep.mubr.f32.mxu0 0.0
    %4987 = vmatmul.mubr.f32.gmra.mrb[0].mxu0 %v4583
    %v4988 = vpop.f32.mrb[0].mxu0
    %v4989 = vadd.f32 0.0, %v4988
    %v4990 = vpop.f32.mrb[0].mxu0
    %v4991 = vadd.f32 0.0, %v4990
    %4992 = vmatprep.mubr.f32.mxu0 0.0
    %4993 = vmatmul.mubr.f32.gmra.mrb[0].mxu0 %v4586
    %v4994 = vpop.f32.mrb[0].mxu0
    %v4995 = vadd.f32 0.0, %v4994
    %v4996 = vpop.f32.mrb[0].mxu0
    %v4997 = vadd.f32 0.0, %v4996
    %4998 = vmatprep.mubr.f32.mxu0 0.0
    %4999 = vmatmul.mubr.f32.gmra.mrb[0].mxu0 %v4589
    %v5000 = vpop.f32.mrb[0].mxu0
    %v5001 = vadd.f32 0.0, %v5000
    %v5002 = vpop.f32.mrb[0].mxu0
    %v5003 = vadd.f32 0.0, %v5002
    %5004 = vmatprep.mubr.f32.mxu0 0.0
    %5005 = vmatmul.mubr.f32.gmra.mrb[0].mxu0 %v4592
    %v5006 = vpop.f32.mrb[0].mxu0
    %v5007 = vadd.f32 0.0, %v5006
    %v5008 = vpop.f32.mrb[0].mxu0
    %v5009 = vadd.f32 0.0, %v5008
    %5010 = vmatprep.mubr.f32.mxu0 0.0
    %5011 = vmatmul.mubr.f32.gmra.mrb[0].mxu0 %v4595
    %v5012 = vpop.f32.mrb[0].mxu0
    %v5013 = vadd.f32 0.0, %v5012
    %v5014 = vpop.f32.mrb[0].mxu0
    %v5015 = vadd.f32 0.0, %v5014
    %5016 = vmatprep.mubr.f32.mxu0 0.0
    %5017 = vmatmul.mubr.f32.gmra.mrb[0].mxu0 %v4598
    %v5018 = vpop.f32.mrb[0].mxu0
    %v5019 = vadd.f32 0.0, %v5018
    %v5020 = vpop.f32.mrb[0].mxu0
    %v5021 = vadd.f32 0.0, %v5020
    %5022 = vmatprep.mubr.f32.mxu0 0.0
    %5023 = vmatmul.mubr.f32.gmra.mrb[0].mxu0 %v4601
    %v5024 = vpop.f32.mrb[0].mxu0
    %v5025 = vadd.f32 0.0, %v5024
    %v5026 = vpop.f32.mrb[0].mxu0
    %v5027 = vadd.f32 0.0, %v5026
    %5028 = vmatprep.mubr.f32.mxu0 0.0
    %5029 = vmatmul.mubr.f32.gmra.mrb[0].mxu0 %v4604
    %v5030 = vpop.f32.mrb[0].mxu0
    %v5031 = vadd.f32 0.0, %v5030
    %v5032 = vpop.f32.mrb[0].mxu0
    %v5033 = vadd.f32 0.0, %v5032
    %5034 = vdwg.mxu0
    %v5035 = vadd.f32 %v4673, %v4675
    %v5036 = vadd.f32 %v5035, %v4816
    %v5037 = vadd.f32 %v5036, %v4818
    %v5038 = vadd.f32 %v5037, %v4959
    %v5039 = vadd.f32 %v5038, %v4961
    %5040 = vadd.xlane.f32.xlu0 %v5039
    %v5041 = vpop.xlane.xlu0 %5040
    %v5042 = vadd.f32 %v4679, %v4681
    %v5043 = vadd.f32 %v5042, %v4822
    %v5044 = vadd.f32 %v5043, %v4824
    %v5045 = vadd.f32 %v5044, %v4965
    %v5046 = vadd.f32 %v5045, %v4967
    %5047 = vadd.xlane.f32.xlu0 %v5046
    %v5048 = vpop.xlane.xlu0 %5047
    %v5049 = vadd.f32 %v4685, %v4687
    %v5050 = vadd.f32 %v5049, %v4828
    %v5051 = vadd.f32 %v5050, %v4830
    %v5052 = vadd.f32 %v5051, %v4971
    %v5053 = vadd.f32 %v5052, %v4973
    %5054 = vadd.xlane.f32.xlu0 %v5053
    %v5055 = vpop.xlane.xlu0 %5054
    %v5056 = vadd.f32 %v4691, %v4693
    %v5057 = vadd.f32 %v5056, %v4834
    %v5058 = vadd.f32 %v5057, %v4836
    %v5059 = vadd.f32 %v5058, %v4977
    %v5060 = vadd.f32 %v5059, %v4979
    %5061 = vadd.xlane.f32.xlu0 %v5060
    %v5062 = vpop.xlane.xlu0 %5061
    %v5063 = vadd.f32 %v4697, %v4699
    %v5064 = vadd.f32 %v5063, %v4840
    %v5065 = vadd.f32 %v5064, %v4842
    %v5066 = vadd.f32 %v5065, %v4983
    %v5067 = vadd.f32 %v5066, %v4985
    %5068 = vadd.xlane.f32.xlu0 %v5067
    %v5069 = vpop.xlane.xlu0 %5068
    %v5070 = vadd.f32 %v4703, %v4705
    %v5071 = vadd.f32 %v5070, %v4846
    %v5072 = vadd.f32 %v5071, %v4848
    %v5073 = vadd.f32 %v5072, %v4989
    %v5074 = vadd.f32 %v5073, %v4991
    %5075 = vadd.xlane.f32.xlu0 %v5074
    %v5076 = vpop.xlane.xlu0 %5075
    %v5077 = vadd.f32 %v4709, %v4711
    %v5078 = vadd.f32 %v5077, %v4852
    %v5079 = vadd.f32 %v5078, %v4854
    %v5080 = vadd.f32 %v5079, %v4995
    %v5081 = vadd.f32 %v5080, %v4997
    %5082 = vadd.xlane.f32.xlu0 %v5081
    %v5083 = vpop.xlane.xlu0 %5082
    %v5084 = vadd.f32 %v4715, %v4717
    %v5085 = vadd.f32 %v5084, %v4858
    %v5086 = vadd.f32 %v5085, %v4860
    %v5087 = vadd.f32 %v5086, %v5001
    %v5088 = vadd.f32 %v5087, %v5003
    %5089 = vadd.xlane.f32.xlu0 %v5088
    %v5090 = vpop.xlane.xlu0 %5089
    %v5091 = vadd.f32 %v4721, %v4723
    %v5092 = vadd.f32 %v5091, %v4864
    %v5093 = vadd.f32 %v5092, %v4866
    %v5094 = vadd.f32 %v5093, %v5007
    %v5095 = vadd.f32 %v5094, %v5009
    %5096 = vadd.xlane.f32.xlu0 %v5095
    %v5097 = vpop.xlane.xlu0 %5096
    %v5098 = vadd.f32 %v4727, %v4729
    %v5099 = vadd.f32 %v5098, %v4870
    %v5100 = vadd.f32 %v5099, %v4872
    %v5101 = vadd.f32 %v5100, %v5013
    %v5102 = vadd.f32 %v5101, %v5015
    %5103 = vadd.xlane.f32.xlu0 %v5102
    %v5104 = vpop.xlane.xlu0 %5103
    %v5105 = vadd.f32 %v4733, %v4735
    %v5106 = vadd.f32 %v5105, %v4876
    %v5107 = vadd.f32 %v5106, %v4878
    %v5108 = vadd.f32 %v5107, %v5019
    %v5109 = vadd.f32 %v5108, %v5021
    %5110 = vadd.xlane.f32.xlu0 %v5109
    %v5111 = vpop.xlane.xlu0 %5110
    %v5112 = vadd.f32 %v4739, %v4741
    %v5113 = vadd.f32 %v5112, %v4882
    %v5114 = vadd.f32 %v5113, %v4884
    %v5115 = vadd.f32 %v5114, %v5025
    %v5116 = vadd.f32 %v5115, %v5027
    %5117 = vadd.xlane.f32.xlu0 %v5116
    %v5118 = vpop.xlane.xlu0 %5117
    %vm5119 = vcmask 1043456
    %v5120 = vsel %vm5119, %v4745, 0.0
    %v5121 = vsel %vm5119, %v4747, 0.0
    %v5122 = vadd.f32 %v5120, %v5121
    %v5123 = vsel %vm5119, %v4888, 0.0
    %v5124 = vadd.f32 %v5122, %v5123
    %v5125 = vsel %vm5119, %v4890, 0.0
    %v5126 = vadd.f32 %v5124, %v5125
    %v5127 = vsel %vm5119, %v5031, 0.0
    %v5128 = vadd.f32 %v5126, %v5127
    %v5129 = vsel %vm5119, %v5033, 0.0
    %v5130 = vadd.f32 %v5128, %v5129
    %5131 = vadd.xlane.f32.xlu0 %v5130
    %v5132 = vpop.xlane.xlu0 %5131
    %v5133 = vrcp.pop 768.0
    %v5134 = vmul.f32 %v5041, %v5133
    %v5135 = vmul.f32 %v5048, %v5133
    %v5136 = vmul.f32 %v5055, %v5133
    %v5137 = vmul.f32 %v5062, %v5133
    %v5138 = vmul.f32 %v5069, %v5133
    %v5139 = vmul.f32 %v5076, %v5133
    %v5140 = vmul.f32 %v5083, %v5133
    %v5141 = vmul.f32 %v5090, %v5133
    %v5142 = vmul.f32 %v5097, %v5133
    %v5143 = vmul.f32 %v5104, %v5133
    %v5144 = vmul.f32 %v5111, %v5133
    %v5145 = vmul.f32 %v5118, %v5133
    %v5146 = vmul.f32 %v5132, %v5133
    %v5147 = vsub.f32 %v4673, %v5134
    %v5148 = vsub.f32 %v4675, %v5134
    %v5149 = vsub.f32 %v4816, %v5134
    %v5150 = vsub.f32 %v4818, %v5134
    %v5151 = vsub.f32 %v4959, %v5134
    %v5152 = vsub.f32 %v4961, %v5134
    %v5153 = vsub.f32 %v4679, %v5135
    %v5154 = vsub.f32 %v4681, %v5135
    %v5155 = vsub.f32 %v4822, %v5135
    %v5156 = vsub.f32 %v4824, %v5135
    %v5157 = vsub.f32 %v4965, %v5135
    %v5158 = vsub.f32 %v4967, %v5135
    %v5159 = vsub.f32 %v4685, %v5136
    %v5160 = vsub.f32 %v4687, %v5136
    %v5161 = vsub.f32 %v4828, %v5136
    %v5162 = vsub.f32 %v4830, %v5136
    %v5163 = vsub.f32 %v4971, %v5136
    %v5164 = vsub.f32 %v4973, %v5136
    %v5165 = vsub.f32 %v4691, %v5137
    %v5166 = vsub.f32 %v4693, %v5137
    %v5167 = vsub.f32 %v4834, %v5137
    %v5168 = vsub.f32 %v4836, %v5137
    %v5169 = vsub.f32 %v4977, %v5137
    %v5170 = vsub.f32 %v4979, %v5137
    %v5171 = vsub.f32 %v4697, %v5138
    %v5172 = vsub.f32 %v4699, %v5138
    %v5173 = vsub.f32 %v4840, %v5138
    %v5174 = vsub.f32 %v4842, %v5138
    %v5175 = vsub.f32 %v4983, %v5138
    %v5176 = vsub.f32 %v4985, %v5138
    %v5177 = vsub.f32 %v4703, %v5139
    %v5178 = vsub.f32 %v4705, %v5139
    %v5179 = vsub.f32 %v4846, %v5139
    %v5180 = vsub.f32 %v4848, %v5139
    %v5181 = vsub.f32 %v4989, %v5139
    %v5182 = vsub.f32 %v4991, %v5139
    %v5183 = vsub.f32 %v4709, %v5140
    %v5184 = vsub.f32 %v4711, %v5140
    %v5185 = vsub.f32 %v4852, %v5140
    %v5186 = vsub.f32 %v4854, %v5140
    %v5187 = vsub.f32 %v4995, %v5140
    %v5188 = vsub.f32 %v4997, %v5140
    %v5189 = vsub.f32 %v4715, %v5141
    %v5190 = vsub.f32 %v4717, %v5141
    %v5191 = vsub.f32 %v4858, %v5141
    %v5192 = vsub.f32 %v4860, %v5141
    %v5193 = vsub.f32 %v5001, %v5141
    %v5194 = vsub.f32 %v5003, %v5141
    %v5195 = vsub.f32 %v4721, %v5142
    %v5196 = vsub.f32 %v4723, %v5142
    %v5197 = vsub.f32 %v4864, %v5142
    %v5198 = vsub.f32 %v4866, %v5142
    %v5199 = vsub.f32 %v5007, %v5142
    %v5200 = vsub.f32 %v5009, %v5142
    %v5201 = vsub.f32 %v4727, %v5143
    %v5202 = vsub.f32 %v4729, %v5143
    %v5203 = vsub.f32 %v4870, %v5143
    %v5204 = vsub.f32 %v4872, %v5143
    %v5205 = vsub.f32 %v5013, %v5143
    %v5206 = vsub.f32 %v5015, %v5143
    %v5207 = vsub.f32 %v4733, %v5144
    %v5208 = vsub.f32 %v4735, %v5144
    %v5209 = vsub.f32 %v4876, %v5144
    %v5210 = vsub.f32 %v4878, %v5144
    %v5211 = vsub.f32 %v5019, %v5144
    %v5212 = vsub.f32 %v5021, %v5144
    %v5213 = vsub.f32 %v4739, %v5145
    %v5214 = vsub.f32 %v4741, %v5145
    %v5215 = vsub.f32 %v4882, %v5145
    %v5216 = vsub.f32 %v4884, %v5145
    %v5217 = vsub.f32 %v5025, %v5145
    %v5218 = vsub.f32 %v5027, %v5145
    %v5219 = vsub.f32 %v4745, %v5146
    %v5220 = vsub.f32 %v4747, %v5146
    %v5221 = vsub.f32 %v4888, %v5146
    %v5222 = vsub.f32 %v4890, %v5146
    %v5223 = vsub.f32 %v5031, %v5146
    %v5224 = vsub.f32 %v5033, %v5146
    %v5225 = vmul.f32 %v5147, %v5147
    %v5226 = vmul.f32 %v5148, %v5148
    %v5227 = vmul.f32 %v5149, %v5149
    %v5228 = vmul.f32 %v5150, %v5150
    %v5229 = vmul.f32 %v5151, %v5151
    %v5230 = vmul.f32 %v5152, %v5152
    %v5231 = vmul.f32 %v5153, %v5153
    %v5232 = vmul.f32 %v5154, %v5154
    %v5233 = vmul.f32 %v5155, %v5155
    %v5234 = vmul.f32 %v5156, %v5156
    %v5235 = vmul.f32 %v5157, %v5157
    %v5236 = vmul.f32 %v5158, %v5158
    %v5237 = vmul.f32 %v5159, %v5159
    %v5238 = vmul.f32 %v5160, %v5160
    %v5239 = vmul.f32 %v5161, %v5161
    %v5240 = vmul.f32 %v5162, %v5162
    %v5241 = vmul.f32 %v5163, %v5163
    %v5242 = vmul.f32 %v5164, %v5164
    %v5243 = vmul.f32 %v5165, %v5165
    %v5244 = vmul.f32 %v5166, %v5166
    %v5245 = vmul.f32 %v5167, %v5167
    %v5246 = vmul.f32 %v5168, %v5168
    %v5247 = vmul.f32 %v5169, %v5169
    %v5248 = vmul.f32 %v5170, %v5170
    %v5249 = vmul.f32 %v5171, %v5171
    %v5250 = vmul.f32 %v5172, %v5172
    %v5251 = vmul.f32 %v5173, %v5173
    %v5252 = vmul.f32 %v5174, %v5174
    %v5253 = vmul.f32 %v5175, %v5175
    %v5254 = vmul.f32 %v5176, %v5176
    %v5255 = vmul.f32 %v5177, %v5177
    %v5256 = vmul.f32 %v5178, %v5178
    %v5257 = vmul.f32 %v5179, %v5179
    %v5258 = vmul.f32 %v5180, %v5180
    %v5259 = vmul.f32 %v5181, %v5181
    %v5260 = vmul.f32 %v5182, %v5182
    %v5261 = vmul.f32 %v5183, %v5183
    %v5262 = vmul.f32 %v5184, %v5184
    %v5263 = vmul.f32 %v5185, %v5185
    %v5264 = vmul.f32 %v5186, %v5186
    %v5265 = vmul.f32 %v5187, %v5187
    %v5266 = vmul.f32 %v5188, %v5188
    %v5267 = vmul.f32 %v5189, %v5189
    %v5268 = vmul.f32 %v5190, %v5190
    %v5269 = vmul.f32 %v5191, %v5191
    %v5270 = vmul.f32 %v5192, %v5192
    %v5271 = vmul.f32 %v5193, %v5193
    %v5272 = vmul.f32 %v5194, %v5194
    %v5273 = vmul.f32 %v5195, %v5195
    %v5274 = vmul.f32 %v5196, %v5196
    %v5275 = vmul.f32 %v5197, %v5197
    %v5276 = vmul.f32 %v5198, %v5198
    %v5277 = vmul.f32 %v5199, %v5199
    %v5278 = vmul.f32 %v5200, %v5200
    %v5279 = vmul.f32 %v5201, %v5201
    %v5280 = vmul.f32 %v5202, %v5202
    %v5281 = vmul.f32 %v5203, %v5203
    %v5282 = vmul.f32 %v5204, %v5204
    %v5283 = vmul.f32 %v5205, %v5205
    %v5284 = vmul.f32 %v5206, %v5206
    %v5285 = vmul.f32 %v5207, %v5207
    %v5286 = vmul.f32 %v5208, %v5208
    %v5287 = vmul.f32 %v5209, %v5209
    %v5288 = vmul.f32 %v5210, %v5210
    %v5289 = vmul.f32 %v5211, %v5211
    %v5290 = vmul.f32 %v5212, %v5212
    %v5291 = vmul.f32 %v5213, %v5213
    %v5292 = vmul.f32 %v5214, %v5214
    %v5293 = vmul.f32 %v5215, %v5215
    %v5294 = vmul.f32 %v5216, %v5216
    %v5295 = vmul.f32 %v5217, %v5217
    %v5296 = vmul.f32 %v5218, %v5218
    %v5297 = vmul.f32 %v5219, %v5219
    %v5298 = vmul.f32 %v5220, %v5220
    %v5299 = vmul.f32 %v5221, %v5221
    %v5300 = vmul.f32 %v5222, %v5222
    %v5301 = vmul.f32 %v5223, %v5223
    %v5302 = vmul.f32 %v5224, %v5224
    %v5303 = vadd.f32 %v5225, %v5226
    %v5304 = vadd.f32 %v5303, %v5227
    %v5305 = vadd.f32 %v5304, %v5228
    %v5306 = vadd.f32 %v5305, %v5229
    %v5307 = vadd.f32 %v5306, %v5230
    %5308 = vadd.xlane.f32.xlu0 %v5307
    %v5309 = vpop.xlane.xlu0 %5308
    %v5310 = vadd.f32 %v5231, %v5232
    %v5311 = vadd.f32 %v5310, %v5233
    %v5312 = vadd.f32 %v5311, %v5234
    %v5313 = vadd.f32 %v5312, %v5235
    %v5314 = vadd.f32 %v5313, %v5236
    %5315 = vadd.xlane.f32.xlu0 %v5314
    %v5316 = vpop.xlane.xlu0 %5315
    %v5317 = vadd.f32 %v5237, %v5238
    %v5318 = vadd.f32 %v5317, %v5239
    %v5319 = vadd.f32 %v5318, %v5240
    %v5320 = vadd.f32 %v5319, %v5241
    %v5321 = vadd.f32 %v5320, %v5242
    %5322 = vadd.xlane.f32.xlu0 %v5321
    %v5323 = vpop.xlane.xlu0 %5322
    %v5324 = vadd.f32 %v5243, %v5244
    %v5325 = vadd.f32 %v5324, %v5245
    %v5326 = vadd.f32 %v5325, %v5246
    %v5327 = vadd.f32 %v5326, %v5247
    %v5328 = vadd.f32 %v5327, %v5248
    %5329 = vadd.xlane.f32.xlu0 %v5328
    %v5330 = vpop.xlane.xlu0 %5329
    %v5331 = vadd.f32 %v5249, %v5250
    %v5332 = vadd.f32 %v5331, %v5251
    %v5333 = vadd.f32 %v5332, %v5252
    %v5334 = vadd.f32 %v5333, %v5253
    %v5335 = vadd.f32 %v5334, %v5254
    %5336 = vadd.xlane.f32.xlu0 %v5335
    %v5337 = vpop.xlane.xlu0 %5336
    %v5338 = vadd.f32 %v5255, %v5256
    %v5339 = vadd.f32 %v5338, %v5257
    %v5340 = vadd.f32 %v5339, %v5258
    %v5341 = vadd.f32 %v5340, %v5259
    %v5342 = vadd.f32 %v5341, %v5260
    %5343 = vadd.xlane.f32.xlu0 %v5342
    %v5344 = vpop.xlane.xlu0 %5343
    %v5345 = vadd.f32 %v5261, %v5262
    %v5346 = vadd.f32 %v5345, %v5263
    %v5347 = vadd.f32 %v5346, %v5264
    %v5348 = vadd.f32 %v5347, %v5265
    %v5349 = vadd.f32 %v5348, %v5266
    %5350 = vadd.xlane.f32.xlu0 %v5349
    %v5351 = vpop.xlane.xlu0 %5350
    %v5352 = vadd.f32 %v5267, %v5268
    %v5353 = vadd.f32 %v5352, %v5269
    %v5354 = vadd.f32 %v5353, %v5270
    %v5355 = vadd.f32 %v5354, %v5271
    %v5356 = vadd.f32 %v5355, %v5272
    %5357 = vadd.xlane.f32.xlu0 %v5356
    %v5358 = vpop.xlane.xlu0 %5357
    %v5359 = vadd.f32 %v5273, %v5274
    %v5360 = vadd.f32 %v5359, %v5275
    %v5361 = vadd.f32 %v5360, %v5276
    %v5362 = vadd.f32 %v5361, %v5277
    %v5363 = vadd.f32 %v5362, %v5278
    %5364 = vadd.xlane.f32.xlu0 %v5363
    %v5365 = vpop.xlane.xlu0 %5364
    %v5366 = vadd.f32 %v5279, %v5280
    %v5367 = vadd.f32 %v5366, %v5281
    %v5368 = vadd.f32 %v5367, %v5282
    %v5369 = vadd.f32 %v5368, %v5283
    %v5370 = vadd.f32 %v5369, %v5284
    %5371 = vadd.xlane.f32.xlu0 %v5370
    %v5372 = vpop.xlane.xlu0 %5371
    %v5373 = vadd.f32 %v5285, %v5286
    %v5374 = vadd.f32 %v5373, %v5287
    %v5375 = vadd.f32 %v5374, %v5288
    %v5376 = vadd.f32 %v5375, %v5289
    %v5377 = vadd.f32 %v5376, %v5290
    %5378 = vadd.xlane.f32.xlu0 %v5377
    %v5379 = vpop.xlane.xlu0 %5378
    %v5380 = vadd.f32 %v5291, %v5292
    %v5381 = vadd.f32 %v5380, %v5293
    %v5382 = vadd.f32 %v5381, %v5294
    %v5383 = vadd.f32 %v5382, %v5295
    %v5384 = vadd.f32 %v5383, %v5296
    %5385 = vadd.xlane.f32.xlu0 %v5384
    %v5386 = vpop.xlane.xlu0 %5385
    %v5387 = vsel %vm5119, %v5297, 0.0
    %v5388 = vsel %vm5119, %v5298, 0.0
    %v5389 = vadd.f32 %v5387, %v5388
    %v5390 = vsel %vm5119, %v5299, 0.0
    %v5391 = vadd.f32 %v5389, %v5390
    %v5392 = vsel %vm5119, %v5300, 0.0
    %v5393 = vadd.f32 %v5391, %v5392
    %v5394 = vsel %vm5119, %v5301, 0.0
    %v5395 = vadd.f32 %v5393, %v5394
    %v5396 = vsel %vm5119, %v5302, 0.0
    %v5397 = vadd.f32 %v5395, %v5396
    %5398 = vadd.xlane.f32.xlu0 %v5397
    %v5399 = vpop.xlane.xlu0 %5398
    %v5400 = vmul.f32 %v5309, %v5133
    %v5401 = vmul.f32 %v5316, %v5133
    %v5402 = vmul.f32 %v5323, %v5133
    %v5403 = vmul.f32 %v5330, %v5133
    %v5404 = vmul.f32 %v5337, %v5133
    %v5405 = vmul.f32 %v5344, %v5133
    %v5406 = vmul.f32 %v5351, %v5133
    %v5407 = vmul.f32 %v5358, %v5133
    %v5408 = vmul.f32 %v5365, %v5133
    %v5409 = vmul.f32 %v5372, %v5133
    %v5410 = vmul.f32 %v5379, %v5133
    %v5411 = vmul.f32 %v5386, %v5133
    %v5412 = vmul.f32 %v5399, %v5133
    %v5413 = vadd.f32 %v5400, 1e-06
    %v5414 = vadd.f32 %v5401, 1e-06
    %v5415 = vadd.f32 %v5402, 1e-06
    %v5416 = vadd.f32 %v5403, 1e-06
    %v5417 = vadd.f32 %v5404, 1e-06
    %v5418 = vadd.f32 %v5405, 1e-06
    %v5419 = vadd.f32 %v5406, 1e-06
    %v5420 = vadd.f32 %v5407, 1e-06
    %v5421 = vadd.f32 %v5408, 1e-06
    %v5422 = vadd.f32 %v5409, 1e-06
    %v5423 = vadd.f32 %v5410, 1e-06
    %v5424 = vadd.f32 %v5411, 1e-06
    %v5425 = vadd.f32 %v5412, 1e-06
    %v5426 = vrsqrt.pop %v5413
    %v5427 = vrsqrt.pop %v5414
    %v5428 = vrsqrt.pop %v5415
    %v5429 = vrsqrt.pop %v5416
    %v5430 = vrsqrt.pop %v5417
    %v5431 = vrsqrt.pop %v5418
    %v5432 = vrsqrt.pop %v5419
    %v5433 = vrsqrt.pop %v5420
    %v5434 = vrsqrt.pop %v5421
    %v5435 = vrsqrt.pop %v5422
    %v5436 = vrsqrt.pop %v5423
    %v5437 = vrsqrt.pop %v5424
    %v5438 = vrsqrt.pop %v5425
    %v5439 = vmul.f32 %v5147, %v5426
    %v5440 = vmul.f32 %v5148, %v5426
    %v5441 = vmul.f32 %v5149, %v5426
    %v5442 = vmul.f32 %v5150, %v5426
    %v5443 = vmul.f32 %v5151, %v5426
    %v5444 = vmul.f32 %v5152, %v5426
    %v5445 = vmul.f32 %v5153, %v5427
    %v5446 = vmul.f32 %v5154, %v5427
    %v5447 = vmul.f32 %v5155, %v5427
    %v5448 = vmul.f32 %v5156, %v5427
    %v5449 = vmul.f32 %v5157, %v5427
    %v5450 = vmul.f32 %v5158, %v5427
    %v5451 = vmul.f32 %v5159, %v5428
    %v5452 = vmul.f32 %v5160, %v5428
    %v5453 = vmul.f32 %v5161, %v5428
    %v5454 = vmul.f32 %v5162, %v5428
    %v5455 = vmul.f32 %v5163, %v5428
    %v5456 = vmul.f32 %v5164, %v5428
    %v5457 = vmul.f32 %v5165, %v5429
    %v5458 = vmul.f32 %v5166, %v5429
    %v5459 = vmul.f32 %v5167, %v5429
    %v5460 = vmul.f32 %v5168, %v5429
    %v5461 = vmul.f32 %v5169, %v5429
    %v5462 = vmul.f32 %v5170, %v5429
    %v5463 = vmul.f32 %v5171, %v5430
    %v5464 = vmul.f32 %v5172, %v5430
    %v5465 = vmul.f32 %v5173, %v5430
    %v5466 = vmul.f32 %v5174, %v5430
    %v5467 = vmul.f32 %v5175, %v5430
    %v5468 = vmul.f32 %v5176, %v5430
    %v5469 = vmul.f32 %v5177, %v5431
    %v5470 = vmul.f32 %v5178, %v5431
    %v5471 = vmul.f32 %v5179, %v5431
    %v5472 = vmul.f32 %v5180, %v5431
    %v5473 = vmul.f32 %v5181, %v5431
    %v5474 = vmul.f32 %v5182, %v5431
    %v5475 = vmul.f32 %v5183, %v5432
    %v5476 = vmul.f32 %v5184, %v5432
    %v5477 = vmul.f32 %v5185, %v5432
    %v5478 = vmul.f32 %v5186, %v5432
    %v5479 = vmul.f32 %v5187, %v5432
    %v5480 = vmul.f32 %v5188, %v5432
    %v5481 = vmul.f32 %v5189, %v5433
    %v5482 = vmul.f32 %v5190, %v5433
    %v5483 = vmul.f32 %v5191, %v5433
    %v5484 = vmul.f32 %v5192, %v5433
    %v5485 = vmul.f32 %v5193, %v5433
    %v5486 = vmul.f32 %v5194, %v5433
    %v5487 = vmul.f32 %v5195, %v5434
    %v5488 = vmul.f32 %v5196, %v5434
    %v5489 = vmul.f32 %v5197, %v5434
    %v5490 = vmul.f32 %v5198, %v5434
    %v5491 = vmul.f32 %v5199, %v5434
    %v5492 = vmul.f32 %v5200, %v5434
    %v5493 = vmul.f32 %v5201, %v5435
    %v5494 = vmul.f32 %v5202, %v5435
    %v5495 = vmul.f32 %v5203, %v5435
    %v5496 = vmul.f32 %v5204, %v5435
    %v5497 = vmul.f32 %v5205, %v5435
    %v5498 = vmul.f32 %v5206, %v5435
    %v5499 = vmul.f32 %v5207, %v5436
    %v5500 = vmul.f32 %v5208, %v5436
    %v5501 = vmul.f32 %v5209, %v5436
    %v5502 = vmul.f32 %v5210, %v5436
    %v5503 = vmul.f32 %v5211, %v5436
    %v5504 = vmul.f32 %v5212, %v5436
    %v5505 = vmul.f32 %v5213, %v5437
    %v5506 = vmul.f32 %v5214, %v5437
    %v5507 = vmul.f32 %v5215, %v5437
    %v5508 = vmul.f32 %v5216, %v5437
    %v5509 = vmul.f32 %v5217, %v5437
    %v5510 = vmul.f32 %v5218, %v5437
    %v5511 = vmul.f32 %v5219, %v5438
    %v5512 = vmul.f32 %v5220, %v5438
    %v5513 = vmul.f32 %v5221, %v5438
    %v5514 = vmul.f32 %v5222, %v5438
    %v5515 = vmul.f32 %v5223, %v5438
    %v5516 = vmul.f32 %v5224, %v5438
    %s5517 = scalar_lea.vmem %s3, 3
    %v5518 = vld [vmem:[%s5517] ss:$8 sm:$0xf]
    %v5519 = vld [vmem:[%s5517] ss:$8 sm:$0x30]
    %v5520 = vor.u32 %v5518, %v5519
    %v5522 = vlaneseq
    %v5523 = vshrl.u32 %v5522, 7
    %v5524 = vsub.s32 0, %v5523
    %v5525 = vrot.slane %v5520, %v5524
    %v5526 = vlaneseq
    %v5527 = vshrl.u32 %v5526, 7
    %v5528 = vsub.s32 1, %v5527
    %v5529 = vrot.slane %v5520, %v5528
    %v5530 = vlaneseq
    %v5531 = vshrl.u32 %v5530, 7
    %v5532 = vsub.s32 2, %v5531
    %v5533 = vrot.slane %v5520, %v5532
    %v5534 = vlaneseq
    %v5535 = vshrl.u32 %v5534, 7
    %v5536 = vsub.s32 3, %v5535
    %v5537 = vrot.slane %v5520, %v5536
    %v5538 = vlaneseq
    %v5539 = vshrl.u32 %v5538, 7
    %v5540 = vsub.s32 4, %v5539
    %v5541 = vrot.slane %v5520, %v5540
    %v5542 = vlaneseq
    %v5543 = vshrl.u32 %v5542, 7
    %v5544 = vsub.s32 5, %v5543
    %v5545 = vrot.slane %v5520, %v5544
    %v5552 = vmul.f32 %v5439, %v5525
    %v5553 = vmul.f32 %v5440, %v5529
    %v5554 = vmul.f32 %v5441, %v5533
    %v5555 = vmul.f32 %v5442, %v5537
    %v5556 = vmul.f32 %v5443, %v5541
    %v5557 = vmul.f32 %v5444, %v5545
    %v5558 = vmul.f32 %v5445, %v5525
    %v5559 = vmul.f32 %v5446, %v5529
    %v5560 = vmul.f32 %v5447, %v5533
    %v5561 = vmul.f32 %v5448, %v5537
    %v5562 = vmul.f32 %v5449, %v5541
    %v5563 = vmul.f32 %v5450, %v5545
    %v5564 = vmul.f32 %v5451, %v5525
    %v5565 = vmul.f32 %v5452, %v5529
    %v5566 = vmul.f32 %v5453, %v5533
    %v5567 = vmul.f32 %v5454, %v5537
    %v5568 = vmul.f32 %v5455, %v5541
    %v5569 = vmul.f32 %v5456, %v5545
    %v5570 = vmul.f32 %v5457, %v5525
    %v5571 = vmul.f32 %v5458, %v5529
    %v5572 = vmul.f32 %v5459, %v5533
    %v5573 = vmul.f32 %v5460, %v5537
    %v5574 = vmul.f32 %v5461, %v5541
    %v5575 = vmul.f32 %v5462, %v5545
    %v5576 = vmul.f32 %v5463, %v5525
    %v5577 = vmul.f32 %v5464, %v5529
    %v5578 = vmul.f32 %v5465, %v5533
    %v5579 = vmul.f32 %v5466, %v5537
    %v5580 = vmul.f32 %v5467, %v5541
    %v5581 = vmul.f32 %v5468, %v5545
    %v5582 = vmul.f32 %v5469, %v5525
    %v5583 = vmul.f32 %v5470, %v5529
    %v5584 = vmul.f32 %v5471, %v5533
    %v5585 = vmul.f32 %v5472, %v5537
    %v5586 = vmul.f32 %v5473, %v5541
    %v5587 = vmul.f32 %v5474, %v5545
    %v5588 = vmul.f32 %v5475, %v5525
    %v5589 = vmul.f32 %v5476, %v5529
    %v5590 = vmul.f32 %v5477, %v5533
    %v5591 = vmul.f32 %v5478, %v5537
    %v5592 = vmul.f32 %v5479, %v5541
    %v5593 = vmul.f32 %v5480, %v5545
    %v5594 = vmul.f32 %v5481, %v5525
    %v5595 = vmul.f32 %v5482, %v5529
    %v5596 = vmul.f32 %v5483, %v5533
    %v5597 = vmul.f32 %v5484, %v5537
    %v5598 = vmul.f32 %v5485, %v5541
    %v5599 = vmul.f32 %v5486, %v5545
    %v5600 = vmul.f32 %v5487, %v5525
    %v5601 = vmul.f32 %v5488, %v5529
    %v5602 = vmul.f32 %v5489, %v5533
    %v5603 = vmul.f32 %v5490, %v5537
    %v5604 = vmul.f32 %v5491, %v5541
    %v5605 = vmul.f32 %v5492, %v5545
    %v5606 = vmul.f32 %v5493, %v5525
    %v5607 = vmul.f32 %v5494, %v5529
    %v5608 = vmul.f32 %v5495, %v5533
    %v5609 = vmul.f32 %v5496, %v5537
    %v5610 = vmul.f32 %v5497, %v5541
    %v5611 = vmul.f32 %v5498, %v5545
    %v5612 = vmul.f32 %v5499, %v5525
    %v5613 = vmul.f32 %v5500, %v5529
    %v5614 = vmul.f32 %v5501, %v5533
    %v5615 = vmul.f32 %v5502, %v5537
    %v5616 = vmul.f32 %v5503, %v5541
    %v5617 = vmul.f32 %v5504, %v5545
    %v5618 = vmul.f32 %v5505, %v5525
    %v5619 = vmul.f32 %v5506, %v5529
    %v5620 = vmul.f32 %v5507, %v5533
    %v5621 = vmul.f32 %v5508, %v5537
    %v5622 = vmul.f32 %v5509, %v5541
    %v5623 = vmul.f32 %v5510, %v5545
    %v5624 = vmul.f32 %v5511, %v5525
    %v5625 = vmul.f32 %v5512, %v5529
    %v5626 = vmul.f32 %v5513, %v5533
    %v5627 = vmul.f32 %v5514, %v5537
    %v5628 = vmul.f32 %v5515, %v5541
    %v5629 = vmul.f32 %v5516, %v5545
    %s5630 = scalar_lea.vmem %s3, 4
    %v5631 = vld [vmem:[%s5630] ss:$8 sm:$0xf]
    %v5632 = vld [vmem:[%s5630] ss:$8 sm:$0x30]
    %v5633 = vor.u32 %v5631, %v5632
    %v5635 = vlaneseq
    %v5636 = vshrl.u32 %v5635, 7
    %v5637 = vsub.s32 0, %v5636
    %v5638 = vrot.slane %v5633, %v5637
    %v5639 = vlaneseq
    %v5640 = vshrl.u32 %v5639, 7
    %v5641 = vsub.s32 1, %v5640
    %v5642 = vrot.slane %v5633, %v5641
    %v5643 = vlaneseq
    %v5644 = vshrl.u32 %v5643, 7
    %v5645 = vsub.s32 2, %v5644
    %v5646 = vrot.slane %v5633, %v5645
    %v5647 = vlaneseq
    %v5648 = vshrl.u32 %v5647, 7
    %v5649 = vsub.s32 3, %v5648
    %v5650 = vrot.slane %v5633, %v5649
    %v5651 = vlaneseq
    %v5652 = vshrl.u32 %v5651, 7
    %v5653 = vsub.s32 4, %v5652
    %v5654 = vrot.slane %v5633, %v5653
    %v5655 = vlaneseq
    %v5656 = vshrl.u32 %v5655, 7
    %v5657 = vsub.s32 5, %v5656
    %v5658 = vrot.slane %v5633, %v5657
    %v5665 = vadd.f32 %v5552, %v5638
    %v5666 = vadd.f32 %v5553, %v5642
    %v5667 = vadd.f32 %v5554, %v5646
    %v5668 = vadd.f32 %v5555, %v5650
    %v5669 = vadd.f32 %v5556, %v5654
    %v5670 = vadd.f32 %v5557, %v5658
    %v5671 = vadd.f32 %v5558, %v5638
    %v5672 = vadd.f32 %v5559, %v5642
    %v5673 = vadd.f32 %v5560, %v5646
    %v5674 = vadd.f32 %v5561, %v5650
    %v5675 = vadd.f32 %v5562, %v5654
    %v5676 = vadd.f32 %v5563, %v5658
    %v5677 = vadd.f32 %v5564, %v5638
    %v5678 = vadd.f32 %v5565, %v5642
    %v5679 = vadd.f32 %v5566, %v5646
    %v5680 = vadd.f32 %v5567, %v5650
    %v5681 = vadd.f32 %v5568, %v5654
    %v5682 = vadd.f32 %v5569, %v5658
    %v5683 = vadd.f32 %v5570, %v5638
    %v5684 = vadd.f32 %v5571, %v5642
    %v5685 = vadd.f32 %v5572, %v5646
    %v5686 = vadd.f32 %v5573, %v5650
    %v5687 = vadd.f32 %v5574, %v5654
    %v5688 = vadd.f32 %v5575, %v5658
    %v5689 = vadd.f32 %v5576, %v5638
    %v5690 = vadd.f32 %v5577, %v5642
    %v5691 = vadd.f32 %v5578, %v5646
    %v5692 = vadd.f32 %v5579, %v5650
    %v5693 = vadd.f32 %v5580, %v5654
    %v5694 = vadd.f32 %v5581, %v5658
    %v5695 = vadd.f32 %v5582, %v5638
    %v5696 = vadd.f32 %v5583, %v5642
    %v5697 = vadd.f32 %v5584, %v5646
    %v5698 = vadd.f32 %v5585, %v5650
    %v5699 = vadd.f32 %v5586, %v5654
    %v5700 = vadd.f32 %v5587, %v5658
    %v5701 = vadd.f32 %v5588, %v5638
    %v5702 = vadd.f32 %v5589, %v5642
    %v5703 = vadd.f32 %v5590, %v5646
    %v5704 = vadd.f32 %v5591, %v5650
    %v5705 = vadd.f32 %v5592, %v5654
    %v5706 = vadd.f32 %v5593, %v5658
    %v5707 = vadd.f32 %v5594, %v5638
    %v5708 = vadd.f32 %v5595, %v5642
    %v5709 = vadd.f32 %v5596, %v5646
    %v5710 = vadd.f32 %v5597, %v5650
    %v5711 = vadd.f32 %v5598, %v5654
    %v5712 = vadd.f32 %v5599, %v5658
    %v5713 = vadd.f32 %v5600, %v5638
    %v5714 = vadd.f32 %v5601, %v5642
    %v5715 = vadd.f32 %v5602, %v5646
    %v5716 = vadd.f32 %v5603, %v5650
    %v5717 = vadd.f32 %v5604, %v5654
    %v5718 = vadd.f32 %v5605, %v5658
    %v5719 = vadd.f32 %v5606, %v5638
    %v5720 = vadd.f32 %v5607, %v5642
    %v5721 = vadd.f32 %v5608, %v5646
    %v5722 = vadd.f32 %v5609, %v5650
    %v5723 = vadd.f32 %v5610, %v5654
    %v5724 = vadd.f32 %v5611, %v5658
    %v5725 = vadd.f32 %v5612, %v5638
    %v5726 = vadd.f32 %v5613, %v5642
    %v5727 = vadd.f32 %v5614, %v5646
    %v5728 = vadd.f32 %v5615, %v5650
    %v5729 = vadd.f32 %v5616, %v5654
    %v5730 = vadd.f32 %v5617, %v5658
    %v5731 = vadd.f32 %v5618, %v5638
    %v5732 = vadd.f32 %v5619, %v5642
    %v5733 = vadd.f32 %v5620, %v5646
    %v5734 = vadd.f32 %v5621, %v5650
    %v5735 = vadd.f32 %v5622, %v5654
    %v5736 = vadd.f32 %v5623, %v5658
    %v5737 = vadd.f32 %v5624, %v5638
    %v5738 = vadd.f32 %v5625, %v5642
    %v5739 = vadd.f32 %v5626, %v5646
    %v5740 = vadd.f32 %v5627, %v5650
    %v5741 = vadd.f32 %v5628, %v5654
    %v5742 = vadd.f32 %v5629, %v5658
    %5743 = vst [vmem:[%s4] sm:$0xff] %v5665
    %5744 = vst [vmem:[%s4 + $0x8] sm:$0xff] %v5666
    %5745 = vst [vmem:[%s4 + $0x10] sm:$0xff] %v5667
    %5746 = vst [vmem:[%s4 + $0x18] sm:$0xff] %v5668
    %5747 = vst [vmem:[%s4 + $0x20] sm:$0xff] %v5669
    %5748 = vst [vmem:[%s4 + $0x28] sm:$0xff] %v5670
    %5749 = vst [vmem:[%s4 + $0x30] sm:$0xff] %v5671
    %5750 = vst [vmem:[%s4 + $0x38] sm:$0xff] %v5672
    %5751 = vst [vmem:[%s4 + $0x40] sm:$0xff] %v5673
    %5752 = vst [vmem:[%s4 + $0x48] sm:$0xff] %v5674
    %5753 = vst [vmem:[%s4 + $0x50] sm:$0xff] %v5675
    %5754 = vst [vmem:[%s4 + $0x58] sm:$0xff] %v5676
    %5755 = vst [vmem:[%s4 + $0x60] sm:$0xff] %v5677
    %5756 = vst [vmem:[%s4 + $0x68] sm:$0xff] %v5678
    %5757 = vst [vmem:[%s4 + $0x70] sm:$0xff] %v5679
    %5758 = vst [vmem:[%s4 + $0x78] sm:$0xff] %v5680
    %5759 = vst [vmem:[%s4 + $0x80] sm:$0xff] %v5681
    %5760 = vst [vmem:[%s4 + $0x88] sm:$0xff] %v5682
    %5761 = vst [vmem:[%s4 + $0x90] sm:$0xff] %v5683
    %5762 = vst [vmem:[%s4 + $0x98] sm:$0xff] %v5684
    %5763 = vst [vmem:[%s4 + $0xa0] sm:$0xff] %v5685
    %5764 = vst [vmem:[%s4 + $0xa8] sm:$0xff] %v5686
    %5765 = vst [vmem:[%s4 + $0xb0] sm:$0xff] %v5687
    %5766 = vst [vmem:[%s4 + $0xb8] sm:$0xff] %v5688
    %5767 = vst [vmem:[%s4 + $0xc0] sm:$0xff] %v5689
    %5768 = vst [vmem:[%s4 + $0xc8] sm:$0xff] %v5690
    %5769 = vst [vmem:[%s4 + $0xd0] sm:$0xff] %v5691
    %5770 = vst [vmem:[%s4 + $0xd8] sm:$0xff] %v5692
    %5771 = vst [vmem:[%s4 + $0xe0] sm:$0xff] %v5693
    %5772 = vst [vmem:[%s4 + $0xe8] sm:$0xff] %v5694
    %5773 = vst [vmem:[%s4 + $0xf0] sm:$0xff] %v5695
    %5774 = vst [vmem:[%s4 + $0xf8] sm:$0xff] %v5696
    %5775 = vst [vmem:[%s4 + $0x100] sm:$0xff] %v5697
    %5776 = vst [vmem:[%s4 + $0x108] sm:$0xff] %v5698
    %5777 = vst [vmem:[%s4 + $0x110] sm:$0xff] %v5699
    %5778 = vst [vmem:[%s4 + $0x118] sm:$0xff] %v5700
    %5779 = vst [vmem:[%s4 + $0x120] sm:$0xff] %v5701
    %5780 = vst [vmem:[%s4 + $0x128] sm:$0xff] %v5702
    %5781 = vst [vmem:[%s4 + $0x130] sm:$0xff] %v5703
    %5782 = vst [vmem:[%s4 + $0x138] sm:$0xff] %v5704
    %5783 = vst [vmem:[%s4 + $0x140] sm:$0xff] %v5705
    %5784 = vst [vmem:[%s4 + $0x148] sm:$0xff] %v5706
    %5785 = vst [vmem:[%s4 + $0x150] sm:$0xff] %v5707
    %5786 = vst [vmem:[%s4 + $0x158] sm:$0xff] %v5708
    %5787 = vst [vmem:[%s4 + $0x160] sm:$0xff] %v5709
    %5788 = vst [vmem:[%s4 + $0x168] sm:$0xff] %v5710
    %5789 = vst [vmem:[%s4 + $0x170] sm:$0xff] %v5711
    %5790 = vst [vmem:[%s4 + $0x178] sm:$0xff] %v5712
    %5791 = vst [vmem:[%s4 + $0x180] sm:$0xff] %v5713
    %5792 = vst [vmem:[%s4 + $0x188] sm:$0xff] %v5714
    %5793 = vst [vmem:[%s4 + $0x190] sm:$0xff] %v5715
    %5794 = vst [vmem:[%s4 + $0x198] sm:$0xff] %v5716
    %5795 = vst [vmem:[%s4 + $0x1a0] sm:$0xff] %v5717
    %5796 = vst [vmem:[%s4 + $0x1a8] sm:$0xff] %v5718
    %5797 = vst [vmem:[%s4 + $0x1b0] sm:$0xff] %v5719
    %5798 = vst [vmem:[%s4 + $0x1b8] sm:$0xff] %v5720
    %5799 = vst [vmem:[%s4 + $0x1c0] sm:$0xff] %v5721
    %5800 = vst [vmem:[%s4 + $0x1c8] sm:$0xff] %v5722
    %5801 = vst [vmem:[%s4 + $0x1d0] sm:$0xff] %v5723
    %5802 = vst [vmem:[%s4 + $0x1d8] sm:$0xff] %v5724
    %5803 = vst [vmem:[%s4 + $0x1e0] sm:$0xff] %v5725
    %5804 = vst [vmem:[%s4 + $0x1e8] sm:$0xff] %v5726
    %5805 = vst [vmem:[%s4 + $0x1f0] sm:$0xff] %v5727
    %5806 = vst [vmem:[%s4 + $0x1f8] sm:$0xff] %v5728
    %5807 = vst [vmem:[%s4 + $0x200] sm:$0xff] %v5729
    %5808 = vst [vmem:[%s4 + $0x208] sm:$0xff] %v5730
    %5809 = vst [vmem:[%s4 + $0x210] sm:$0xff] %v5731
    %5810 = vst [vmem:[%s4 + $0x218] sm:$0xff] %v5732
    %5811 = vst [vmem:[%s4 + $0x220] sm:$0xff] %v5733
    %5812 = vst [vmem:[%s4 + $0x228] sm:$0xff] %v5734
    %5813 = vst [vmem:[%s4 + $0x230] sm:$0xff] %v5735
    %5814 = vst [vmem:[%s4 + $0x238] sm:$0xff] %v5736
    %5815 = vst [vmem:[%s4 + $0x240] sm:$0xf] %v5737
    %5816 = vst [vmem:[%s4 + $0x248] sm:$0xf] %v5738
    %5817 = vst [vmem:[%s4 + $0x250] sm:$0xf] %v5739
    %5818 = vst [vmem:[%s4 + $0x258] sm:$0xf] %v5740
    %5819 = vst [vmem:[%s4 + $0x260] sm:$0xf] %v5741
    %5820 = vst [vmem:[%s4 + $0x268] sm:$0xf] %v5742
    %v5821 = vld [vmem:[%s1 + $0xe80] sm:$0xf]
    %v5822 = vld [vmem:[%s1 + $0xe88] sm:$0x7]
    %v5823 = vpack.c.bf16 %v4243, %v4243
    %v5826 = vunpack.c.l.b16 %v5821
    %v5827 = vunpack.c.l.b16 %v5822
    %v5828 = vpack.c.b16 %v5827, %v5826
    %v5830 = vsel %vm4566, %v5828, 0
    %v5833 = vsel %vm5119, %v5823, 0
    %5835 = vmatprep.subr.bf16.mxu0 0
    %5836 = vmatpush1.bf16.msra.mxu0 %v5833
    %5837 = vmatprep.subr.bf16.mxu0 0
    %5838 = vmatpush1.bf16.msra.mxu0 0
    %5839 = vmatprep.subr.bf16.mxu0 0
    %5840 = vmatpush1.bf16.msra.mxu0 0
    %5841 = vmatprep.subr.bf16.mxu0 0
    %5842 = vmatpush1.bf16.msra.mxu0 0
    %5843 = vmatprep.subr.bf16.mxu0 0
    %5844 = vmatpush1.bf16.msra.mxu0 0
    %5845 = vmatprep.subr.bf16.mxu0 0
    %5846 = vmatpush1.bf16.msra.mxu0 0
    %5847 = vmatprep.subr.bf16.mxu0 0
    %5848 = vmatpush1.bf16.msra.mxu0 0
    %5849 = vmatprep.subr.bf16.mxu0 0
    %5850 = vmatpush1.bf16.msra.mxu0 0
    %5851 = vmatprep.subr.bf16.mxu0 0
    %5852 = vmatpush1.bf16.msra.mxu0 0
    %5853 = vmatprep.subr.bf16.mxu0 0
    %5854 = vmatpush1.bf16.msra.mxu0 0
    %5855 = vmatprep.subr.bf16.mxu0 0
    %5856 = vmatpush1.bf16.msra.mxu0 0
    %5857 = vmatprep.subr.bf16.mxu0 0
    %5858 = vmatpush1.bf16.msra.mxu0 0
    %5859 = vmatprep.subr.bf16.mxu0 0
    %5860 = vmatpush1.bf16.msra.mxu0 0
    %5861 = vmatprep.subr.bf16.mxu0 0
    %5862 = vmatpush1.bf16.msra.mxu0 0
    %5863 = vmatprep.subr.bf16.mxu0 0
    %5864 = vmatpush1.bf16.msra.mxu0 0
    %5865 = vmatprep.subr.bf16.mxu0 0
    %5866 = vmatpush1.bf16.msra.mxu0 0
    %5867 = vmatprep.mubr.bf16.mxu0 0
    %5868 = vmatmul.mubr.bf16.gmra.mrb[0].mxu0 %v5830
    %v5869 = vpop.f32.mrb[0].mxu0
    %v5870 = vadd.f32 0.0, %v5869
    %v5871 = vpop.f32.mrb[0].mxu0
    %v5872 = vpop.f32.mrb[0].mxu0
    %v5873 = vadd.f32 0.0, %v5872
    %v5874 = vpop.f32.mrb[0].mxu0
    %5875 = vdwg.mxu0
    %v5876 = vld [vmem:[%s1 + $0xea0] sm:$0xf]
    %v5877 = vld [vmem:[%s1 + $0xea8] sm:$0x7]
    %v5880 = vunpack.c.l.b16 %v5876
    %v5881 = vunpack.c.l.b16 %v5877
    %v5882 = vpack.c.b16 %v5881, %v5880
    %v5884 = vsel %vm4566, %v5882, 0
    %5886 = vmatprep.subr.bf16.mxu0 0
    %5887 = vmatpush1.bf16.msra.mxu0 %v5833
    %5888 = vmatprep.subr.bf16.mxu0 0
    %5889 = vmatpush1.bf16.msra.mxu0 0
    %5890 = vmatprep.subr.bf16.mxu0 0
    %5891 = vmatpush1.bf16.msra.mxu0 0
    %5892 = vmatprep.subr.bf16.mxu0 0
    %5893 = vmatpush1.bf16.msra.mxu0 0
    %5894 = vmatprep.subr.bf16.mxu0 0
    %5895 = vmatpush1.bf16.msra.mxu0 0
    %5896 = vmatprep.subr.bf16.mxu0 0
    %5897 = vmatpush1.bf16.msra.mxu0 0
    %5898 = vmatprep.subr.bf16.mxu0 0
    %5899 = vmatpush1.bf16.msra.mxu0 0
    %5900 = vmatprep.subr.bf16.mxu0 0
    %5901 = vmatpush1.bf16.msra.mxu0 0
    %5902 = vmatprep.subr.bf16.mxu0 0
    %5903 = vmatpush1.bf16.msra.mxu0 0
    %5904 = vmatprep.subr.bf16.mxu0 0
    %5905 = vmatpush1.bf16.msra.mxu0 0
    %5906 = vmatprep.subr.bf16.mxu0 0
    %5907 = vmatpush1.bf16.msra.mxu0 0
    %5908 = vmatprep.subr.bf16.mxu0 0
    %5909 = vmatpush1.bf16.msra.mxu0 0
    %5910 = vmatprep.subr.bf16.mxu0 0
    %5911 = vmatpush1.bf16.msra.mxu0 0
    %5912 = vmatprep.subr.bf16.mxu0 0
    %5913 = vmatpush1.bf16.msra.mxu0 0
    %5914 = vmatprep.subr.bf16.mxu0 0
    %5915 = vmatpush1.bf16.msra.mxu0 0
    %5916 = vmatprep.subr.bf16.mxu0 0
    %5917 = vmatpush1.bf16.msra.mxu0 0
    %5918 = vmatprep.mubr.bf16.mxu0 0
    %5919 = vmatmul.mubr.bf16.gmra.mrb[0].mxu0 %v5884
    %v5920 = vpop.f32.mrb[0].mxu0
    %v5921 = vadd.f32 0.0, %v5920
    %v5922 = vpop.f32.mrb[0].mxu0
    %v5923 = vpop.f32.mrb[0].mxu0
    %v5924 = vadd.f32 0.0, %v5923
    %v5925 = vpop.f32.mrb[0].mxu0
    %5926 = vdwg.mxu0
    %v5927 = vmax.f32 %v5870, %v5921
    %v5928 = vmax.f32 %v5873, %v5924
    %v5929 = vld [vmem:[%s1 + $0xec0] sm:$0xff]
    %v5930 = vld [vmem:[%s1 + $0xec8] sm:$0xff]
    %v5931 = vld [vmem:[%s1 + $0xed0] sm:$0xff]
    %v5932 = vld [vmem:[%s1 + $0xed8] sm:$0xff]
    %v5933 = vld [vmem:[%s1 + $0xee0] sm:$0xff]
    %v5934 = vld [vmem:[%s1 + $0xee8] sm:$0xff]
    %v5935 = vld [vmem:[%s1 + $0xef0] sm:$0xff]
    %v5936 = vld [vmem:[%s1 + $0xef8] sm:$0xff]
    %v5937 = vld [vmem:[%s1 + $0xf00] sm:$0xff]
    %v5938 = vld [vmem:[%s1 + $0xf08] sm:$0xff]
    %v5939 = vld [vmem:[%s1 + $0xf10] sm:$0xff]
    %v5940 = vld [vmem:[%s1 + $0xf18] sm:$0xff]
    %v5941 = vld [vmem:[%s1 + $0xf20] sm:$0xff]
    %v5942 = vld [vmem:[%s1 + $0xf28] sm:$0xff]
    %v5943 = vld [vmem:[%s1 + $0xf30] sm:$0xff]
    %v5944 = vld [vmem:[%s1 + $0xf38] sm:$0xff]
    %v5945 = vpack.c.bf16 %v5928, %v5927
    %v5962 = vunpack.c.l.b16 %v5929
    %v5963 = vunpack.c.h.b16 %v5929
    %v5964 = vunpack.c.l.b16 %v5930
    %v5965 = vunpack.c.h.b16 %v5930
    %v5966 = vunpack.c.l.b16 %v5931
    %v5967 = vunpack.c.h.b16 %v5931
    %v5968 = vunpack.c.l.b16 %v5932
    %v5969 = vunpack.c.h.b16 %v5932
    %v5970 = vunpack.c.l.b16 %v5933
    %v5971 = vunpack.c.h.b16 %v5933
    %v5972 = vunpack.c.l.b16 %v5934
    %v5973 = vunpack.c.h.b16 %v5934
    %v5974 = vunpack.c.l.b16 %v5935
    %v5975 = vunpack.c.h.b16 %v5935
    %v5976 = vunpack.c.l.b16 %v5936
    %v5977 = vunpack.c.h.b16 %v5936
    %v5978 = vunpack.c.l.b16 %v5937
    %v5979 = vunpack.c.h.b16 %v5937
    %v5980 = vunpack.c.l.b16 %v5938
    %v5981 = vunpack.c.h.b16 %v5938
    %v5982 = vunpack.c.l.b16 %v5939
    %v5983 = vunpack.c.h.b16 %v5939
    %v5984 = vunpack.c.l.b16 %v5940
    %v5985 = vunpack.c.h.b16 %v5940
    %v5986 = vunpack.c.l.b16 %v5941
    %v5987 = vunpack.c.h.b16 %v5941
    %v5988 = vunpack.c.l.b16 %v5942
    %v5989 = vunpack.c.h.b16 %v5942
    %v5990 = vunpack.c.l.b16 %v5943
    %v5991 = vunpack.c.h.b16 %v5943
    %v5992 = vunpack.c.l.b16 %v5944
    %v5993 = vunpack.c.h.b16 %v5944
    %v5994 = vpack.c.b16 %v5964, %v5962
    %v5995 = vpack.c.b16 %v5965, %v5963
    %v5996 = vpack.c.b16 %v5968, %v5966
    %v5997 = vpack.c.b16 %v5969, %v5967
    %v5998 = vpack.c.b16 %v5972, %v5970
    %v5999 = vpack.c.b16 %v5973, %v5971
    %v6000 = vpack.c.b16 %v5976, %v5974
    %v6001 = vpack.c.b16 %v5977, %v5975
    %v6002 = vpack.c.b16 %v5980, %v5978
    %v6003 = vpack.c.b16 %v5981, %v5979
    %v6004 = vpack.c.b16 %v5984, %v5982
    %v6005 = vpack.c.b16 %v5985, %v5983
    %v6006 = vpack.c.b16 %v5988, %v5986
    %v6007 = vpack.c.b16 %v5989, %v5987
    %v6008 = vpack.c.b16 %v5992, %v5990
    %v6009 = vpack.c.b16 %v5993, %v5991
    %6026 = vmatprep.subr.bf16.mxu0 %v5995
    %6027 = vmatpush1.bf16.msra.mxu0 %v5994
    %6028 = vmatprep.subr.bf16.mxu0 %v5997
    %6029 = vmatpush1.bf16.msra.mxu0 %v5996
    %6030 = vmatprep.subr.bf16.mxu0 %v5999
    %6031 = vmatpush1.bf16.msra.mxu0 %v5998
    %6032 = vmatprep.subr.bf16.mxu0 %v6001
    %6033 = vmatpush1.bf16.msra.mxu0 %v6000
    %6034 = vmatprep.subr.bf16.mxu0 %v6003
    %6035 = vmatpush1.bf16.msra.mxu0 %v6002
    %6036 = vmatprep.subr.bf16.mxu0 %v6005
    %6037 = vmatpush1.bf16.msra.mxu0 %v6004
    %6038 = vmatprep.subr.bf16.mxu0 %v6007
    %6039 = vmatpush1.bf16.msra.mxu0 %v6006
    %6040 = vmatprep.subr.bf16.mxu0 %v6009
    %6041 = vmatpush1.bf16.msra.mxu0 %v6008
    %6042 = vmatprep.subr.bf16.mxu0 0
    %6043 = vmatpush1.bf16.msra.mxu0 0
    %6044 = vmatprep.subr.bf16.mxu0 0
    %6045 = vmatpush1.bf16.msra.mxu0 0
    %6046 = vmatprep.subr.bf16.mxu0 0
    %6047 = vmatpush1.bf16.msra.mxu0 0
    %6048 = vmatprep.subr.bf16.mxu0 0
    %6049 = vmatpush1.bf16.msra.mxu0 0
    %6050 = vmatprep.subr.bf16.mxu0 0
    %6051 = vmatpush1.bf16.msra.mxu0 0
    %6052 = vmatprep.subr.bf16.mxu0 0
    %6053 = vmatpush1.bf16.msra.mxu0 0
    %6054 = vmatprep.subr.bf16.mxu0 0
    %6055 = vmatpush1.bf16.msra.mxu0 0
    %6056 = vmatprep.subr.bf16.mxu0 0
    %6057 = vmatpush1.bf16.msra.mxu0 0
    %6058 = vmatprep.mubr.bf16.mxu0 0
    %6059 = vmatmul.mubr.bf16.gmra.mrb[0].mxu0 %v5945
    %v6060 = vpop.f32.mrb[0].mxu0
    %v6061 = vadd.f32 0.0, %v6060
    %v6062 = vpop.f32.mrb[0].mxu0
    %v6063 = vadd.f32 0.0, %v6062
    %v6064 = vpop.f32.mrb[0].mxu0
    %v6065 = vadd.f32 0.0, %v6064
    %v6066 = vpop.f32.mrb[0].mxu0
    %v6067 = vadd.f32 0.0, %v6066
    %6068 = vdwg.mxu0
    %v6069 = vld [vmem:[%s1 + $0xf40] sm:$0xff]
    %v6070 = vld [vmem:[%s1 + $0xf48] sm:$0xff]
    %v6071 = vld [vmem:[%s1 + $0xf50] sm:$0xff]
    %v6072 = vld [vmem:[%s1 + $0xf58] sm:$0xff]
    %v6073 = vld [vmem:[%s1 + $0xf60] sm:$0xff]
    %v6074 = vld [vmem:[%s1 + $0xf68] sm:$0xff]
    %v6075 = vld [vmem:[%s1 + $0xf70] sm:$0xff]
    %v6076 = vld [vmem:[%s1 + $0xf78] sm:$0xff]
    %v6077 = vld [vmem:[%s1 + $0xf80] sm:$0xff]
    %v6078 = vld [vmem:[%s1 + $0xf88] sm:$0xff]
    %v6079 = vld [vmem:[%s1 + $0xf90] sm:$0xff]
    %v6080 = vld [vmem:[%s1 + $0xf98] sm:$0xff]
    %v6081 = vld [vmem:[%s1 + $0xfa0] sm:$0xff]
    %v6082 = vld [vmem:[%s1 + $0xfa8] sm:$0xff]
    %v6083 = vld [vmem:[%s1 + $0xfb0] sm:$0xff]
    %v6084 = vld [vmem:[%s1 + $0xfb8] sm:$0xff]
    %v6101 = vunpack.c.l.b16 %v6069
    %v6102 = vunpack.c.h.b16 %v6069
    %v6103 = vunpack.c.l.b16 %v6070
    %v6104 = vunpack.c.h.b16 %v6070
    %v6105 = vunpack.c.l.b16 %v6071
    %v6106 = vunpack.c.h.b16 %v6071
    %v6107 = vunpack.c.l.b16 %v6072
    %v6108 = vunpack.c.h.b16 %v6072
    %v6109 = vunpack.c.l.b16 %v6073
    %v6110 = vunpack.c.h.b16 %v6073
    %v6111 = vunpack.c.l.b16 %v6074
    %v6112 = vunpack.c.h.b16 %v6074
    %v6113 = vunpack.c.l.b16 %v6075
    %v6114 = vunpack.c.h.b16 %v6075
    %v6115 = vunpack.c.l.b16 %v6076
    %v6116 = vunpack.c.h.b16 %v6076
    %v6117 = vunpack.c.l.b16 %v6077
    %v6118 = vunpack.c.h.b16 %v6077
    %v6119 = vunpack.c.l.b16 %v6078
    %v6120 = vunpack.c.h.b16 %v6078
    %v6121 = vunpack.c.l.b16 %v6079
    %v6122 = vunpack.c.h.b16 %v6079
    %v6123 = vunpack.c.l.b16 %v6080
    %v6124 = vunpack.c.h.b16 %v6080
    %v6125 = vunpack.c.l.b16 %v6081
    %v6126 = vunpack.c.h.b16 %v6081
    %v6127 = vunpack.c.l.b16 %v6082
    %v6128 = vunpack.c.h.b16 %v6082
    %v6129 = vunpack.c.l.b16 %v6083
    %v6130 = vunpack.c.h.b16 %v6083
    %v6131 = vunpack.c.l.b16 %v6084
    %v6132 = vunpack.c.h.b16 %v6084
    %v6133 = vpack.c.b16 %v6103, %v6101
    %v6134 = vpack.c.b16 %v6104, %v6102
    %v6135 = vpack.c.b16 %v6107, %v6105
    %v6136 = vpack.c.b16 %v6108, %v6106
    %v6137 = vpack.c.b16 %v6111, %v6109
    %v6138 = vpack.c.b16 %v6112, %v6110
    %v6139 = vpack.c.b16 %v6115, %v6113
    %v6140 = vpack.c.b16 %v6116, %v6114
    %v6141 = vpack.c.b16 %v6119, %v6117
    %v6142 = vpack.c.b16 %v6120, %v6118
    %v6143 = vpack.c.b16 %v6123, %v6121
    %v6144 = vpack.c.b16 %v6124, %v6122
    %v6145 = vpack.c.b16 %v6127, %v6125
    %v6146 = vpack.c.b16 %v6128, %v6126
    %v6147 = vpack.c.b16 %v6131, %v6129
    %v6148 = vpack.c.b16 %v6132, %v6130
    %6165 = vmatprep.subr.bf16.mxu0 %v6134
    %6166 = vmatpush1.bf16.msra.mxu0 %v6133
    %6167 = vmatprep.subr.bf16.mxu0 %v6136
    %6168 = vmatpush1.bf16.msra.mxu0 %v6135
    %6169 = vmatprep.subr.bf16.mxu0 %v6138
    %6170 = vmatpush1.bf16.msra.mxu0 %v6137
    %6171 = vmatprep.subr.bf16.mxu0 %v6140
    %6172 = vmatpush1.bf16.msra.mxu0 %v6139
    %6173 = vmatprep.subr.bf16.mxu0 %v6142
    %6174 = vmatpush1.bf16.msra.mxu0 %v6141
    %6175 = vmatprep.subr.bf16.mxu0 %v6144
    %6176 = vmatpush1.bf16.msra.mxu0 %v6143
    %6177 = vmatprep.subr.bf16.mxu0 %v6146
    %6178 = vmatpush1.bf16.msra.mxu0 %v6145
    %6179 = vmatprep.subr.bf16.mxu0 %v6148
    %6180 = vmatpush1.bf16.msra.mxu0 %v6147
    %6181 = vmatprep.subr.bf16.mxu0 0
    %6182 = vmatpush1.bf16.msra.mxu0 0
    %6183 = vmatprep.subr.bf16.mxu0 0
    %6184 = vmatpush1.bf16.msra.mxu0 0
    %6185 = vmatprep.subr.bf16.mxu0 0
    %6186 = vmatpush1.bf16.msra.mxu0 0
    %6187 = vmatprep.subr.bf16.mxu0 0
    %6188 = vmatpush1.bf16.msra.mxu0 0
    %6189 = vmatprep.subr.bf16.mxu0 0
    %6190 = vmatpush1.bf16.msra.mxu0 0
    %6191 = vmatprep.subr.bf16.mxu0 0
    %6192 = vmatpush1.bf16.msra.mxu0 0
    %6193 = vmatprep.subr.bf16.mxu0 0
    %6194 = vmatpush1.bf16.msra.mxu0 0
    %6195 = vmatprep.subr.bf16.mxu0 0
    %6196 = vmatpush1.bf16.msra.mxu0 0
    %6197 = vmatprep.mubr.bf16.mxu0 0
    %6198 = vmatmul.mubr.bf16.gmra.mrb[0].mxu0 %v5945
    %v6199 = vpop.f32.mrb[0].mxu0
    %v6200 = vadd.f32 0.0, %v6199
    %v6201 = vpop.f32.mrb[0].mxu0
    %v6202 = vadd.f32 0.0, %v6201
    %v6203 = vpop.f32.mrb[0].mxu0
    %v6204 = vadd.f32 0.0, %v6203
    %v6205 = vpop.f32.mrb[0].mxu0
    %v6206 = vadd.f32 0.0, %v6205
    %6207 = vdwg.mxu0
    %v6208 = vmax.f32 %v6061, %v6200
    %v6209 = vmax.f32 %v6063, %v6202
    %v6210 = vmax.f32 %v6065, %v6204
    %v6211 = vmax.f32 %v6067, %v6206
    %v6212 = vld [vmem:[%s3 + $0x5] ss:$0 sm:$0xff]
    %v6213 = vld [vmem:[%s1 + $0xfc0] sm:$0xf]
    %v6214 = vld [vmem:[%s1 + $0xfc8] sm:$0xf]
    %v6215 = vld [vmem:[%s1 + $0xfd0] sm:$0xf]
    %v6216 = vld [vmem:[%s1 + $0xfd8] sm:$0xf]
    %v6217 = vld [vmem:[%s1 + $0xfe0] sm:$0xf]
    %v6218 = vld [vmem:[%s1 + $0xfe8] sm:$0xf]
    %v6219 = vld [vmem:[%s1 + $0xff0] sm:$0xf]
    %v6220 = vld [vmem:[%s1 + $0xff8] sm:$0xf]
    %v6221 = vld [vmem:[%s1 + $0x1000] sm:$0xf]
    %v6222 = vld [vmem:[%s1 + $0x1008] sm:$0xf]
    %v6223 = vld [vmem:[%s1 + $0x1010] sm:$0xf]
    %v6224 = vld [vmem:[%s1 + $0x1018] sm:$0xf]
    %v6225 = vld [vmem:[%s1 + $0x1020] sm:$0xf]
    %v6226 = vld [vmem:[%s1 + $0x1028] sm:$0xf]
    %v6227 = vld [vmem:[%s1 + $0x1030] sm:$0xf]
    %v6228 = vld [vmem:[%s1 + $0x1038] sm:$0xf]
    %v6229 = vld [vmem:[%s1 + $0x1040] sm:$0xf]
    %v6230 = vld [vmem:[%s1 + $0x1048] sm:$0xf]
    %v6231 = vld [vmem:[%s1 + $0x1050] sm:$0xf]
    %v6232 = vld [vmem:[%s1 + $0x1058] sm:$0xf]
    %v6233 = vld [vmem:[%s1 + $0x1060] sm:$0xf]
    %v6234 = vld [vmem:[%s1 + $0x1068] sm:$0xf]
    %v6235 = vld [vmem:[%s1 + $0x1070] sm:$0xf]
    %v6236 = vld [vmem:[%s1 + $0x1078] sm:$0xf]
    %v6237 = vld [vmem:[%s1 + $0x1080] sm:$0xf]
    %v6238 = vld [vmem:[%s1 + $0x1088] sm:$0xf]
    %v6239 = vld [vmem:[%s1 + $0x1090] sm:$0xf]
    %v6240 = vld [vmem:[%s1 + $0x1098] sm:$0xf]
    %v6241 = vld [vmem:[%s1 + $0x10a0] sm:$0xf]
    %v6242 = vld [vmem:[%s1 + $0x10a8] sm:$0xf]
    %v6243 = vld [vmem:[%s1 + $0x10b0] sm:$0xf]
    %v6244 = vld [vmem:[%s1 + $0x10b8] sm:$0xf]
    %v6245 = vpack.c.bf16 %v6208, %v6208
    %v6246 = vpack.c.bf16 %v6209, %v6209
    %v6279 = vunpack.c.l.b16 %v6213
    %v6280 = vunpack.c.l.b16 %v6214
    %v6281 = vunpack.c.l.b16 %v6215
    %v6282 = vunpack.c.l.b16 %v6216
    %v6283 = vunpack.c.l.b16 %v6217
    %v6284 = vunpack.c.l.b16 %v6218
    %v6285 = vunpack.c.l.b16 %v6219
    %v6286 = vunpack.c.l.b16 %v6220
    %v6287 = vunpack.c.l.b16 %v6221
    %v6288 = vunpack.c.l.b16 %v6222
    %v6289 = vunpack.c.l.b16 %v6223
    %v6290 = vunpack.c.l.b16 %v6224
    %v6291 = vunpack.c.l.b16 %v6225
    %v6292 = vunpack.c.l.b16 %v6226
    %v6293 = vunpack.c.l.b16 %v6227
    %v6294 = vunpack.c.l.b16 %v6228
    %v6295 = vunpack.c.l.b16 %v6229
    %v6296 = vunpack.c.l.b16 %v6230
    %v6297 = vunpack.c.l.b16 %v6231
    %v6298 = vunpack.c.l.b16 %v6232
    %v6299 = vunpack.c.l.b16 %v6233
    %v6300 = vunpack.c.l.b16 %v6234
    %v6301 = vunpack.c.l.b16 %v6235
    %v6302 = vunpack.c.l.b16 %v6236
    %v6303 = vunpack.c.l.b16 %v6237
    %v6304 = vunpack.c.l.b16 %v6238
    %v6305 = vunpack.c.l.b16 %v6239
    %v6306 = vunpack.c.l.b16 %v6240
    %v6307 = vunpack.c.l.b16 %v6241
    %v6308 = vunpack.c.l.b16 %v6242
    %v6309 = vunpack.c.l.b16 %v6243
    %v6310 = vunpack.c.l.b16 %v6244
    %v6311 = vpack.c.b16 %v6280, %v6279
    %v6312 = vpack.c.b16 %v6282, %v6281
    %v6313 = vpack.c.b16 %v6284, %v6283
    %v6314 = vpack.c.b16 %v6286, %v6285
    %v6315 = vpack.c.b16 %v6288, %v6287
    %v6316 = vpack.c.b16 %v6290, %v6289
    %v6317 = vpack.c.b16 %v6292, %v6291
    %v6318 = vpack.c.b16 %v6294, %v6293
    %v6319 = vpack.c.b16 %v6296, %v6295
    %v6320 = vpack.c.b16 %v6298, %v6297
    %v6321 = vpack.c.b16 %v6300, %v6299
    %v6322 = vpack.c.b16 %v6302, %v6301
    %v6323 = vpack.c.b16 %v6304, %v6303
    %v6324 = vpack.c.b16 %v6306, %v6305
    %v6325 = vpack.c.b16 %v6308, %v6307
    %v6326 = vpack.c.b16 %v6310, %v6309
    %6343 = vmatprep.subr.bf16.mxu0 0
    %6344 = vmatpush1.bf16.msra.mxu0 %v6311
    %6345 = vmatprep.subr.bf16.mxu0 0
    %6346 = vmatpush1.bf16.msra.mxu0 %v6312
    %6347 = vmatprep.subr.bf16.mxu0 0
    %6348 = vmatpush1.bf16.msra.mxu0 %v6313
    %6349 = vmatprep.subr.bf16.mxu0 0
    %6350 = vmatpush1.bf16.msra.mxu0 %v6314
    %6351 = vmatprep.subr.bf16.mxu0 0
    %6352 = vmatpush1.bf16.msra.mxu0 %v6315
    %6353 = vmatprep.subr.bf16.mxu0 0
    %6354 = vmatpush1.bf16.msra.mxu0 %v6316
    %6355 = vmatprep.subr.bf16.mxu0 0
    %6356 = vmatpush1.bf16.msra.mxu0 %v6317
    %6357 = vmatprep.subr.bf16.mxu0 0
    %6358 = vmatpush1.bf16.msra.mxu0 %v6318
    %6359 = vmatprep.subr.bf16.mxu0 0
    %6360 = vmatpush1.bf16.msra.mxu0 %v6319
    %6361 = vmatprep.subr.bf16.mxu0 0
    %6362 = vmatpush1.bf16.msra.mxu0 %v6320
    %6363 = vmatprep.subr.bf16.mxu0 0
    %6364 = vmatpush1.bf16.msra.mxu0 %v6321
    %6365 = vmatprep.subr.bf16.mxu0 0
    %6366 = vmatpush1.bf16.msra.mxu0 %v6322
    %6367 = vmatprep.subr.bf16.mxu0 0
    %6368 = vmatpush1.bf16.msra.mxu0 %v6323
    %6369 = vmatprep.subr.bf16.mxu0 0
    %6370 = vmatpush1.bf16.msra.mxu0 %v6324
    %6371 = vmatprep.subr.bf16.mxu0 0
    %6372 = vmatpush1.bf16.msra.mxu0 %v6325
    %6373 = vmatprep.subr.bf16.mxu0 0
    %6374 = vmatpush1.bf16.msra.mxu0 %v6326
    %6375 = vmatprep.mubr.bf16.mxu0 %v6246
    %6376 = vmatmul.mubr.bf16.gmra.mrb[0].mxu0 %v6245
    %v6377 = vpop.f32.mrb[0].mxu0
    %v6378 = vadd.f32 0.0, %v6377
    %v6379 = vpop.f32.mrb[0].mxu0
    %v6380 = vpop.f32.mrb[0].mxu0
    %v6381 = vpop.f32.mrb[0].mxu0
    %6382 = vdwg.mxu0
    %v6383 = vadd.f32 %v6212, %v6378
    %v6384 = vld [vmem:[%s1 + $0x10c0] sm:$0xf]
    %v6385 = vld [vmem:[%s1 + $0x10c8] sm:$0xf]
    %v6386 = vld [vmem:[%s1 + $0x10d0] sm:$0xf]
    %v6387 = vld [vmem:[%s1 + $0x10d8] sm:$0xf]
    %v6388 = vld [vmem:[%s1 + $0x10e0] sm:$0xf]
    %v6389 = vld [vmem:[%s1 + $0x10e8] sm:$0xf]
    %v6390 = vld [vmem:[%s1 + $0x10f0] sm:$0xf]
    %v6391 = vld [vmem:[%s1 + $0x10f8] sm:$0xf]
    %v6392 = vld [vmem:[%s1 + $0x1100] sm:$0xf]
    %v6393 = vld [vmem:[%s1 + $0x1108] sm:$0xf]
    %v6394 = vld [vmem:[%s1 + $0x1110] sm:$0xf]
    %v6395 = vld [vmem:[%s1 + $0x1118] sm:$0xf]
    %v6396 = vld [vmem:[%s1 + $0x1120] sm:$0xf]
    %v6397 = vld [vmem:[%s1 + $0x1128] sm:$0xf]
    %v6398 = vld [vmem:[%s1 + $0x1130] sm:$0xf]
    %v6399 = vld [vmem:[%s1 + $0x1138] sm:$0xf]
    %v6400 = vld [vmem:[%s1 + $0x1140] sm:$0xf]
    %v6401 = vld [vmem:[%s1 + $0x1148] sm:$0xf]
    %v6402 = vld [vmem:[%s1 + $0x1150] sm:$0xf]
    %v6403 = vld [vmem:[%s1 + $0x1158] sm:$0xf]
    %v6404 = vld [vmem:[%s1 + $0x1160] sm:$0xf]
    %v6405 = vld [vmem:[%s1 + $0x1168] sm:$0xf]
    %v6406 = vld [vmem:[%s1 + $0x1170] sm:$0xf]
    %v6407 = vld [vmem:[%s1 + $0x1178] sm:$0xf]
    %v6408 = vld [vmem:[%s1 + $0x1180] sm:$0xf]
    %v6409 = vld [vmem:[%s1 + $0x1188] sm:$0xf]
    %v6410 = vld [vmem:[%s1 + $0x1190] sm:$0xf]
    %v6411 = vld [vmem:[%s1 + $0x1198] sm:$0xf]
    %v6412 = vld [vmem:[%s1 + $0x11a0] sm:$0xf]
    %v6413 = vld [vmem:[%s1 + $0x11a8] sm:$0xf]
    %v6414 = vld [vmem:[%s1 + $0x11b0] sm:$0xf]
    %v6415 = vld [vmem:[%s1 + $0x11b8] sm:$0xf]
    %v6418 = vrot.slane %v6245, 1
    %v6419 = vrot.slane %v6246, 1
    %v6454 = vunpack.c.l.b16 %v6384
    %v6455 = vunpack.c.l.b16 %v6385
    %v6456 = vunpack.c.l.b16 %v6386
    %v6457 = vunpack.c.l.b16 %v6387
    %v6458 = vunpack.c.l.b16 %v6388
    %v6459 = vunpack.c.l.b16 %v6389
    %v6460 = vunpack.c.l.b16 %v6390
    %v6461 = vunpack.c.l.b16 %v6391
    %v6462 = vunpack.c.l.b16 %v6392
    %v6463 = vunpack.c.l.b16 %v6393
    %v6464 = vunpack.c.l.b16 %v6394
    %v6465 = vunpack.c.l.b16 %v6395
    %v6466 = vunpack.c.l.b16 %v6396
    %v6467 = vunpack.c.l.b16 %v6397
    %v6468 = vunpack.c.l.b16 %v6398
    %v6469 = vunpack.c.l.b16 %v6399
    %v6470 = vunpack.c.l.b16 %v6400
    %v6471 = vunpack.c.l.b16 %v6401
    %v6472 = vunpack.c.l.b16 %v6402
    %v6473 = vunpack.c.l.b16 %v6403
    %v6474 = vunpack.c.l.b16 %v6404
    %v6475 = vunpack.c.l.b16 %v6405
    %v6476 = vunpack.c.l.b16 %v6406
    %v6477 = vunpack.c.l.b16 %v6407
    %v6478 = vunpack.c.l.b16 %v6408
    %v6479 = vunpack.c.l.b16 %v6409
    %v6480 = vunpack.c.l.b16 %v6410
    %v6481 = vunpack.c.l.b16 %v6411
    %v6482 = vunpack.c.l.b16 %v6412
    %v6483 = vunpack.c.l.b16 %v6413
    %v6484 = vunpack.c.l.b16 %v6414
    %v6485 = vunpack.c.l.b16 %v6415
    %v6486 = vpack.c.b16 %v6455, %v6454
    %v6487 = vpack.c.b16 %v6457, %v6456
    %v6488 = vpack.c.b16 %v6459, %v6458
    %v6489 = vpack.c.b16 %v6461, %v6460
    %v6490 = vpack.c.b16 %v6463, %v6462
    %v6491 = vpack.c.b16 %v6465, %v6464
    %v6492 = vpack.c.b16 %v6467, %v6466
    %v6493 = vpack.c.b16 %v6469, %v6468
    %v6494 = vpack.c.b16 %v6471, %v6470
    %v6495 = vpack.c.b16 %v6473, %v6472
    %v6496 = vpack.c.b16 %v6475, %v6474
    %v6497 = vpack.c.b16 %v6477, %v6476
    %v6498 = vpack.c.b16 %v6479, %v6478
    %v6499 = vpack.c.b16 %v6481, %v6480
    %v6500 = vpack.c.b16 %v6483, %v6482
    %v6501 = vpack.c.b16 %v6485, %v6484
    %6518 = vmatprep.subr.bf16.mxu0 0
    %6519 = vmatpush1.bf16.msra.mxu0 %v6486
    %6520 = vmatprep.subr.bf16.mxu0 0
    %6521 = vmatpush1.bf16.msra.mxu0 %v6487
    %6522 = vmatprep.subr.bf16.mxu0 0
    %6523 = vmatpush1.bf16.msra.mxu0 %v6488
    %6524 = vmatprep.subr.bf16.mxu0 0
    %6525 = vmatpush1.bf16.msra.mxu0 %v6489
    %6526 = vmatprep.subr.bf16.mxu0 0
    %6527 = vmatpush1.bf16.msra.mxu0 %v6490
    %6528 = vmatprep.subr.bf16.mxu0 0
    %6529 = vmatpush1.bf16.msra.mxu0 %v6491
    %6530 = vmatprep.subr.bf16.mxu0 0
    %6531 = vmatpush1.bf16.msra.mxu0 %v6492
    %6532 = vmatprep.subr.bf16.mxu0 0
    %6533 = vmatpush1.bf16.msra.mxu0 %v6493
    %6534 = vmatprep.subr.bf16.mxu0 0
    %6535 = vmatpush1.bf16.msra.mxu0 %v6494
    %6536 = vmatprep.subr.bf16.mxu0 0
    %6537 = vmatpush1.bf16.msra.mxu0 %v6495
    %6538 = vmatprep.subr.bf16.mxu0 0
    %6539 = vmatpush1.bf16.msra.mxu0 %v6496
    %6540 = vmatprep.subr.bf16.mxu0 0
    %6541 = vmatpush1.bf16.msra.mxu0 %v6497
    %6542 = vmatprep.subr.bf16.mxu0 0
    %6543 = vmatpush1.bf16.msra.mxu0 %v6498
    %6544 = vmatprep.subr.bf16.mxu0 0
    %6545 = vmatpush1.bf16.msra.mxu0 %v6499
    %6546 = vmatprep.subr.bf16.mxu0 0
    %6547 = vmatpush1.bf16.msra.mxu0 %v6500
    %6548 = vmatprep.subr.bf16.mxu0 0
    %6549 = vmatpush1.bf16.msra.mxu0 %v6501
    %6550 = vmatprep.mubr.bf16.mxu0 %v6419
    %6551 = vmatmul.mubr.bf16.gmra.mrb[0].mxu0 %v6418
    %v6552 = vpop.f32.mrb[0].mxu0
    %v6553 = vadd.f32 0.0, %v6552
    %v6554 = vpop.f32.mrb[0].mxu0
    %v6555 = vpop.f32.mrb[0].mxu0
    %v6556 = vpop.f32.mrb[0].mxu0
    %6557 = vdwg.mxu0
    %v6558 = vadd.f32 %v6383, %v6553
    %v6559 = vld [vmem:[%s1 + $0x11c0] sm:$0xf]
    %v6560 = vld [vmem:[%s1 + $0x11c8] sm:$0xf]
    %v6561 = vld [vmem:[%s1 + $0x11d0] sm:$0xf]
    %v6562 = vld [vmem:[%s1 + $0x11d8] sm:$0xf]
    %v6563 = vld [vmem:[%s1 + $0x11e0] sm:$0xf]
    %v6564 = vld [vmem:[%s1 + $0x11e8] sm:$0xf]
    %v6565 = vld [vmem:[%s1 + $0x11f0] sm:$0xf]
    %v6566 = vld [vmem:[%s1 + $0x11f8] sm:$0xf]
    %v6567 = vld [vmem:[%s1 + $0x1200] sm:$0xf]
    %v6568 = vld [vmem:[%s1 + $0x1208] sm:$0xf]
    %v6569 = vld [vmem:[%s1 + $0x1210] sm:$0xf]
    %v6570 = vld [vmem:[%s1 + $0x1218] sm:$0xf]
    %v6571 = vld [vmem:[%s1 + $0x1220] sm:$0xf]
    %v6572 = vld [vmem:[%s1 + $0x1228] sm:$0xf]
    %v6573 = vld [vmem:[%s1 + $0x1230] sm:$0xf]
    %v6574 = vld [vmem:[%s1 + $0x1238] sm:$0xf]
    %v6575 = vld [vmem:[%s1 + $0x1240] sm:$0xf]
    %v6576 = vld [vmem:[%s1 + $0x1248] sm:$0xf]
    %v6577 = vld [vmem:[%s1 + $0x1250] sm:$0xf]
    %v6578 = vld [vmem:[%s1 + $0x1258] sm:$0xf]
    %v6579 = vld [vmem:[%s1 + $0x1260] sm:$0xf]
    %v6580 = vld [vmem:[%s1 + $0x1268] sm:$0xf]
    %v6581 = vld [vmem:[%s1 + $0x1270] sm:$0xf]
    %v6582 = vld [vmem:[%s1 + $0x1278] sm:$0xf]
    %v6583 = vld [vmem:[%s1 + $0x1280] sm:$0xf]
    %v6584 = vld [vmem:[%s1 + $0x1288] sm:$0xf]
    %v6585 = vld [vmem:[%s1 + $0x1290] sm:$0xf]
    %v6586 = vld [vmem:[%s1 + $0x1298] sm:$0xf]
    %v6587 = vld [vmem:[%s1 + $0x12a0] sm:$0xf]
    %v6588 = vld [vmem:[%s1 + $0x12a8] sm:$0xf]
    %v6589 = vld [vmem:[%s1 + $0x12b0] sm:$0xf]
    %v6590 = vld [vmem:[%s1 + $0x12b8] sm:$0xf]
    %v6591 = vrot.slane %v6245, 2
    %v6592 = vrot.slane %v6246, 2
    %v6627 = vunpack.c.l.b16 %v6559
    %v6628 = vunpack.c.l.b16 %v6560
    %v6629 = vunpack.c.l.b16 %v6561
    %v6630 = vunpack.c.l.b16 %v6562
    %v6631 = vunpack.c.l.b16 %v6563
    %v6632 = vunpack.c.l.b16 %v6564
    %v6633 = vunpack.c.l.b16 %v6565
    %v6634 = vunpack.c.l.b16 %v6566
    %v6635 = vunpack.c.l.b16 %v6567
    %v6636 = vunpack.c.l.b16 %v6568
    %v6637 = vunpack.c.l.b16 %v6569
    %v6638 = vunpack.c.l.b16 %v6570
    %v6639 = vunpack.c.l.b16 %v6571
    %v6640 = vunpack.c.l.b16 %v6572
    %v6641 = vunpack.c.l.b16 %v6573
    %v6642 = vunpack.c.l.b16 %v6574
    %v6643 = vunpack.c.l.b16 %v6575
    %v6644 = vunpack.c.l.b16 %v6576
    %v6645 = vunpack.c.l.b16 %v6577
    %v6646 = vunpack.c.l.b16 %v6578
    %v6647 = vunpack.c.l.b16 %v6579
    %v6648 = vunpack.c.l.b16 %v6580
    %v6649 = vunpack.c.l.b16 %v6581
    %v6650 = vunpack.c.l.b16 %v6582
    %v6651 = vunpack.c.l.b16 %v6583
    %v6652 = vunpack.c.l.b16 %v6584
    %v6653 = vunpack.c.l.b16 %v6585
    %v6654 = vunpack.c.l.b16 %v6586
    %v6655 = vunpack.c.l.b16 %v6587
    %v6656 = vunpack.c.l.b16 %v6588
    %v6657 = vunpack.c.l.b16 %v6589
    %v6658 = vunpack.c.l.b16 %v6590
    %v6659 = vpack.c.b16 %v6628, %v6627
    %v6660 = vpack.c.b16 %v6630, %v6629
    %v6661 = vpack.c.b16 %v6632, %v6631
    %v6662 = vpack.c.b16 %v6634, %v6633
    %v6663 = vpack.c.b16 %v6636, %v6635
    %v6664 = vpack.c.b16 %v6638, %v6637
    %v6665 = vpack.c.b16 %v6640, %v6639
    %v6666 = vpack.c.b16 %v6642, %v6641
    %v6667 = vpack.c.b16 %v6644, %v6643
    %v6668 = vpack.c.b16 %v6646, %v6645
    %v6669 = vpack.c.b16 %v6648, %v6647
    %v6670 = vpack.c.b16 %v6650, %v6649
    %v6671 = vpack.c.b16 %v6652, %v6651
    %v6672 = vpack.c.b16 %v6654, %v6653
    %v6673 = vpack.c.b16 %v6656, %v6655
    %v6674 = vpack.c.b16 %v6658, %v6657
    %6691 = vmatprep.subr.bf16.mxu0 0
    %6692 = vmatpush1.bf16.msra.mxu0 %v6659
    %6693 = vmatprep.subr.bf16.mxu0 0
    %6694 = vmatpush1.bf16.msra.mxu0 %v6660
    %6695 = vmatprep.subr.bf16.mxu0 0
    %6696 = vmatpush1.bf16.msra.mxu0 %v6661
    %6697 = vmatprep.subr.bf16.mxu0 0
    %6698 = vmatpush1.bf16.msra.mxu0 %v6662
    %6699 = vmatprep.subr.bf16.mxu0 0
    %6700 = vmatpush1.bf16.msra.mxu0 %v6663
    %6701 = vmatprep.subr.bf16.mxu0 0
    %6702 = vmatpush1.bf16.msra.mxu0 %v6664
    %6703 = vmatprep.subr.bf16.mxu0 0
    %6704 = vmatpush1.bf16.msra.mxu0 %v6665
    %6705 = vmatprep.subr.bf16.mxu0 0
    %6706 = vmatpush1.bf16.msra.mxu0 %v6666
    %6707 = vmatprep.subr.bf16.mxu0 0
    %6708 = vmatpush1.bf16.msra.mxu0 %v6667
    %6709 = vmatprep.subr.bf16.mxu0 0
    %6710 = vmatpush1.bf16.msra.mxu0 %v6668
    %6711 = vmatprep.subr.bf16.mxu0 0
    %6712 = vmatpush1.bf16.msra.mxu0 %v6669
    %6713 = vmatprep.subr.bf16.mxu0 0
    %6714 = vmatpush1.bf16.msra.mxu0 %v6670
    %6715 = vmatprep.subr.bf16.mxu0 0
    %6716 = vmatpush1.bf16.msra.mxu0 %v6671
    %6717 = vmatprep.subr.bf16.mxu0 0
    %6718 = vmatpush1.bf16.msra.mxu0 %v6672
    %6719 = vmatprep.subr.bf16.mxu0 0
    %6720 = vmatpush1.bf16.msra.mxu0 %v6673
    %6721 = vmatprep.subr.bf16.mxu0 0
    %6722 = vmatpush1.bf16.msra.mxu0 %v6674
    %6723 = vmatprep.mubr.bf16.mxu0 %v6592
    %6724 = vmatmul.mubr.bf16.gmra.mrb[0].mxu0 %v6591
    %v6725 = vpop.f32.mrb[0].mxu0
    %v6726 = vadd.f32 0.0, %v6725
    %v6727 = vpop.f32.mrb[0].mxu0
    %v6728 = vpop.f32.mrb[0].mxu0
    %v6729 = vpop.f32.mrb[0].mxu0
    %6730 = vdwg.mxu0
    %v6731 = vadd.f32 %v6558, %v6726
    %v6732 = vld [vmem:[%s1 + $0x12c0] sm:$0xf]
    %v6733 = vld [vmem:[%s1 + $0x12c8] sm:$0xf]
    %v6734 = vld [vmem:[%s1 + $0x12d0] sm:$0xf]
    %v6735 = vld [vmem:[%s1 + $0x12d8] sm:$0xf]
    %v6736 = vld [vmem:[%s1 + $0x12e0] sm:$0xf]
    %v6737 = vld [vmem:[%s1 + $0x12e8] sm:$0xf]
    %v6738 = vld [vmem:[%s1 + $0x12f0] sm:$0xf]
    %v6739 = vld [vmem:[%s1 + $0x12f8] sm:$0xf]
    %v6740 = vld [vmem:[%s1 + $0x1300] sm:$0xf]
    %v6741 = vld [vmem:[%s1 + $0x1308] sm:$0xf]
    %v6742 = vld [vmem:[%s1 + $0x1310] sm:$0xf]
    %v6743 = vld [vmem:[%s1 + $0x1318] sm:$0xf]
    %v6744 = vld [vmem:[%s1 + $0x1320] sm:$0xf]
    %v6745 = vld [vmem:[%s1 + $0x1328] sm:$0xf]
    %v6746 = vld [vmem:[%s1 + $0x1330] sm:$0xf]
    %v6747 = vld [vmem:[%s1 + $0x1338] sm:$0xf]
    %v6748 = vld [vmem:[%s1 + $0x1340] sm:$0xf]
    %v6749 = vld [vmem:[%s1 + $0x1348] sm:$0xf]
    %v6750 = vld [vmem:[%s1 + $0x1350] sm:$0xf]
    %v6751 = vld [vmem:[%s1 + $0x1358] sm:$0xf]
    %v6752 = vld [vmem:[%s1 + $0x1360] sm:$0xf]
    %v6753 = vld [vmem:[%s1 + $0x1368] sm:$0xf]
    %v6754 = vld [vmem:[%s1 + $0x1370] sm:$0xf]
    %v6755 = vld [vmem:[%s1 + $0x1378] sm:$0xf]
    %v6756 = vld [vmem:[%s1 + $0x1380] sm:$0xf]
    %v6757 = vld [vmem:[%s1 + $0x1388] sm:$0xf]
    %v6758 = vld [vmem:[%s1 + $0x1390] sm:$0xf]
    %v6759 = vld [vmem:[%s1 + $0x1398] sm:$0xf]
    %v6760 = vld [vmem:[%s1 + $0x13a0] sm:$0xf]
    %v6761 = vld [vmem:[%s1 + $0x13a8] sm:$0xf]
    %v6762 = vld [vmem:[%s1 + $0x13b0] sm:$0xf]
    %v6763 = vld [vmem:[%s1 + $0x13b8] sm:$0xf]
    %v6764 = vrot.slane %v6245, 3
    %v6765 = vrot.slane %v6246, 3
    %v6800 = vunpack.c.l.b16 %v6732
    %v6801 = vunpack.c.l.b16 %v6733
    %v6802 = vunpack.c.l.b16 %v6734
    %v6803 = vunpack.c.l.b16 %v6735
    %v6804 = vunpack.c.l.b16 %v6736
    %v6805 = vunpack.c.l.b16 %v6737
    %v6806 = vunpack.c.l.b16 %v6738
    %v6807 = vunpack.c.l.b16 %v6739
    %v6808 = vunpack.c.l.b16 %v6740
    %v6809 = vunpack.c.l.b16 %v6741
    %v6810 = vunpack.c.l.b16 %v6742
    %v6811 = vunpack.c.l.b16 %v6743
    %v6812 = vunpack.c.l.b16 %v6744
    %v6813 = vunpack.c.l.b16 %v6745
    %v6814 = vunpack.c.l.b16 %v6746
    %v6815 = vunpack.c.l.b16 %v6747
    %v6816 = vunpack.c.l.b16 %v6748
    %v6817 = vunpack.c.l.b16 %v6749
    %v6818 = vunpack.c.l.b16 %v6750
    %v6819 = vunpack.c.l.b16 %v6751
    %v6820 = vunpack.c.l.b16 %v6752
    %v6821 = vunpack.c.l.b16 %v6753
    %v6822 = vunpack.c.l.b16 %v6754
    %v6823 = vunpack.c.l.b16 %v6755
    %v6824 = vunpack.c.l.b16 %v6756
    %v6825 = vunpack.c.l.b16 %v6757
    %v6826 = vunpack.c.l.b16 %v6758
    %v6827 = vunpack.c.l.b16 %v6759
    %v6828 = vunpack.c.l.b16 %v6760
    %v6829 = vunpack.c.l.b16 %v6761
    %v6830 = vunpack.c.l.b16 %v6762
    %v6831 = vunpack.c.l.b16 %v6763
    %v6832 = vpack.c.b16 %v6801, %v6800
    %v6833 = vpack.c.b16 %v6803, %v6802
    %v6834 = vpack.c.b16 %v6805, %v6804
    %v6835 = vpack.c.b16 %v6807, %v6806
    %v6836 = vpack.c.b16 %v6809, %v6808
    %v6837 = vpack.c.b16 %v6811, %v6810
    %v6838 = vpack.c.b16 %v6813, %v6812
    %v6839 = vpack.c.b16 %v6815, %v6814
    %v6840 = vpack.c.b16 %v6817, %v6816
    %v6841 = vpack.c.b16 %v6819, %v6818
    %v6842 = vpack.c.b16 %v6821, %v6820
    %v6843 = vpack.c.b16 %v6823, %v6822
    %v6844 = vpack.c.b16 %v6825, %v6824
    %v6845 = vpack.c.b16 %v6827, %v6826
    %v6846 = vpack.c.b16 %v6829, %v6828
    %v6847 = vpack.c.b16 %v6831, %v6830
    %6864 = vmatprep.subr.bf16.mxu0 0
    %6865 = vmatpush1.bf16.msra.mxu0 %v6832
    %6866 = vmatprep.subr.bf16.mxu0 0
    %6867 = vmatpush1.bf16.msra.mxu0 %v6833
    %6868 = vmatprep.subr.bf16.mxu0 0
    %6869 = vmatpush1.bf16.msra.mxu0 %v6834
    %6870 = vmatprep.subr.bf16.mxu0 0
    %6871 = vmatpush1.bf16.msra.mxu0 %v6835
    %6872 = vmatprep.subr.bf16.mxu0 0
    %6873 = vmatpush1.bf16.msra.mxu0 %v6836
    %6874 = vmatprep.subr.bf16.mxu0 0
    %6875 = vmatpush1.bf16.msra.mxu0 %v6837
    %6876 = vmatprep.subr.bf16.mxu0 0
    %6877 = vmatpush1.bf16.msra.mxu0 %v6838
    %6878 = vmatprep.subr.bf16.mxu0 0
    %6879 = vmatpush1.bf16.msra.mxu0 %v6839
    %6880 = vmatprep.subr.bf16.mxu0 0
    %6881 = vmatpush1.bf16.msra.mxu0 %v6840
    %6882 = vmatprep.subr.bf16.mxu0 0
    %6883 = vmatpush1.bf16.msra.mxu0 %v6841
    %6884 = vmatprep.subr.bf16.mxu0 0
    %6885 = vmatpush1.bf16.msra.mxu0 %v6842
    %6886 = vmatprep.subr.bf16.mxu0 0
    %6887 = vmatpush1.bf16.msra.mxu0 %v6843
    %6888 = vmatprep.subr.bf16.mxu0 0
    %6889 = vmatpush1.bf16.msra.mxu0 %v6844
    %6890 = vmatprep.subr.bf16.mxu0 0
    %6891 = vmatpush1.bf16.msra.mxu0 %v6845
    %6892 = vmatprep.subr.bf16.mxu0 0
    %6893 = vmatpush1.bf16.msra.mxu0 %v6846
    %6894 = vmatprep.subr.bf16.mxu0 0
    %6895 = vmatpush1.bf16.msra.mxu0 %v6847
    %6896 = vmatprep.mubr.bf16.mxu0 %v6765
    %6897 = vmatmul.mubr.bf16.gmra.mrb[0].mxu0 %v6764
    %v6898 = vpop.f32.mrb[0].mxu0
    %v6899 = vadd.f32 0.0, %v6898
    %v6900 = vpop.f32.mrb[0].mxu0
    %v6901 = vpop.f32.mrb[0].mxu0
    %v6902 = vpop.f32.mrb[0].mxu0
    %6903 = vdwg.mxu0
    %v6904 = vadd.f32 %v6731, %v6899
    %v6905 = vld [vmem:[%s1 + $0x13c0] sm:$0xf]
    %v6906 = vld [vmem:[%s1 + $0x13c8] sm:$0xf]
    %v6907 = vld [vmem:[%s1 + $0x13d0] sm:$0xf]
    %v6908 = vld [vmem:[%s1 + $0x13d8] sm:$0xf]
    %v6909 = vld [vmem:[%s1 + $0x13e0] sm:$0xf]
    %v6910 = vld [vmem:[%s1 + $0x13e8] sm:$0xf]
    %v6911 = vld [vmem:[%s1 + $0x13f0] sm:$0xf]
    %v6912 = vld [vmem:[%s1 + $0x13f8] sm:$0xf]
    %v6913 = vld [vmem:[%s1 + $0x1400] sm:$0xf]
    %v6914 = vld [vmem:[%s1 + $0x1408] sm:$0xf]
    %v6915 = vld [vmem:[%s1 + $0x1410] sm:$0xf]
    %v6916 = vld [vmem:[%s1 + $0x1418] sm:$0xf]
    %v6917 = vld [vmem:[%s1 + $0x1420] sm:$0xf]
    %v6918 = vld [vmem:[%s1 + $0x1428] sm:$0xf]
    %v6919 = vld [vmem:[%s1 + $0x1430] sm:$0xf]
    %v6920 = vld [vmem:[%s1 + $0x1438] sm:$0xf]
    %v6921 = vld [vmem:[%s1 + $0x1440] sm:$0xf]
    %v6922 = vld [vmem:[%s1 + $0x1448] sm:$0xf]
    %v6923 = vld [vmem:[%s1 + $0x1450] sm:$0xf]
    %v6924 = vld [vmem:[%s1 + $0x1458] sm:$0xf]
    %v6925 = vld [vmem:[%s1 + $0x1460] sm:$0xf]
    %v6926 = vld [vmem:[%s1 + $0x1468] sm:$0xf]
    %v6927 = vld [vmem:[%s1 + $0x1470] sm:$0xf]
    %v6928 = vld [vmem:[%s1 + $0x1478] sm:$0xf]
    %v6929 = vld [vmem:[%s1 + $0x1480] sm:$0xf]
    %v6930 = vld [vmem:[%s1 + $0x1488] sm:$0xf]
    %v6931 = vld [vmem:[%s1 + $0x1490] sm:$0xf]
    %v6932 = vld [vmem:[%s1 + $0x1498] sm:$0xf]
    %v6933 = vld [vmem:[%s1 + $0x14a0] sm:$0xf]
    %v6934 = vld [vmem:[%s1 + $0x14a8] sm:$0xf]
    %v6935 = vld [vmem:[%s1 + $0x14b0] sm:$0xf]
    %v6936 = vld [vmem:[%s1 + $0x14b8] sm:$0xf]
    %v6937 = vpack.c.bf16 %v6210, %v6210
    %v6938 = vpack.c.bf16 %v6211, %v6211
    %v6971 = vunpack.c.l.b16 %v6905
    %v6972 = vunpack.c.l.b16 %v6906
    %v6973 = vunpack.c.l.b16 %v6907
    %v6974 = vunpack.c.l.b16 %v6908
    %v6975 = vunpack.c.l.b16 %v6909
    %v6976 = vunpack.c.l.b16 %v6910
    %v6977 = vunpack.c.l.b16 %v6911
    %v6978 = vunpack.c.l.b16 %v6912
    %v6979 = vunpack.c.l.b16 %v6913
    %v6980 = vunpack.c.l.b16 %v6914
    %v6981 = vunpack.c.l.b16 %v6915
    %v6982 = vunpack.c.l.b16 %v6916
    %v6983 = vunpack.c.l.b16 %v6917
    %v6984 = vunpack.c.l.b16 %v6918
    %v6985 = vunpack.c.l.b16 %v6919
    %v6986 = vunpack.c.l.b16 %v6920
    %v6987 = vunpack.c.l.b16 %v6921
    %v6988 = vunpack.c.l.b16 %v6922
    %v6989 = vunpack.c.l.b16 %v6923
    %v6990 = vunpack.c.l.b16 %v6924
    %v6991 = vunpack.c.l.b16 %v6925
    %v6992 = vunpack.c.l.b16 %v6926
    %v6993 = vunpack.c.l.b16 %v6927
    %v6994 = vunpack.c.l.b16 %v6928
    %v6995 = vunpack.c.l.b16 %v6929
    %v6996 = vunpack.c.l.b16 %v6930
    %v6997 = vunpack.c.l.b16 %v6931
    %v6998 = vunpack.c.l.b16 %v6932
    %v6999 = vunpack.c.l.b16 %v6933
    %v7000 = vunpack.c.l.b16 %v6934
    %v7001 = vunpack.c.l.b16 %v6935
    %v7002 = vunpack.c.l.b16 %v6936
    %v7003 = vpack.c.b16 %v6972, %v6971
    %v7004 = vpack.c.b16 %v6974, %v6973
    %v7005 = vpack.c.b16 %v6976, %v6975
    %v7006 = vpack.c.b16 %v6978, %v6977
    %v7007 = vpack.c.b16 %v6980, %v6979
    %v7008 = vpack.c.b16 %v6982, %v6981
    %v7009 = vpack.c.b16 %v6984, %v6983
    %v7010 = vpack.c.b16 %v6986, %v6985
    %v7011 = vpack.c.b16 %v6988, %v6987
    %v7012 = vpack.c.b16 %v6990, %v6989
    %v7013 = vpack.c.b16 %v6992, %v6991
    %v7014 = vpack.c.b16 %v6994, %v6993
    %v7015 = vpack.c.b16 %v6996, %v6995
    %v7016 = vpack.c.b16 %v6998, %v6997
    %v7017 = vpack.c.b16 %v7000, %v6999
    %v7018 = vpack.c.b16 %v7002, %v7001
    %7035 = vmatprep.subr.bf16.mxu0 0
    %7036 = vmatpush1.bf16.msra.mxu0 %v7003
    %7037 = vmatprep.subr.bf16.mxu0 0
    %7038 = vmatpush1.bf16.msra.mxu0 %v7004
    %7039 = vmatprep.subr.bf16.mxu0 0
    %7040 = vmatpush1.bf16.msra.mxu0 %v7005
    %7041 = vmatprep.subr.bf16.mxu0 0
    %7042 = vmatpush1.bf16.msra.mxu0 %v7006
    %7043 = vmatprep.subr.bf16.mxu0 0
    %7044 = vmatpush1.bf16.msra.mxu0 %v7007
    %7045 = vmatprep.subr.bf16.mxu0 0
    %7046 = vmatpush1.bf16.msra.mxu0 %v7008
    %7047 = vmatprep.subr.bf16.mxu0 0
    %7048 = vmatpush1.bf16.msra.mxu0 %v7009
    %7049 = vmatprep.subr.bf16.mxu0 0
    %7050 = vmatpush1.bf16.msra.mxu0 %v7010
    %7051 = vmatprep.subr.bf16.mxu0 0
    %7052 = vmatpush1.bf16.msra.mxu0 %v7011
    %7053 = vmatprep.subr.bf16.mxu0 0
    %7054 = vmatpush1.bf16.msra.mxu0 %v7012
    %7055 = vmatprep.subr.bf16.mxu0 0
    %7056 = vmatpush1.bf16.msra.mxu0 %v7013
    %7057 = vmatprep.subr.bf16.mxu0 0
    %7058 = vmatpush1.bf16.msra.mxu0 %v7014
    %7059 = vmatprep.subr.bf16.mxu0 0
    %7060 = vmatpush1.bf16.msra.mxu0 %v7015
    %7061 = vmatprep.subr.bf16.mxu0 0
    %7062 = vmatpush1.bf16.msra.mxu0 %v7016
    %7063 = vmatprep.subr.bf16.mxu0 0
    %7064 = vmatpush1.bf16.msra.mxu0 %v7017
    %7065 = vmatprep.subr.bf16.mxu0 0
    %7066 = vmatpush1.bf16.msra.mxu0 %v7018
    %7067 = vmatprep.mubr.bf16.mxu0 %v6938
    %7068 = vmatmul.mubr.bf16.gmra.mrb[0].mxu0 %v6937
    %v7069 = vpop.f32.mrb[0].mxu0
    %v7070 = vadd.f32 0.0, %v7069
    %v7071 = vpop.f32.mrb[0].mxu0
    %v7072 = vpop.f32.mrb[0].mxu0
    %v7073 = vpop.f32.mrb[0].mxu0
    %7074 = vdwg.mxu0
    %v7075 = vadd.f32 %v6904, %v7070
    %v7076 = vld [vmem:[%s1 + $0x14c0] sm:$0xf]
    %v7077 = vld [vmem:[%s1 + $0x14c8] sm:$0xf]
    %v7078 = vld [vmem:[%s1 + $0x14d0] sm:$0xf]
    %v7079 = vld [vmem:[%s1 + $0x14d8] sm:$0xf]
    %v7080 = vld [vmem:[%s1 + $0x14e0] sm:$0xf]
    %v7081 = vld [vmem:[%s1 + $0x14e8] sm:$0xf]
    %v7082 = vld [vmem:[%s1 + $0x14f0] sm:$0xf]
    %v7083 = vld [vmem:[%s1 + $0x14f8] sm:$0xf]
    %v7084 = vld [vmem:[%s1 + $0x1500] sm:$0xf]
    %v7085 = vld [vmem:[%s1 + $0x1508] sm:$0xf]
    %v7086 = vld [vmem:[%s1 + $0x1510] sm:$0xf]
    %v7087 = vld [vmem:[%s1 + $0x1518] sm:$0xf]
    %v7088 = vld [vmem:[%s1 + $0x1520] sm:$0xf]
    %v7089 = vld [vmem:[%s1 + $0x1528] sm:$0xf]
    %v7090 = vld [vmem:[%s1 + $0x1530] sm:$0xf]
    %v7091 = vld [vmem:[%s1 + $0x1538] sm:$0xf]
    %v7092 = vld [vmem:[%s1 + $0x1540] sm:$0xf]
    %v7093 = vld [vmem:[%s1 + $0x1548] sm:$0xf]
    %v7094 = vld [vmem:[%s1 + $0x1550] sm:$0xf]
    %v7095 = vld [vmem:[%s1 + $0x1558] sm:$0xf]
    %v7096 = vld [vmem:[%s1 + $0x1560] sm:$0xf]
    %v7097 = vld [vmem:[%s1 + $0x1568] sm:$0xf]
    %v7098 = vld [vmem:[%s1 + $0x1570] sm:$0xf]
    %v7099 = vld [vmem:[%s1 + $0x1578] sm:$0xf]
    %v7100 = vld [vmem:[%s1 + $0x1580] sm:$0xf]
    %v7101 = vld [vmem:[%s1 + $0x1588] sm:$0xf]
    %v7102 = vld [vmem:[%s1 + $0x1590] sm:$0xf]
    %v7103 = vld [vmem:[%s1 + $0x1598] sm:$0xf]
    %v7104 = vld [vmem:[%s1 + $0x15a0] sm:$0xf]
    %v7105 = vld [vmem:[%s1 + $0x15a8] sm:$0xf]
    %v7106 = vld [vmem:[%s1 + $0x15b0] sm:$0xf]
    %v7107 = vld [vmem:[%s1 + $0x15b8] sm:$0xf]
    %v7110 = vrot.slane %v6937, 1
    %v7111 = vrot.slane %v6938, 1
    %v7146 = vunpack.c.l.b16 %v7076
    %v7147 = vunpack.c.l.b16 %v7077
    %v7148 = vunpack.c.l.b16 %v7078
    %v7149 = vunpack.c.l.b16 %v7079
    %v7150 = vunpack.c.l.b16 %v7080
    %v7151 = vunpack.c.l.b16 %v7081
    %v7152 = vunpack.c.l.b16 %v7082
    %v7153 = vunpack.c.l.b16 %v7083
    %v7154 = vunpack.c.l.b16 %v7084
    %v7155 = vunpack.c.l.b16 %v7085
    %v7156 = vunpack.c.l.b16 %v7086
    %v7157 = vunpack.c.l.b16 %v7087
    %v7158 = vunpack.c.l.b16 %v7088
    %v7159 = vunpack.c.l.b16 %v7089
    %v7160 = vunpack.c.l.b16 %v7090
    %v7161 = vunpack.c.l.b16 %v7091
    %v7162 = vunpack.c.l.b16 %v7092
    %v7163 = vunpack.c.l.b16 %v7093
    %v7164 = vunpack.c.l.b16 %v7094
    %v7165 = vunpack.c.l.b16 %v7095
    %v7166 = vunpack.c.l.b16 %v7096
    %v7167 = vunpack.c.l.b16 %v7097
    %v7168 = vunpack.c.l.b16 %v7098
    %v7169 = vunpack.c.l.b16 %v7099
    %v7170 = vunpack.c.l.b16 %v7100
    %v7171 = vunpack.c.l.b16 %v7101
    %v7172 = vunpack.c.l.b16 %v7102
    %v7173 = vunpack.c.l.b16 %v7103
    %v7174 = vunpack.c.l.b16 %v7104
    %v7175 = vunpack.c.l.b16 %v7105
    %v7176 = vunpack.c.l.b16 %v7106
    %v7177 = vunpack.c.l.b16 %v7107
    %v7178 = vpack.c.b16 %v7147, %v7146
    %v7179 = vpack.c.b16 %v7149, %v7148
    %v7180 = vpack.c.b16 %v7151, %v7150
    %v7181 = vpack.c.b16 %v7153, %v7152
    %v7182 = vpack.c.b16 %v7155, %v7154
    %v7183 = vpack.c.b16 %v7157, %v7156
    %v7184 = vpack.c.b16 %v7159, %v7158
    %v7185 = vpack.c.b16 %v7161, %v7160
    %v7186 = vpack.c.b16 %v7163, %v7162
    %v7187 = vpack.c.b16 %v7165, %v7164
    %v7188 = vpack.c.b16 %v7167, %v7166
    %v7189 = vpack.c.b16 %v7169, %v7168
    %v7190 = vpack.c.b16 %v7171, %v7170
    %v7191 = vpack.c.b16 %v7173, %v7172
    %v7192 = vpack.c.b16 %v7175, %v7174
    %v7193 = vpack.c.b16 %v7177, %v7176
    %7210 = vmatprep.subr.bf16.mxu0 0
    %7211 = vmatpush1.bf16.msra.mxu0 %v7178
    %7212 = vmatprep.subr.bf16.mxu0 0
    %7213 = vmatpush1.bf16.msra.mxu0 %v7179
    %7214 = vmatprep.subr.bf16.mxu0 0
    %7215 = vmatpush1.bf16.msra.mxu0 %v7180
    %7216 = vmatprep.subr.bf16.mxu0 0
    %7217 = vmatpush1.bf16.msra.mxu0 %v7181
    %7218 = vmatprep.subr.bf16.mxu0 0
    %7219 = vmatpush1.bf16.msra.mxu0 %v7182
    %7220 = vmatprep.subr.bf16.mxu0 0
    %7221 = vmatpush1.bf16.msra.mxu0 %v7183
    %7222 = vmatprep.subr.bf16.mxu0 0
    %7223 = vmatpush1.bf16.msra.mxu0 %v7184
    %7224 = vmatprep.subr.bf16.mxu0 0
    %7225 = vmatpush1.bf16.msra.mxu0 %v7185
    %7226 = vmatprep.subr.bf16.mxu0 0
    %7227 = vmatpush1.bf16.msra.mxu0 %v7186
    %7228 = vmatprep.subr.bf16.mxu0 0
    %7229 = vmatpush1.bf16.msra.mxu0 %v7187
    %7230 = vmatprep.subr.bf16.mxu0 0
    %7231 = vmatpush1.bf16.msra.mxu0 %v7188
    %7232 = vmatprep.subr.bf16.mxu0 0
    %7233 = vmatpush1.bf16.msra.mxu0 %v7189
    %7234 = vmatprep.subr.bf16.mxu0 0
    %7235 = vmatpush1.bf16.msra.mxu0 %v7190
    %7236 = vmatprep.subr.bf16.mxu0 0
    %7237 = vmatpush1.bf16.msra.mxu0 %v7191
    %7238 = vmatprep.subr.bf16.mxu0 0
    %7239 = vmatpush1.bf16.msra.mxu0 %v7192
    %7240 = vmatprep.subr.bf16.mxu0 0
    %7241 = vmatpush1.bf16.msra.mxu0 %v7193
    %7242 = vmatprep.mubr.bf16.mxu0 %v7111
    %7243 = vmatmul.mubr.bf16.gmra.mrb[0].mxu0 %v7110
    %v7244 = vpop.f32.mrb[0].mxu0
    %v7245 = vadd.f32 0.0, %v7244
    %v7246 = vpop.f32.mrb[0].mxu0
    %v7247 = vpop.f32.mrb[0].mxu0
    %v7248 = vpop.f32.mrb[0].mxu0
    %7249 = vdwg.mxu0
    %v7250 = vadd.f32 %v7075, %v7245
    %v7251 = vld [vmem:[%s1 + $0x15c0] sm:$0xf]
    %v7252 = vld [vmem:[%s1 + $0x15c8] sm:$0xf]
    %v7253 = vld [vmem:[%s1 + $0x15d0] sm:$0xf]
    %v7254 = vld [vmem:[%s1 + $0x15d8] sm:$0xf]
    %v7255 = vld [vmem:[%s1 + $0x15e0] sm:$0xf]
    %v7256 = vld [vmem:[%s1 + $0x15e8] sm:$0xf]
    %v7257 = vld [vmem:[%s1 + $0x15f0] sm:$0xf]
    %v7258 = vld [vmem:[%s1 + $0x15f8] sm:$0xf]
    %v7259 = vld [vmem:[%s1 + $0x1600] sm:$0xf]
    %v7260 = vld [vmem:[%s1 + $0x1608] sm:$0xf]
    %v7261 = vld [vmem:[%s1 + $0x1610] sm:$0xf]
    %v7262 = vld [vmem:[%s1 + $0x1618] sm:$0xf]
    %v7263 = vld [vmem:[%s1 + $0x1620] sm:$0xf]
    %v7264 = vld [vmem:[%s1 + $0x1628] sm:$0xf]
    %v7265 = vld [vmem:[%s1 + $0x1630] sm:$0xf]
    %v7266 = vld [vmem:[%s1 + $0x1638] sm:$0xf]
    %v7267 = vld [vmem:[%s1 + $0x1640] sm:$0xf]
    %v7268 = vld [vmem:[%s1 + $0x1648] sm:$0xf]
    %v7269 = vld [vmem:[%s1 + $0x1650] sm:$0xf]
    %v7270 = vld [vmem:[%s1 + $0x1658] sm:$0xf]
    %v7271 = vld [vmem:[%s1 + $0x1660] sm:$0xf]
    %v7272 = vld [vmem:[%s1 + $0x1668] sm:$0xf]
    %v7273 = vld [vmem:[%s1 + $0x1670] sm:$0xf]
    %v7274 = vld [vmem:[%s1 + $0x1678] sm:$0xf]
    %v7275 = vld [vmem:[%s1 + $0x1680] sm:$0xf]
    %v7276 = vld [vmem:[%s1 + $0x1688] sm:$0xf]
    %v7277 = vld [vmem:[%s1 + $0x1690] sm:$0xf]
    %v7278 = vld [vmem:[%s1 + $0x1698] sm:$0xf]
    %v7279 = vld [vmem:[%s1 + $0x16a0] sm:$0xf]
    %v7280 = vld [vmem:[%s1 + $0x16a8] sm:$0xf]
    %v7281 = vld [vmem:[%s1 + $0x16b0] sm:$0xf]
    %v7282 = vld [vmem:[%s1 + $0x16b8] sm:$0xf]
    %v7283 = vrot.slane %v6937, 2
    %v7284 = vrot.slane %v6938, 2
    %v7319 = vunpack.c.l.b16 %v7251
    %v7320 = vunpack.c.l.b16 %v7252
    %v7321 = vunpack.c.l.b16 %v7253
    %v7322 = vunpack.c.l.b16 %v7254
    %v7323 = vunpack.c.l.b16 %v7255
    %v7324 = vunpack.c.l.b16 %v7256
    %v7325 = vunpack.c.l.b16 %v7257
    %v7326 = vunpack.c.l.b16 %v7258
    %v7327 = vunpack.c.l.b16 %v7259
    %v7328 = vunpack.c.l.b16 %v7260
    %v7329 = vunpack.c.l.b16 %v7261
    %v7330 = vunpack.c.l.b16 %v7262
    %v7331 = vunpack.c.l.b16 %v7263
    %v7332 = vunpack.c.l.b16 %v7264
    %v7333 = vunpack.c.l.b16 %v7265
    %v7334 = vunpack.c.l.b16 %v7266
    %v7335 = vunpack.c.l.b16 %v7267
    %v7336 = vunpack.c.l.b16 %v7268
    %v7337 = vunpack.c.l.b16 %v7269
    %v7338 = vunpack.c.l.b16 %v7270
    %v7339 = vunpack.c.l.b16 %v7271
    %v7340 = vunpack.c.l.b16 %v7272
    %v7341 = vunpack.c.l.b16 %v7273
    %v7342 = vunpack.c.l.b16 %v7274
    %v7343 = vunpack.c.l.b16 %v7275
    %v7344 = vunpack.c.l.b16 %v7276
    %v7345 = vunpack.c.l.b16 %v7277
    %v7346 = vunpack.c.l.b16 %v7278
    %v7347 = vunpack.c.l.b16 %v7279
    %v7348 = vunpack.c.l.b16 %v7280
    %v7349 = vunpack.c.l.b16 %v7281
    %v7350 = vunpack.c.l.b16 %v7282
    %v7351 = vpack.c.b16 %v7320, %v7319
    %v7352 = vpack.c.b16 %v7322, %v7321
    %v7353 = vpack.c.b16 %v7324, %v7323
    %v7354 = vpack.c.b16 %v7326, %v7325
    %v7355 = vpack.c.b16 %v7328, %v7327
    %v7356 = vpack.c.b16 %v7330, %v7329
    %v7357 = vpack.c.b16 %v7332, %v7331
    %v7358 = vpack.c.b16 %v7334, %v7333
    %v7359 = vpack.c.b16 %v7336, %v7335
    %v7360 = vpack.c.b16 %v7338, %v7337
    %v7361 = vpack.c.b16 %v7340, %v7339
    %v7362 = vpack.c.b16 %v7342, %v7341
    %v7363 = vpack.c.b16 %v7344, %v7343
    %v7364 = vpack.c.b16 %v7346, %v7345
    %v7365 = vpack.c.b16 %v7348, %v7347
    %v7366 = vpack.c.b16 %v7350, %v7349
    %7383 = vmatprep.subr.bf16.mxu0 0
    %7384 = vmatpush1.bf16.msra.mxu0 %v7351
    %7385 = vmatprep.subr.bf16.mxu0 0
    %7386 = vmatpush1.bf16.msra.mxu0 %v7352
    %7387 = vmatprep.subr.bf16.mxu0 0
    %7388 = vmatpush1.bf16.msra.mxu0 %v7353
    %7389 = vmatprep.subr.bf16.mxu0 0
    %7390 = vmatpush1.bf16.msra.mxu0 %v7354
    %7391 = vmatprep.subr.bf16.mxu0 0
    %7392 = vmatpush1.bf16.msra.mxu0 %v7355
    %7393 = vmatprep.subr.bf16.mxu0 0
    %7394 = vmatpush1.bf16.msra.mxu0 %v7356
    %7395 = vmatprep.subr.bf16.mxu0 0
    %7396 = vmatpush1.bf16.msra.mxu0 %v7357
    %7397 = vmatprep.subr.bf16.mxu0 0
    %7398 = vmatpush1.bf16.msra.mxu0 %v7358
    %7399 = vmatprep.subr.bf16.mxu0 0
    %7400 = vmatpush1.bf16.msra.mxu0 %v7359
    %7401 = vmatprep.subr.bf16.mxu0 0
    %7402 = vmatpush1.bf16.msra.mxu0 %v7360
    %7403 = vmatprep.subr.bf16.mxu0 0
    %7404 = vmatpush1.bf16.msra.mxu0 %v7361
    %7405 = vmatprep.subr.bf16.mxu0 0
    %7406 = vmatpush1.bf16.msra.mxu0 %v7362
    %7407 = vmatprep.subr.bf16.mxu0 0
    %7408 = vmatpush1.bf16.msra.mxu0 %v7363
    %7409 = vmatprep.subr.bf16.mxu0 0
    %7410 = vmatpush1.bf16.msra.mxu0 %v7364
    %7411 = vmatprep.subr.bf16.mxu0 0
    %7412 = vmatpush1.bf16.msra.mxu0 %v7365
    %7413 = vmatprep.subr.bf16.mxu0 0
    %7414 = vmatpush1.bf16.msra.mxu0 %v7366
    %7415 = vmatprep.mubr.bf16.mxu0 %v7284
    %7416 = vmatmul.mubr.bf16.gmra.mrb[0].mxu0 %v7283
    %v7417 = vpop.f32.mrb[0].mxu0
    %v7418 = vadd.f32 0.0, %v7417
    %v7419 = vpop.f32.mrb[0].mxu0
    %v7420 = vpop.f32.mrb[0].mxu0
    %v7421 = vpop.f32.mrb[0].mxu0
    %7422 = vdwg.mxu0
    %v7423 = vadd.f32 %v7250, %v7418
    %v7424 = vmax.f32 %v7423, 0.0
    %v7425 = vld [vmem:[%s1 + $0x16c0] sm:$0xf]
    %v7426 = vld [vmem:[%s1 + $0x16c8] sm:$0xf]
    %v7427 = vld [vmem:[%s1 + $0x16d0] sm:$0xf]
    %v7428 = vld [vmem:[%s1 + $0x16d8] sm:$0xf]
    %v7429 = vld [vmem:[%s1 + $0x16e0] sm:$0xf]
    %v7430 = vld [vmem:[%s1 + $0x16e8] sm:$0xf]
    %v7431 = vld [vmem:[%s1 + $0x16f0] sm:$0xf]
    %v7432 = vld [vmem:[%s1 + $0x16f8] sm:$0xf]
    %v7433 = vld [vmem:[%s1 + $0x1700] sm:$0xf]
    %v7434 = vld [vmem:[%s1 + $0x1708] sm:$0xf]
    %v7435 = vld [vmem:[%s1 + $0x1710] sm:$0xf]
    %v7436 = vld [vmem:[%s1 + $0x1718] sm:$0xf]
    %v7437 = vld [vmem:[%s1 + $0x1720] sm:$0xf]
    %v7438 = vld [vmem:[%s1 + $0x1728] sm:$0xf]
    %v7439 = vld [vmem:[%s1 + $0x1730] sm:$0xf]
    %v7440 = vld [vmem:[%s1 + $0x1738] sm:$0xf]
    %v7441 = vpack.c.bf16 %v7424, %v7424
    %v7442 = vld [vmem:[%s3 + $0x6] ss:$0 sm:$0xff]
    %v7459 = vunpack.c.l.b16 %v7425
    %v7460 = vunpack.c.l.b16 %v7426
    %v7461 = vunpack.c.l.b16 %v7427
    %v7462 = vunpack.c.l.b16 %v7428
    %v7463 = vunpack.c.l.b16 %v7429
    %v7464 = vunpack.c.l.b16 %v7430
    %v7465 = vunpack.c.l.b16 %v7431
    %v7466 = vunpack.c.l.b16 %v7432
    %v7467 = vunpack.c.l.b16 %v7433
    %v7468 = vunpack.c.l.b16 %v7434
    %v7469 = vunpack.c.l.b16 %v7435
    %v7470 = vunpack.c.l.b16 %v7436
    %v7471 = vunpack.c.l.b16 %v7437
    %v7472 = vunpack.c.l.b16 %v7438
    %v7473 = vunpack.c.l.b16 %v7439
    %v7474 = vunpack.c.l.b16 %v7440
    %v7475 = vpack.c.b16 %v7460, %v7459
    %v7476 = vpack.c.b16 %v7462, %v7461
    %v7477 = vpack.c.b16 %v7464, %v7463
    %v7478 = vpack.c.b16 %v7466, %v7465
    %v7479 = vpack.c.b16 %v7468, %v7467
    %v7480 = vpack.c.b16 %v7470, %v7469
    %v7481 = vpack.c.b16 %v7472, %v7471
    %v7482 = vpack.c.b16 %v7474, %v7473
    %7491 = vmatprep.subr.bf16.mxu0 0
    %7492 = vmatpush1.bf16.msra.mxu0 %v7475
    %7493 = vmatprep.subr.bf16.mxu0 0
    %7494 = vmatpush1.bf16.msra.mxu0 %v7476
    %7495 = vmatprep.subr.bf16.mxu0 0
    %7496 = vmatpush1.bf16.msra.mxu0 %v7477
    %7497 = vmatprep.subr.bf16.mxu0 0
    %7498 = vmatpush1.bf16.msra.mxu0 %v7478
    %7499 = vmatprep.subr.bf16.mxu0 0
    %7500 = vmatpush1.bf16.msra.mxu0 %v7479
    %7501 = vmatprep.subr.bf16.mxu0 0
    %7502 = vmatpush1.bf16.msra.mxu0 %v7480
    %7503 = vmatprep.subr.bf16.mxu0 0
    %7504 = vmatpush1.bf16.msra.mxu0 %v7481
    %7505 = vmatprep.subr.bf16.mxu0 0
    %7506 = vmatpush1.bf16.msra.mxu0 %v7482
    %7507 = vmatprep.subr.bf16.mxu0 0
    %7508 = vmatpush1.bf16.msra.mxu0 0
    %7509 = vmatprep.subr.bf16.mxu0 0
    %7510 = vmatpush1.bf16.msra.mxu0 0
    %7511 = vmatprep.subr.bf16.mxu0 0
    %7512 = vmatpush1.bf16.msra.mxu0 0
    %7513 = vmatprep.subr.bf16.mxu0 0
    %7514 = vmatpush1.bf16.msra.mxu0 0
    %7515 = vmatprep.subr.bf16.mxu0 0
    %7516 = vmatpush1.bf16.msra.mxu0 0
    %7517 = vmatprep.subr.bf16.mxu0 0
    %7518 = vmatpush1.bf16.msra.mxu0 0
    %7519 = vmatprep.subr.bf16.mxu0 0
    %7520 = vmatpush1.bf16.msra.mxu0 0
    %7521 = vmatprep.subr.bf16.mxu0 0
    %7522 = vmatpush1.bf16.msra.mxu0 0
    %7523 = vmatprep.mubr.bf16.mxu0 0
    %7524 = vmatmul.mubr.bf16.gmra.mrb[0].mxu0 %v7441
    %v7525 = vpop.f32.mrb[0].mxu0
    %v7526 = vadd.f32 %v7442, %v7525
    %v7527 = vpop.f32.mrb[0].mxu0
    %v7528 = vpop.f32.mrb[0].mxu0
    %v7529 = vpop.f32.mrb[0].mxu0
    %7530 = vdwg.mxu0
    %v7531 = vmax.f32 %v7526, 0.0
    %v7532 = vld [vmem:[%s1 + $0x1740] sm:$0xf]
    %v7533 = vld [vmem:[%s1 + $0x1748] sm:$0xf]
    %v7534 = vld [vmem:[%s1 + $0x1750] sm:$0xf]
    %v7535 = vld [vmem:[%s1 + $0x1758] sm:$0xf]
    %v7536 = vld [vmem:[%s1 + $0x1760] sm:$0xf]
    %v7537 = vld [vmem:[%s1 + $0x1768] sm:$0xf]
    %v7538 = vld [vmem:[%s1 + $0x1770] sm:$0xf]
    %v7539 = vld [vmem:[%s1 + $0x1778] sm:$0xf]
    %v7540 = vld [vmem:[%s1 + $0x1780] sm:$0xf]
    %v7541 = vld [vmem:[%s1 + $0x1788] sm:$0xf]
    %v7542 = vld [vmem:[%s1 + $0x1790] sm:$0xf]
    %v7543 = vld [vmem:[%s1 + $0x1798] sm:$0xf]
    %v7544 = vld [vmem:[%s1 + $0x17a0] sm:$0xf]
    %v7545 = vld [vmem:[%s1 + $0x17a8] sm:$0xf]
    %v7546 = vld [vmem:[%s1 + $0x17b0] sm:$0xf]
    %v7547 = vld [vmem:[%s1 + $0x17b8] sm:$0xf]
    %v7548 = vpack.c.bf16 %v7531, %v7531
    %v7549 = vld [vmem:[%s3 + $0x7] ss:$0 sm:$0xff]
    %v7566 = vunpack.c.l.b16 %v7532
    %v7567 = vunpack.c.l.b16 %v7533
    %v7568 = vunpack.c.l.b16 %v7534
    %v7569 = vunpack.c.l.b16 %v7535
    %v7570 = vunpack.c.l.b16 %v7536
    %v7571 = vunpack.c.l.b16 %v7537
    %v7572 = vunpack.c.l.b16 %v7538
    %v7573 = vunpack.c.l.b16 %v7539
    %v7574 = vunpack.c.l.b16 %v7540
    %v7575 = vunpack.c.l.b16 %v7541
    %v7576 = vunpack.c.l.b16 %v7542
    %v7577 = vunpack.c.l.b16 %v7543
    %v7578 = vunpack.c.l.b16 %v7544
    %v7579 = vunpack.c.l.b16 %v7545
    %v7580 = vunpack.c.l.b16 %v7546
    %v7581 = vunpack.c.l.b16 %v7547
    %v7582 = vpack.c.b16 %v7567, %v7566
    %v7583 = vpack.c.b16 %v7569, %v7568
    %v7584 = vpack.c.b16 %v7571, %v7570
    %v7585 = vpack.c.b16 %v7573, %v7572
    %v7586 = vpack.c.b16 %v7575, %v7574
    %v7587 = vpack.c.b16 %v7577, %v7576
    %v7588 = vpack.c.b16 %v7579, %v7578
    %v7589 = vpack.c.b16 %v7581, %v7580
    %7598 = vmatprep.subr.bf16.mxu0 0
    %7599 = vmatpush1.bf16.msra.mxu0 %v7582
    %7600 = vmatprep.subr.bf16.mxu0 0
    %7601 = vmatpush1.bf16.msra.mxu0 %v7583
    %7602 = vmatprep.subr.bf16.mxu0 0
    %7603 = vmatpush1.bf16.msra.mxu0 %v7584
    %7604 = vmatprep.subr.bf16.mxu0 0
    %7605 = vmatpush1.bf16.msra.mxu0 %v7585
    %7606 = vmatprep.subr.bf16.mxu0 0
    %7607 = vmatpush1.bf16.msra.mxu0 %v7586
    %7608 = vmatprep.subr.bf16.mxu0 0
    %7609 = vmatpush1.bf16.msra.mxu0 %v7587
    %7610 = vmatprep.subr.bf16.mxu0 0
    %7611 = vmatpush1.bf16.msra.mxu0 %v7588
    %7612 = vmatprep.subr.bf16.mxu0 0
    %7613 = vmatpush1.bf16.msra.mxu0 %v7589
    %7614 = vmatprep.subr.bf16.mxu0 0
    %7615 = vmatpush1.bf16.msra.mxu0 0
    %7616 = vmatprep.subr.bf16.mxu0 0
    %7617 = vmatpush1.bf16.msra.mxu0 0
    %7618 = vmatprep.subr.bf16.mxu0 0
    %7619 = vmatpush1.bf16.msra.mxu0 0
    %7620 = vmatprep.subr.bf16.mxu0 0
    %7621 = vmatpush1.bf16.msra.mxu0 0
    %7622 = vmatprep.subr.bf16.mxu0 0
    %7623 = vmatpush1.bf16.msra.mxu0 0
    %7624 = vmatprep.subr.bf16.mxu0 0
    %7625 = vmatpush1.bf16.msra.mxu0 0
    %7626 = vmatprep.subr.bf16.mxu0 0
    %7627 = vmatpush1.bf16.msra.mxu0 0
    %7628 = vmatprep.subr.bf16.mxu0 0
    %7629 = vmatpush1.bf16.msra.mxu0 0
    %7630 = vmatprep.mubr.bf16.mxu0 0
    %7631 = vmatmul.mubr.bf16.gmra.mrb[0].mxu0 %v7548
    %v7632 = vpop.f32.mrb[0].mxu0
    %v7633 = vadd.f32 %v7549, %v7632
    %v7634 = vpop.f32.mrb[0].mxu0
    %v7635 = vpop.f32.mrb[0].mxu0
    %v7636 = vpop.f32.mrb[0].mxu0
    %7637 = vdwg.mxu0
    %7638 = vst [vmem:[#allocation2] sm:$0x3] %v7633
    // Predicated region
    $region18: #{forward.1} parent=1 // pred_check
      _
    $region19: #{forward.1} parent=1 // pred_check_branch
      %7640 = sbr.rel (0) target = $region21
    $region20: #{forward.1} parent=1 // pred_region
      _
    $region21: #{forward.1} parent=1 // pred_fallthru
      _
    // Predicated region
    $region22: #{forward.1} parent=1 // pred_check
      _
    $region23: #{forward.1} parent=1 // pred_check_branch
      %7642 = sbr.rel (0) target = $region25
    $region24: #{forward.1} parent=1 // pred_region
      %s7644 = ssub.s32 32, 32
      %7645 = vsyncadd [#allocation3], %s7644
      %s7647 = sshll.u32 [#allocation2], 4
      %s7648 = int_to_ptr.vmem [resolvable:$true] %s7647
      %7650 = dma.vmem_to_hbm [thread:$0]  %s7648, 32, %s5, [#allocation3]
    $region25: #{forward.1} parent=1 // pred_fallthru
      _
    // Predicated region
    $region26: #{forward.1} parent=1 // pred_check
      _
    $region27: #{forward.1} parent=1 // pred_check_branch
      %7652 = sbr.rel (0) target = $region29
    $region28: #{forward.1} parent=1 // pred_region
      _
    $region29: #{forward.1} parent=1 // pred_fallthru
      _
    // Predicated region
    $region30: #{forward.1} parent=1 // pred_check
      _
    $region31: #{forward.1} parent=1 // pred_check_branch
      %7654 = sbr.rel (0) target = $region33
    $region32: #{forward.1} parent=1 // pred_region
      %7655 = dma.done [#allocation3], 32
    $region33: #{forward.1} parent=1 // pred_fallthru
      _
    %7656 = vsyncpa [#allocation3], 1

</llo_original>
